<compile_context>
chip_gen: v6e
topology: v6e:2x2x1
jax: 0.10.0
libtpu: 0.0.40
codegen_flags: <defaults>
</compile_context>

<pallas_src>
import jax
import jax.numpy as jnp
from jax import lax
from jax.experimental import pallas as pl
from jax.experimental.pallas import tpu as pltpu


# ----------------------------------------------------------------------------
# Fused forward kernel: one batch block per grid step.
# ----------------------------------------------------------------------------
def _fused_forward_kernel(x_ref, w1_ref, b1_ref, w2_ref, b2_ref,
                          wf_ref, bf_ref, wc_ref, bc_ref, o_ref):
    B, H1, _ = x_ref.shape
    K = w1_ref.shape[0]
    Ho1 = H1 - K + 1            # 24
    Hp1 = Ho1 // 2              # 12
    Ho2 = Hp1 - K + 1           # 8
    Hp2 = Ho2 // 2              # 4

    def conv_bias_relu_pool(x3, w_ref, b_row, Ho):
        """x3: (B, Hin, Lin) bf16 slab, lanes ordered (w, cin).
        w_ref: (K, Lin, Lout) banded block-Toeplitz weights whose output lanes
        are pre-permuted to (j, wp, cout).  Returns (B*(Ho//2), Lout//2) bf16."""
        Lin = x3.shape[-1]
        Lout = w_ref.shape[-1]
        acc = None
        for dy in range(K):                           # K MXU matmuls, f32 accumulation
            xd = x3[:, dy:dy + Ho, :].reshape(B * Ho, Lin)
            part = jnp.dot(xd, w_ref[dy], preferred_element_type=jnp.float32)
            acc = part if acc is None else acc + part
        acc = jnp.maximum(acc + b_row, 0.0)           # bias + ReLU (f32, lane-dense)
        half = Lout // 2
        # 2x2 stride-2 max pool.  W-pool is a plain lane-half max thanks to the
        # (j, wp, c) output-lane permutation; H-pool merges row pairs into
        # lanes and takes another lane-half max.  Pool carried in bf16.
        wmax = jnp.maximum(acc[:, :half], acc[:, half:]).astype(jnp.bfloat16)
        hh = wmax.reshape(B * (Ho // 2), Lout)        # rows (b, hp), lanes (i, wp, c)
        return jnp.maximum(hh[:, :half], hh[:, half:])

    x = x_ref[...]                                             # (B, 28, W*Cin) bf16
    p1 = conv_bias_relu_pool(x, w1_ref, b1_ref[...], Ho1)      # (B*12, 12*32) bf16
    p1 = p1.reshape(B, Hp1, p1.shape[-1])
    p2 = conv_bias_relu_pool(p1, w2_ref, b2_ref[...], Ho2)     # (B*4, 4*64) bf16

    # NHWC flatten order (hp, wp, c); fc1 weight columns were pre-permuted to match.
    feats_in = p2.reshape(B, Hp2 * p2.shape[-1])               # (B, 1024) bf16
    h = jnp.dot(feats_in, wf_ref[...], preferred_element_type=jnp.float32)
    h = jnp.maximum(h + bf_ref[...], 0.0).astype(jnp.bfloat16)  # features = relu(fc1(x))
    logits = jnp.dot(h, wc_ref[...], preferred_element_type=jnp.float32) + bc_ref[...]
    o_ref[...] = logits.reshape(1, *o_ref.shape[1:])            # (1, B, 128) f32


def mnist_cnn_forward(x_nchw, pp, block_batch=32):
    """x_nchw: (N, Cin, 28, 28); pp: dict from prepare_pallas_params."""
    N, C0, H, W = x_nchw.shape
    K, WC0, L1out = pp["conv1_w"].shape
    assert WC0 == W * C0, "input width/channels inconsistent with prepared params"
    L2in, L2out = pp["conv2_w"].shape[1:]
    Din, Dh = pp["fc1_w"].shape
    Dpad = pp["cls_w"].shape[1]                       # classifier padded to 128 lanes

    # Lane-dense bf16 input slab: rows (n, h), lanes (w, cin).
    x = jnp.transpose(x_nchw, (0, 2, 3, 1)).reshape(N, H, W * C0).astype(jnp.bfloat16)

    # Batch block: large enough to amortize per-step overhead, but always
    # >= 2 grid steps when N >= 2 (v7x has 2 TensorCores on the parallel axis).
    bb = max(1, min(block_batch, -(-N // 2)))
    nblk = -(-N // bb)
    Npad = nblk * bb
    if Npad != N:
        x = jnp.pad(x, ((0, Npad - N), (0, 0), (0, 0)))

    out = pl.pallas_call(
        _fused_forward_kernel,
        out_shape=jax.ShapeDtypeStruct((nblk, bb, Dpad), jnp.float32),
        grid=(nblk,),
        in_specs=[
            pl.BlockSpec((bb, H, W * C0), lambda n: (n, 0, 0)),     # x slab
            pl.BlockSpec((K, WC0, L1out), lambda n: (0, 0, 0)),     # conv1 Toeplitz
            pl.BlockSpec((1, L1out), lambda n: (0, 0)),             # conv1 bias (tiled)
            pl.BlockSpec((K, L2in, L2out), lambda n: (0, 0, 0)),    # conv2 Toeplitz
            pl.BlockSpec((1, L2out), lambda n: (0, 0)),             # conv2 bias (tiled)
            pl.BlockSpec((Din, Dh), lambda n: (0, 0)),              # fc1 weight
            pl.BlockSpec((1, Dh), lambda n: (0, 0)),                # fc1 bias
            pl.BlockSpec((Dh, Dpad), lambda n: (0, 0)),             # classifier weight
            pl.BlockSpec((1, Dpad), lambda n: (0, 0)),              # classifier bias
        ],
        out_specs=pl.BlockSpec((1, bb, Dpad), lambda n: (n, 0, 0)),
        compiler_params=pltpu.CompilerParams(
            dimension_semantics=("parallel",),
            vmem_limit_bytes=40 * 1024 * 1024,
        ),
    )(x, pp["conv1_w"], pp["conv1_b"], pp["conv2_w"], pp["conv2_b"],
      pp["fc1_w"], pp["fc1_b"], pp["cls_w"], pp["cls_b"])

    return out.reshape(Npad, Dpad)[:N, :pp["num_classes"]]


# ----------------------------------------------------------------------------
# Parameters: PyTorch layouts -> one-time conversion to fused-kernel layouts.
# ----------------------------------------------------------------------------
def init_params(key, dim_in=3, num_classes=10):
    ks = jax.random.split(key, 8)

    def init(k, shape, scale):
        return scale * jax.random.normal(k, shape, jnp.float32)

    return dict(
        conv1_w=init(ks[0], (32, dim_in, 5, 5), 0.05),    # torch (Cout, Cin, K, K)
        conv1_b=init(ks[1], (32,), 0.05),
        conv2_w=init(ks[2], (64, 32, 5, 5), 0.02),
        conv2_b=init(ks[3], (64,), 0.02),
        fc1_w=init(ks[4], (512, 1024), 0.02),             # torch Linear (out, in)
        fc1_b=init(ks[5], (512,), 0.02),
        cls_w=init(ks[6], (num_classes, 512), 0.05),
        cls_b=init(ks[7], (num_classes,), 0.05),
    )


def prepare_pallas_params(p, H=28, W=28):
    """One-time conversion of torch-layout params into fused-kernel layouts."""
    def banded_toeplitz(w_pt, W_in):
        # (Cout, Cin, K, K) -> (K, W_in*Cin, Wo*Cout) banded block-Toeplitz
        # matrices (one per kernel row dy), output lanes permuted to
        # (j, wp, cout) so the in-kernel W-pool is a plain lane-half max.
        Cout, Cin, K, _ = w_pt.shape
        Wo = W_in - K + 1
        Wp = Wo // 2
        wt = jnp.transpose(w_pt, (2, 3, 1, 0)).astype(jnp.float32)   # (dy, dx, cin, cout)
        sel = (jnp.arange(W_in)[:, None, None]
               == jnp.arange(Wo)[None, :, None] + jnp.arange(K)[None, None, :]
               ).astype(jnp.float32)                                  # (w, wo, dx)
        big = jnp.einsum("wod,ydic->ywioc", sel, wt)                  # (dy, w, cin, wo, cout)
        big = big.reshape(K, W_in * Cin, Wo * Cout)
        wo_perm = (2 * jnp.arange(Wp)[None, :]
                   + jnp.arange(2)[:, None]).reshape(-1)              # new (j, wp) -> old wo
        lane_perm = (wo_perm[:, None] * Cout + jnp.arange(Cout)[None, :]).reshape(-1)
        return big[:, :, lane_perm].astype(jnp.bfloat16)

    def tiled_bias(b, Wo):
        return jnp.tile(b.astype(jnp.float32), Wo)[None, :]

    C2 = p["conv2_w"].shape[0]                            # 64
    K = p["conv1_w"].shape[2]                             # 5
    Wo1 = W - K + 1                                       # 24
    Wp1 = Wo1 // 2                                        # 12
    Wo2 = Wp1 - K + 1                                     # 8
    Wp2 = Wo2 // 2                                        # 4
    Hp2 = ((H - K + 1) // 2 - K + 1) // 2                 # 4

    # fc1: permute input columns from torch's NCHW flatten (c2, h, w) to the
    # NHWC flatten (h, w, c2) order produced by the conv pipeline.
    Dh, Din = p["fc1_w"].shape                            # (512, 1024)
    assert Din == C2 * Hp2 * Wp2
    w_fc1 = (p["fc1_w"].reshape(Dh, C2, Hp2, Wp2)
             .transpose(2, 3, 1, 0)
             .reshape(Din, Dh)
             .astype(jnp.bfloat16))

    # classifier: pad outputs to 128 lanes for unmasked stores.
    nc = p["cls_w"].shape[0]
    Dpad = 128
    w_cls = jnp.zeros((Dh, Dpad), jnp.bfloat16).at[:, :nc].set(
        p["cls_w"].T.astype(jnp.bfloat16))
    b_cls = jnp.zeros((1, Dpad), jnp.float32).at[0, :nc].set(
        p["cls_b"].astype(jnp.float32))

    return dict(
        conv1_w=banded_toeplitz(p["conv1_w"], W),         # (5,  84, 768) bf16
        conv1_b=tiled_bias(p["conv1_b"], Wo1),            # (1, 768) f32
        conv2_w=banded_toeplitz(p["conv2_w"], Wp1),       # (5, 384, 512) bf16
        conv2_b=tiled_bias(p["conv2_b"], Wo2),            # (1, 512) f32
        fc1_w=w_fc1, fc1_b=p["fc1_b"][None, :].astype(jnp.float32),
        cls_w=w_cls, cls_b=b_cls,
        num_classes=nc,
    )


# Pure-JAX reference (same math, f32) used to sanity-check the Pallas result.
def reference_forward(x_nchw, p):
    x = jnp.transpose(x_nchw, (0, 2, 3, 1)).astype(jnp.float32)

    def block(x, w_pt, b):
        w = jnp.transpose(w_pt, (2, 3, 1, 0))             # HWIO
        y = lax.conv_general_dilated(x, w, (1, 1), "VALID",
                                     dimension_numbers=("NHWC", "HWIO", "NHWC"),
                                     precision=lax.Precision.HIGHEST)
        y = jnp.maximum(y + b[None, None, None, :], 0.0)
        return lax.reduce_window(y, -jnp.inf, lax.max,
                                 (1, 2, 2, 1), (1, 2, 2, 1), "VALID")

    x = block(x, p["conv1_w"], p["conv1_b"])
    x = block(x, p["conv2_w"], p["conv2_b"])
    x = jnp.transpose(x, (0, 3, 1, 2)).reshape(x.shape[0], -1)     # torch flatten order
    h = jnp.maximum(jnp.dot(x, p["fc1_w"].T, precision=lax.Precision.HIGHEST)
                    + p["fc1_b"], 0.0)
    return jnp.dot(h, p["cls_w"].T, precision=lax.Precision.HIGHEST) + p["cls_b"]


if __name__ == "__main__":
    key = jax.random.PRNGKey(0)
    kx, kp = jax.random.split(key)
    # 28x28 spatial input is implied by fc1.in_features = 1024 = 64 * 4 * 4.
    x = jax.random.normal(kx, (2, 3, 28, 28), jnp.float32)
    params = init_params(kp, dim_in=3, num_classes=10)
    pparams = prepare_pallas_params(params)

    out = jax.block_until_ready(mnist_cnn_forward(x, pparams))
    ref = reference_forward(x, params)

    assert out.shape == (2, 10), out.shape
    rel_err = jnp.max(jnp.abs(out - ref)) / (jnp.max(jnp.abs(ref)) + 1e-6)
    assert float(rel_err) < 2e-2, f"mismatch vs reference: rel_err={float(rel_err)}"
    print("KERNEL_OK")
</pallas_src>

<mosaic_0001>
module attributes {stable_mosaic.version = 11 : i64} {
  func.func @_fused_forward_kernel(%arg0: i32, %arg1: memref<1x28x84xbf16, #tpu.memory_space<vmem>>, %arg2: memref<5x84x768xbf16, #tpu.memory_space<vmem>>, %arg3: memref<1x768xf32, #tpu.memory_space<vmem>>, %arg4: memref<5x384x512xbf16, #tpu.memory_space<vmem>>, %arg5: memref<1x512xf32, #tpu.memory_space<vmem>>, %arg6: memref<1024x512xbf16, #tpu.memory_space<vmem>>, %arg7: memref<1x512xf32, #tpu.memory_space<vmem>>, %arg8: memref<512x128xbf16, #tpu.memory_space<vmem>>, %arg9: memref<1x128xf32, #tpu.memory_space<vmem>>, %arg10: memref<1x1x128xf32, #tpu.memory_space<vmem>>) attributes {dimension_semantics = [#tpu.dimension_semantics<parallel>], iteration_bounds = array<i64: 2>, scalar_prefetch = 0 : i64, scratch_operands = 0 : i64, tpu.core_type = #tpu.core_type<tc>, window_params = [{transform_indices = @transform_0, window_bounds = array<i64: 1, 28, 84>}, {pipeline_mode = #tpu.pipeline_mode<synchronous>, transform_indices = @transform_1, window_bounds = array<i64: 5, 84, 768>}, {pipeline_mode = #tpu.pipeline_mode<synchronous>, transform_indices = @transform_2, window_bounds = array<i64: 1, 768>}, {pipeline_mode = #tpu.pipeline_mode<synchronous>, transform_indices = @transform_3, window_bounds = array<i64: 5, 384, 512>}, {pipeline_mode = #tpu.pipeline_mode<synchronous>, transform_indices = @transform_4, window_bounds = array<i64: 1, 512>}, {pipeline_mode = #tpu.pipeline_mode<synchronous>, transform_indices = @transform_5, window_bounds = array<i64: 1024, 512>}, {pipeline_mode = #tpu.pipeline_mode<synchronous>, transform_indices = @transform_6, window_bounds = array<i64: 1, 512>}, {pipeline_mode = #tpu.pipeline_mode<synchronous>, transform_indices = @transform_7, window_bounds = array<i64: 512, 128>}, {pipeline_mode = #tpu.pipeline_mode<synchronous>, transform_indices = @transform_8, window_bounds = array<i64: 1, 128>}, {transform_indices = @transform_9, window_bounds = array<i64: 1, 1, 128>}]} {
    %c0 = arith.constant 0 : index
    %c0_0 = arith.constant 0 : index
    %c0_1 = arith.constant 0 : index
    %0 = vector.load %arg1[%c0, %c0_0, %c0_1] : memref<1x28x84xbf16, #tpu.memory_space<vmem>>, vector<1x28x84xbf16>
    %c0_2 = arith.constant 0 : index
    %c0_3 = arith.constant 0 : index
    %1 = vector.load %arg3[%c0_2, %c0_3] : memref<1x768xf32, #tpu.memory_space<vmem>>, vector<1x768xf32>
    %2 = vector.extract_strided_slice %0 {offsets = [0, 0, 0], sizes = [1, 24, 84], strides = [1, 1, 1]} : vector<1x28x84xbf16> to vector<1x24x84xbf16>
    %3 = vector.shape_cast %2 : vector<1x24x84xbf16> to vector<24x84xbf16>
    %c0_4 = arith.constant 0 : index
    %c0_5 = arith.constant 0 : index
    %c0_6 = arith.constant 0 : index
    %4 = vector.load %arg2[%c0_4, %c0_5, %c0_6] : memref<5x84x768xbf16, #tpu.memory_space<vmem>>, vector<1x84x768xbf16>
    %5 = vector.shape_cast %4 : vector<1x84x768xbf16> to vector<84x768xbf16>
    %cst = arith.constant dense<0.000000e+00> : vector<24x768xf32>
    %6 = tpu.matmul %3, %5, %cst {dimension_numbers = #tpu.dot_dimension_numbers<[1], [0], [0], [1], [0, 0, 1, 1], [], []>} : vector<24x84xbf16>, vector<84x768xbf16>, vector<24x768xf32> -> vector<24x768xf32>
    %7 = vector.extract_strided_slice %0 {offsets = [0, 1, 0], sizes = [1, 24, 84], strides = [1, 1, 1]} : vector<1x28x84xbf16> to vector<1x24x84xbf16>
    %8 = vector.shape_cast %7 : vector<1x24x84xbf16> to vector<24x84xbf16>
    %c1 = arith.constant 1 : index
    %c0_7 = arith.constant 0 : index
    %c0_8 = arith.constant 0 : index
    %9 = vector.load %arg2[%c1, %c0_7, %c0_8] : memref<5x84x768xbf16, #tpu.memory_space<vmem>>, vector<1x84x768xbf16>
    %10 = vector.shape_cast %9 : vector<1x84x768xbf16> to vector<84x768xbf16>
    %cst_9 = arith.constant dense<0.000000e+00> : vector<24x768xf32>
    %11 = tpu.matmul %8, %10, %cst_9 {dimension_numbers = #tpu.dot_dimension_numbers<[1], [0], [0], [1], [0, 0, 1, 1], [], []>} : vector<24x84xbf16>, vector<84x768xbf16>, vector<24x768xf32> -> vector<24x768xf32>
    %12 = arith.addf %6, %11 : vector<24x768xf32>
    %13 = vector.extract_strided_slice %0 {offsets = [0, 2, 0], sizes = [1, 24, 84], strides = [1, 1, 1]} : vector<1x28x84xbf16> to vector<1x24x84xbf16>
    %14 = vector.shape_cast %13 : vector<1x24x84xbf16> to vector<24x84xbf16>
    %c2 = arith.constant 2 : index
    %c0_10 = arith.constant 0 : index
    %c0_11 = arith.constant 0 : index
    %15 = vector.load %arg2[%c2, %c0_10, %c0_11] : memref<5x84x768xbf16, #tpu.memory_space<vmem>>, vector<1x84x768xbf16>
    %16 = vector.shape_cast %15 : vector<1x84x768xbf16> to vector<84x768xbf16>
    %cst_12 = arith.constant dense<0.000000e+00> : vector<24x768xf32>
    %17 = tpu.matmul %14, %16, %cst_12 {dimension_numbers = #tpu.dot_dimension_numbers<[1], [0], [0], [1], [0, 0, 1, 1], [], []>} : vector<24x84xbf16>, vector<84x768xbf16>, vector<24x768xf32> -> vector<24x768xf32>
    %18 = arith.addf %12, %17 : vector<24x768xf32>
    %19 = vector.extract_strided_slice %0 {offsets = [0, 3, 0], sizes = [1, 24, 84], strides = [1, 1, 1]} : vector<1x28x84xbf16> to vector<1x24x84xbf16>
    %20 = vector.shape_cast %19 : vector<1x24x84xbf16> to vector<24x84xbf16>
    %c3 = arith.constant 3 : index
    %c0_13 = arith.constant 0 : index
    %c0_14 = arith.constant 0 : index
    %21 = vector.load %arg2[%c3, %c0_13, %c0_14] : memref<5x84x768xbf16, #tpu.memory_space<vmem>>, vector<1x84x768xbf16>
    %22 = vector.shape_cast %21 : vector<1x84x768xbf16> to vector<84x768xbf16>
    %cst_15 = arith.constant dense<0.000000e+00> : vector<24x768xf32>
    %23 = tpu.matmul %20, %22, %cst_15 {dimension_numbers = #tpu.dot_dimension_numbers<[1], [0], [0], [1], [0, 0, 1, 1], [], []>} : vector<24x84xbf16>, vector<84x768xbf16>, vector<24x768xf32> -> vector<24x768xf32>
    %24 = arith.addf %18, %23 : vector<24x768xf32>
    %25 = vector.extract_strided_slice %0 {offsets = [0, 4, 0], sizes = [1, 24, 84], strides = [1, 1, 1]} : vector<1x28x84xbf16> to vector<1x24x84xbf16>
    %26 = vector.shape_cast %25 : vector<1x24x84xbf16> to vector<24x84xbf16>
    %c4 = arith.constant 4 : index
    %c0_16 = arith.constant 0 : index
    %c0_17 = arith.constant 0 : index
    %27 = vector.load %arg2[%c4, %c0_16, %c0_17] : memref<5x84x768xbf16, #tpu.memory_space<vmem>>, vector<1x84x768xbf16>
    %28 = vector.shape_cast %27 : vector<1x84x768xbf16> to vector<84x768xbf16>
    %cst_18 = arith.constant dense<0.000000e+00> : vector<24x768xf32>
    %29 = tpu.matmul %26, %28, %cst_18 {dimension_numbers = #tpu.dot_dimension_numbers<[1], [0], [0], [1], [0, 0, 1, 1], [], []>} : vector<24x84xbf16>, vector<84x768xbf16>, vector<24x768xf32> -> vector<24x768xf32>
    %30 = arith.addf %24, %29 : vector<24x768xf32>
    %31 = vector.broadcast %1 : vector<1x768xf32> to vector<24x768xf32>
    %32 = arith.addf %30, %31 : vector<24x768xf32>
    %cst_19 = arith.constant 0.000000e+00 : f32
    %33 = vector.broadcast %cst_19 : f32 to vector<24x768xf32>
    %34 = arith.maximumf %32, %33 : vector<24x768xf32>
    %35 = vector.extract_strided_slice %34 {offsets = [0, 0], sizes = [24, 384], strides = [1, 1]} : vector<24x768xf32> to vector<24x384xf32>
    %36 = vector.extract_strided_slice %34 {offsets = [0, 384], sizes = [24, 384], strides = [1, 1]} : vector<24x768xf32> to vector<24x384xf32>
    %37 = arith.maximumf %35, %36 : vector<24x384xf32>
    %38 = arith.truncf %37 : vector<24x384xf32> to vector<24x384xbf16>
    %39 = vector.shape_cast %38 : vector<24x384xbf16> to vector<12x768xbf16>
    %40 = vector.extract_strided_slice %39 {offsets = [0, 0], sizes = [12, 384], strides = [1, 1]} : vector<12x768xbf16> to vector<12x384xbf16>
    %41 = vector.extract_strided_slice %39 {offsets = [0, 384], sizes = [12, 384], strides = [1, 1]} : vector<12x768xbf16> to vector<12x384xbf16>
    %42 = arith.maximumf %40, %41 : vector<12x384xbf16>
    %43 = vector.shape_cast %42 : vector<12x384xbf16> to vector<1x12x384xbf16>
    %c0_20 = arith.constant 0 : index
    %c0_21 = arith.constant 0 : index
    %44 = vector.load %arg5[%c0_20, %c0_21] : memref<1x512xf32, #tpu.memory_space<vmem>>, vector<1x512xf32>
    %45 = vector.extract_strided_slice %43 {offsets = [0, 0, 0], sizes = [1, 8, 384], strides = [1, 1, 1]} : vector<1x12x384xbf16> to vector<1x8x384xbf16>
    %46 = vector.shape_cast %45 : vector<1x8x384xbf16> to vector<8x384xbf16>
    %c0_22 = arith.constant 0 : index
    %c0_23 = arith.constant 0 : index
    %c0_24 = arith.constant 0 : index
    %47 = vector.load %arg4[%c0_22, %c0_23, %c0_24] : memref<5x384x512xbf16, #tpu.memory_space<vmem>>, vector<1x384x512xbf16>
    %48 = vector.shape_cast %47 : vector<1x384x512xbf16> to vector<384x512xbf16>
    %cst_25 = arith.constant dense<0.000000e+00> : vector<8x512xf32>
    %49 = tpu.matmul %46, %48, %cst_25 {dimension_numbers = #tpu.dot_dimension_numbers<[1], [0], [0], [1], [0, 0, 1, 1], [], []>} : vector<8x384xbf16>, vector<384x512xbf16>, vector<8x512xf32> -> vector<8x512xf32>
    %50 = vector.extract_strided_slice %43 {offsets = [0, 1, 0], sizes = [1, 8, 384], strides = [1, 1, 1]} : vector<1x12x384xbf16> to vector<1x8x384xbf16>
    %51 = vector.shape_cast %50 : vector<1x8x384xbf16> to vector<8x384xbf16>
    %c1_26 = arith.constant 1 : index
    %c0_27 = arith.constant 0 : index
    %c0_28 = arith.constant 0 : index
    %52 = vector.load %arg4[%c1_26, %c0_27, %c0_28] : memref<5x384x512xbf16, #tpu.memory_space<vmem>>, vector<1x384x512xbf16>
    %53 = vector.shape_cast %52 : vector<1x384x512xbf16> to vector<384x512xbf16>
    %cst_29 = arith.constant dense<0.000000e+00> : vector<8x512xf32>
    %54 = tpu.matmul %51, %53, %cst_29 {dimension_numbers = #tpu.dot_dimension_numbers<[1], [0], [0], [1], [0, 0, 1, 1], [], []>} : vector<8x384xbf16>, vector<384x512xbf16>, vector<8x512xf32> -> vector<8x512xf32>
    %55 = arith.addf %49, %54 : vector<8x512xf32>
    %56 = vector.extract_strided_slice %43 {offsets = [0, 2, 0], sizes = [1, 8, 384], strides = [1, 1, 1]} : vector<1x12x384xbf16> to vector<1x8x384xbf16>
    %57 = vector.shape_cast %56 : vector<1x8x384xbf16> to vector<8x384xbf16>
    %c2_30 = arith.constant 2 : index
    %c0_31 = arith.constant 0 : index
    %c0_32 = arith.constant 0 : index
    %58 = vector.load %arg4[%c2_30, %c0_31, %c0_32] : memref<5x384x512xbf16, #tpu.memory_space<vmem>>, vector<1x384x512xbf16>
    %59 = vector.shape_cast %58 : vector<1x384x512xbf16> to vector<384x512xbf16>
    %cst_33 = arith.constant dense<0.000000e+00> : vector<8x512xf32>
    %60 = tpu.matmul %57, %59, %cst_33 {dimension_numbers = #tpu.dot_dimension_numbers<[1], [0], [0], [1], [0, 0, 1, 1], [], []>} : vector<8x384xbf16>, vector<384x512xbf16>, vector<8x512xf32> -> vector<8x512xf32>
    %61 = arith.addf %55, %60 : vector<8x512xf32>
    %62 = vector.extract_strided_slice %43 {offsets = [0, 3, 0], sizes = [1, 8, 384], strides = [1, 1, 1]} : vector<1x12x384xbf16> to vector<1x8x384xbf16>
    %63 = vector.shape_cast %62 : vector<1x8x384xbf16> to vector<8x384xbf16>
    %c3_34 = arith.constant 3 : index
    %c0_35 = arith.constant 0 : index
    %c0_36 = arith.constant 0 : index
    %64 = vector.load %arg4[%c3_34, %c0_35, %c0_36] : memref<5x384x512xbf16, #tpu.memory_space<vmem>>, vector<1x384x512xbf16>
    %65 = vector.shape_cast %64 : vector<1x384x512xbf16> to vector<384x512xbf16>
    %cst_37 = arith.constant dense<0.000000e+00> : vector<8x512xf32>
    %66 = tpu.matmul %63, %65, %cst_37 {dimension_numbers = #tpu.dot_dimension_numbers<[1], [0], [0], [1], [0, 0, 1, 1], [], []>} : vector<8x384xbf16>, vector<384x512xbf16>, vector<8x512xf32> -> vector<8x512xf32>
    %67 = arith.addf %61, %66 : vector<8x512xf32>
    %68 = vector.extract_strided_slice %43 {offsets = [0, 4, 0], sizes = [1, 8, 384], strides = [1, 1, 1]} : vector<1x12x384xbf16> to vector<1x8x384xbf16>
    %69 = vector.shape_cast %68 : vector<1x8x384xbf16> to vector<8x384xbf16>
    %c4_38 = arith.constant 4 : index
    %c0_39 = arith.constant 0 : index
    %c0_40 = arith.constant 0 : index
    %70 = vector.load %arg4[%c4_38, %c0_39, %c0_40] : memref<5x384x512xbf16, #tpu.memory_space<vmem>>, vector<1x384x512xbf16>
    %71 = vector.shape_cast %70 : vector<1x384x512xbf16> to vector<384x512xbf16>
    %cst_41 = arith.constant dense<0.000000e+00> : vector<8x512xf32>
    %72 = tpu.matmul %69, %71, %cst_41 {dimension_numbers = #tpu.dot_dimension_numbers<[1], [0], [0], [1], [0, 0, 1, 1], [], []>} : vector<8x384xbf16>, vector<384x512xbf16>, vector<8x512xf32> -> vector<8x512xf32>
    %73 = arith.addf %67, %72 : vector<8x512xf32>
    %74 = vector.broadcast %44 : vector<1x512xf32> to vector<8x512xf32>
    %75 = arith.addf %73, %74 : vector<8x512xf32>
    %cst_42 = arith.constant 0.000000e+00 : f32
    %76 = vector.broadcast %cst_42 : f32 to vector<8x512xf32>
    %77 = arith.maximumf %75, %76 : vector<8x512xf32>
    %78 = vector.extract_strided_slice %77 {offsets = [0, 0], sizes = [8, 256], strides = [1, 1]} : vector<8x512xf32> to vector<8x256xf32>
    %79 = vector.extract_strided_slice %77 {offsets = [0, 256], sizes = [8, 256], strides = [1, 1]} : vector<8x512xf32> to vector<8x256xf32>
    %80 = arith.maximumf %78, %79 : vector<8x256xf32>
    %81 = arith.truncf %80 : vector<8x256xf32> to vector<8x256xbf16>
    %82 = vector.shape_cast %81 : vector<8x256xbf16> to vector<4x512xbf16>
    %83 = vector.extract_strided_slice %82 {offsets = [0, 0], sizes = [4, 256], strides = [1, 1]} : vector<4x512xbf16> to vector<4x256xbf16>
    %84 = vector.extract_strided_slice %82 {offsets = [0, 256], sizes = [4, 256], strides = [1, 1]} : vector<4x512xbf16> to vector<4x256xbf16>
    %85 = arith.maximumf %83, %84 : vector<4x256xbf16>
    %86 = vector.shape_cast %85 : vector<4x256xbf16> to vector<1x1024xbf16>
    %c0_43 = arith.constant 0 : index
    %c0_44 = arith.constant 0 : index
    %87 = vector.load %arg6[%c0_43, %c0_44] : memref<1024x512xbf16, #tpu.memory_space<vmem>>, vector<1024x512xbf16>
    %cst_45 = arith.constant dense<0.000000e+00> : vector<1x512xf32>
    %88 = tpu.matmul %86, %87, %cst_45 {dimension_numbers = #tpu.dot_dimension_numbers<[1], [0], [0], [1], [0, 0, 1, 1], [], []>} : vector<1x1024xbf16>, vector<1024x512xbf16>, vector<1x512xf32> -> vector<1x512xf32>
    %c0_46 = arith.constant 0 : index
    %c0_47 = arith.constant 0 : index
    %89 = vector.load %arg7[%c0_46, %c0_47] : memref<1x512xf32, #tpu.memory_space<vmem>>, vector<1x512xf32>
    %90 = arith.addf %88, %89 : vector<1x512xf32>
    %cst_48 = arith.constant 0.000000e+00 : f32
    %91 = vector.broadcast %cst_48 : f32 to vector<1x512xf32>
    %92 = arith.maximumf %90, %91 : vector<1x512xf32>
    %93 = arith.truncf %92 : vector<1x512xf32> to vector<1x512xbf16>
    %c0_49 = arith.constant 0 : index
    %c0_50 = arith.constant 0 : index
    %94 = vector.load %arg8[%c0_49, %c0_50] : memref<512x128xbf16, #tpu.memory_space<vmem>>, vector<512x128xbf16>
    %cst_51 = arith.constant dense<0.000000e+00> : vector<1x128xf32>
    %95 = tpu.matmul %93, %94, %cst_51 {dimension_numbers = #tpu.dot_dimension_numbers<[1], [0], [0], [1], [0, 0, 1, 1], [], []>} : vector<1x512xbf16>, vector<512x128xbf16>, vector<1x128xf32> -> vector<1x128xf32>
    %c0_52 = arith.constant 0 : index
    %c0_53 = arith.constant 0 : index
    %96 = vector.load %arg9[%c0_52, %c0_53] : memref<1x128xf32, #tpu.memory_space<vmem>>, vector<1x128xf32>
    %97 = arith.addf %95, %96 : vector<1x128xf32>
    %98 = vector.shape_cast %97 : vector<1x128xf32> to vector<1x1x128xf32>
    %c0_54 = arith.constant 0 : index
    %c0_55 = arith.constant 0 : index
    %c0_56 = arith.constant 0 : index
    %99 = vector.load %arg10[%c0_54, %c0_55, %c0_56] : memref<1x1x128xf32, #tpu.memory_space<vmem>>, vector<1x1x128xf32>
    tpu.vector_store %arg10[%c0_54, %c0_55, %c0_56], %98 {strides = array<i32>} : memref<1x1x128xf32, #tpu.memory_space<vmem>>, vector<1x1x128xf32>,
    return
  }
  func.func @transform_0(%arg0: i32) -> (i32, i32, i32) {
    %c0_i32 = arith.constant 0 : i32
    %c0_i32_0 = arith.constant 0 : i32
    %c0_i32_1 = arith.constant 0 : i32
    return %arg0, %c0_i32, %c0_i32_0 : i32, i32, i32
  }
  func.func @transform_1(%arg0: i32) -> (i32, i32, i32) {
    %c0_i32 = arith.constant 0 : i32
    %c0_i32_0 = arith.constant 0 : i32
    %c0_i32_1 = arith.constant 0 : i32
    %c0_i32_2 = arith.constant 0 : i32
    return %c0_i32, %c0_i32_0, %c0_i32_1 : i32, i32, i32
  }
  func.func @transform_2(%arg0: i32) -> (i32, i32) {
    %c0_i32 = arith.constant 0 : i32
    %c0_i32_0 = arith.constant 0 : i32
    %c0_i32_1 = arith.constant 0 : i32
    return %c0_i32, %c0_i32_0 : i32, i32
  }
  func.func @transform_3(%arg0: i32) -> (i32, i32, i32) {
    %c0_i32 = arith.constant 0 : i32
    %c0_i32_0 = arith.constant 0 : i32
    %c0_i32_1 = arith.constant 0 : i32
    %c0_i32_2 = arith.constant 0 : i32
    return %c0_i32, %c0_i32_0, %c0_i32_1 : i32, i32, i32
  }
  func.func @transform_4(%arg0: i32) -> (i32, i32) {
    %c0_i32 = arith.constant 0 : i32
    %c0_i32_0 = arith.constant 0 : i32
    %c0_i32_1 = arith.constant 0 : i32
    return %c0_i32, %c0_i32_0 : i32, i32
  }
  func.func @transform_5(%arg0: i32) -> (i32, i32) {
    %c0_i32 = arith.constant 0 : i32
    %c0_i32_0 = arith.constant 0 : i32
    %c0_i32_1 = arith.constant 0 : i32
    return %c0_i32, %c0_i32_0 : i32, i32
  }
  func.func @transform_6(%arg0: i32) -> (i32, i32) {
    %c0_i32 = arith.constant 0 : i32
    %c0_i32_0 = arith.constant 0 : i32
    %c0_i32_1 = arith.constant 0 : i32
    return %c0_i32, %c0_i32_0 : i32, i32
  }
  func.func @transform_7(%arg0: i32) -> (i32, i32) {
    %c0_i32 = arith.constant 0 : i32
    %c0_i32_0 = arith.constant 0 : i32
    %c0_i32_1 = arith.constant 0 : i32
    return %c0_i32, %c0_i32_0 : i32, i32
  }
  func.func @transform_8(%arg0: i32) -> (i32, i32) {
    %c0_i32 = arith.constant 0 : i32
    %c0_i32_0 = arith.constant 0 : i32
    %c0_i32_1 = arith.constant 0 : i32
    return %c0_i32, %c0_i32_0 : i32, i32
  }
  func.func @transform_9(%arg0: i32) -> (i32, i32, i32) {
    %c0_i32 = arith.constant 0 : i32
    %c0_i32_0 = arith.constant 0 : i32
    %c0_i32_1 = arith.constant 0 : i32
    return %arg0, %c0_i32, %c0_i32_0 : i32, i32, i32
  }
}

</mosaic_0001>

<llo_original>
// kernel: tpu_custom_call.1
$region0: #{tpu_custom_call.1}
  #allocation0 [shape = 'u32[]', space=smem, size = 0x4, offset = 0x4, fixed_abs, tag = 'smem constant byte address 0x4 - core index']
  #allocation1 [shape = 'u32[144,128]{1,0:T(1,128)}', space=vmem, size = 0x12000, scoped, tag = 'internal scratch']
  %s0 = inlined_call_operand.vmem [shape: bf16[2,28,84], index: 0, kind: input, shape index: {}]
  %s1 = inlined_call_operand.hbm [shape: bf16[5,84,768], index: 1, kind: input, shape index: {}]
  %s2 = inlined_call_operand.hbm [shape: f32[1,768], index: 2, kind: input, shape index: {}]
  %s3 = inlined_call_operand.hbm [shape: bf16[5,384,512], index: 3, kind: input, shape index: {}]
  %s4 = inlined_call_operand.hbm [shape: f32[1,512], index: 4, kind: input, shape index: {}]
  %s5 = inlined_call_operand.hbm [shape: bf16[1024,512], index: 5, kind: input, shape index: {}]
  %s6 = inlined_call_operand.hbm [shape: f32[1,512], index: 6, kind: input, shape index: {}]
  %s7 = inlined_call_operand.hbm [shape: bf16[512,128], index: 7, kind: input, shape index: {}]
  %s8 = inlined_call_operand.hbm [shape: f32[1,128], index: 8, kind: input, shape index: {}]
  %s9 = inlined_call_operand.hbm [shape: f32[2,1,128], index: 9, kind: output, shape index: {}]
  %s10 = sld [smem:[#allocation0]]
  $region101: #{tpu_custom_call.1} parent=0
    _
  %s12 = ssub.s32 1, %s10
  %s13 = scalar_select 0, %s12, %s10
  $region1: #{tpu_custom_call.1} parent=0
    #allocation2 [shape = 'u8[675840]{0}', space=vmem, size = 0xa5000, scoped, tag = 'input window, operand 1, single buffered']
    #allocation3 [shape = 's32[2]{0}', space=sflag, size = 0x8, scoped, tag = 'scoped memory for tpu_custom_call.1']
    #allocation4 [shape = 's32[2]{0}', space=sflag, size = 0x8, scoped, tag = 'scoped memory for tpu_custom_call.1']
    #allocation5 [shape = 'u8[3072]{0}', space=vmem, size = 0xc00, scoped, tag = 'input window, operand 2, single buffered']
    #allocation6 [shape = 's32[1]{0}', space=sflag, size = 0x4, scoped, tag = 'scoped memory for tpu_custom_call.1']
    #allocation7 [shape = 'u8[1966080]{0}', space=vmem, size = 0x1e0000, scoped, tag = 'input window, operand 3, single buffered']
    #allocation8 [shape = 'u8[2048]{0}', space=vmem, size = 0x800, scoped, tag = 'input window, operand 4, single buffered']
    #allocation9 [shape = 's32[1]{0}', space=sflag, size = 0x4, scoped, tag = 'scoped memory for tpu_custom_call.1']
    #allocation10 [shape = 'u8[1048576]{0}', space=vmem, size = 0x100000, scoped, tag = 'input window, operand 5, single buffered']
    #allocation11 [shape = 'u8[2048]{0}', space=vmem, size = 0x800, scoped, tag = 'input window, operand 6, single buffered']
    #allocation12 [shape = 's32[1]{0}', space=sflag, size = 0x4, scoped, tag = 'scoped memory for tpu_custom_call.1']
    #allocation13 [shape = 'u8[131072]{0}', space=vmem, size = 0x20000, scoped, tag = 'input window, operand 7, single buffered']
    #allocation14 [shape = 'u8[512]{0}', space=vmem, size = 0x400, scoped, tag = 'input window, operand 8, single buffered']
    #allocation15 [shape = 's32[1]{0}', space=sflag, size = 0x4, scoped, tag = 'scoped memory for tpu_custom_call.1']
    #allocation16 [shape = 'u8[1024]{0}', space=vmem, size = 0x400, scoped, tag = 'output window, operand 0']
    %14 = vsyncpa [#allocation3], 0
    %15 = vsyncpa [#allocation6], 0
    %16 = vsyncpa [#allocation9], 0
    %17 = vsyncpa [#allocation12], 0
    %18 = vsyncpa [#allocation15], 0
    %19 = vsyncpa [#allocation4], 0
    %s20 = scalar_lea.sflag [#allocation4], 1
    %21 = vsyncpa %s20, 0
    loop: start=0, step=1, limit=4
    $region2: #{tpu_custom_call.1} parent=1 // loop_pre_header
      _
    $region3: #{tpu_custom_call.1} parent=1 // loop_header
      %s23 = sphi 0, %s27
      %p24 = scmp.ge.s32.totalorder %s23, 4
      %s33 = sphi 0, %s35
      %s36 = sphi 0, %s33
      %s37 = sphi 0, %s36
      %s53 = sphi 0, %s37
      %s57 = sphi 0, %s57
      %s59 = sphi 0, %s57
      %s60 = sphi 0, %s59
      %s74 = sphi 0, %s60
      %s78 = sphi 0, %s78
      %s80 = sphi 0, %s78
      %s81 = sphi 0, %s80
      %s95 = sphi 0, %s81
      %s99 = sphi 0, %s99
      %s101 = sphi 0, %s99
      %s102 = sphi 0, %s101
      %s116 = sphi 0, %s102
      %s120 = sphi 0, %s120
      %s122 = sphi 0, %s120
      %s123 = sphi 0, %s122
      %s137 = sphi 0, %s123
      %s141 = sphi 0, %s141
      %s143 = sphi 0, %s141
      %s144 = sphi 0, %s143
      %s158 = sphi 0, %s144
      %s162 = sphi 0, %s162
      %s164 = sphi 0, %s162
      %s165 = sphi 0, %s164
      %s179 = sphi 0, %s165
      %s183 = sphi 0, %s183
      %s185 = sphi 0, %s183
      %s186 = sphi 0, %s185
      %s200 = sphi 0, %s186
      %s204 = sphi 0, %s204
      %s206 = sphi 0, %s204
      %s207 = sphi 0, %s206
      %s221 = sphi 0, %s207
      %s227 = sphi 0, %s229
      %s230 = sphi 0, %s227
      %s231 = sphi 0, %s230
      %s247 = sphi 0, %s231
    $region4: #{tpu_custom_call.1} parent=1 // loop_header_branch
      %26 = sbr.rel (%p24) target = $region8
    $region5: #{tpu_custom_call.1} parent=1 // loop_body
      %s28 = ssub.s32 %s23, 1
      %s29 = ssub.s32 %s23, 2
      %s30 = sadd.s32 %s23, 1
      %s31 = ssub.s32 %s23, %s30
      %p32 = scmp.eq.s32.totalorder %s31, 0
      %s34 = sadd.s32 %s33, 1
      %s35 = scalar_select %p32, %s33, %s34
      %p38 = pneg %p32
      %p39 = scmp.eq.s32.totalorder %s23, 1
      %p40 = por %p38, %p39
      %p41 = scmp.ne.s32.totalorder %s33, %s36
      %p42 = scmp.eq.s32.totalorder %s23, 0
      %p43 = por %p41, %p42
      %p44 = scmp.ne.s32.totalorder %s33, %s36
      %p45 = scmp.eq.s32.totalorder %s28, 1
      %p46 = por %p44, %p45
      %p47 = scmp.ne.s32.totalorder %s36, %s37
      %p48 = scmp.eq.s32.totalorder %s28, 0
      %p49 = por %p47, %p48
      %p50 = scmp.ne.s32.totalorder %s36, %s37
      %p51 = scmp.eq.s32.totalorder %s29, 1
      %p52 = por %p50, %p51
      %p54 = scmp.ne.s32.totalorder %s37, %s53
      %p55 = scmp.eq.s32.totalorder %s29, 0
      %p56 = por %p54, %p55
      %s58 = sadd.s32 %s57, 1
      %p61 = scmp.eq.s32.totalorder %s23, 1
      %p62 = scmp.ne.s32.totalorder %s57, %s59
      %p63 = scmp.eq.s32.totalorder %s23, 0
      %p64 = por %p62, %p63
      %p65 = scmp.ne.s32.totalorder %s57, %s59
      %p66 = scmp.eq.s32.totalorder %s28, 1
      %p67 = por %p65, %p66
      %p68 = scmp.ne.s32.totalorder %s59, %s60
      %p69 = scmp.eq.s32.totalorder %s28, 0
      %p70 = por %p68, %p69
      %p71 = scmp.ne.s32.totalorder %s59, %s60
      %p72 = scmp.eq.s32.totalorder %s29, 1
      %p73 = por %p71, %p72
      %p75 = scmp.ne.s32.totalorder %s60, %s74
      %p76 = scmp.eq.s32.totalorder %s29, 0
      %p77 = por %p75, %p76
      %s79 = sadd.s32 %s78, 1
      %p82 = scmp.eq.s32.totalorder %s23, 1
      %p83 = scmp.ne.s32.totalorder %s78, %s80
      %p84 = scmp.eq.s32.totalorder %s23, 0
      %p85 = por %p83, %p84
      %p86 = scmp.ne.s32.totalorder %s78, %s80
      %p87 = scmp.eq.s32.totalorder %s28, 1
      %p88 = por %p86, %p87
      %p89 = scmp.ne.s32.totalorder %s80, %s81
      %p90 = scmp.eq.s32.totalorder %s28, 0
      %p91 = por %p89, %p90
      %p92 = scmp.ne.s32.totalorder %s80, %s81
      %p93 = scmp.eq.s32.totalorder %s29, 1
      %p94 = por %p92, %p93
      %p96 = scmp.ne.s32.totalorder %s81, %s95
      %p97 = scmp.eq.s32.totalorder %s29, 0
      %p98 = por %p96, %p97
      %s100 = sadd.s32 %s99, 1
      %p103 = scmp.eq.s32.totalorder %s23, 1
      %p104 = scmp.ne.s32.totalorder %s99, %s101
      %p105 = scmp.eq.s32.totalorder %s23, 0
      %p106 = por %p104, %p105
      %p107 = scmp.ne.s32.totalorder %s99, %s101
      %p108 = scmp.eq.s32.totalorder %s28, 1
      %p109 = por %p107, %p108
      %p110 = scmp.ne.s32.totalorder %s101, %s102
      %p111 = scmp.eq.s32.totalorder %s28, 0
      %p112 = por %p110, %p111
      %p113 = scmp.ne.s32.totalorder %s101, %s102
      %p114 = scmp.eq.s32.totalorder %s29, 1
      %p115 = por %p113, %p114
      %p117 = scmp.ne.s32.totalorder %s102, %s116
      %p118 = scmp.eq.s32.totalorder %s29, 0
      %p119 = por %p117, %p118
      %s121 = sadd.s32 %s120, 1
      %p124 = scmp.eq.s32.totalorder %s23, 1
      %p125 = scmp.ne.s32.totalorder %s120, %s122
      %p126 = scmp.eq.s32.totalorder %s23, 0
      %p127 = por %p125, %p126
      %p128 = scmp.ne.s32.totalorder %s120, %s122
      %p129 = scmp.eq.s32.totalorder %s28, 1
      %p130 = por %p128, %p129
      %p131 = scmp.ne.s32.totalorder %s122, %s123
      %p132 = scmp.eq.s32.totalorder %s28, 0
      %p133 = por %p131, %p132
      %p134 = scmp.ne.s32.totalorder %s122, %s123
      %p135 = scmp.eq.s32.totalorder %s29, 1
      %p136 = por %p134, %p135
      %p138 = scmp.ne.s32.totalorder %s123, %s137
      %p139 = scmp.eq.s32.totalorder %s29, 0
      %p140 = por %p138, %p139
      %s142 = sadd.s32 %s141, 1
      %p145 = scmp.eq.s32.totalorder %s23, 1
      %p146 = scmp.ne.s32.totalorder %s141, %s143
      %p147 = scmp.eq.s32.totalorder %s23, 0
      %p148 = por %p146, %p147
      %p149 = scmp.ne.s32.totalorder %s141, %s143
      %p150 = scmp.eq.s32.totalorder %s28, 1
      %p151 = por %p149, %p150
      %p152 = scmp.ne.s32.totalorder %s143, %s144
      %p153 = scmp.eq.s32.totalorder %s28, 0
      %p154 = por %p152, %p153
      %p155 = scmp.ne.s32.totalorder %s143, %s144
      %p156 = scmp.eq.s32.totalorder %s29, 1
      %p157 = por %p155, %p156
      %p159 = scmp.ne.s32.totalorder %s144, %s158
      %p160 = scmp.eq.s32.totalorder %s29, 0
      %p161 = por %p159, %p160
      %s163 = sadd.s32 %s162, 1
      %p166 = scmp.eq.s32.totalorder %s23, 1
      %p167 = scmp.ne.s32.totalorder %s162, %s164
      %p168 = scmp.eq.s32.totalorder %s23, 0
      %p169 = por %p167, %p168
      %p170 = scmp.ne.s32.totalorder %s162, %s164
      %p171 = scmp.eq.s32.totalorder %s28, 1
      %p172 = por %p170, %p171
      %p173 = scmp.ne.s32.totalorder %s164, %s165
      %p174 = scmp.eq.s32.totalorder %s28, 0
      %p175 = por %p173, %p174
      %p176 = scmp.ne.s32.totalorder %s164, %s165
      %p177 = scmp.eq.s32.totalorder %s29, 1
      %p178 = por %p176, %p177
      %p180 = scmp.ne.s32.totalorder %s165, %s179
      %p181 = scmp.eq.s32.totalorder %s29, 0
      %p182 = por %p180, %p181
      %s184 = sadd.s32 %s183, 1
      %p187 = scmp.eq.s32.totalorder %s23, 1
      %p188 = scmp.ne.s32.totalorder %s183, %s185
      %p189 = scmp.eq.s32.totalorder %s23, 0
      %p190 = por %p188, %p189
      %p191 = scmp.ne.s32.totalorder %s183, %s185
      %p192 = scmp.eq.s32.totalorder %s28, 1
      %p193 = por %p191, %p192
      %p194 = scmp.ne.s32.totalorder %s185, %s186
      %p195 = scmp.eq.s32.totalorder %s28, 0
      %p196 = por %p194, %p195
      %p197 = scmp.ne.s32.totalorder %s185, %s186
      %p198 = scmp.eq.s32.totalorder %s29, 1
      %p199 = por %p197, %p198
      %p201 = scmp.ne.s32.totalorder %s186, %s200
      %p202 = scmp.eq.s32.totalorder %s29, 0
      %p203 = por %p201, %p202
      %s205 = sadd.s32 %s204, 1
      %p208 = scmp.eq.s32.totalorder %s23, 1
      %p209 = scmp.ne.s32.totalorder %s204, %s206
      %p210 = scmp.eq.s32.totalorder %s23, 0
      %p211 = por %p209, %p210
      %p212 = scmp.ne.s32.totalorder %s204, %s206
      %p213 = scmp.eq.s32.totalorder %s28, 1
      %p214 = por %p212, %p213
      %p215 = scmp.ne.s32.totalorder %s206, %s207
      %p216 = scmp.eq.s32.totalorder %s28, 0
      %p217 = por %p215, %p216
      %p218 = scmp.ne.s32.totalorder %s206, %s207
      %p219 = scmp.eq.s32.totalorder %s29, 1
      %p220 = por %p218, %p219
      %p222 = scmp.ne.s32.totalorder %s207, %s221
      %p223 = scmp.eq.s32.totalorder %s29, 0
      %p224 = por %p222, %p223
      %s225 = ssub.s32 %s23, %s30
      %p226 = scmp.eq.s32.totalorder %s225, 0
      %s228 = sadd.s32 %s227, 1
      %s229 = scalar_select %p226, %s227, %s228
      %p232 = pneg %p226
      %p233 = scmp.eq.s32.totalorder %s23, 1
      %p234 = por %p232, %p233
      %p235 = scmp.ne.s32.totalorder %s227, %s230
      %p236 = scmp.eq.s32.totalorder %s23, 0
      %p237 = por %p235, %p236
      %p238 = scmp.ne.s32.totalorder %s227, %s230
      %p239 = scmp.eq.s32.totalorder %s28, 1
      %p240 = por %p238, %p239
      %p241 = scmp.ne.s32.totalorder %s230, %s231
      %p242 = scmp.eq.s32.totalorder %s28, 0
      %p243 = por %p241, %p242
      %p244 = scmp.ne.s32.totalorder %s230, %s231
      %p245 = scmp.eq.s32.totalorder %s29, 1
      %p246 = por %p244, %p245
      %p248 = scmp.ne.s32.totalorder %s231, %s247
      %p249 = scmp.eq.s32.totalorder %s29, 0
      %p250 = por %p248, %p249
      %p251 = scmp.le.s32.totalorder 1, %s23
      %p252 = scmp.lt.s32.totalorder %s23, 3
      %p253 = pnand %p251, %p252
      %p254 = pneg %p253
      // Predicated region
      $region9: #{tpu_custom_call.1} parent=5 // pred_check
        _
      $region10: #{tpu_custom_call.1} parent=5 // pred_check_branch
        %256 = sbr.rel (%p253) target = $region12
      $region11: #{tpu_custom_call.1} parent=5 // pred_region
        %s257 = ssub.s32 %s23, 1
        // Predicated region
        $region13: #{tpu_custom_call.1} parent=11 // pred_check
          %p258 = pneg %p70
        $region14: #{tpu_custom_call.1} parent=11 // pred_check_branch
          %260 = sbr.rel (%p258) target = $region16
        $region15: #{tpu_custom_call.1} parent=11 // pred_region
          %s262 = ssub.s32 21120, 21120
          %263 = vsyncadd [#allocation3], %s262
          %s264 = sshll.u32 [#allocation2], 4
          %s265 = int_to_ptr.vmem [resolvable:$true] %s264
          %270 = dma.hbm_to_vmem [thread:$0]  %s1, 21120, %s265, [#allocation3], 384, 384, 24
        $region16: #{tpu_custom_call.1} parent=11 // pred_fallthru
          _
        // Predicated region
        $region17: #{tpu_custom_call.1} parent=11 // pred_check
          %p271 = pneg %p91
        $region18: #{tpu_custom_call.1} parent=11 // pred_check_branch
          %273 = sbr.rel (%p271) target = $region20
        $region19: #{tpu_custom_call.1} parent=11 // pred_region
          %s275 = ssub.s32 96, 96
          %276 = vsyncadd [#allocation6], %s275
          %s278 = sshll.u32 [#allocation5], 4
          %s279 = int_to_ptr.vmem [resolvable:$true] %s278
          %281 = dma.hbm_to_vmem [thread:$0]  %s2, 96, %s279, [#allocation6]
        $region20: #{tpu_custom_call.1} parent=11 // pred_fallthru
          _
        // Predicated region
        $region21: #{tpu_custom_call.1} parent=11 // pred_check
          %p282 = pneg %p112
        $region22: #{tpu_custom_call.1} parent=11 // pred_check_branch
          %284 = sbr.rel (%p282) target = $region24
        $region23: #{tpu_custom_call.1} parent=11 // pred_region
          %s286 = ssub.s32 61440, 61440
          %287 = vsyncadd [#allocation6], %s286
          %s288 = sshll.u32 [#allocation7], 4
          %s289 = int_to_ptr.vmem [resolvable:$true] %s288
          %294 = dma.hbm_to_vmem [thread:$0]  %s3, 61440, %s289, [#allocation6], 256, 256, 16
        $region24: #{tpu_custom_call.1} parent=11 // pred_fallthru
          _
        // Predicated region
        $region25: #{tpu_custom_call.1} parent=11 // pred_check
          %p295 = pneg %p133
        $region26: #{tpu_custom_call.1} parent=11 // pred_check_branch
          %297 = sbr.rel (%p295) target = $region28
        $region27: #{tpu_custom_call.1} parent=11 // pred_region
          %s299 = ssub.s32 64, 64
          %300 = vsyncadd [#allocation9], %s299
          %s302 = sshll.u32 [#allocation8], 4
          %s303 = int_to_ptr.vmem [resolvable:$true] %s302
          %305 = dma.hbm_to_vmem [thread:$0]  %s4, 64, %s303, [#allocation9]
        $region28: #{tpu_custom_call.1} parent=11 // pred_fallthru
          _
        // Predicated region
        $region29: #{tpu_custom_call.1} parent=11 // pred_check
          %p306 = pneg %p154
        $region30: #{tpu_custom_call.1} parent=11 // pred_check_branch
          %308 = sbr.rel (%p306) target = $region32
        $region31: #{tpu_custom_call.1} parent=11 // pred_region
          %s310 = ssub.s32 32768, 32768
          %311 = vsyncadd [#allocation9], %s310
          %s312 = sshll.u32 [#allocation10], 4
          %s313 = int_to_ptr.vmem [resolvable:$true] %s312
          %318 = dma.hbm_to_vmem [thread:$0]  %s5, 32768, %s313, [#allocation9], 256, 256, 16
        $region32: #{tpu_custom_call.1} parent=11 // pred_fallthru
          _
        // Predicated region
        $region33: #{tpu_custom_call.1} parent=11 // pred_check
          %p319 = pneg %p175
        $region34: #{tpu_custom_call.1} parent=11 // pred_check_branch
          %321 = sbr.rel (%p319) target = $region36
        $region35: #{tpu_custom_call.1} parent=11 // pred_region
          %s323 = ssub.s32 64, 64
          %324 = vsyncadd [#allocation12], %s323
          %s326 = sshll.u32 [#allocation11], 4
          %s327 = int_to_ptr.vmem [resolvable:$true] %s326
          %329 = dma.hbm_to_vmem [thread:$0]  %s6, 64, %s327, [#allocation12]
        $region36: #{tpu_custom_call.1} parent=11 // pred_fallthru
          _
        // Predicated region
        $region37: #{tpu_custom_call.1} parent=11 // pred_check
          %p330 = pneg %p196
        $region38: #{tpu_custom_call.1} parent=11 // pred_check_branch
          %332 = sbr.rel (%p330) target = $region40
        $region39: #{tpu_custom_call.1} parent=11 // pred_region
          %s334 = ssub.s32 4096, 4096
          %335 = vsyncadd [#allocation12], %s334
          %s336 = sshll.u32 [#allocation13], 4
          %s337 = int_to_ptr.vmem [resolvable:$true] %s336
          %342 = dma.hbm_to_vmem [thread:$0]  %s7, 4096, %s337, [#allocation12], 64, 64, 4
        $region40: #{tpu_custom_call.1} parent=11 // pred_fallthru
          _
        // Predicated region
        $region41: #{tpu_custom_call.1} parent=11 // pred_check
          %p343 = pneg %p217
        $region42: #{tpu_custom_call.1} parent=11 // pred_check_branch
          %345 = sbr.rel (%p343) target = $region44
        $region43: #{tpu_custom_call.1} parent=11 // pred_region
          %s347 = ssub.s32 16, 16
          %348 = vsyncadd [#allocation15], %s347
          %s350 = sshll.u32 [#allocation14], 4
          %s351 = int_to_ptr.vmem [resolvable:$true] %s350
          %353 = dma.hbm_to_vmem [thread:$0]  %s8, 16, %s351, [#allocation15]
        $region44: #{tpu_custom_call.1} parent=11 // pred_fallthru
          _
      $region12: #{tpu_custom_call.1} parent=5 // pred_fallthru
        _
      %p354 = scmp.lt.s32.totalorder %s23, 2
      // Predicated region
      $region45: #{tpu_custom_call.1} parent=5 // pred_check
        %p355 = pneg %p354
      $region46: #{tpu_custom_call.1} parent=5 // pred_check_branch
        %357 = sbr.rel (%p355) target = $region48
      $region47: #{tpu_custom_call.1} parent=5 // pred_region
        // Predicated region
        $region49: #{tpu_custom_call.1} parent=47 // pred_check
          %p358 = pneg %p43
        $region50: #{tpu_custom_call.1} parent=47 // pred_check_branch
          %360 = sbr.rel (%p358) target = $region52
        $region51: #{tpu_custom_call.1} parent=47 // pred_region
          %p361 = scmp.lt.s32.totalorder %s23, 1
          %s362 = scalar_select %p361, %s23, 1
          %s363 = smul.addr %s362, 4
          %s364 = smul.addr %s363, 4
          %s365 = scalar_lea.vmem %s0, %s364
        $region52: #{tpu_custom_call.1} parent=47 // pred_fallthru
          _
      $region48: #{tpu_custom_call.1} parent=5 // pred_fallthru
        _
      %p366 = scmp.le.s32.totalorder 1, %s23
      %p367 = scmp.lt.s32.totalorder %s23, 3
      %p368 = pnand %p366, %p367
      %p369 = pneg %p368
      // Predicated region
      $region53: #{tpu_custom_call.1} parent=5 // pred_check
        _
      $region54: #{tpu_custom_call.1} parent=5 // pred_check_branch
        %371 = sbr.rel (%p368) target = $region56
      $region55: #{tpu_custom_call.1} parent=5 // pred_region
        %s372 = ssub.s32 %s23, 1
        // Predicated region
        $region57: #{tpu_custom_call.1} parent=55 // pred_check
          %p373 = pneg %p70
        $region58: #{tpu_custom_call.1} parent=55 // pred_check_branch
          %375 = sbr.rel (%p373) target = $region60
        $region59: #{tpu_custom_call.1} parent=55 // pred_region
          %376 = dma.done [#allocation3], 21120
        $region60: #{tpu_custom_call.1} parent=55 // pred_fallthru
          _
        // Predicated region
        $region61: #{tpu_custom_call.1} parent=55 // pred_check
          %p377 = pneg %p91
        $region62: #{tpu_custom_call.1} parent=55 // pred_check_branch
          %379 = sbr.rel (%p377) target = $region64
        $region63: #{tpu_custom_call.1} parent=55 // pred_region
          %380 = dma.done [#allocation6], 96
        $region64: #{tpu_custom_call.1} parent=55 // pred_fallthru
          _
        // Predicated region
        $region65: #{tpu_custom_call.1} parent=55 // pred_check
          %p381 = pneg %p112
        $region66: #{tpu_custom_call.1} parent=55 // pred_check_branch
          %383 = sbr.rel (%p381) target = $region68
        $region67: #{tpu_custom_call.1} parent=55 // pred_region
          %384 = dma.done [#allocation6], 61440
        $region68: #{tpu_custom_call.1} parent=55 // pred_fallthru
          _
        // Predicated region
        $region69: #{tpu_custom_call.1} parent=55 // pred_check
          %p385 = pneg %p133
        $region70: #{tpu_custom_call.1} parent=55 // pred_check_branch
          %387 = sbr.rel (%p385) target = $region72
        $region71: #{tpu_custom_call.1} parent=55 // pred_region
          %388 = dma.done [#allocation9], 64
        $region72: #{tpu_custom_call.1} parent=55 // pred_fallthru
          _
        // Predicated region
        $region73: #{tpu_custom_call.1} parent=55 // pred_check
          %p389 = pneg %p154
        $region74: #{tpu_custom_call.1} parent=55 // pred_check_branch
          %391 = sbr.rel (%p389) target = $region76
        $region75: #{tpu_custom_call.1} parent=55 // pred_region
          %392 = dma.done [#allocation9], 32768
        $region76: #{tpu_custom_call.1} parent=55 // pred_fallthru
          _
        // Predicated region
        $region77: #{tpu_custom_call.1} parent=55 // pred_check
          %p393 = pneg %p175
        $region78: #{tpu_custom_call.1} parent=55 // pred_check_branch
          %395 = sbr.rel (%p393) target = $region80
        $region79: #{tpu_custom_call.1} parent=55 // pred_region
          %396 = dma.done [#allocation12], 64
        $region80: #{tpu_custom_call.1} parent=55 // pred_fallthru
          _
        // Predicated region
        $region81: #{tpu_custom_call.1} parent=55 // pred_check
          %p397 = pneg %p196
        $region82: #{tpu_custom_call.1} parent=55 // pred_check_branch
          %399 = sbr.rel (%p397) target = $region84
        $region83: #{tpu_custom_call.1} parent=55 // pred_region
          %400 = dma.done [#allocation12], 4096
        $region84: #{tpu_custom_call.1} parent=55 // pred_fallthru
          _
        // Predicated region
        $region85: #{tpu_custom_call.1} parent=55 // pred_check
          %p401 = pneg %p217
        $region86: #{tpu_custom_call.1} parent=55 // pred_check_branch
          %403 = sbr.rel (%p401) target = $region88
        $region87: #{tpu_custom_call.1} parent=55 // pred_region
          %404 = dma.done [#allocation15], 16
        $region88: #{tpu_custom_call.1} parent=55 // pred_fallthru
          _
        %p405 = scmp.lt.s32.totalorder %s28, 1
        %s406 = scalar_select %p405, %s28, 1
        %s407 = smul.addr %s406, 4
        %s408 = smul.addr %s407, 4
        %s409 = scalar_lea.vmem %s0, %s408
        %p410 = pneg %p49
        %p411 = pneg %p46
        %p412 = pneg %p70
        %p413 = pneg %p67
        %p414 = pneg %p91
        %p415 = pneg %p88
        %p416 = pneg %p112
        %p417 = pneg %p109
        %p418 = pneg %p133
        %p419 = pneg %p130
        %p420 = pneg %p154
        %p421 = pneg %p151
        %p422 = pneg %p175
        %p423 = pneg %p172
        %p424 = pneg %p196
        %p425 = pneg %p193
        %p426 = pneg %p217
        %p427 = pneg %p214
        %p428 = pneg %p243
        %p429 = pneg %p240
        %s430 = sand.u32 %s230, 1
        %s431 = scalar_lea.sflag [#allocation4], %s430
        %s432 = sand.u32 %s230, 1
        %s433 = scalar_lea.vmem [#allocation16], %s432
        %p434 = scmp.lt.s32.totalorder %s28, 1
        %s435 = scalar_select %p434, %s28, 1
        %s436 = smul.addr %s435, 4
        %s437 = smul.addr %s436, 4
        %s438 = scalar_lea.vmem %s0, %s437
        %v440 = vld [vmem:[%s438] sm:$0xf]
        %v441 = vld [vmem:[%s438 + $0x4] sm:$0xf]
        %v442 = vld [vmem:[%s438 + $0x8] sm:$0xf]
        %v443 = vld [vmem:[%s438 + $0xc] sm:$0x3]
        %v444 = vld [vmem:[#allocation5] sm:$0x3f]
        %v445 = vld [vmem:[#allocation2] sm:$0xff]
        %v446 = vld [vmem:[#allocation2 + $0x8] sm:$0xff]
        %v447 = vld [vmem:[#allocation2 + $0x10] sm:$0xff]
        %v448 = vld [vmem:[#allocation2 + $0x18] sm:$0xff]
        %v449 = vld [vmem:[#allocation2 + $0x20] sm:$0xff]
        %v450 = vld [vmem:[#allocation2 + $0x28] sm:$0xff]
        %v451 = vld [vmem:[#allocation2 + $0x30] sm:$0xff]
        %v452 = vld [vmem:[#allocation2 + $0x38] sm:$0xff]
        %v453 = vld [vmem:[#allocation2 + $0x40] sm:$0xff]
        %v454 = vld [vmem:[#allocation2 + $0x48] sm:$0xff]
        %v455 = vld [vmem:[#allocation2 + $0x50] sm:$0xff]
        %v456 = vld [vmem:[#allocation2 + $0x58] sm:$0xff]
        %v457 = vld [vmem:[#allocation2 + $0x60] sm:$0xff]
        %v458 = vld [vmem:[#allocation2 + $0x68] sm:$0xff]
        %v459 = vld [vmem:[#allocation2 + $0x70] sm:$0xff]
        %v460 = vld [vmem:[#allocation2 + $0x78] sm:$0xff]
        %v461 = vld [vmem:[#allocation2 + $0x80] sm:$0xff]
        %v462 = vld [vmem:[#allocation2 + $0x88] sm:$0xff]
        %v463 = vld [vmem:[#allocation2 + $0x90] sm:$0xff]
        %v464 = vld [vmem:[#allocation2 + $0x98] sm:$0xff]
        %v465 = vld [vmem:[#allocation2 + $0xa0] sm:$0xff]
        %v466 = vld [vmem:[#allocation2 + $0xa8] sm:$0xff]
        %v467 = vld [vmem:[#allocation2 + $0xb0] sm:$0xff]
        %v468 = vld [vmem:[#allocation2 + $0xb8] sm:$0xff]
        %v469 = vld [vmem:[#allocation2 + $0xc0] sm:$0xff]
        %v470 = vld [vmem:[#allocation2 + $0xc8] sm:$0xff]
        %v471 = vld [vmem:[#allocation2 + $0xd0] sm:$0xff]
        %v472 = vld [vmem:[#allocation2 + $0xd8] sm:$0xff]
        %v473 = vld [vmem:[#allocation2 + $0xe0] sm:$0xff]
        %v474 = vld [vmem:[#allocation2 + $0xe8] sm:$0xff]
        %v475 = vld [vmem:[#allocation2 + $0xf0] sm:$0x33]
        %v476 = vld [vmem:[#allocation2 + $0xf8] sm:$0x33]
        %v477 = vld [vmem:[#allocation2 + $0x100] sm:$0x33]
        %s478 = scalar_lea.vmem [#allocation2], 264
        %v479 = vld [vmem:[%s478] sm:$0xff]
        %v480 = vld [vmem:[%s478 + $0x8] sm:$0xff]
        %v481 = vld [vmem:[%s478 + $0x10] sm:$0xff]
        %v482 = vld [vmem:[%s478 + $0x18] sm:$0xff]
        %v483 = vld [vmem:[%s478 + $0x20] sm:$0xff]
        %v484 = vld [vmem:[%s478 + $0x28] sm:$0xff]
        %v485 = vld [vmem:[%s478 + $0x30] sm:$0xff]
        %v486 = vld [vmem:[%s478 + $0x38] sm:$0xff]
        %v487 = vld [vmem:[%s478 + $0x40] sm:$0xff]
        %v488 = vld [vmem:[%s478 + $0x48] sm:$0xff]
        %v489 = vld [vmem:[%s478 + $0x50] sm:$0xff]
        %v490 = vld [vmem:[%s478 + $0x58] sm:$0xff]
        %v491 = vld [vmem:[%s478 + $0x60] sm:$0xff]
        %v492 = vld [vmem:[%s478 + $0x68] sm:$0xff]
        %v493 = vld [vmem:[%s478 + $0x70] sm:$0xff]
        %v494 = vld [vmem:[%s478 + $0x78] sm:$0xff]
        %v495 = vld [vmem:[%s478 + $0x80] sm:$0xff]
        %v496 = vld [vmem:[%s478 + $0x88] sm:$0xff]
        %v497 = vld [vmem:[%s478 + $0x90] sm:$0xff]
        %v498 = vld [vmem:[%s478 + $0x98] sm:$0xff]
        %v499 = vld [vmem:[%s478 + $0xa0] sm:$0xff]
        %v500 = vld [vmem:[%s478 + $0xa8] sm:$0xff]
        %v501 = vld [vmem:[%s478 + $0xb0] sm:$0xff]
        %v502 = vld [vmem:[%s478 + $0xb8] sm:$0xff]
        %v503 = vld [vmem:[%s478 + $0xc0] sm:$0xff]
        %v504 = vld [vmem:[%s478 + $0xc8] sm:$0xff]
        %v505 = vld [vmem:[%s478 + $0xd0] sm:$0xff]
        %v506 = vld [vmem:[%s478 + $0xd8] sm:$0xff]
        %v507 = vld [vmem:[%s478 + $0xe0] sm:$0xff]
        %v508 = vld [vmem:[%s478 + $0xe8] sm:$0xff]
        %v509 = vld [vmem:[%s478 + $0xf0] sm:$0x33]
        %v510 = vld [vmem:[%s478 + $0xf8] sm:$0x33]
        %v511 = vld [vmem:[%s478 + $0x100] sm:$0x33]
        %v516 = vunpack.c.l.b16 %v440
        %v517 = vunpack.c.l.b16 %v441
        %v518 = vunpack.c.l.b16 %v442
        %v519 = vunpack.c.l.b16 %v443
        %v520 = vpack.c.b16 %v517, %v516
        %v521 = vpack.c.b16 %v519, %v518
        %vm522 = vsmask.f32 7424
        %v524 = vshrl.u32 %v520, 16
        %v526 = vshll.u32 %v520, 16
        %v528 = vrot.slane %v526, 1
        %v529 = vor.u32 %v524, %v528
        %v531 = vshll.u32 %v521, 16
        %v533 = vrot.slane %v531, 1
        %v534 = vsel %vm522, %v529, %v533
        %v535 = vshrl.u32 %v521, 16
        %v537 = vor.u32 %v535, %v533
        %v571 = vunpack.c.l.b16 %v479
        %v572 = vunpack.c.h.b16 %v479
        %v573 = vunpack.c.l.b16 %v480
        %v574 = vunpack.c.h.b16 %v480
        %v575 = vunpack.c.l.b16 %v481
        %v576 = vunpack.c.h.b16 %v481
        %v577 = vunpack.c.l.b16 %v482
        %v578 = vunpack.c.h.b16 %v482
        %v579 = vunpack.c.l.b16 %v483
        %v580 = vunpack.c.h.b16 %v483
        %v581 = vunpack.c.l.b16 %v484
        %v582 = vunpack.c.h.b16 %v484
        %v583 = vunpack.c.l.b16 %v485
        %v584 = vunpack.c.h.b16 %v485
        %v585 = vunpack.c.l.b16 %v486
        %v586 = vunpack.c.h.b16 %v486
        %v587 = vunpack.c.l.b16 %v487
        %v588 = vunpack.c.h.b16 %v487
        %v589 = vunpack.c.l.b16 %v488
        %v590 = vunpack.c.h.b16 %v488
        %v591 = vunpack.c.l.b16 %v489
        %v592 = vunpack.c.h.b16 %v489
        %v593 = vunpack.c.l.b16 %v490
        %v594 = vunpack.c.h.b16 %v490
        %v595 = vunpack.c.l.b16 %v491
        %v596 = vunpack.c.h.b16 %v491
        %v597 = vunpack.c.l.b16 %v492
        %v598 = vunpack.c.h.b16 %v492
        %v599 = vunpack.c.l.b16 %v493
        %v600 = vunpack.c.h.b16 %v493
        %v601 = vunpack.c.l.b16 %v494
        %v602 = vunpack.c.h.b16 %v494
        %v603 = vunpack.c.l.b16 %v495
        %v604 = vunpack.c.h.b16 %v495
        %v605 = vunpack.c.l.b16 %v496
        %v606 = vunpack.c.h.b16 %v496
        %v607 = vunpack.c.l.b16 %v497
        %v608 = vunpack.c.h.b16 %v497
        %v609 = vunpack.c.l.b16 %v498
        %v610 = vunpack.c.h.b16 %v498
        %v611 = vunpack.c.l.b16 %v499
        %v612 = vunpack.c.h.b16 %v499
        %v613 = vunpack.c.l.b16 %v500
        %v614 = vunpack.c.h.b16 %v500
        %v615 = vunpack.c.l.b16 %v501
        %v616 = vunpack.c.h.b16 %v501
        %v617 = vunpack.c.l.b16 %v502
        %v618 = vunpack.c.h.b16 %v502
        %v619 = vunpack.c.l.b16 %v503
        %v620 = vunpack.c.h.b16 %v503
        %v621 = vunpack.c.l.b16 %v504
        %v622 = vunpack.c.h.b16 %v504
        %v623 = vunpack.c.l.b16 %v505
        %v624 = vunpack.c.h.b16 %v505
        %v625 = vunpack.c.l.b16 %v506
        %v626 = vunpack.c.h.b16 %v506
        %v627 = vunpack.c.l.b16 %v507
        %v628 = vunpack.c.h.b16 %v507
        %v629 = vunpack.c.l.b16 %v508
        %v630 = vunpack.c.h.b16 %v508
        %v631 = vunpack.c.l.b16 %v509
        %v632 = vunpack.c.h.b16 %v509
        %v633 = vunpack.c.l.b16 %v510
        %v634 = vunpack.c.h.b16 %v510
        %v635 = vunpack.c.l.b16 %v511
        %v636 = vunpack.c.h.b16 %v511
        %v637 = vpack.c.b16 %v577, %v571
        %v638 = vpack.c.b16 %v578, %v572
        %v639 = vpack.c.b16 %v579, %v573
        %v640 = vpack.c.b16 %v580, %v574
        %v641 = vpack.c.b16 %v581, %v575
        %v642 = vpack.c.b16 %v582, %v576
        %v643 = vpack.c.b16 %v589, %v583
        %v644 = vpack.c.b16 %v590, %v584
        %v645 = vpack.c.b16 %v591, %v585
        %v646 = vpack.c.b16 %v592, %v586
        %v647 = vpack.c.b16 %v593, %v587
        %v648 = vpack.c.b16 %v594, %v588
        %v649 = vpack.c.b16 %v601, %v595
        %v650 = vpack.c.b16 %v602, %v596
        %v651 = vpack.c.b16 %v603, %v597
        %v652 = vpack.c.b16 %v604, %v598
        %v653 = vpack.c.b16 %v605, %v599
        %v654 = vpack.c.b16 %v606, %v600
        %v655 = vpack.c.b16 %v613, %v607
        %v656 = vpack.c.b16 %v614, %v608
        %v657 = vpack.c.b16 %v615, %v609
        %v658 = vpack.c.b16 %v616, %v610
        %v659 = vpack.c.b16 %v617, %v611
        %v660 = vpack.c.b16 %v618, %v612
        %v661 = vpack.c.b16 %v625, %v619
        %v662 = vpack.c.b16 %v626, %v620
        %v663 = vpack.c.b16 %v627, %v621
        %v664 = vpack.c.b16 %v628, %v622
        %v665 = vpack.c.b16 %v629, %v623
        %v666 = vpack.c.b16 %v630, %v624
        %v667 = vpack.c.b16 %v631, %v631
        %v668 = vpack.c.b16 %v632, %v632
        %v669 = vpack.c.b16 %v633, %v633
        %v670 = vpack.c.b16 %v634, %v634
        %v671 = vpack.c.b16 %v635, %v635
        %v672 = vpack.c.b16 %v636, %v636
        %vm703 = vcmask 687104
        %v705 = vsel %vm703, %v534, 0
        %v708 = vsel %vm703, %v537, 0
        %vm710 = vcmask 1041408
        %v712 = vsel %vm710, %v667, 0
        %v715 = vsel %vm710, %v668, 0
        %v718 = vsel %vm710, %v669, 0
        %v721 = vsel %vm710, %v670, 0
        %v724 = vsel %vm710, %v671, 0
        %v727 = vsel %vm710, %v672, 0
        %729 = vmatprep.subr.bf16.mxu0 0
        %730 = vmatpush1.bf16.msra.mxu0 0
        %731 = vmatprep.subr.bf16.mxu0 0
        %732 = vmatpush1.bf16.msra.mxu0 0
        %733 = vmatprep.subr.bf16.mxu0 %v715
        %734 = vmatpush1.bf16.msra.mxu0 %v712
        %735 = vmatprep.subr.bf16.mxu0 %v662
        %736 = vmatpush1.bf16.msra.mxu0 %v661
        %737 = vmatprep.subr.bf16.mxu0 %v656
        %738 = vmatpush1.bf16.msra.mxu0 %v655
        %739 = vmatprep.subr.bf16.mxu0 %v650
        %740 = vmatpush1.bf16.msra.mxu0 %v649
        %741 = vmatprep.subr.bf16.mxu0 %v644
        %742 = vmatpush1.bf16.msra.mxu0 %v643
        %743 = vmatprep.subr.bf16.mxu0 %v638
        %744 = vmatpush1.bf16.msra.mxu0 %v637
        %745 = vmatprep.subr.bf16.mxu0 0
        %746 = vmatpush2.bf16.msra.mxu0 0
        %747 = vmatprep.subr.bf16.mxu0 0
        %748 = vmatpush2.bf16.msra.mxu0 0
        %749 = vmatprep.subr.bf16.mxu0 0
        %750 = vmatpush2.bf16.msra.mxu0 0
        %751 = vmatprep.subr.bf16.mxu0 0
        %752 = vmatpush2.bf16.msra.mxu0 0
        %753 = vmatprep.subr.bf16.mxu0 0
        %754 = vmatpush2.bf16.msra.mxu0 0
        %755 = vmatprep.subr.bf16.mxu0 0
        %756 = vmatpush2.bf16.msra.mxu0 0
        %757 = vmatprep.subr.bf16.mxu0 0
        %758 = vmatpush2.bf16.msra.mxu0 0
        %759 = vmatprep.subr.bf16.mxu0 0
        %760 = vmatpush2.bf16.msra.mxu0 0
        %761 = vmatprep.mubr.bf16.mxu0 0
        %762 = vmatmul.mubr.bf16.gmra.mxu0 %v705
        %v763 = vpop.f32.mrf.mxu0
        %v764 = vadd.f32 0.0, %v763
        %v765 = vpop.f32.mrf.mxu0
        %v766 = vadd.f32 0.0, %v765
        %v767 = vpop.f32.mrf.mxu0
        %v768 = vadd.f32 0.0, %v767
        %v769 = vpop.f32.mrf.mxu0
        %v770 = vadd.f32 0.0, %v769
        %771 = vmatprep.mubr.bf16.mxu0 0
        %772 = vmatmul.mubr.bf16.gmra.mxu0 %v708
        %v773 = vpop.f32.mrf.mxu0
        %v774 = vadd.f32 0.0, %v773
        %v775 = vpop.f32.mrf.mxu0
        %v776 = vadd.f32 0.0, %v775
        %v777 = vpop.f32.mrf.mxu0
        %v778 = vpop.f32.mrf.mxu0
        %779 = vdwg.mxu0
        %780 = vmatprep.subr.bf16.mxu0 0
        %781 = vmatpush1.bf16.msra.mxu0 0
        %782 = vmatprep.subr.bf16.mxu0 0
        %783 = vmatpush1.bf16.msra.mxu0 0
        %784 = vmatprep.subr.bf16.mxu0 %v721
        %785 = vmatpush1.bf16.msra.mxu0 %v718
        %786 = vmatprep.subr.bf16.mxu0 %v664
        %787 = vmatpush1.bf16.msra.mxu0 %v663
        %788 = vmatprep.subr.bf16.mxu0 %v658
        %789 = vmatpush1.bf16.msra.mxu0 %v657
        %790 = vmatprep.subr.bf16.mxu0 %v652
        %791 = vmatpush1.bf16.msra.mxu0 %v651
        %792 = vmatprep.subr.bf16.mxu0 %v646
        %793 = vmatpush1.bf16.msra.mxu0 %v645
        %794 = vmatprep.subr.bf16.mxu0 %v640
        %795 = vmatpush1.bf16.msra.mxu0 %v639
        %796 = vmatprep.subr.bf16.mxu0 0
        %797 = vmatpush2.bf16.msra.mxu0 0
        %798 = vmatprep.subr.bf16.mxu0 0
        %799 = vmatpush2.bf16.msra.mxu0 0
        %800 = vmatprep.subr.bf16.mxu0 0
        %801 = vmatpush2.bf16.msra.mxu0 0
        %802 = vmatprep.subr.bf16.mxu0 0
        %803 = vmatpush2.bf16.msra.mxu0 0
        %804 = vmatprep.subr.bf16.mxu0 0
        %805 = vmatpush2.bf16.msra.mxu0 0
        %806 = vmatprep.subr.bf16.mxu0 0
        %807 = vmatpush2.bf16.msra.mxu0 0
        %808 = vmatprep.subr.bf16.mxu0 0
        %809 = vmatpush2.bf16.msra.mxu0 0
        %810 = vmatprep.subr.bf16.mxu0 0
        %811 = vmatpush2.bf16.msra.mxu0 0
        %812 = vmatprep.mubr.bf16.mxu0 0
        %813 = vmatmul.mubr.bf16.gmra.mxu0 %v705
        %v814 = vpop.f32.mrf.mxu0
        %v815 = vadd.f32 0.0, %v814
        %v816 = vpop.f32.mrf.mxu0
        %v817 = vadd.f32 0.0, %v816
        %v818 = vpop.f32.mrf.mxu0
        %v819 = vadd.f32 0.0, %v818
        %v820 = vpop.f32.mrf.mxu0
        %v821 = vadd.f32 0.0, %v820
        %822 = vmatprep.mubr.bf16.mxu0 0
        %823 = vmatmul.mubr.bf16.gmra.mxu0 %v708
        %v824 = vpop.f32.mrf.mxu0
        %v825 = vadd.f32 0.0, %v824
        %v826 = vpop.f32.mrf.mxu0
        %v827 = vadd.f32 0.0, %v826
        %v828 = vpop.f32.mrf.mxu0
        %v829 = vpop.f32.mrf.mxu0
        %830 = vdwg.mxu0
        %831 = vmatprep.subr.bf16.mxu0 0
        %832 = vmatpush1.bf16.msra.mxu0 0
        %833 = vmatprep.subr.bf16.mxu0 0
        %834 = vmatpush1.bf16.msra.mxu0 0
        %835 = vmatprep.subr.bf16.mxu0 %v727
        %836 = vmatpush1.bf16.msra.mxu0 %v724
        %837 = vmatprep.subr.bf16.mxu0 %v666
        %838 = vmatpush1.bf16.msra.mxu0 %v665
        %839 = vmatprep.subr.bf16.mxu0 %v660
        %840 = vmatpush1.bf16.msra.mxu0 %v659
        %841 = vmatprep.subr.bf16.mxu0 %v654
        %842 = vmatpush1.bf16.msra.mxu0 %v653
        %843 = vmatprep.subr.bf16.mxu0 %v648
        %844 = vmatpush1.bf16.msra.mxu0 %v647
        %845 = vmatprep.subr.bf16.mxu0 %v642
        %846 = vmatpush1.bf16.msra.mxu0 %v641
        %847 = vmatprep.subr.bf16.mxu0 0
        %848 = vmatpush2.bf16.msra.mxu0 0
        %849 = vmatprep.subr.bf16.mxu0 0
        %850 = vmatpush2.bf16.msra.mxu0 0
        %851 = vmatprep.subr.bf16.mxu0 0
        %852 = vmatpush2.bf16.msra.mxu0 0
        %853 = vmatprep.subr.bf16.mxu0 0
        %854 = vmatpush2.bf16.msra.mxu0 0
        %855 = vmatprep.subr.bf16.mxu0 0
        %856 = vmatpush2.bf16.msra.mxu0 0
        %857 = vmatprep.subr.bf16.mxu0 0
        %858 = vmatpush2.bf16.msra.mxu0 0
        %859 = vmatprep.subr.bf16.mxu0 0
        %860 = vmatpush2.bf16.msra.mxu0 0
        %861 = vmatprep.subr.bf16.mxu0 0
        %862 = vmatpush2.bf16.msra.mxu0 0
        %863 = vmatprep.mubr.bf16.mxu0 0
        %864 = vmatmul.mubr.bf16.gmra.mxu0 %v705
        %v865 = vpop.f32.mrf.mxu0
        %v866 = vadd.f32 0.0, %v865
        %v867 = vpop.f32.mrf.mxu0
        %v868 = vadd.f32 0.0, %v867
        %v869 = vpop.f32.mrf.mxu0
        %v870 = vadd.f32 0.0, %v869
        %v871 = vpop.f32.mrf.mxu0
        %v872 = vadd.f32 0.0, %v871
        %873 = vmatprep.mubr.bf16.mxu0 0
        %874 = vmatmul.mubr.bf16.gmra.mxu0 %v708
        %v875 = vpop.f32.mrf.mxu0
        %v876 = vadd.f32 0.0, %v875
        %v877 = vpop.f32.mrf.mxu0
        %v878 = vadd.f32 0.0, %v877
        %v879 = vpop.f32.mrf.mxu0
        %v880 = vpop.f32.mrf.mxu0
        %881 = vdwg.mxu0
        %v882 = vpack.c.b16 %v518, %v518
        %v916 = vunpack.c.l.b16 %v445
        %v917 = vunpack.c.h.b16 %v445
        %v918 = vunpack.c.l.b16 %v446
        %v919 = vunpack.c.h.b16 %v446
        %v920 = vunpack.c.l.b16 %v447
        %v921 = vunpack.c.h.b16 %v447
        %v922 = vunpack.c.l.b16 %v448
        %v923 = vunpack.c.h.b16 %v448
        %v924 = vunpack.c.l.b16 %v449
        %v925 = vunpack.c.h.b16 %v449
        %v926 = vunpack.c.l.b16 %v450
        %v927 = vunpack.c.h.b16 %v450
        %v928 = vunpack.c.l.b16 %v451
        %v929 = vunpack.c.h.b16 %v451
        %v930 = vunpack.c.l.b16 %v452
        %v931 = vunpack.c.h.b16 %v452
        %v932 = vunpack.c.l.b16 %v453
        %v933 = vunpack.c.h.b16 %v453
        %v934 = vunpack.c.l.b16 %v454
        %v935 = vunpack.c.h.b16 %v454
        %v936 = vunpack.c.l.b16 %v455
        %v937 = vunpack.c.h.b16 %v455
        %v938 = vunpack.c.l.b16 %v456
        %v939 = vunpack.c.h.b16 %v456
        %v940 = vunpack.c.l.b16 %v457
        %v941 = vunpack.c.h.b16 %v457
        %v942 = vunpack.c.l.b16 %v458
        %v943 = vunpack.c.h.b16 %v458
        %v944 = vunpack.c.l.b16 %v459
        %v945 = vunpack.c.h.b16 %v459
        %v946 = vunpack.c.l.b16 %v460
        %v947 = vunpack.c.h.b16 %v460
        %v948 = vunpack.c.l.b16 %v461
        %v949 = vunpack.c.h.b16 %v461
        %v950 = vunpack.c.l.b16 %v462
        %v951 = vunpack.c.h.b16 %v462
        %v952 = vunpack.c.l.b16 %v463
        %v953 = vunpack.c.h.b16 %v463
        %v954 = vunpack.c.l.b16 %v464
        %v955 = vunpack.c.h.b16 %v464
        %v956 = vunpack.c.l.b16 %v465
        %v957 = vunpack.c.h.b16 %v465
        %v958 = vunpack.c.l.b16 %v466
        %v959 = vunpack.c.h.b16 %v466
        %v960 = vunpack.c.l.b16 %v467
        %v961 = vunpack.c.h.b16 %v467
        %v962 = vunpack.c.l.b16 %v468
        %v963 = vunpack.c.h.b16 %v468
        %v964 = vunpack.c.l.b16 %v469
        %v965 = vunpack.c.h.b16 %v469
        %v966 = vunpack.c.l.b16 %v470
        %v967 = vunpack.c.h.b16 %v470
        %v968 = vunpack.c.l.b16 %v471
        %v969 = vunpack.c.h.b16 %v471
        %v970 = vunpack.c.l.b16 %v472
        %v971 = vunpack.c.h.b16 %v472
        %v972 = vunpack.c.l.b16 %v473
        %v973 = vunpack.c.h.b16 %v473
        %v974 = vunpack.c.l.b16 %v474
        %v975 = vunpack.c.h.b16 %v474
        %v976 = vunpack.c.l.b16 %v475
        %v977 = vunpack.c.h.b16 %v475
        %v978 = vunpack.c.l.b16 %v476
        %v979 = vunpack.c.h.b16 %v476
        %v980 = vunpack.c.l.b16 %v477
        %v981 = vunpack.c.h.b16 %v477
        %v982 = vpack.c.b16 %v922, %v916
        %v983 = vpack.c.b16 %v923, %v917
        %v984 = vpack.c.b16 %v924, %v918
        %v985 = vpack.c.b16 %v925, %v919
        %v986 = vpack.c.b16 %v926, %v920
        %v987 = vpack.c.b16 %v927, %v921
        %v988 = vpack.c.b16 %v934, %v928
        %v989 = vpack.c.b16 %v935, %v929
        %v990 = vpack.c.b16 %v936, %v930
        %v991 = vpack.c.b16 %v937, %v931
        %v992 = vpack.c.b16 %v938, %v932
        %v993 = vpack.c.b16 %v939, %v933
        %v994 = vpack.c.b16 %v946, %v940
        %v995 = vpack.c.b16 %v947, %v941
        %v996 = vpack.c.b16 %v948, %v942
        %v997 = vpack.c.b16 %v949, %v943
        %v998 = vpack.c.b16 %v950, %v944
        %v999 = vpack.c.b16 %v951, %v945
        %v1000 = vpack.c.b16 %v958, %v952
        %v1001 = vpack.c.b16 %v959, %v953
        %v1002 = vpack.c.b16 %v960, %v954
        %v1003 = vpack.c.b16 %v961, %v955
        %v1004 = vpack.c.b16 %v962, %v956
        %v1005 = vpack.c.b16 %v963, %v957
        %v1006 = vpack.c.b16 %v970, %v964
        %v1007 = vpack.c.b16 %v971, %v965
        %v1008 = vpack.c.b16 %v972, %v966
        %v1009 = vpack.c.b16 %v973, %v967
        %v1010 = vpack.c.b16 %v974, %v968
        %v1011 = vpack.c.b16 %v975, %v969
        %v1012 = vpack.c.b16 %v976, %v976
        %v1013 = vpack.c.b16 %v977, %v977
        %v1014 = vpack.c.b16 %v978, %v978
        %v1015 = vpack.c.b16 %v979, %v979
        %v1016 = vpack.c.b16 %v980, %v980
        %v1017 = vpack.c.b16 %v981, %v981
        %v1048 = vsel %vm703, %v520, 0
        %v1051 = vsel %vm703, %v882, 0
        %v1054 = vsel %vm710, %v1012, 0
        %v1057 = vsel %vm710, %v1013, 0
        %v1060 = vsel %vm710, %v1014, 0
        %v1063 = vsel %vm710, %v1015, 0
        %v1066 = vsel %vm710, %v1016, 0
        %v1069 = vsel %vm710, %v1017, 0
        %1071 = vmatprep.subr.bf16.mxu0 0
        %1072 = vmatpush1.bf16.msra.mxu0 0
        %1073 = vmatprep.subr.bf16.mxu0 0
        %1074 = vmatpush1.bf16.msra.mxu0 0
        %1075 = vmatprep.subr.bf16.mxu0 %v1057
        %1076 = vmatpush1.bf16.msra.mxu0 %v1054
        %1077 = vmatprep.subr.bf16.mxu0 %v1007
        %1078 = vmatpush1.bf16.msra.mxu0 %v1006
        %1079 = vmatprep.subr.bf16.mxu0 %v1001
        %1080 = vmatpush1.bf16.msra.mxu0 %v1000
        %1081 = vmatprep.subr.bf16.mxu0 %v995
        %1082 = vmatpush1.bf16.msra.mxu0 %v994
        %1083 = vmatprep.subr.bf16.mxu0 %v989
        %1084 = vmatpush1.bf16.msra.mxu0 %v988
        %1085 = vmatprep.subr.bf16.mxu0 %v983
        %1086 = vmatpush1.bf16.msra.mxu0 %v982
        %1087 = vmatprep.subr.bf16.mxu0 0
        %1088 = vmatpush2.bf16.msra.mxu0 0
        %1089 = vmatprep.subr.bf16.mxu0 0
        %1090 = vmatpush2.bf16.msra.mxu0 0
        %1091 = vmatprep.subr.bf16.mxu0 0
        %1092 = vmatpush2.bf16.msra.mxu0 0
        %1093 = vmatprep.subr.bf16.mxu0 0
        %1094 = vmatpush2.bf16.msra.mxu0 0
        %1095 = vmatprep.subr.bf16.mxu0 0
        %1096 = vmatpush2.bf16.msra.mxu0 0
        %1097 = vmatprep.subr.bf16.mxu0 0
        %1098 = vmatpush2.bf16.msra.mxu0 0
        %1099 = vmatprep.subr.bf16.mxu0 0
        %1100 = vmatpush2.bf16.msra.mxu0 0
        %1101 = vmatprep.subr.bf16.mxu0 0
        %1102 = vmatpush2.bf16.msra.mxu0 0
        %1103 = vmatprep.mubr.bf16.mxu0 0
        %1104 = vmatmul.mubr.bf16.gmra.mxu0 %v1048
        %v1105 = vpop.f32.mrf.mxu0
        %v1106 = vadd.f32 %v764, %v1105
        %v1107 = vpop.f32.mrf.mxu0
        %v1108 = vadd.f32 %v766, %v1107
        %v1109 = vpop.f32.mrf.mxu0
        %v1110 = vadd.f32 %v768, %v1109
        %v1111 = vpop.f32.mrf.mxu0
        %v1112 = vadd.f32 %v770, %v1111
        %1113 = vmatprep.mubr.bf16.mxu0 0
        %1114 = vmatmul.mubr.bf16.gmra.mxu0 %v1051
        %v1115 = vpop.f32.mrf.mxu0
        %v1116 = vadd.f32 %v774, %v1115
        %v1117 = vpop.f32.mrf.mxu0
        %v1118 = vadd.f32 %v776, %v1117
        %v1119 = vpop.f32.mrf.mxu0
        %v1120 = vpop.f32.mrf.mxu0
        %1121 = vdwg.mxu0
        %1122 = vmatprep.subr.bf16.mxu0 0
        %1123 = vmatpush1.bf16.msra.mxu0 0
        %1124 = vmatprep.subr.bf16.mxu0 0
        %1125 = vmatpush1.bf16.msra.mxu0 0
        %1126 = vmatprep.subr.bf16.mxu0 %v1063
        %1127 = vmatpush1.bf16.msra.mxu0 %v1060
        %1128 = vmatprep.subr.bf16.mxu0 %v1009
        %1129 = vmatpush1.bf16.msra.mxu0 %v1008
        %1130 = vmatprep.subr.bf16.mxu0 %v1003
        %1131 = vmatpush1.bf16.msra.mxu0 %v1002
        %1132 = vmatprep.subr.bf16.mxu0 %v997
        %1133 = vmatpush1.bf16.msra.mxu0 %v996
        %1134 = vmatprep.subr.bf16.mxu0 %v991
        %1135 = vmatpush1.bf16.msra.mxu0 %v990
        %1136 = vmatprep.subr.bf16.mxu0 %v985
        %1137 = vmatpush1.bf16.msra.mxu0 %v984
        %1138 = vmatprep.subr.bf16.mxu0 0
        %1139 = vmatpush2.bf16.msra.mxu0 0
        %1140 = vmatprep.subr.bf16.mxu0 0
        %1141 = vmatpush2.bf16.msra.mxu0 0
        %1142 = vmatprep.subr.bf16.mxu0 0
        %1143 = vmatpush2.bf16.msra.mxu0 0
        %1144 = vmatprep.subr.bf16.mxu0 0
        %1145 = vmatpush2.bf16.msra.mxu0 0
        %1146 = vmatprep.subr.bf16.mxu0 0
        %1147 = vmatpush2.bf16.msra.mxu0 0
        %1148 = vmatprep.subr.bf16.mxu0 0
        %1149 = vmatpush2.bf16.msra.mxu0 0
        %1150 = vmatprep.subr.bf16.mxu0 0
        %1151 = vmatpush2.bf16.msra.mxu0 0
        %1152 = vmatprep.subr.bf16.mxu0 0
        %1153 = vmatpush2.bf16.msra.mxu0 0
        %1154 = vmatprep.mubr.bf16.mxu0 0
        %1155 = vmatmul.mubr.bf16.gmra.mxu0 %v1048
        %v1156 = vpop.f32.mrf.mxu0
        %v1157 = vadd.f32 %v815, %v1156
        %v1158 = vpop.f32.mrf.mxu0
        %v1159 = vadd.f32 %v817, %v1158
        %v1160 = vpop.f32.mrf.mxu0
        %v1161 = vadd.f32 %v819, %v1160
        %v1162 = vpop.f32.mrf.mxu0
        %v1163 = vadd.f32 %v821, %v1162
        %1164 = vmatprep.mubr.bf16.mxu0 0
        %1165 = vmatmul.mubr.bf16.gmra.mxu0 %v1051
        %v1166 = vpop.f32.mrf.mxu0
        %v1167 = vadd.f32 %v825, %v1166
        %v1168 = vpop.f32.mrf.mxu0
        %v1169 = vadd.f32 %v827, %v1168
        %v1170 = vpop.f32.mrf.mxu0
        %v1171 = vpop.f32.mrf.mxu0
        %1172 = vdwg.mxu0
        %1173 = vmatprep.subr.bf16.mxu0 0
        %1174 = vmatpush1.bf16.msra.mxu0 0
        %1175 = vmatprep.subr.bf16.mxu0 0
        %1176 = vmatpush1.bf16.msra.mxu0 0
        %1177 = vmatprep.subr.bf16.mxu0 %v1069
        %1178 = vmatpush1.bf16.msra.mxu0 %v1066
        %1179 = vmatprep.subr.bf16.mxu0 %v1011
        %1180 = vmatpush1.bf16.msra.mxu0 %v1010
        %1181 = vmatprep.subr.bf16.mxu0 %v1005
        %1182 = vmatpush1.bf16.msra.mxu0 %v1004
        %1183 = vmatprep.subr.bf16.mxu0 %v999
        %1184 = vmatpush1.bf16.msra.mxu0 %v998
        %1185 = vmatprep.subr.bf16.mxu0 %v993
        %1186 = vmatpush1.bf16.msra.mxu0 %v992
        %1187 = vmatprep.subr.bf16.mxu0 %v987
        %1188 = vmatpush1.bf16.msra.mxu0 %v986
        %1189 = vmatprep.subr.bf16.mxu0 0
        %1190 = vmatpush2.bf16.msra.mxu0 0
        %1191 = vmatprep.subr.bf16.mxu0 0
        %1192 = vmatpush2.bf16.msra.mxu0 0
        %1193 = vmatprep.subr.bf16.mxu0 0
        %1194 = vmatpush2.bf16.msra.mxu0 0
        %1195 = vmatprep.subr.bf16.mxu0 0
        %1196 = vmatpush2.bf16.msra.mxu0 0
        %1197 = vmatprep.subr.bf16.mxu0 0
        %1198 = vmatpush2.bf16.msra.mxu0 0
        %1199 = vmatprep.subr.bf16.mxu0 0
        %1200 = vmatpush2.bf16.msra.mxu0 0
        %1201 = vmatprep.subr.bf16.mxu0 0
        %1202 = vmatpush2.bf16.msra.mxu0 0
        %1203 = vmatprep.subr.bf16.mxu0 0
        %1204 = vmatpush2.bf16.msra.mxu0 0
        %1205 = vmatprep.mubr.bf16.mxu0 0
        %1206 = vmatmul.mubr.bf16.gmra.mxu0 %v1048
        %v1207 = vpop.f32.mrf.mxu0
        %v1208 = vadd.f32 %v866, %v1207
        %v1209 = vpop.f32.mrf.mxu0
        %v1210 = vadd.f32 %v868, %v1209
        %v1211 = vpop.f32.mrf.mxu0
        %v1212 = vadd.f32 %v870, %v1211
        %v1213 = vpop.f32.mrf.mxu0
        %v1214 = vadd.f32 %v872, %v1213
        %1215 = vmatprep.mubr.bf16.mxu0 0
        %1216 = vmatmul.mubr.bf16.gmra.mxu0 %v1051
        %v1217 = vpop.f32.mrf.mxu0
        %v1218 = vadd.f32 %v876, %v1217
        %v1219 = vpop.f32.mrf.mxu0
        %v1220 = vadd.f32 %v878, %v1219
        %v1221 = vpop.f32.mrf.mxu0
        %v1222 = vpop.f32.mrf.mxu0
        %1223 = vdwg.mxu0
        %s1224 = scalar_lea.vmem [#allocation2], 528
        %v1225 = vld [vmem:[%s1224] sm:$0xff]
        %v1226 = vld [vmem:[%s1224 + $0x8] sm:$0xff]
        %v1227 = vld [vmem:[%s1224 + $0x10] sm:$0xff]
        %v1228 = vld [vmem:[%s1224 + $0x18] sm:$0xff]
        %v1229 = vld [vmem:[%s1224 + $0x20] sm:$0xff]
        %v1230 = vld [vmem:[%s1224 + $0x28] sm:$0xff]
        %v1231 = vld [vmem:[%s1224 + $0x30] sm:$0xff]
        %v1232 = vld [vmem:[%s1224 + $0x38] sm:$0xff]
        %v1233 = vld [vmem:[%s1224 + $0x40] sm:$0xff]
        %v1234 = vld [vmem:[%s1224 + $0x48] sm:$0xff]
        %v1235 = vld [vmem:[%s1224 + $0x50] sm:$0xff]
        %v1236 = vld [vmem:[%s1224 + $0x58] sm:$0xff]
        %v1237 = vld [vmem:[%s1224 + $0x60] sm:$0xff]
        %v1238 = vld [vmem:[%s1224 + $0x68] sm:$0xff]
        %v1239 = vld [vmem:[%s1224 + $0x70] sm:$0xff]
        %v1240 = vld [vmem:[%s1224 + $0x78] sm:$0xff]
        %v1241 = vld [vmem:[%s1224 + $0x80] sm:$0xff]
        %v1242 = vld [vmem:[%s1224 + $0x88] sm:$0xff]
        %v1243 = vld [vmem:[%s1224 + $0x90] sm:$0xff]
        %v1244 = vld [vmem:[%s1224 + $0x98] sm:$0xff]
        %v1245 = vld [vmem:[%s1224 + $0xa0] sm:$0xff]
        %v1246 = vld [vmem:[%s1224 + $0xa8] sm:$0xff]
        %v1247 = vld [vmem:[%s1224 + $0xb0] sm:$0xff]
        %v1248 = vld [vmem:[%s1224 + $0xb8] sm:$0xff]
        %v1249 = vld [vmem:[%s1224 + $0xc0] sm:$0xff]
        %v1250 = vld [vmem:[%s1224 + $0xc8] sm:$0xff]
        %v1251 = vld [vmem:[%s1224 + $0xd0] sm:$0xff]
        %v1252 = vld [vmem:[%s1224 + $0xd8] sm:$0xff]
        %v1253 = vld [vmem:[%s1224 + $0xe0] sm:$0xff]
        %v1254 = vld [vmem:[%s1224 + $0xe8] sm:$0xff]
        %v1255 = vld [vmem:[%s1224 + $0xf0] sm:$0x33]
        %v1256 = vld [vmem:[%s1224 + $0xf8] sm:$0x33]
        %v1257 = vld [vmem:[%s1224 + $0x100] sm:$0x33]
        %vm1258 = vcmask 1046528
        %v1259 = vrot.slane %v520, 1
        %v1260 = vrot.slane %v521, 1
        %v1261 = vsel %vm1258, %v1259, %v1260
        %v1295 = vunpack.c.l.b16 %v1225
        %v1296 = vunpack.c.h.b16 %v1225
        %v1297 = vunpack.c.l.b16 %v1226
        %v1298 = vunpack.c.h.b16 %v1226
        %v1299 = vunpack.c.l.b16 %v1227
        %v1300 = vunpack.c.h.b16 %v1227
        %v1301 = vunpack.c.l.b16 %v1228
        %v1302 = vunpack.c.h.b16 %v1228
        %v1303 = vunpack.c.l.b16 %v1229
        %v1304 = vunpack.c.h.b16 %v1229
        %v1305 = vunpack.c.l.b16 %v1230
        %v1306 = vunpack.c.h.b16 %v1230
        %v1307 = vunpack.c.l.b16 %v1231
        %v1308 = vunpack.c.h.b16 %v1231
        %v1309 = vunpack.c.l.b16 %v1232
        %v1310 = vunpack.c.h.b16 %v1232
        %v1311 = vunpack.c.l.b16 %v1233
        %v1312 = vunpack.c.h.b16 %v1233
        %v1313 = vunpack.c.l.b16 %v1234
        %v1314 = vunpack.c.h.b16 %v1234
        %v1315 = vunpack.c.l.b16 %v1235
        %v1316 = vunpack.c.h.b16 %v1235
        %v1317 = vunpack.c.l.b16 %v1236
        %v1318 = vunpack.c.h.b16 %v1236
        %v1319 = vunpack.c.l.b16 %v1237
        %v1320 = vunpack.c.h.b16 %v1237
        %v1321 = vunpack.c.l.b16 %v1238
        %v1322 = vunpack.c.h.b16 %v1238
        %v1323 = vunpack.c.l.b16 %v1239
        %v1324 = vunpack.c.h.b16 %v1239
        %v1325 = vunpack.c.l.b16 %v1240
        %v1326 = vunpack.c.h.b16 %v1240
        %v1327 = vunpack.c.l.b16 %v1241
        %v1328 = vunpack.c.h.b16 %v1241
        %v1329 = vunpack.c.l.b16 %v1242
        %v1330 = vunpack.c.h.b16 %v1242
        %v1331 = vunpack.c.l.b16 %v1243
        %v1332 = vunpack.c.h.b16 %v1243
        %v1333 = vunpack.c.l.b16 %v1244
        %v1334 = vunpack.c.h.b16 %v1244
        %v1335 = vunpack.c.l.b16 %v1245
        %v1336 = vunpack.c.h.b16 %v1245
        %v1337 = vunpack.c.l.b16 %v1246
        %v1338 = vunpack.c.h.b16 %v1246
        %v1339 = vunpack.c.l.b16 %v1247
        %v1340 = vunpack.c.h.b16 %v1247
        %v1341 = vunpack.c.l.b16 %v1248
        %v1342 = vunpack.c.h.b16 %v1248
        %v1343 = vunpack.c.l.b16 %v1249
        %v1344 = vunpack.c.h.b16 %v1249
        %v1345 = vunpack.c.l.b16 %v1250
        %v1346 = vunpack.c.h.b16 %v1250
        %v1347 = vunpack.c.l.b16 %v1251
        %v1348 = vunpack.c.h.b16 %v1251
        %v1349 = vunpack.c.l.b16 %v1252
        %v1350 = vunpack.c.h.b16 %v1252
        %v1351 = vunpack.c.l.b16 %v1253
        %v1352 = vunpack.c.h.b16 %v1253
        %v1353 = vunpack.c.l.b16 %v1254
        %v1354 = vunpack.c.h.b16 %v1254
        %v1355 = vunpack.c.l.b16 %v1255
        %v1356 = vunpack.c.h.b16 %v1255
        %v1357 = vunpack.c.l.b16 %v1256
        %v1358 = vunpack.c.h.b16 %v1256
        %v1359 = vunpack.c.l.b16 %v1257
        %v1360 = vunpack.c.h.b16 %v1257
        %v1361 = vpack.c.b16 %v1301, %v1295
        %v1362 = vpack.c.b16 %v1302, %v1296
        %v1363 = vpack.c.b16 %v1303, %v1297
        %v1364 = vpack.c.b16 %v1304, %v1298
        %v1365 = vpack.c.b16 %v1305, %v1299
        %v1366 = vpack.c.b16 %v1306, %v1300
        %v1367 = vpack.c.b16 %v1313, %v1307
        %v1368 = vpack.c.b16 %v1314, %v1308
        %v1369 = vpack.c.b16 %v1315, %v1309
        %v1370 = vpack.c.b16 %v1316, %v1310
        %v1371 = vpack.c.b16 %v1317, %v1311
        %v1372 = vpack.c.b16 %v1318, %v1312
        %v1373 = vpack.c.b16 %v1325, %v1319
        %v1374 = vpack.c.b16 %v1326, %v1320
        %v1375 = vpack.c.b16 %v1327, %v1321
        %v1376 = vpack.c.b16 %v1328, %v1322
        %v1377 = vpack.c.b16 %v1329, %v1323
        %v1378 = vpack.c.b16 %v1330, %v1324
        %v1379 = vpack.c.b16 %v1337, %v1331
        %v1380 = vpack.c.b16 %v1338, %v1332
        %v1381 = vpack.c.b16 %v1339, %v1333
        %v1382 = vpack.c.b16 %v1340, %v1334
        %v1383 = vpack.c.b16 %v1341, %v1335
        %v1384 = vpack.c.b16 %v1342, %v1336
        %v1385 = vpack.c.b16 %v1349, %v1343
        %v1386 = vpack.c.b16 %v1350, %v1344
        %v1387 = vpack.c.b16 %v1351, %v1345
        %v1388 = vpack.c.b16 %v1352, %v1346
        %v1389 = vpack.c.b16 %v1353, %v1347
        %v1390 = vpack.c.b16 %v1354, %v1348
        %v1391 = vpack.c.b16 %v1355, %v1355
        %v1392 = vpack.c.b16 %v1356, %v1356
        %v1393 = vpack.c.b16 %v1357, %v1357
        %v1394 = vpack.c.b16 %v1358, %v1358
        %v1395 = vpack.c.b16 %v1359, %v1359
        %v1396 = vpack.c.b16 %v1360, %v1360
        %v1428 = vsel %vm703, %v1261, 0
        %v1431 = vsel %vm703, %v1260, 0
        %v1434 = vsel %vm710, %v1391, 0
        %v1437 = vsel %vm710, %v1392, 0
        %v1440 = vsel %vm710, %v1393, 0
        %v1443 = vsel %vm710, %v1394, 0
        %v1446 = vsel %vm710, %v1395, 0
        %v1449 = vsel %vm710, %v1396, 0
        %1451 = vmatprep.subr.bf16.mxu0 0
        %1452 = vmatpush1.bf16.msra.mxu0 0
        %1453 = vmatprep.subr.bf16.mxu0 0
        %1454 = vmatpush1.bf16.msra.mxu0 0
        %1455 = vmatprep.subr.bf16.mxu0 %v1437
        %1456 = vmatpush1.bf16.msra.mxu0 %v1434
        %1457 = vmatprep.subr.bf16.mxu0 %v1386
        %1458 = vmatpush1.bf16.msra.mxu0 %v1385
        %1459 = vmatprep.subr.bf16.mxu0 %v1380
        %1460 = vmatpush1.bf16.msra.mxu0 %v1379
        %1461 = vmatprep.subr.bf16.mxu0 %v1374
        %1462 = vmatpush1.bf16.msra.mxu0 %v1373
        %1463 = vmatprep.subr.bf16.mxu0 %v1368
        %1464 = vmatpush1.bf16.msra.mxu0 %v1367
        %1465 = vmatprep.subr.bf16.mxu0 %v1362
        %1466 = vmatpush1.bf16.msra.mxu0 %v1361
        %1467 = vmatprep.subr.bf16.mxu0 0
        %1468 = vmatpush2.bf16.msra.mxu0 0
        %1469 = vmatprep.subr.bf16.mxu0 0
        %1470 = vmatpush2.bf16.msra.mxu0 0
        %1471 = vmatprep.subr.bf16.mxu0 0
        %1472 = vmatpush2.bf16.msra.mxu0 0
        %1473 = vmatprep.subr.bf16.mxu0 0
        %1474 = vmatpush2.bf16.msra.mxu0 0
        %1475 = vmatprep.subr.bf16.mxu0 0
        %1476 = vmatpush2.bf16.msra.mxu0 0
        %1477 = vmatprep.subr.bf16.mxu0 0
        %1478 = vmatpush2.bf16.msra.mxu0 0
        %1479 = vmatprep.subr.bf16.mxu0 0
        %1480 = vmatpush2.bf16.msra.mxu0 0
        %1481 = vmatprep.subr.bf16.mxu0 0
        %1482 = vmatpush2.bf16.msra.mxu0 0
        %1483 = vmatprep.mubr.bf16.mxu0 0
        %1484 = vmatmul.mubr.bf16.gmra.mxu0 %v1428
        %v1485 = vpop.f32.mrf.mxu0
        %v1486 = vadd.f32 0.0, %v1485
        %v1487 = vpop.f32.mrf.mxu0
        %v1488 = vadd.f32 0.0, %v1487
        %v1489 = vpop.f32.mrf.mxu0
        %v1490 = vadd.f32 0.0, %v1489
        %v1491 = vpop.f32.mrf.mxu0
        %v1492 = vadd.f32 0.0, %v1491
        %1493 = vmatprep.mubr.bf16.mxu0 0
        %1494 = vmatmul.mubr.bf16.gmra.mxu0 %v1431
        %v1495 = vpop.f32.mrf.mxu0
        %v1496 = vadd.f32 0.0, %v1495
        %v1497 = vpop.f32.mrf.mxu0
        %v1498 = vadd.f32 0.0, %v1497
        %v1499 = vpop.f32.mrf.mxu0
        %v1500 = vpop.f32.mrf.mxu0
        %1501 = vdwg.mxu0
        %1502 = vmatprep.subr.bf16.mxu0 0
        %1503 = vmatpush1.bf16.msra.mxu0 0
        %1504 = vmatprep.subr.bf16.mxu0 0
        %1505 = vmatpush1.bf16.msra.mxu0 0
        %1506 = vmatprep.subr.bf16.mxu0 %v1443
        %1507 = vmatpush1.bf16.msra.mxu0 %v1440
        %1508 = vmatprep.subr.bf16.mxu0 %v1388
        %1509 = vmatpush1.bf16.msra.mxu0 %v1387
        %1510 = vmatprep.subr.bf16.mxu0 %v1382
        %1511 = vmatpush1.bf16.msra.mxu0 %v1381
        %1512 = vmatprep.subr.bf16.mxu0 %v1376
        %1513 = vmatpush1.bf16.msra.mxu0 %v1375
        %1514 = vmatprep.subr.bf16.mxu0 %v1370
        %1515 = vmatpush1.bf16.msra.mxu0 %v1369
        %1516 = vmatprep.subr.bf16.mxu0 %v1364
        %1517 = vmatpush1.bf16.msra.mxu0 %v1363
        %1518 = vmatprep.subr.bf16.mxu0 0
        %1519 = vmatpush2.bf16.msra.mxu0 0
        %1520 = vmatprep.subr.bf16.mxu0 0
        %1521 = vmatpush2.bf16.msra.mxu0 0
        %1522 = vmatprep.subr.bf16.mxu0 0
        %1523 = vmatpush2.bf16.msra.mxu0 0
        %1524 = vmatprep.subr.bf16.mxu0 0
        %1525 = vmatpush2.bf16.msra.mxu0 0
        %1526 = vmatprep.subr.bf16.mxu0 0
        %1527 = vmatpush2.bf16.msra.mxu0 0
        %1528 = vmatprep.subr.bf16.mxu0 0
        %1529 = vmatpush2.bf16.msra.mxu0 0
        %1530 = vmatprep.subr.bf16.mxu0 0
        %1531 = vmatpush2.bf16.msra.mxu0 0
        %1532 = vmatprep.subr.bf16.mxu0 0
        %1533 = vmatpush2.bf16.msra.mxu0 0
        %1534 = vmatprep.mubr.bf16.mxu0 0
        %1535 = vmatmul.mubr.bf16.gmra.mxu0 %v1428
        %v1536 = vpop.f32.mrf.mxu0
        %v1537 = vadd.f32 0.0, %v1536
        %v1538 = vpop.f32.mrf.mxu0
        %v1539 = vadd.f32 0.0, %v1538
        %v1540 = vpop.f32.mrf.mxu0
        %v1541 = vadd.f32 0.0, %v1540
        %v1542 = vpop.f32.mrf.mxu0
        %v1543 = vadd.f32 0.0, %v1542
        %1544 = vmatprep.mubr.bf16.mxu0 0
        %1545 = vmatmul.mubr.bf16.gmra.mxu0 %v1431
        %v1546 = vpop.f32.mrf.mxu0
        %v1547 = vadd.f32 0.0, %v1546
        %v1548 = vpop.f32.mrf.mxu0
        %v1549 = vadd.f32 0.0, %v1548
        %v1550 = vpop.f32.mrf.mxu0
        %v1551 = vpop.f32.mrf.mxu0
        %1552 = vdwg.mxu0
        %1553 = vmatprep.subr.bf16.mxu0 0
        %1554 = vmatpush1.bf16.msra.mxu0 0
        %1555 = vmatprep.subr.bf16.mxu0 0
        %1556 = vmatpush1.bf16.msra.mxu0 0
        %1557 = vmatprep.subr.bf16.mxu0 %v1449
        %1558 = vmatpush1.bf16.msra.mxu0 %v1446
        %1559 = vmatprep.subr.bf16.mxu0 %v1390
        %1560 = vmatpush1.bf16.msra.mxu0 %v1389
        %1561 = vmatprep.subr.bf16.mxu0 %v1384
        %1562 = vmatpush1.bf16.msra.mxu0 %v1383
        %1563 = vmatprep.subr.bf16.mxu0 %v1378
        %1564 = vmatpush1.bf16.msra.mxu0 %v1377
        %1565 = vmatprep.subr.bf16.mxu0 %v1372
        %1566 = vmatpush1.bf16.msra.mxu0 %v1371
        %1567 = vmatprep.subr.bf16.mxu0 %v1366
        %1568 = vmatpush1.bf16.msra.mxu0 %v1365
        %1569 = vmatprep.subr.bf16.mxu0 0
        %1570 = vmatpush2.bf16.msra.mxu0 0
        %1571 = vmatprep.subr.bf16.mxu0 0
        %1572 = vmatpush2.bf16.msra.mxu0 0
        %1573 = vmatprep.subr.bf16.mxu0 0
        %1574 = vmatpush2.bf16.msra.mxu0 0
        %1575 = vmatprep.subr.bf16.mxu0 0
        %1576 = vmatpush2.bf16.msra.mxu0 0
        %1577 = vmatprep.subr.bf16.mxu0 0
        %1578 = vmatpush2.bf16.msra.mxu0 0
        %1579 = vmatprep.subr.bf16.mxu0 0
        %1580 = vmatpush2.bf16.msra.mxu0 0
        %1581 = vmatprep.subr.bf16.mxu0 0
        %1582 = vmatpush2.bf16.msra.mxu0 0
        %1583 = vmatprep.subr.bf16.mxu0 0
        %1584 = vmatpush2.bf16.msra.mxu0 0
        %1585 = vmatprep.mubr.bf16.mxu0 0
        %1586 = vmatmul.mubr.bf16.gmra.mxu0 %v1428
        %v1587 = vpop.f32.mrf.mxu0
        %v1588 = vadd.f32 0.0, %v1587
        %v1589 = vpop.f32.mrf.mxu0
        %v1590 = vadd.f32 0.0, %v1589
        %v1591 = vpop.f32.mrf.mxu0
        %v1592 = vadd.f32 0.0, %v1591
        %v1593 = vpop.f32.mrf.mxu0
        %v1594 = vadd.f32 0.0, %v1593
        %1595 = vmatprep.mubr.bf16.mxu0 0
        %1596 = vmatmul.mubr.bf16.gmra.mxu0 %v1431
        %v1597 = vpop.f32.mrf.mxu0
        %v1598 = vadd.f32 0.0, %v1597
        %v1599 = vpop.f32.mrf.mxu0
        %v1600 = vadd.f32 0.0, %v1599
        %v1601 = vpop.f32.mrf.mxu0
        %v1602 = vpop.f32.mrf.mxu0
        %1603 = vdwg.mxu0
        %v1604 = vadd.f32 %v1106, %v1486
        %v1605 = vadd.f32 %v1108, %v1488
        %v1606 = vadd.f32 %v1157, %v1537
        %v1607 = vadd.f32 %v1159, %v1539
        %v1608 = vadd.f32 %v1208, %v1588
        %v1609 = vadd.f32 %v1210, %v1590
        %v1610 = vadd.f32 %v1110, %v1490
        %v1611 = vadd.f32 %v1112, %v1492
        %v1612 = vadd.f32 %v1161, %v1541
        %v1613 = vadd.f32 %v1163, %v1543
        %v1614 = vadd.f32 %v1212, %v1592
        %v1615 = vadd.f32 %v1214, %v1594
        %v1616 = vadd.f32 %v1116, %v1496
        %v1617 = vadd.f32 %v1118, %v1498
        %v1618 = vadd.f32 %v1167, %v1547
        %v1619 = vadd.f32 %v1169, %v1549
        %v1620 = vadd.f32 %v1218, %v1598
        %v1621 = vadd.f32 %v1220, %v1600
        %s1622 = scalar_lea.vmem [#allocation2], 792
        %v1623 = vld [vmem:[%s1622] sm:$0xff]
        %v1624 = vld [vmem:[%s1622 + $0x8] sm:$0xff]
        %v1625 = vld [vmem:[%s1622 + $0x10] sm:$0xff]
        %v1626 = vld [vmem:[%s1622 + $0x18] sm:$0xff]
        %v1627 = vld [vmem:[%s1622 + $0x20] sm:$0xff]
        %v1628 = vld [vmem:[%s1622 + $0x28] sm:$0xff]
        %v1629 = vld [vmem:[%s1622 + $0x30] sm:$0xff]
        %v1630 = vld [vmem:[%s1622 + $0x38] sm:$0xff]
        %v1631 = vld [vmem:[%s1622 + $0x40] sm:$0xff]
        %v1632 = vld [vmem:[%s1622 + $0x48] sm:$0xff]
        %v1633 = vld [vmem:[%s1622 + $0x50] sm:$0xff]
        %v1634 = vld [vmem:[%s1622 + $0x58] sm:$0xff]
        %v1635 = vld [vmem:[%s1622 + $0x60] sm:$0xff]
        %v1636 = vld [vmem:[%s1622 + $0x68] sm:$0xff]
        %v1637 = vld [vmem:[%s1622 + $0x70] sm:$0xff]
        %v1638 = vld [vmem:[%s1622 + $0x78] sm:$0xff]
        %v1639 = vld [vmem:[%s1622 + $0x80] sm:$0xff]
        %v1640 = vld [vmem:[%s1622 + $0x88] sm:$0xff]
        %v1641 = vld [vmem:[%s1622 + $0x90] sm:$0xff]
        %v1642 = vld [vmem:[%s1622 + $0x98] sm:$0xff]
        %v1643 = vld [vmem:[%s1622 + $0xa0] sm:$0xff]
        %v1644 = vld [vmem:[%s1622 + $0xa8] sm:$0xff]
        %v1645 = vld [vmem:[%s1622 + $0xb0] sm:$0xff]
        %v1646 = vld [vmem:[%s1622 + $0xb8] sm:$0xff]
        %v1647 = vld [vmem:[%s1622 + $0xc0] sm:$0xff]
        %v1648 = vld [vmem:[%s1622 + $0xc8] sm:$0xff]
        %v1649 = vld [vmem:[%s1622 + $0xd0] sm:$0xff]
        %v1650 = vld [vmem:[%s1622 + $0xd8] sm:$0xff]
        %v1651 = vld [vmem:[%s1622 + $0xe0] sm:$0xff]
        %v1652 = vld [vmem:[%s1622 + $0xe8] sm:$0xff]
        %v1653 = vld [vmem:[%s1622 + $0xf0] sm:$0x33]
        %v1654 = vld [vmem:[%s1622 + $0xf8] sm:$0x33]
        %v1655 = vld [vmem:[%s1622 + $0x100] sm:$0x33]
        %vm1656 = vsmask.f32 6400
        %v1657 = vrot.slane %v524, 1
        %v1658 = vrot.slane %v526, 2
        %v1659 = vor.u32 %v1657, %v1658
        %v1660 = vrot.slane %v535, 1
        %v1661 = vrot.slane %v531, 2
        %v1662 = vor.u32 %v1660, %v1661
        %v1663 = vsel %vm1656, %v1659, %v1662
        %v1697 = vunpack.c.l.b16 %v1623
        %v1698 = vunpack.c.h.b16 %v1623
        %v1699 = vunpack.c.l.b16 %v1624
        %v1700 = vunpack.c.h.b16 %v1624
        %v1701 = vunpack.c.l.b16 %v1625
        %v1702 = vunpack.c.h.b16 %v1625
        %v1703 = vunpack.c.l.b16 %v1626
        %v1704 = vunpack.c.h.b16 %v1626
        %v1705 = vunpack.c.l.b16 %v1627
        %v1706 = vunpack.c.h.b16 %v1627
        %v1707 = vunpack.c.l.b16 %v1628
        %v1708 = vunpack.c.h.b16 %v1628
        %v1709 = vunpack.c.l.b16 %v1629
        %v1710 = vunpack.c.h.b16 %v1629
        %v1711 = vunpack.c.l.b16 %v1630
        %v1712 = vunpack.c.h.b16 %v1630
        %v1713 = vunpack.c.l.b16 %v1631
        %v1714 = vunpack.c.h.b16 %v1631
        %v1715 = vunpack.c.l.b16 %v1632
        %v1716 = vunpack.c.h.b16 %v1632
        %v1717 = vunpack.c.l.b16 %v1633
        %v1718 = vunpack.c.h.b16 %v1633
        %v1719 = vunpack.c.l.b16 %v1634
        %v1720 = vunpack.c.h.b16 %v1634
        %v1721 = vunpack.c.l.b16 %v1635
        %v1722 = vunpack.c.h.b16 %v1635
        %v1723 = vunpack.c.l.b16 %v1636
        %v1724 = vunpack.c.h.b16 %v1636
        %v1725 = vunpack.c.l.b16 %v1637
        %v1726 = vunpack.c.h.b16 %v1637
        %v1727 = vunpack.c.l.b16 %v1638
        %v1728 = vunpack.c.h.b16 %v1638
        %v1729 = vunpack.c.l.b16 %v1639
        %v1730 = vunpack.c.h.b16 %v1639
        %v1731 = vunpack.c.l.b16 %v1640
        %v1732 = vunpack.c.h.b16 %v1640
        %v1733 = vunpack.c.l.b16 %v1641
        %v1734 = vunpack.c.h.b16 %v1641
        %v1735 = vunpack.c.l.b16 %v1642
        %v1736 = vunpack.c.h.b16 %v1642
        %v1737 = vunpack.c.l.b16 %v1643
        %v1738 = vunpack.c.h.b16 %v1643
        %v1739 = vunpack.c.l.b16 %v1644
        %v1740 = vunpack.c.h.b16 %v1644
        %v1741 = vunpack.c.l.b16 %v1645
        %v1742 = vunpack.c.h.b16 %v1645
        %v1743 = vunpack.c.l.b16 %v1646
        %v1744 = vunpack.c.h.b16 %v1646
        %v1745 = vunpack.c.l.b16 %v1647
        %v1746 = vunpack.c.h.b16 %v1647
        %v1747 = vunpack.c.l.b16 %v1648
        %v1748 = vunpack.c.h.b16 %v1648
        %v1749 = vunpack.c.l.b16 %v1649
        %v1750 = vunpack.c.h.b16 %v1649
        %v1751 = vunpack.c.l.b16 %v1650
        %v1752 = vunpack.c.h.b16 %v1650
        %v1753 = vunpack.c.l.b16 %v1651
        %v1754 = vunpack.c.h.b16 %v1651
        %v1755 = vunpack.c.l.b16 %v1652
        %v1756 = vunpack.c.h.b16 %v1652
        %v1757 = vunpack.c.l.b16 %v1653
        %v1758 = vunpack.c.h.b16 %v1653
        %v1759 = vunpack.c.l.b16 %v1654
        %v1760 = vunpack.c.h.b16 %v1654
        %v1761 = vunpack.c.l.b16 %v1655
        %v1762 = vunpack.c.h.b16 %v1655
        %v1763 = vpack.c.b16 %v1703, %v1697
        %v1764 = vpack.c.b16 %v1704, %v1698
        %v1765 = vpack.c.b16 %v1705, %v1699
        %v1766 = vpack.c.b16 %v1706, %v1700
        %v1767 = vpack.c.b16 %v1707, %v1701
        %v1768 = vpack.c.b16 %v1708, %v1702
        %v1769 = vpack.c.b16 %v1715, %v1709
        %v1770 = vpack.c.b16 %v1716, %v1710
        %v1771 = vpack.c.b16 %v1717, %v1711
        %v1772 = vpack.c.b16 %v1718, %v1712
        %v1773 = vpack.c.b16 %v1719, %v1713
        %v1774 = vpack.c.b16 %v1720, %v1714
        %v1775 = vpack.c.b16 %v1727, %v1721
        %v1776 = vpack.c.b16 %v1728, %v1722
        %v1777 = vpack.c.b16 %v1729, %v1723
        %v1778 = vpack.c.b16 %v1730, %v1724
        %v1779 = vpack.c.b16 %v1731, %v1725
        %v1780 = vpack.c.b16 %v1732, %v1726
        %v1781 = vpack.c.b16 %v1739, %v1733
        %v1782 = vpack.c.b16 %v1740, %v1734
        %v1783 = vpack.c.b16 %v1741, %v1735
        %v1784 = vpack.c.b16 %v1742, %v1736
        %v1785 = vpack.c.b16 %v1743, %v1737
        %v1786 = vpack.c.b16 %v1744, %v1738
        %v1787 = vpack.c.b16 %v1751, %v1745
        %v1788 = vpack.c.b16 %v1752, %v1746
        %v1789 = vpack.c.b16 %v1753, %v1747
        %v1790 = vpack.c.b16 %v1754, %v1748
        %v1791 = vpack.c.b16 %v1755, %v1749
        %v1792 = vpack.c.b16 %v1756, %v1750
        %v1793 = vpack.c.b16 %v1757, %v1757
        %v1794 = vpack.c.b16 %v1758, %v1758
        %v1795 = vpack.c.b16 %v1759, %v1759
        %v1796 = vpack.c.b16 %v1760, %v1760
        %v1797 = vpack.c.b16 %v1761, %v1761
        %v1798 = vpack.c.b16 %v1762, %v1762
        %v1830 = vsel %vm703, %v1663, 0
        %v1833 = vsel %vm703, %v1662, 0
        %v1836 = vsel %vm710, %v1793, 0
        %v1839 = vsel %vm710, %v1794, 0
        %v1842 = vsel %vm710, %v1795, 0
        %v1845 = vsel %vm710, %v1796, 0
        %v1848 = vsel %vm710, %v1797, 0
        %v1851 = vsel %vm710, %v1798, 0
        %1853 = vmatprep.subr.bf16.mxu0 0
        %1854 = vmatpush1.bf16.msra.mxu0 0
        %1855 = vmatprep.subr.bf16.mxu0 0
        %1856 = vmatpush1.bf16.msra.mxu0 0
        %1857 = vmatprep.subr.bf16.mxu0 %v1839
        %1858 = vmatpush1.bf16.msra.mxu0 %v1836
        %1859 = vmatprep.subr.bf16.mxu0 %v1788
        %1860 = vmatpush1.bf16.msra.mxu0 %v1787
        %1861 = vmatprep.subr.bf16.mxu0 %v1782
        %1862 = vmatpush1.bf16.msra.mxu0 %v1781
        %1863 = vmatprep.subr.bf16.mxu0 %v1776
        %1864 = vmatpush1.bf16.msra.mxu0 %v1775
        %1865 = vmatprep.subr.bf16.mxu0 %v1770
        %1866 = vmatpush1.bf16.msra.mxu0 %v1769
        %1867 = vmatprep.subr.bf16.mxu0 %v1764
        %1868 = vmatpush1.bf16.msra.mxu0 %v1763
        %1869 = vmatprep.subr.bf16.mxu0 0
        %1870 = vmatpush2.bf16.msra.mxu0 0
        %1871 = vmatprep.subr.bf16.mxu0 0
        %1872 = vmatpush2.bf16.msra.mxu0 0
        %1873 = vmatprep.subr.bf16.mxu0 0
        %1874 = vmatpush2.bf16.msra.mxu0 0
        %1875 = vmatprep.subr.bf16.mxu0 0
        %1876 = vmatpush2.bf16.msra.mxu0 0
        %1877 = vmatprep.subr.bf16.mxu0 0
        %1878 = vmatpush2.bf16.msra.mxu0 0
        %1879 = vmatprep.subr.bf16.mxu0 0
        %1880 = vmatpush2.bf16.msra.mxu0 0
        %1881 = vmatprep.subr.bf16.mxu0 0
        %1882 = vmatpush2.bf16.msra.mxu0 0
        %1883 = vmatprep.subr.bf16.mxu0 0
        %1884 = vmatpush2.bf16.msra.mxu0 0
        %1885 = vmatprep.mubr.bf16.mxu0 0
        %1886 = vmatmul.mubr.bf16.gmra.mxu0 %v1830
        %v1887 = vpop.f32.mrf.mxu0
        %v1888 = vadd.f32 0.0, %v1887
        %v1889 = vpop.f32.mrf.mxu0
        %v1890 = vadd.f32 0.0, %v1889
        %v1891 = vpop.f32.mrf.mxu0
        %v1892 = vadd.f32 0.0, %v1891
        %v1893 = vpop.f32.mrf.mxu0
        %v1894 = vadd.f32 0.0, %v1893
        %1895 = vmatprep.mubr.bf16.mxu0 0
        %1896 = vmatmul.mubr.bf16.gmra.mxu0 %v1833
        %v1897 = vpop.f32.mrf.mxu0
        %v1898 = vadd.f32 0.0, %v1897
        %v1899 = vpop.f32.mrf.mxu0
        %v1900 = vadd.f32 0.0, %v1899
        %v1901 = vpop.f32.mrf.mxu0
        %v1902 = vpop.f32.mrf.mxu0
        %1903 = vdwg.mxu0
        %1904 = vmatprep.subr.bf16.mxu0 0
        %1905 = vmatpush1.bf16.msra.mxu0 0
        %1906 = vmatprep.subr.bf16.mxu0 0
        %1907 = vmatpush1.bf16.msra.mxu0 0
        %1908 = vmatprep.subr.bf16.mxu0 %v1845
        %1909 = vmatpush1.bf16.msra.mxu0 %v1842
        %1910 = vmatprep.subr.bf16.mxu0 %v1790
        %1911 = vmatpush1.bf16.msra.mxu0 %v1789
        %1912 = vmatprep.subr.bf16.mxu0 %v1784
        %1913 = vmatpush1.bf16.msra.mxu0 %v1783
        %1914 = vmatprep.subr.bf16.mxu0 %v1778
        %1915 = vmatpush1.bf16.msra.mxu0 %v1777
        %1916 = vmatprep.subr.bf16.mxu0 %v1772
        %1917 = vmatpush1.bf16.msra.mxu0 %v1771
        %1918 = vmatprep.subr.bf16.mxu0 %v1766
        %1919 = vmatpush1.bf16.msra.mxu0 %v1765
        %1920 = vmatprep.subr.bf16.mxu0 0
        %1921 = vmatpush2.bf16.msra.mxu0 0
        %1922 = vmatprep.subr.bf16.mxu0 0
        %1923 = vmatpush2.bf16.msra.mxu0 0
        %1924 = vmatprep.subr.bf16.mxu0 0
        %1925 = vmatpush2.bf16.msra.mxu0 0
        %1926 = vmatprep.subr.bf16.mxu0 0
        %1927 = vmatpush2.bf16.msra.mxu0 0
        %1928 = vmatprep.subr.bf16.mxu0 0
        %1929 = vmatpush2.bf16.msra.mxu0 0
        %1930 = vmatprep.subr.bf16.mxu0 0
        %1931 = vmatpush2.bf16.msra.mxu0 0
        %1932 = vmatprep.subr.bf16.mxu0 0
        %1933 = vmatpush2.bf16.msra.mxu0 0
        %1934 = vmatprep.subr.bf16.mxu0 0
        %1935 = vmatpush2.bf16.msra.mxu0 0
        %1936 = vmatprep.mubr.bf16.mxu0 0
        %1937 = vmatmul.mubr.bf16.gmra.mxu0 %v1830
        %v1938 = vpop.f32.mrf.mxu0
        %v1939 = vadd.f32 0.0, %v1938
        %v1940 = vpop.f32.mrf.mxu0
        %v1941 = vadd.f32 0.0, %v1940
        %v1942 = vpop.f32.mrf.mxu0
        %v1943 = vadd.f32 0.0, %v1942
        %v1944 = vpop.f32.mrf.mxu0
        %v1945 = vadd.f32 0.0, %v1944
        %1946 = vmatprep.mubr.bf16.mxu0 0
        %1947 = vmatmul.mubr.bf16.gmra.mxu0 %v1833
        %v1948 = vpop.f32.mrf.mxu0
        %v1949 = vadd.f32 0.0, %v1948
        %v1950 = vpop.f32.mrf.mxu0
        %v1951 = vadd.f32 0.0, %v1950
        %v1952 = vpop.f32.mrf.mxu0
        %v1953 = vpop.f32.mrf.mxu0
        %1954 = vdwg.mxu0
        %1955 = vmatprep.subr.bf16.mxu0 0
        %1956 = vmatpush1.bf16.msra.mxu0 0
        %1957 = vmatprep.subr.bf16.mxu0 0
        %1958 = vmatpush1.bf16.msra.mxu0 0
        %1959 = vmatprep.subr.bf16.mxu0 %v1851
        %1960 = vmatpush1.bf16.msra.mxu0 %v1848
        %1961 = vmatprep.subr.bf16.mxu0 %v1792
        %1962 = vmatpush1.bf16.msra.mxu0 %v1791
        %1963 = vmatprep.subr.bf16.mxu0 %v1786
        %1964 = vmatpush1.bf16.msra.mxu0 %v1785
        %1965 = vmatprep.subr.bf16.mxu0 %v1780
        %1966 = vmatpush1.bf16.msra.mxu0 %v1779
        %1967 = vmatprep.subr.bf16.mxu0 %v1774
        %1968 = vmatpush1.bf16.msra.mxu0 %v1773
        %1969 = vmatprep.subr.bf16.mxu0 %v1768
        %1970 = vmatpush1.bf16.msra.mxu0 %v1767
        %1971 = vmatprep.subr.bf16.mxu0 0
        %1972 = vmatpush2.bf16.msra.mxu0 0
        %1973 = vmatprep.subr.bf16.mxu0 0
        %1974 = vmatpush2.bf16.msra.mxu0 0
        %1975 = vmatprep.subr.bf16.mxu0 0
        %1976 = vmatpush2.bf16.msra.mxu0 0
        %1977 = vmatprep.subr.bf16.mxu0 0
        %1978 = vmatpush2.bf16.msra.mxu0 0
        %1979 = vmatprep.subr.bf16.mxu0 0
        %1980 = vmatpush2.bf16.msra.mxu0 0
        %1981 = vmatprep.subr.bf16.mxu0 0
        %1982 = vmatpush2.bf16.msra.mxu0 0
        %1983 = vmatprep.subr.bf16.mxu0 0
        %1984 = vmatpush2.bf16.msra.mxu0 0
        %1985 = vmatprep.subr.bf16.mxu0 0
        %1986 = vmatpush2.bf16.msra.mxu0 0
        %1987 = vmatprep.mubr.bf16.mxu0 0
        %1988 = vmatmul.mubr.bf16.gmra.mxu0 %v1830
        %v1989 = vpop.f32.mrf.mxu0
        %v1990 = vadd.f32 0.0, %v1989
        %v1991 = vpop.f32.mrf.mxu0
        %v1992 = vadd.f32 0.0, %v1991
        %v1993 = vpop.f32.mrf.mxu0
        %v1994 = vadd.f32 0.0, %v1993
        %v1995 = vpop.f32.mrf.mxu0
        %v1996 = vadd.f32 0.0, %v1995
        %1997 = vmatprep.mubr.bf16.mxu0 0
        %1998 = vmatmul.mubr.bf16.gmra.mxu0 %v1833
        %v1999 = vpop.f32.mrf.mxu0
        %v2000 = vadd.f32 0.0, %v1999
        %v2001 = vpop.f32.mrf.mxu0
        %v2002 = vadd.f32 0.0, %v2001
        %v2003 = vpop.f32.mrf.mxu0
        %v2004 = vpop.f32.mrf.mxu0
        %2005 = vdwg.mxu0
        %v2006 = vadd.f32 %v1604, %v1888
        %v2007 = vadd.f32 %v1605, %v1890
        %v2008 = vadd.f32 %v1606, %v1939
        %v2009 = vadd.f32 %v1607, %v1941
        %v2010 = vadd.f32 %v1608, %v1990
        %v2011 = vadd.f32 %v1609, %v1992
        %v2012 = vadd.f32 %v1610, %v1892
        %v2013 = vadd.f32 %v1611, %v1894
        %v2014 = vadd.f32 %v1612, %v1943
        %v2015 = vadd.f32 %v1613, %v1945
        %v2016 = vadd.f32 %v1614, %v1994
        %v2017 = vadd.f32 %v1615, %v1996
        %v2018 = vadd.f32 %v1616, %v1898
        %v2019 = vadd.f32 %v1617, %v1900
        %v2020 = vadd.f32 %v1618, %v1949
        %v2021 = vadd.f32 %v1619, %v1951
        %v2022 = vadd.f32 %v1620, %v2000
        %v2023 = vadd.f32 %v1621, %v2002
        %s2024 = scalar_lea.vmem [#allocation2], 1056
        %v2025 = vld [vmem:[%s2024] sm:$0xff]
        %v2026 = vld [vmem:[%s2024 + $0x8] sm:$0xff]
        %v2027 = vld [vmem:[%s2024 + $0x10] sm:$0xff]
        %v2028 = vld [vmem:[%s2024 + $0x18] sm:$0xff]
        %v2029 = vld [vmem:[%s2024 + $0x20] sm:$0xff]
        %v2030 = vld [vmem:[%s2024 + $0x28] sm:$0xff]
        %v2031 = vld [vmem:[%s2024 + $0x30] sm:$0xff]
        %v2032 = vld [vmem:[%s2024 + $0x38] sm:$0xff]
        %v2033 = vld [vmem:[%s2024 + $0x40] sm:$0xff]
        %v2034 = vld [vmem:[%s2024 + $0x48] sm:$0xff]
        %v2035 = vld [vmem:[%s2024 + $0x50] sm:$0xff]
        %v2036 = vld [vmem:[%s2024 + $0x58] sm:$0xff]
        %v2037 = vld [vmem:[%s2024 + $0x60] sm:$0xff]
        %v2038 = vld [vmem:[%s2024 + $0x68] sm:$0xff]
        %v2039 = vld [vmem:[%s2024 + $0x70] sm:$0xff]
        %v2040 = vld [vmem:[%s2024 + $0x78] sm:$0xff]
        %v2041 = vld [vmem:[%s2024 + $0x80] sm:$0xff]
        %v2042 = vld [vmem:[%s2024 + $0x88] sm:$0xff]
        %v2043 = vld [vmem:[%s2024 + $0x90] sm:$0xff]
        %v2044 = vld [vmem:[%s2024 + $0x98] sm:$0xff]
        %v2045 = vld [vmem:[%s2024 + $0xa0] sm:$0xff]
        %v2046 = vld [vmem:[%s2024 + $0xa8] sm:$0xff]
        %v2047 = vld [vmem:[%s2024 + $0xb0] sm:$0xff]
        %v2048 = vld [vmem:[%s2024 + $0xb8] sm:$0xff]
        %v2049 = vld [vmem:[%s2024 + $0xc0] sm:$0xff]
        %v2050 = vld [vmem:[%s2024 + $0xc8] sm:$0xff]
        %v2051 = vld [vmem:[%s2024 + $0xd0] sm:$0xff]
        %v2052 = vld [vmem:[%s2024 + $0xd8] sm:$0xff]
        %v2053 = vld [vmem:[%s2024 + $0xe0] sm:$0xff]
        %v2054 = vld [vmem:[%s2024 + $0xe8] sm:$0xff]
        %v2055 = vld [vmem:[%s2024 + $0xf0] sm:$0x33]
        %v2056 = vld [vmem:[%s2024 + $0xf8] sm:$0x33]
        %v2057 = vld [vmem:[%s2024 + $0x100] sm:$0x33]
        %vm2058 = vcmask 1045504
        %v2059 = vrot.slane %v520, 2
        %v2060 = vrot.slane %v521, 2
        %v2061 = vsel %vm2058, %v2059, %v2060
        %v2095 = vunpack.c.l.b16 %v2025
        %v2096 = vunpack.c.h.b16 %v2025
        %v2097 = vunpack.c.l.b16 %v2026
        %v2098 = vunpack.c.h.b16 %v2026
        %v2099 = vunpack.c.l.b16 %v2027
        %v2100 = vunpack.c.h.b16 %v2027
        %v2101 = vunpack.c.l.b16 %v2028
        %v2102 = vunpack.c.h.b16 %v2028
        %v2103 = vunpack.c.l.b16 %v2029
        %v2104 = vunpack.c.h.b16 %v2029
        %v2105 = vunpack.c.l.b16 %v2030
        %v2106 = vunpack.c.h.b16 %v2030
        %v2107 = vunpack.c.l.b16 %v2031
        %v2108 = vunpack.c.h.b16 %v2031
        %v2109 = vunpack.c.l.b16 %v2032
        %v2110 = vunpack.c.h.b16 %v2032
        %v2111 = vunpack.c.l.b16 %v2033
        %v2112 = vunpack.c.h.b16 %v2033
        %v2113 = vunpack.c.l.b16 %v2034
        %v2114 = vunpack.c.h.b16 %v2034
        %v2115 = vunpack.c.l.b16 %v2035
        %v2116 = vunpack.c.h.b16 %v2035
        %v2117 = vunpack.c.l.b16 %v2036
        %v2118 = vunpack.c.h.b16 %v2036
        %v2119 = vunpack.c.l.b16 %v2037
        %v2120 = vunpack.c.h.b16 %v2037
        %v2121 = vunpack.c.l.b16 %v2038
        %v2122 = vunpack.c.h.b16 %v2038
        %v2123 = vunpack.c.l.b16 %v2039
        %v2124 = vunpack.c.h.b16 %v2039
        %v2125 = vunpack.c.l.b16 %v2040
        %v2126 = vunpack.c.h.b16 %v2040
        %v2127 = vunpack.c.l.b16 %v2041
        %v2128 = vunpack.c.h.b16 %v2041
        %v2129 = vunpack.c.l.b16 %v2042
        %v2130 = vunpack.c.h.b16 %v2042
        %v2131 = vunpack.c.l.b16 %v2043
        %v2132 = vunpack.c.h.b16 %v2043
        %v2133 = vunpack.c.l.b16 %v2044
        %v2134 = vunpack.c.h.b16 %v2044
        %v2135 = vunpack.c.l.b16 %v2045
        %v2136 = vunpack.c.h.b16 %v2045
        %v2137 = vunpack.c.l.b16 %v2046
        %v2138 = vunpack.c.h.b16 %v2046
        %v2139 = vunpack.c.l.b16 %v2047
        %v2140 = vunpack.c.h.b16 %v2047
        %v2141 = vunpack.c.l.b16 %v2048
        %v2142 = vunpack.c.h.b16 %v2048
        %v2143 = vunpack.c.l.b16 %v2049
        %v2144 = vunpack.c.h.b16 %v2049
        %v2145 = vunpack.c.l.b16 %v2050
        %v2146 = vunpack.c.h.b16 %v2050
        %v2147 = vunpack.c.l.b16 %v2051
        %v2148 = vunpack.c.h.b16 %v2051
        %v2149 = vunpack.c.l.b16 %v2052
        %v2150 = vunpack.c.h.b16 %v2052
        %v2151 = vunpack.c.l.b16 %v2053
        %v2152 = vunpack.c.h.b16 %v2053
        %v2153 = vunpack.c.l.b16 %v2054
        %v2154 = vunpack.c.h.b16 %v2054
        %v2155 = vunpack.c.l.b16 %v2055
        %v2156 = vunpack.c.h.b16 %v2055
        %v2157 = vunpack.c.l.b16 %v2056
        %v2158 = vunpack.c.h.b16 %v2056
        %v2159 = vunpack.c.l.b16 %v2057
        %v2160 = vunpack.c.h.b16 %v2057
        %v2161 = vpack.c.b16 %v2101, %v2095
        %v2162 = vpack.c.b16 %v2102, %v2096
        %v2163 = vpack.c.b16 %v2103, %v2097
        %v2164 = vpack.c.b16 %v2104, %v2098
        %v2165 = vpack.c.b16 %v2105, %v2099
        %v2166 = vpack.c.b16 %v2106, %v2100
        %v2167 = vpack.c.b16 %v2113, %v2107
        %v2168 = vpack.c.b16 %v2114, %v2108
        %v2169 = vpack.c.b16 %v2115, %v2109
        %v2170 = vpack.c.b16 %v2116, %v2110
        %v2171 = vpack.c.b16 %v2117, %v2111
        %v2172 = vpack.c.b16 %v2118, %v2112
        %v2173 = vpack.c.b16 %v2125, %v2119
        %v2174 = vpack.c.b16 %v2126, %v2120
        %v2175 = vpack.c.b16 %v2127, %v2121
        %v2176 = vpack.c.b16 %v2128, %v2122
        %v2177 = vpack.c.b16 %v2129, %v2123
        %v2178 = vpack.c.b16 %v2130, %v2124
        %v2179 = vpack.c.b16 %v2137, %v2131
        %v2180 = vpack.c.b16 %v2138, %v2132
        %v2181 = vpack.c.b16 %v2139, %v2133
        %v2182 = vpack.c.b16 %v2140, %v2134
        %v2183 = vpack.c.b16 %v2141, %v2135
        %v2184 = vpack.c.b16 %v2142, %v2136
        %v2185 = vpack.c.b16 %v2149, %v2143
        %v2186 = vpack.c.b16 %v2150, %v2144
        %v2187 = vpack.c.b16 %v2151, %v2145
        %v2188 = vpack.c.b16 %v2152, %v2146
        %v2189 = vpack.c.b16 %v2153, %v2147
        %v2190 = vpack.c.b16 %v2154, %v2148
        %v2191 = vpack.c.b16 %v2155, %v2155
        %v2192 = vpack.c.b16 %v2156, %v2156
        %v2193 = vpack.c.b16 %v2157, %v2157
        %v2194 = vpack.c.b16 %v2158, %v2158
        %v2195 = vpack.c.b16 %v2159, %v2159
        %v2196 = vpack.c.b16 %v2160, %v2160
        %v2228 = vsel %vm703, %v2061, 0
        %v2231 = vsel %vm703, %v2060, 0
        %v2234 = vsel %vm710, %v2191, 0
        %v2237 = vsel %vm710, %v2192, 0
        %v2240 = vsel %vm710, %v2193, 0
        %v2243 = vsel %vm710, %v2194, 0
        %v2246 = vsel %vm710, %v2195, 0
        %v2249 = vsel %vm710, %v2196, 0
        %2251 = vmatprep.subr.bf16.mxu0 0
        %2252 = vmatpush1.bf16.msra.mxu0 0
        %2253 = vmatprep.subr.bf16.mxu0 0
        %2254 = vmatpush1.bf16.msra.mxu0 0
        %2255 = vmatprep.subr.bf16.mxu0 %v2237
        %2256 = vmatpush1.bf16.msra.mxu0 %v2234
        %2257 = vmatprep.subr.bf16.mxu0 %v2186
        %2258 = vmatpush1.bf16.msra.mxu0 %v2185
        %2259 = vmatprep.subr.bf16.mxu0 %v2180
        %2260 = vmatpush1.bf16.msra.mxu0 %v2179
        %2261 = vmatprep.subr.bf16.mxu0 %v2174
        %2262 = vmatpush1.bf16.msra.mxu0 %v2173
        %2263 = vmatprep.subr.bf16.mxu0 %v2168
        %2264 = vmatpush1.bf16.msra.mxu0 %v2167
        %2265 = vmatprep.subr.bf16.mxu0 %v2162
        %2266 = vmatpush1.bf16.msra.mxu0 %v2161
        %2267 = vmatprep.subr.bf16.mxu0 0
        %2268 = vmatpush2.bf16.msra.mxu0 0
        %2269 = vmatprep.subr.bf16.mxu0 0
        %2270 = vmatpush2.bf16.msra.mxu0 0
        %2271 = vmatprep.subr.bf16.mxu0 0
        %2272 = vmatpush2.bf16.msra.mxu0 0
        %2273 = vmatprep.subr.bf16.mxu0 0
        %2274 = vmatpush2.bf16.msra.mxu0 0
        %2275 = vmatprep.subr.bf16.mxu0 0
        %2276 = vmatpush2.bf16.msra.mxu0 0
        %2277 = vmatprep.subr.bf16.mxu0 0
        %2278 = vmatpush2.bf16.msra.mxu0 0
        %2279 = vmatprep.subr.bf16.mxu0 0
        %2280 = vmatpush2.bf16.msra.mxu0 0
        %2281 = vmatprep.subr.bf16.mxu0 0
        %2282 = vmatpush2.bf16.msra.mxu0 0
        %2283 = vmatprep.mubr.bf16.mxu0 0
        %2284 = vmatmul.mubr.bf16.gmra.mxu0 %v2228
        %v2285 = vpop.f32.mrf.mxu0
        %v2286 = vadd.f32 0.0, %v2285
        %v2287 = vpop.f32.mrf.mxu0
        %v2288 = vadd.f32 0.0, %v2287
        %v2289 = vpop.f32.mrf.mxu0
        %v2290 = vadd.f32 0.0, %v2289
        %v2291 = vpop.f32.mrf.mxu0
        %v2292 = vadd.f32 0.0, %v2291
        %2293 = vmatprep.mubr.bf16.mxu0 0
        %2294 = vmatmul.mubr.bf16.gmra.mxu0 %v2231
        %v2295 = vpop.f32.mrf.mxu0
        %v2296 = vadd.f32 0.0, %v2295
        %v2297 = vpop.f32.mrf.mxu0
        %v2298 = vadd.f32 0.0, %v2297
        %v2299 = vpop.f32.mrf.mxu0
        %v2300 = vpop.f32.mrf.mxu0
        %2301 = vdwg.mxu0
        %2302 = vmatprep.subr.bf16.mxu0 0
        %2303 = vmatpush1.bf16.msra.mxu0 0
        %2304 = vmatprep.subr.bf16.mxu0 0
        %2305 = vmatpush1.bf16.msra.mxu0 0
        %2306 = vmatprep.subr.bf16.mxu0 %v2243
        %2307 = vmatpush1.bf16.msra.mxu0 %v2240
        %2308 = vmatprep.subr.bf16.mxu0 %v2188
        %2309 = vmatpush1.bf16.msra.mxu0 %v2187
        %2310 = vmatprep.subr.bf16.mxu0 %v2182
        %2311 = vmatpush1.bf16.msra.mxu0 %v2181
        %2312 = vmatprep.subr.bf16.mxu0 %v2176
        %2313 = vmatpush1.bf16.msra.mxu0 %v2175
        %2314 = vmatprep.subr.bf16.mxu0 %v2170
        %2315 = vmatpush1.bf16.msra.mxu0 %v2169
        %2316 = vmatprep.subr.bf16.mxu0 %v2164
        %2317 = vmatpush1.bf16.msra.mxu0 %v2163
        %2318 = vmatprep.subr.bf16.mxu0 0
        %2319 = vmatpush2.bf16.msra.mxu0 0
        %2320 = vmatprep.subr.bf16.mxu0 0
        %2321 = vmatpush2.bf16.msra.mxu0 0
        %2322 = vmatprep.subr.bf16.mxu0 0
        %2323 = vmatpush2.bf16.msra.mxu0 0
        %2324 = vmatprep.subr.bf16.mxu0 0
        %2325 = vmatpush2.bf16.msra.mxu0 0
        %2326 = vmatprep.subr.bf16.mxu0 0
        %2327 = vmatpush2.bf16.msra.mxu0 0
        %2328 = vmatprep.subr.bf16.mxu0 0
        %2329 = vmatpush2.bf16.msra.mxu0 0
        %2330 = vmatprep.subr.bf16.mxu0 0
        %2331 = vmatpush2.bf16.msra.mxu0 0
        %2332 = vmatprep.subr.bf16.mxu0 0
        %2333 = vmatpush2.bf16.msra.mxu0 0
        %2334 = vmatprep.mubr.bf16.mxu0 0
        %2335 = vmatmul.mubr.bf16.gmra.mxu0 %v2228
        %v2336 = vpop.f32.mrf.mxu0
        %v2337 = vadd.f32 0.0, %v2336
        %v2338 = vpop.f32.mrf.mxu0
        %v2339 = vadd.f32 0.0, %v2338
        %v2340 = vpop.f32.mrf.mxu0
        %v2341 = vadd.f32 0.0, %v2340
        %v2342 = vpop.f32.mrf.mxu0
        %v2343 = vadd.f32 0.0, %v2342
        %2344 = vmatprep.mubr.bf16.mxu0 0
        %2345 = vmatmul.mubr.bf16.gmra.mxu0 %v2231
        %v2346 = vpop.f32.mrf.mxu0
        %v2347 = vadd.f32 0.0, %v2346
        %v2348 = vpop.f32.mrf.mxu0
        %v2349 = vadd.f32 0.0, %v2348
        %v2350 = vpop.f32.mrf.mxu0
        %v2351 = vpop.f32.mrf.mxu0
        %2352 = vdwg.mxu0
        %2353 = vmatprep.subr.bf16.mxu0 0
        %2354 = vmatpush1.bf16.msra.mxu0 0
        %2355 = vmatprep.subr.bf16.mxu0 0
        %2356 = vmatpush1.bf16.msra.mxu0 0
        %2357 = vmatprep.subr.bf16.mxu0 %v2249
        %2358 = vmatpush1.bf16.msra.mxu0 %v2246
        %2359 = vmatprep.subr.bf16.mxu0 %v2190
        %2360 = vmatpush1.bf16.msra.mxu0 %v2189
        %2361 = vmatprep.subr.bf16.mxu0 %v2184
        %2362 = vmatpush1.bf16.msra.mxu0 %v2183
        %2363 = vmatprep.subr.bf16.mxu0 %v2178
        %2364 = vmatpush1.bf16.msra.mxu0 %v2177
        %2365 = vmatprep.subr.bf16.mxu0 %v2172
        %2366 = vmatpush1.bf16.msra.mxu0 %v2171
        %2367 = vmatprep.subr.bf16.mxu0 %v2166
        %2368 = vmatpush1.bf16.msra.mxu0 %v2165
        %2369 = vmatprep.subr.bf16.mxu0 0
        %2370 = vmatpush2.bf16.msra.mxu0 0
        %2371 = vmatprep.subr.bf16.mxu0 0
        %2372 = vmatpush2.bf16.msra.mxu0 0
        %2373 = vmatprep.subr.bf16.mxu0 0
        %2374 = vmatpush2.bf16.msra.mxu0 0
        %2375 = vmatprep.subr.bf16.mxu0 0
        %2376 = vmatpush2.bf16.msra.mxu0 0
        %2377 = vmatprep.subr.bf16.mxu0 0
        %2378 = vmatpush2.bf16.msra.mxu0 0
        %2379 = vmatprep.subr.bf16.mxu0 0
        %2380 = vmatpush2.bf16.msra.mxu0 0
        %2381 = vmatprep.subr.bf16.mxu0 0
        %2382 = vmatpush2.bf16.msra.mxu0 0
        %2383 = vmatprep.subr.bf16.mxu0 0
        %2384 = vmatpush2.bf16.msra.mxu0 0
        %2385 = vmatprep.mubr.bf16.mxu0 0
        %2386 = vmatmul.mubr.bf16.gmra.mxu0 %v2228
        %v2387 = vpop.f32.mrf.mxu0
        %v2388 = vadd.f32 0.0, %v2387
        %v2389 = vpop.f32.mrf.mxu0
        %v2390 = vadd.f32 0.0, %v2389
        %v2391 = vpop.f32.mrf.mxu0
        %v2392 = vadd.f32 0.0, %v2391
        %v2393 = vpop.f32.mrf.mxu0
        %v2394 = vadd.f32 0.0, %v2393
        %2395 = vmatprep.mubr.bf16.mxu0 0
        %2396 = vmatmul.mubr.bf16.gmra.mxu0 %v2231
        %v2397 = vpop.f32.mrf.mxu0
        %v2398 = vadd.f32 0.0, %v2397
        %v2399 = vpop.f32.mrf.mxu0
        %v2400 = vadd.f32 0.0, %v2399
        %v2401 = vpop.f32.mrf.mxu0
        %v2402 = vpop.f32.mrf.mxu0
        %2403 = vdwg.mxu0
        %v2404 = vadd.f32 %v2006, %v2286
        %v2405 = vadd.f32 %v2007, %v2288
        %v2406 = vadd.f32 %v2008, %v2337
        %v2407 = vadd.f32 %v2009, %v2339
        %v2408 = vadd.f32 %v2010, %v2388
        %v2409 = vadd.f32 %v2011, %v2390
        %v2410 = vadd.f32 %v2012, %v2290
        %v2411 = vadd.f32 %v2013, %v2292
        %v2412 = vadd.f32 %v2014, %v2341
        %v2413 = vadd.f32 %v2015, %v2343
        %v2414 = vadd.f32 %v2016, %v2392
        %v2415 = vadd.f32 %v2017, %v2394
        %v2416 = vadd.f32 %v2018, %v2296
        %v2417 = vadd.f32 %v2019, %v2298
        %v2418 = vadd.f32 %v2020, %v2347
        %v2419 = vadd.f32 %v2021, %v2349
        %v2420 = vadd.f32 %v2022, %v2398
        %v2421 = vadd.f32 %v2023, %v2400
        %v2423 = vlaneseq
        %v2424 = vshrl.u32 %v2423, 7
        %v2425 = vsub.s32 0, %v2424
        %v2426 = vrot.slane %v444, %v2425
        %v2427 = vlaneseq
        %v2428 = vshrl.u32 %v2427, 7
        %v2429 = vsub.s32 1, %v2428
        %v2430 = vrot.slane %v444, %v2429
        %v2431 = vlaneseq
        %v2432 = vshrl.u32 %v2431, 7
        %v2433 = vsub.s32 2, %v2432
        %v2434 = vrot.slane %v444, %v2433
        %v2435 = vlaneseq
        %v2436 = vshrl.u32 %v2435, 7
        %v2437 = vsub.s32 3, %v2436
        %v2438 = vrot.slane %v444, %v2437
        %v2439 = vlaneseq
        %v2440 = vshrl.u32 %v2439, 7
        %v2441 = vsub.s32 4, %v2440
        %v2442 = vrot.slane %v444, %v2441
        %v2443 = vlaneseq
        %v2444 = vshrl.u32 %v2443, 7
        %v2445 = vsub.s32 5, %v2444
        %v2446 = vrot.slane %v444, %v2445
        %v2453 = vadd.f32 %v2404, %v2426
        %v2454 = vadd.f32 %v2405, %v2430
        %v2455 = vadd.f32 %v2406, %v2434
        %v2456 = vadd.f32 %v2407, %v2438
        %v2457 = vadd.f32 %v2408, %v2442
        %v2458 = vadd.f32 %v2409, %v2446
        %v2459 = vadd.f32 %v2410, %v2426
        %v2460 = vadd.f32 %v2411, %v2430
        %v2461 = vadd.f32 %v2412, %v2434
        %v2462 = vadd.f32 %v2413, %v2438
        %v2463 = vadd.f32 %v2414, %v2442
        %v2464 = vadd.f32 %v2415, %v2446
        %v2465 = vadd.f32 %v2416, %v2426
        %v2466 = vadd.f32 %v2417, %v2430
        %v2467 = vadd.f32 %v2418, %v2434
        %v2468 = vadd.f32 %v2419, %v2438
        %v2469 = vadd.f32 %v2420, %v2442
        %v2470 = vadd.f32 %v2421, %v2446
        %v2471 = vmax.f32 %v2453, 0.0
        %v2472 = vmax.f32 %v2454, 0.0
        %v2473 = vmax.f32 %v2455, 0.0
        %v2474 = vmax.f32 %v2456, 0.0
        %v2475 = vmax.f32 %v2457, 0.0
        %v2476 = vmax.f32 %v2458, 0.0
        %v2477 = vmax.f32 %v2459, 0.0
        %v2478 = vmax.f32 %v2460, 0.0
        %v2479 = vmax.f32 %v2461, 0.0
        %v2480 = vmax.f32 %v2462, 0.0
        %v2481 = vmax.f32 %v2463, 0.0
        %v2482 = vmax.f32 %v2464, 0.0
        %v2483 = vmax.f32 %v2465, 0.0
        %v2484 = vmax.f32 %v2466, 0.0
        %v2485 = vmax.f32 %v2467, 0.0
        %v2486 = vmax.f32 %v2468, 0.0
        %v2487 = vmax.f32 %v2469, 0.0
        %v2488 = vmax.f32 %v2470, 0.0
        %v2489 = vmax.f32 %v2471, %v2474
        %v2490 = vmax.f32 %v2472, %v2475
        %v2491 = vmax.f32 %v2473, %v2476
        %v2492 = vmax.f32 %v2477, %v2480
        %v2493 = vmax.f32 %v2478, %v2481
        %v2494 = vmax.f32 %v2479, %v2482
        %v2495 = vmax.f32 %v2483, %v2486
        %v2496 = vmax.f32 %v2484, %v2487
        %v2497 = vmax.f32 %v2485, %v2488
        %v2498 = vpack.c.bf16 %v2492, %v2489
        %v2499 = vpack.c.bf16 %v2493, %v2490
        %v2500 = vpack.c.bf16 %v2494, %v2491
        %v2501 = vpack.c.bf16 %v2495, %v2495
        %v2502 = vpack.c.bf16 %v2496, %v2496
        %v2503 = vpack.c.bf16 %v2497, %v2497
        %vm2504 = vsmask.f32 256
        %v2505 = vsel %vm2504, %v2498, 0
        %v2506 = vrot.slane %v2498, 1
        %v2508 = vshll.u32 %v2506, 16
        %vm2510 = vsmask.f32 770
        %v2511 = vsel %vm2510, %v2508, %v2505
        %vm2512 = vsmask.f32 1284
        %v2513 = vsel %vm2512, %v2506, %v2511
        %v2514 = vrot.slane %v2498, 2
        %v2516 = vshll.u32 %v2514, 16
        %vm2518 = vsmask.f32 1798
        %v2519 = vsel %vm2518, %v2516, %v2513
        %vm2520 = vsmask.f32 2312
        %v2521 = vsel %vm2520, %v2514, %v2519
        %v2522 = vrot.slane %v2498, 3
        %v2524 = vshll.u32 %v2522, 16
        %vm2526 = vsmask.f32 2826
        %v2527 = vsel %vm2526, %v2524, %v2521
        %vm2528 = vsmask.f32 3340
        %v2529 = vsel %vm2528, %v2522, %v2527
        %v2530 = vrot.slane %v2498, 4
        %v2532 = vshll.u32 %v2530, 16
        %vm2534 = vsmask.f32 3854
        %v2535 = vsel %vm2534, %v2532, %v2529
        %v2536 = vrot.slane %v2501, 4
        %vm2537 = vsmask.f32 4368
        %v2538 = vsel %vm2537, %v2536, %v2535
        %v2539 = vrot.slane %v2501, 5
        %v2541 = vshll.u32 %v2539, 16
        %vm2543 = vsmask.f32 4882
        %v2544 = vsel %vm2543, %v2541, %v2538
        %vm2545 = vsmask.f32 5396
        %v2546 = vsel %vm2545, %v2539, %v2544
        %v2547 = vrot.slane %v2501, 6
        %v2549 = vshll.u32 %v2547, 16
        %vm2551 = vsmask.f32 5910
        %v2552 = vsel %vm2551, %v2549, %v2546
        %v2553 = vsel %vm2504, %v2499, 0
        %v2554 = vrot.slane %v2499, 1
        %v2556 = vshll.u32 %v2554, 16
        %v2558 = vsel %vm2510, %v2556, %v2553
        %v2559 = vsel %vm2512, %v2554, %v2558
        %v2560 = vrot.slane %v2499, 2
        %v2562 = vshll.u32 %v2560, 16
        %v2564 = vsel %vm2518, %v2562, %v2559
        %v2565 = vsel %vm2520, %v2560, %v2564
        %v2566 = vrot.slane %v2499, 3
        %v2568 = vshll.u32 %v2566, 16
        %v2570 = vsel %vm2526, %v2568, %v2565
        %v2571 = vsel %vm2528, %v2566, %v2570
        %v2572 = vrot.slane %v2499, 4
        %v2574 = vshll.u32 %v2572, 16
        %v2576 = vsel %vm2534, %v2574, %v2571
        %v2577 = vrot.slane %v2502, 4
        %v2578 = vsel %vm2537, %v2577, %v2576
        %v2579 = vrot.slane %v2502, 5
        %v2581 = vshll.u32 %v2579, 16
        %v2583 = vsel %vm2543, %v2581, %v2578
        %v2584 = vsel %vm2545, %v2579, %v2583
        %v2585 = vrot.slane %v2502, 6
        %v2587 = vshll.u32 %v2585, 16
        %v2589 = vsel %vm2551, %v2587, %v2584
        %v2590 = vsel %vm2504, %v2500, 0
        %v2591 = vrot.slane %v2500, 1
        %v2593 = vshll.u32 %v2591, 16
        %v2595 = vsel %vm2510, %v2593, %v2590
        %v2596 = vsel %vm2512, %v2591, %v2595
        %v2597 = vrot.slane %v2500, 2
        %v2599 = vshll.u32 %v2597, 16
        %v2601 = vsel %vm2518, %v2599, %v2596
        %v2602 = vsel %vm2520, %v2597, %v2601
        %v2603 = vrot.slane %v2500, 3
        %v2605 = vshll.u32 %v2603, 16
        %v2607 = vsel %vm2526, %v2605, %v2602
        %v2608 = vsel %vm2528, %v2603, %v2607
        %v2609 = vrot.slane %v2500, 4
        %v2611 = vshll.u32 %v2609, 16
        %v2613 = vsel %vm2534, %v2611, %v2608
        %v2614 = vrot.slane %v2503, 4
        %v2615 = vsel %vm2537, %v2614, %v2613
        %v2616 = vrot.slane %v2503, 5
        %v2618 = vshll.u32 %v2616, 16
        %v2620 = vsel %vm2543, %v2618, %v2615
        %v2621 = vsel %vm2545, %v2616, %v2620
        %v2622 = vrot.slane %v2503, 6
        %v2624 = vshll.u32 %v2622, 16
        %v2626 = vsel %vm2551, %v2624, %v2621
        %v2628 = vshrl.u32 %v2498, 16
        %v2630 = vsel %vm2504, %v2628, 0
        %v2631 = vsel %vm2510, %v2506, %v2630
        %v2632 = vshrl.u32 %v2506, 16
        %v2634 = vsel %vm2512, %v2632, %v2631
        %v2635 = vsel %vm2518, %v2514, %v2634
        %v2636 = vshrl.u32 %v2514, 16
        %v2638 = vsel %vm2520, %v2636, %v2635
        %v2639 = vsel %vm2526, %v2522, %v2638
        %v2640 = vshrl.u32 %v2522, 16
        %v2642 = vsel %vm2528, %v2640, %v2639
        %v2643 = vsel %vm2534, %v2530, %v2642
        %v2645 = vshrl.u32 %v2536, 16
        %v2647 = vsel %vm2537, %v2645, %v2643
        %v2648 = vsel %vm2543, %v2539, %v2647
        %v2649 = vshrl.u32 %v2539, 16
        %v2651 = vsel %vm2545, %v2649, %v2648
        %v2652 = vsel %vm2551, %v2547, %v2651
        %v2654 = vshrl.u32 %v2499, 16
        %v2656 = vsel %vm2504, %v2654, 0
        %v2657 = vsel %vm2510, %v2554, %v2656
        %v2658 = vshrl.u32 %v2554, 16
        %v2660 = vsel %vm2512, %v2658, %v2657
        %v2661 = vsel %vm2518, %v2560, %v2660
        %v2662 = vshrl.u32 %v2560, 16
        %v2664 = vsel %vm2520, %v2662, %v2661
        %v2665 = vsel %vm2526, %v2566, %v2664
        %v2666 = vshrl.u32 %v2566, 16
        %v2668 = vsel %vm2528, %v2666, %v2665
        %v2669 = vsel %vm2534, %v2572, %v2668
        %v2671 = vshrl.u32 %v2577, 16
        %v2673 = vsel %vm2537, %v2671, %v2669
        %v2674 = vsel %vm2543, %v2579, %v2673
        %v2675 = vshrl.u32 %v2579, 16
        %v2677 = vsel %vm2545, %v2675, %v2674
        %v2678 = vsel %vm2551, %v2585, %v2677
        %v2680 = vshrl.u32 %v2500, 16
        %v2682 = vsel %vm2504, %v2680, 0
        %v2683 = vsel %vm2510, %v2591, %v2682
        %v2684 = vshrl.u32 %v2591, 16
        %v2686 = vsel %vm2512, %v2684, %v2683
        %v2687 = vsel %vm2518, %v2597, %v2686
        %v2688 = vshrl.u32 %v2597, 16
        %v2690 = vsel %vm2520, %v2688, %v2687
        %v2691 = vsel %vm2526, %v2603, %v2690
        %v2692 = vshrl.u32 %v2603, 16
        %v2694 = vsel %vm2528, %v2692, %v2691
        %v2695 = vsel %vm2534, %v2609, %v2694
        %v2697 = vshrl.u32 %v2614, 16
        %v2699 = vsel %vm2537, %v2697, %v2695
        %v2700 = vsel %vm2543, %v2616, %v2699
        %v2701 = vshrl.u32 %v2616, 16
        %v2703 = vsel %vm2545, %v2701, %v2700
        %v2704 = vsel %vm2551, %v2622, %v2703
        %v2705 = vmax.bf16 %v2552, %v2652
        %v2706 = vmax.bf16 %v2589, %v2678
        %v2707 = vmax.bf16 %v2626, %v2704
        %v2708 = vld [vmem:[#allocation8] sm:$0xf]
        %v2709 = vld [vmem:[#allocation7] sm:$0xff]
        %v2710 = vld [vmem:[#allocation7 + $0x8] sm:$0xff]
        %v2711 = vld [vmem:[#allocation7 + $0x10] sm:$0xff]
        %v2712 = vld [vmem:[#allocation7 + $0x18] sm:$0xff]
        %v2713 = vld [vmem:[#allocation7 + $0x20] sm:$0xff]
        %v2714 = vld [vmem:[#allocation7 + $0x28] sm:$0xff]
        %v2715 = vld [vmem:[#allocation7 + $0x30] sm:$0xff]
        %v2716 = vld [vmem:[#allocation7 + $0x38] sm:$0xff]
        %v2717 = vld [vmem:[#allocation7 + $0x40] sm:$0xff]
        %v2718 = vld [vmem:[#allocation7 + $0x48] sm:$0xff]
        %v2719 = vld [vmem:[#allocation7 + $0x50] sm:$0xff]
        %v2720 = vld [vmem:[#allocation7 + $0x58] sm:$0xff]
        %v2721 = vld [vmem:[#allocation7 + $0x60] sm:$0xff]
        %v2722 = vld [vmem:[#allocation7 + $0x68] sm:$0xff]
        %v2723 = vld [vmem:[#allocation7 + $0x70] sm:$0xff]
        %v2724 = vld [vmem:[#allocation7 + $0x78] sm:$0xff]
        %v2725 = vld [vmem:[#allocation7 + $0x80] sm:$0xff]
        %v2726 = vld [vmem:[#allocation7 + $0x88] sm:$0xff]
        %v2727 = vld [vmem:[#allocation7 + $0x90] sm:$0xff]
        %v2728 = vld [vmem:[#allocation7 + $0x98] sm:$0xff]
        %v2729 = vld [vmem:[#allocation7 + $0xa0] sm:$0xff]
        %v2730 = vld [vmem:[#allocation7 + $0xa8] sm:$0xff]
        %v2731 = vld [vmem:[#allocation7 + $0xb0] sm:$0xff]
        %v2732 = vld [vmem:[#allocation7 + $0xb8] sm:$0xff]
        %v2733 = vld [vmem:[#allocation7 + $0xc0] sm:$0xff]
        %v2734 = vld [vmem:[#allocation7 + $0xc8] sm:$0xff]
        %v2735 = vld [vmem:[#allocation7 + $0xd0] sm:$0xff]
        %v2736 = vld [vmem:[#allocation7 + $0xd8] sm:$0xff]
        %v2737 = vld [vmem:[#allocation7 + $0xe0] sm:$0xff]
        %v2738 = vld [vmem:[#allocation7 + $0xe8] sm:$0xff]
        %v2739 = vld [vmem:[#allocation7 + $0xf0] sm:$0xff]
        %v2740 = vld [vmem:[#allocation7 + $0xf8] sm:$0xff]
        %v2741 = vld [vmem:[#allocation7 + $0x100] sm:$0xff]
        %v2742 = vld [vmem:[#allocation7 + $0x108] sm:$0xff]
        %v2743 = vld [vmem:[#allocation7 + $0x110] sm:$0xff]
        %v2744 = vld [vmem:[#allocation7 + $0x118] sm:$0xff]
        %v2745 = vld [vmem:[#allocation7 + $0x120] sm:$0xff]
        %v2746 = vld [vmem:[#allocation7 + $0x128] sm:$0xff]
        %v2747 = vld [vmem:[#allocation7 + $0x130] sm:$0xff]
        %v2748 = vld [vmem:[#allocation7 + $0x138] sm:$0xff]
        %v2749 = vld [vmem:[#allocation7 + $0x140] sm:$0xff]
        %v2750 = vld [vmem:[#allocation7 + $0x148] sm:$0xff]
        %v2751 = vld [vmem:[#allocation7 + $0x150] sm:$0xff]
        %v2752 = vld [vmem:[#allocation7 + $0x158] sm:$0xff]
        %v2753 = vld [vmem:[#allocation7 + $0x160] sm:$0xff]
        %v2754 = vld [vmem:[#allocation7 + $0x168] sm:$0xff]
        %v2755 = vld [vmem:[#allocation7 + $0x170] sm:$0xff]
        %v2756 = vld [vmem:[#allocation7 + $0x178] sm:$0xff]
        %v2757 = vld [vmem:[#allocation7 + $0x180] sm:$0xff]
        %v2758 = vld [vmem:[#allocation7 + $0x188] sm:$0xff]
        %v2759 = vld [vmem:[#allocation7 + $0x190] sm:$0xff]
        %v2760 = vld [vmem:[#allocation7 + $0x198] sm:$0xff]
        %v2761 = vld [vmem:[#allocation7 + $0x1a0] sm:$0xff]
        %v2762 = vld [vmem:[#allocation7 + $0x1a8] sm:$0xff]
        %v2763 = vld [vmem:[#allocation7 + $0x1b0] sm:$0xff]
        %v2764 = vld [vmem:[#allocation7 + $0x1b8] sm:$0xff]
        %v2765 = vld [vmem:[#allocation7 + $0x1c0] sm:$0xff]
        %v2766 = vld [vmem:[#allocation7 + $0x1c8] sm:$0xff]
        %v2767 = vld [vmem:[#allocation7 + $0x1d0] sm:$0xff]
        %v2768 = vld [vmem:[#allocation7 + $0x1d8] sm:$0xff]
        %v2769 = vld [vmem:[#allocation7 + $0x1e0] sm:$0xff]
        %v2770 = vld [vmem:[#allocation7 + $0x1e8] sm:$0xff]
        %v2771 = vld [vmem:[#allocation7 + $0x1f0] sm:$0xff]
        %v2772 = vld [vmem:[#allocation7 + $0x1f8] sm:$0xff]
        %v2773 = vld [vmem:[#allocation7 + $0x200] sm:$0xff]
        %v2774 = vld [vmem:[#allocation7 + $0x208] sm:$0xff]
        %v2775 = vld [vmem:[#allocation7 + $0x210] sm:$0xff]
        %v2776 = vld [vmem:[#allocation7 + $0x218] sm:$0xff]
        %v2777 = vld [vmem:[#allocation7 + $0x220] sm:$0xff]
        %v2778 = vld [vmem:[#allocation7 + $0x228] sm:$0xff]
        %v2779 = vld [vmem:[#allocation7 + $0x230] sm:$0xff]
        %v2780 = vld [vmem:[#allocation7 + $0x238] sm:$0xff]
        %v2781 = vld [vmem:[#allocation7 + $0x240] sm:$0xff]
        %v2782 = vld [vmem:[#allocation7 + $0x248] sm:$0xff]
        %v2783 = vld [vmem:[#allocation7 + $0x250] sm:$0xff]
        %v2784 = vld [vmem:[#allocation7 + $0x258] sm:$0xff]
        %v2785 = vld [vmem:[#allocation7 + $0x260] sm:$0xff]
        %v2786 = vld [vmem:[#allocation7 + $0x268] sm:$0xff]
        %v2787 = vld [vmem:[#allocation7 + $0x270] sm:$0xff]
        %v2788 = vld [vmem:[#allocation7 + $0x278] sm:$0xff]
        %v2789 = vld [vmem:[#allocation7 + $0x280] sm:$0xff]
        %v2790 = vld [vmem:[#allocation7 + $0x288] sm:$0xff]
        %v2791 = vld [vmem:[#allocation7 + $0x290] sm:$0xff]
        %v2792 = vld [vmem:[#allocation7 + $0x298] sm:$0xff]
        %v2793 = vld [vmem:[#allocation7 + $0x2a0] sm:$0xff]
        %v2794 = vld [vmem:[#allocation7 + $0x2a8] sm:$0xff]
        %v2795 = vld [vmem:[#allocation7 + $0x2b0] sm:$0xff]
        %v2796 = vld [vmem:[#allocation7 + $0x2b8] sm:$0xff]
        %v2797 = vld [vmem:[#allocation7 + $0x2c0] sm:$0xff]
        %v2798 = vld [vmem:[#allocation7 + $0x2c8] sm:$0xff]
        %v2799 = vld [vmem:[#allocation7 + $0x2d0] sm:$0xff]
        %v2800 = vld [vmem:[#allocation7 + $0x2d8] sm:$0xff]
        %v2801 = vld [vmem:[#allocation7 + $0x2e0] sm:$0xff]
        %v2802 = vld [vmem:[#allocation7 + $0x2e8] sm:$0xff]
        %v2803 = vld [vmem:[#allocation7 + $0x2f0] sm:$0xff]
        %v2804 = vld [vmem:[#allocation7 + $0x2f8] sm:$0xff]
        %s2805 = scalar_lea.vmem [#allocation7], 768
        %v2806 = vld [vmem:[%s2805] sm:$0xff]
        %v2807 = vld [vmem:[%s2805 + $0x8] sm:$0xff]
        %v2808 = vld [vmem:[%s2805 + $0x10] sm:$0xff]
        %v2809 = vld [vmem:[%s2805 + $0x18] sm:$0xff]
        %v2810 = vld [vmem:[%s2805 + $0x20] sm:$0xff]
        %v2811 = vld [vmem:[%s2805 + $0x28] sm:$0xff]
        %v2812 = vld [vmem:[%s2805 + $0x30] sm:$0xff]
        %v2813 = vld [vmem:[%s2805 + $0x38] sm:$0xff]
        %v2814 = vld [vmem:[%s2805 + $0x40] sm:$0xff]
        %v2815 = vld [vmem:[%s2805 + $0x48] sm:$0xff]
        %v2816 = vld [vmem:[%s2805 + $0x50] sm:$0xff]
        %v2817 = vld [vmem:[%s2805 + $0x58] sm:$0xff]
        %v2818 = vld [vmem:[%s2805 + $0x60] sm:$0xff]
        %v2819 = vld [vmem:[%s2805 + $0x68] sm:$0xff]
        %v2820 = vld [vmem:[%s2805 + $0x70] sm:$0xff]
        %v2821 = vld [vmem:[%s2805 + $0x78] sm:$0xff]
        %v2822 = vld [vmem:[%s2805 + $0x80] sm:$0xff]
        %v2823 = vld [vmem:[%s2805 + $0x88] sm:$0xff]
        %v2824 = vld [vmem:[%s2805 + $0x90] sm:$0xff]
        %v2825 = vld [vmem:[%s2805 + $0x98] sm:$0xff]
        %v2826 = vld [vmem:[%s2805 + $0xa0] sm:$0xff]
        %v2827 = vld [vmem:[%s2805 + $0xa8] sm:$0xff]
        %v2828 = vld [vmem:[%s2805 + $0xb0] sm:$0xff]
        %v2829 = vld [vmem:[%s2805 + $0xb8] sm:$0xff]
        %v2830 = vld [vmem:[%s2805 + $0xc0] sm:$0xff]
        %v2831 = vld [vmem:[%s2805 + $0xc8] sm:$0xff]
        %v2832 = vld [vmem:[%s2805 + $0xd0] sm:$0xff]
        %v2833 = vld [vmem:[%s2805 + $0xd8] sm:$0xff]
        %v2834 = vld [vmem:[%s2805 + $0xe0] sm:$0xff]
        %v2835 = vld [vmem:[%s2805 + $0xe8] sm:$0xff]
        %v2836 = vld [vmem:[%s2805 + $0xf0] sm:$0xff]
        %v2837 = vld [vmem:[%s2805 + $0xf8] sm:$0xff]
        %v2838 = vld [vmem:[%s2805 + $0x100] sm:$0xff]
        %v2839 = vld [vmem:[%s2805 + $0x108] sm:$0xff]
        %v2840 = vld [vmem:[%s2805 + $0x110] sm:$0xff]
        %v2841 = vld [vmem:[%s2805 + $0x118] sm:$0xff]
        %v2842 = vld [vmem:[%s2805 + $0x120] sm:$0xff]
        %v2843 = vld [vmem:[%s2805 + $0x128] sm:$0xff]
        %v2844 = vld [vmem:[%s2805 + $0x130] sm:$0xff]
        %v2845 = vld [vmem:[%s2805 + $0x138] sm:$0xff]
        %v2846 = vld [vmem:[%s2805 + $0x140] sm:$0xff]
        %v2847 = vld [vmem:[%s2805 + $0x148] sm:$0xff]
        %v2848 = vld [vmem:[%s2805 + $0x150] sm:$0xff]
        %v2849 = vld [vmem:[%s2805 + $0x158] sm:$0xff]
        %v2850 = vld [vmem:[%s2805 + $0x160] sm:$0xff]
        %v2851 = vld [vmem:[%s2805 + $0x168] sm:$0xff]
        %v2852 = vld [vmem:[%s2805 + $0x170] sm:$0xff]
        %v2853 = vld [vmem:[%s2805 + $0x178] sm:$0xff]
        %v2854 = vld [vmem:[%s2805 + $0x180] sm:$0xff]
        %v2855 = vld [vmem:[%s2805 + $0x188] sm:$0xff]
        %v2856 = vld [vmem:[%s2805 + $0x190] sm:$0xff]
        %v2857 = vld [vmem:[%s2805 + $0x198] sm:$0xff]
        %v2858 = vld [vmem:[%s2805 + $0x1a0] sm:$0xff]
        %v2859 = vld [vmem:[%s2805 + $0x1a8] sm:$0xff]
        %v2860 = vld [vmem:[%s2805 + $0x1b0] sm:$0xff]
        %v2861 = vld [vmem:[%s2805 + $0x1b8] sm:$0xff]
        %v2862 = vld [vmem:[%s2805 + $0x1c0] sm:$0xff]
        %v2863 = vld [vmem:[%s2805 + $0x1c8] sm:$0xff]
        %v2864 = vld [vmem:[%s2805 + $0x1d0] sm:$0xff]
        %v2865 = vld [vmem:[%s2805 + $0x1d8] sm:$0xff]
        %v2866 = vld [vmem:[%s2805 + $0x1e0] sm:$0xff]
        %v2867 = vld [vmem:[%s2805 + $0x1e8] sm:$0xff]
        %v2868 = vld [vmem:[%s2805 + $0x1f0] sm:$0xff]
        %v2869 = vld [vmem:[%s2805 + $0x1f8] sm:$0xff]
        %v2870 = vld [vmem:[%s2805 + $0x200] sm:$0xff]
        %v2871 = vld [vmem:[%s2805 + $0x208] sm:$0xff]
        %v2872 = vld [vmem:[%s2805 + $0x210] sm:$0xff]
        %v2873 = vld [vmem:[%s2805 + $0x218] sm:$0xff]
        %v2874 = vld [vmem:[%s2805 + $0x220] sm:$0xff]
        %v2875 = vld [vmem:[%s2805 + $0x228] sm:$0xff]
        %v2876 = vld [vmem:[%s2805 + $0x230] sm:$0xff]
        %v2877 = vld [vmem:[%s2805 + $0x238] sm:$0xff]
        %v2878 = vld [vmem:[%s2805 + $0x240] sm:$0xff]
        %v2879 = vld [vmem:[%s2805 + $0x248] sm:$0xff]
        %v2880 = vld [vmem:[%s2805 + $0x250] sm:$0xff]
        %v2881 = vld [vmem:[%s2805 + $0x258] sm:$0xff]
        %v2882 = vld [vmem:[%s2805 + $0x260] sm:$0xff]
        %v2883 = vld [vmem:[%s2805 + $0x268] sm:$0xff]
        %v2884 = vld [vmem:[%s2805 + $0x270] sm:$0xff]
        %v2885 = vld [vmem:[%s2805 + $0x278] sm:$0xff]
        %v2886 = vld [vmem:[%s2805 + $0x280] sm:$0xff]
        %v2887 = vld [vmem:[%s2805 + $0x288] sm:$0xff]
        %v2888 = vld [vmem:[%s2805 + $0x290] sm:$0xff]
        %v2889 = vld [vmem:[%s2805 + $0x298] sm:$0xff]
        %v2890 = vld [vmem:[%s2805 + $0x2a0] sm:$0xff]
        %v2891 = vld [vmem:[%s2805 + $0x2a8] sm:$0xff]
        %v2892 = vld [vmem:[%s2805 + $0x2b0] sm:$0xff]
        %v2893 = vld [vmem:[%s2805 + $0x2b8] sm:$0xff]
        %v2894 = vld [vmem:[%s2805 + $0x2c0] sm:$0xff]
        %v2895 = vld [vmem:[%s2805 + $0x2c8] sm:$0xff]
        %v2896 = vld [vmem:[%s2805 + $0x2d0] sm:$0xff]
        %v2897 = vld [vmem:[%s2805 + $0x2d8] sm:$0xff]
        %v2898 = vld [vmem:[%s2805 + $0x2e0] sm:$0xff]
        %v2899 = vld [vmem:[%s2805 + $0x2e8] sm:$0xff]
        %v2900 = vld [vmem:[%s2805 + $0x2f0] sm:$0xff]
        %v2901 = vld [vmem:[%s2805 + $0x2f8] sm:$0xff]
        %v2903 = vshrl.u32 %v2705, 16
        %v2905 = vshll.u32 %v2705, 16
        %v2907 = vrot.slane %v2905, 1
        %v2908 = vor.u32 %v2903, %v2907
        %v2910 = vshrl.u32 %v2706, 16
        %v2912 = vshll.u32 %v2706, 16
        %v2914 = vrot.slane %v2912, 1
        %v2915 = vor.u32 %v2910, %v2914
        %v2917 = vshrl.u32 %v2707, 16
        %v2919 = vshll.u32 %v2707, 16
        %v2921 = vrot.slane %v2919, 1
        %v2922 = vor.u32 %v2917, %v2921
        %v3022 = vunpack.c.l.b16 %v2806
        %v3023 = vunpack.c.h.b16 %v2806
        %v3024 = vunpack.c.l.b16 %v2807
        %v3025 = vunpack.c.h.b16 %v2807
        %v3026 = vunpack.c.l.b16 %v2808
        %v3027 = vunpack.c.h.b16 %v2808
        %v3028 = vunpack.c.l.b16 %v2809
        %v3029 = vunpack.c.h.b16 %v2809
        %v3030 = vunpack.c.l.b16 %v2810
        %v3031 = vunpack.c.h.b16 %v2810
        %v3032 = vunpack.c.l.b16 %v2811
        %v3033 = vunpack.c.h.b16 %v2811
        %v3034 = vunpack.c.l.b16 %v2812
        %v3035 = vunpack.c.h.b16 %v2812
        %v3036 = vunpack.c.l.b16 %v2813
        %v3037 = vunpack.c.h.b16 %v2813
        %v3038 = vunpack.c.l.b16 %v2814
        %v3039 = vunpack.c.h.b16 %v2814
        %v3040 = vunpack.c.l.b16 %v2815
        %v3041 = vunpack.c.h.b16 %v2815
        %v3042 = vunpack.c.l.b16 %v2816
        %v3043 = vunpack.c.h.b16 %v2816
        %v3044 = vunpack.c.l.b16 %v2817
        %v3045 = vunpack.c.h.b16 %v2817
        %v3046 = vunpack.c.l.b16 %v2818
        %v3047 = vunpack.c.h.b16 %v2818
        %v3048 = vunpack.c.l.b16 %v2819
        %v3049 = vunpack.c.h.b16 %v2819
        %v3050 = vunpack.c.l.b16 %v2820
        %v3051 = vunpack.c.h.b16 %v2820
        %v3052 = vunpack.c.l.b16 %v2821
        %v3053 = vunpack.c.h.b16 %v2821
        %v3054 = vunpack.c.l.b16 %v2822
        %v3055 = vunpack.c.h.b16 %v2822
        %v3056 = vunpack.c.l.b16 %v2823
        %v3057 = vunpack.c.h.b16 %v2823
        %v3058 = vunpack.c.l.b16 %v2824
        %v3059 = vunpack.c.h.b16 %v2824
        %v3060 = vunpack.c.l.b16 %v2825
        %v3061 = vunpack.c.h.b16 %v2825
        %v3062 = vunpack.c.l.b16 %v2826
        %v3063 = vunpack.c.h.b16 %v2826
        %v3064 = vunpack.c.l.b16 %v2827
        %v3065 = vunpack.c.h.b16 %v2827
        %v3066 = vunpack.c.l.b16 %v2828
        %v3067 = vunpack.c.h.b16 %v2828
        %v3068 = vunpack.c.l.b16 %v2829
        %v3069 = vunpack.c.h.b16 %v2829
        %v3070 = vunpack.c.l.b16 %v2830
        %v3071 = vunpack.c.h.b16 %v2830
        %v3072 = vunpack.c.l.b16 %v2831
        %v3073 = vunpack.c.h.b16 %v2831
        %v3074 = vunpack.c.l.b16 %v2832
        %v3075 = vunpack.c.h.b16 %v2832
        %v3076 = vunpack.c.l.b16 %v2833
        %v3077 = vunpack.c.h.b16 %v2833
        %v3078 = vunpack.c.l.b16 %v2834
        %v3079 = vunpack.c.h.b16 %v2834
        %v3080 = vunpack.c.l.b16 %v2835
        %v3081 = vunpack.c.h.b16 %v2835
        %v3082 = vunpack.c.l.b16 %v2836
        %v3083 = vunpack.c.h.b16 %v2836
        %v3084 = vunpack.c.l.b16 %v2837
        %v3085 = vunpack.c.h.b16 %v2837
        %v3086 = vunpack.c.l.b16 %v2838
        %v3087 = vunpack.c.h.b16 %v2838
        %v3088 = vunpack.c.l.b16 %v2839
        %v3089 = vunpack.c.h.b16 %v2839
        %v3090 = vunpack.c.l.b16 %v2840
        %v3091 = vunpack.c.h.b16 %v2840
        %v3092 = vunpack.c.l.b16 %v2841
        %v3093 = vunpack.c.h.b16 %v2841
        %v3094 = vunpack.c.l.b16 %v2842
        %v3095 = vunpack.c.h.b16 %v2842
        %v3096 = vunpack.c.l.b16 %v2843
        %v3097 = vunpack.c.h.b16 %v2843
        %v3098 = vunpack.c.l.b16 %v2844
        %v3099 = vunpack.c.h.b16 %v2844
        %v3100 = vunpack.c.l.b16 %v2845
        %v3101 = vunpack.c.h.b16 %v2845
        %v3102 = vunpack.c.l.b16 %v2846
        %v3103 = vunpack.c.h.b16 %v2846
        %v3104 = vunpack.c.l.b16 %v2847
        %v3105 = vunpack.c.h.b16 %v2847
        %v3106 = vunpack.c.l.b16 %v2848
        %v3107 = vunpack.c.h.b16 %v2848
        %v3108 = vunpack.c.l.b16 %v2849
        %v3109 = vunpack.c.h.b16 %v2849
        %v3110 = vunpack.c.l.b16 %v2850
        %v3111 = vunpack.c.h.b16 %v2850
        %v3112 = vunpack.c.l.b16 %v2851
        %v3113 = vunpack.c.h.b16 %v2851
        %v3114 = vunpack.c.l.b16 %v2852
        %v3115 = vunpack.c.h.b16 %v2852
        %v3116 = vunpack.c.l.b16 %v2853
        %v3117 = vunpack.c.h.b16 %v2853
        %v3118 = vunpack.c.l.b16 %v2854
        %v3119 = vunpack.c.h.b16 %v2854
        %v3120 = vunpack.c.l.b16 %v2855
        %v3121 = vunpack.c.h.b16 %v2855
        %v3122 = vunpack.c.l.b16 %v2856
        %v3123 = vunpack.c.h.b16 %v2856
        %v3124 = vunpack.c.l.b16 %v2857
        %v3125 = vunpack.c.h.b16 %v2857
        %v3126 = vunpack.c.l.b16 %v2858
        %v3127 = vunpack.c.h.b16 %v2858
        %v3128 = vunpack.c.l.b16 %v2859
        %v3129 = vunpack.c.h.b16 %v2859
        %v3130 = vunpack.c.l.b16 %v2860
        %v3131 = vunpack.c.h.b16 %v2860
        %v3132 = vunpack.c.l.b16 %v2861
        %v3133 = vunpack.c.h.b16 %v2861
        %v3134 = vunpack.c.l.b16 %v2862
        %v3135 = vunpack.c.h.b16 %v2862
        %v3136 = vunpack.c.l.b16 %v2863
        %v3137 = vunpack.c.h.b16 %v2863
        %v3138 = vunpack.c.l.b16 %v2864
        %v3139 = vunpack.c.h.b16 %v2864
        %v3140 = vunpack.c.l.b16 %v2865
        %v3141 = vunpack.c.h.b16 %v2865
        %v3142 = vunpack.c.l.b16 %v2866
        %v3143 = vunpack.c.h.b16 %v2866
        %v3144 = vunpack.c.l.b16 %v2867
        %v3145 = vunpack.c.h.b16 %v2867
        %v3146 = vunpack.c.l.b16 %v2868
        %v3147 = vunpack.c.h.b16 %v2868
        %v3148 = vunpack.c.l.b16 %v2869
        %v3149 = vunpack.c.h.b16 %v2869
        %v3150 = vunpack.c.l.b16 %v2870
        %v3151 = vunpack.c.h.b16 %v2870
        %v3152 = vunpack.c.l.b16 %v2871
        %v3153 = vunpack.c.h.b16 %v2871
        %v3154 = vunpack.c.l.b16 %v2872
        %v3155 = vunpack.c.h.b16 %v2872
        %v3156 = vunpack.c.l.b16 %v2873
        %v3157 = vunpack.c.h.b16 %v2873
        %v3158 = vunpack.c.l.b16 %v2874
        %v3159 = vunpack.c.h.b16 %v2874
        %v3160 = vunpack.c.l.b16 %v2875
        %v3161 = vunpack.c.h.b16 %v2875
        %v3162 = vunpack.c.l.b16 %v2876
        %v3163 = vunpack.c.h.b16 %v2876
        %v3164 = vunpack.c.l.b16 %v2877
        %v3165 = vunpack.c.h.b16 %v2877
        %v3166 = vunpack.c.l.b16 %v2878
        %v3167 = vunpack.c.h.b16 %v2878
        %v3168 = vunpack.c.l.b16 %v2879
        %v3169 = vunpack.c.h.b16 %v2879
        %v3170 = vunpack.c.l.b16 %v2880
        %v3171 = vunpack.c.h.b16 %v2880
        %v3172 = vunpack.c.l.b16 %v2881
        %v3173 = vunpack.c.h.b16 %v2881
        %v3174 = vunpack.c.l.b16 %v2882
        %v3175 = vunpack.c.h.b16 %v2882
        %v3176 = vunpack.c.l.b16 %v2883
        %v3177 = vunpack.c.h.b16 %v2883
        %v3178 = vunpack.c.l.b16 %v2884
        %v3179 = vunpack.c.h.b16 %v2884
        %v3180 = vunpack.c.l.b16 %v2885
        %v3181 = vunpack.c.h.b16 %v2885
        %v3182 = vunpack.c.l.b16 %v2886
        %v3183 = vunpack.c.h.b16 %v2886
        %v3184 = vunpack.c.l.b16 %v2887
        %v3185 = vunpack.c.h.b16 %v2887
        %v3186 = vunpack.c.l.b16 %v2888
        %v3187 = vunpack.c.h.b16 %v2888
        %v3188 = vunpack.c.l.b16 %v2889
        %v3189 = vunpack.c.h.b16 %v2889
        %v3190 = vunpack.c.l.b16 %v2890
        %v3191 = vunpack.c.h.b16 %v2890
        %v3192 = vunpack.c.l.b16 %v2891
        %v3193 = vunpack.c.h.b16 %v2891
        %v3194 = vunpack.c.l.b16 %v2892
        %v3195 = vunpack.c.h.b16 %v2892
        %v3196 = vunpack.c.l.b16 %v2893
        %v3197 = vunpack.c.h.b16 %v2893
        %v3198 = vunpack.c.l.b16 %v2894
        %v3199 = vunpack.c.h.b16 %v2894
        %v3200 = vunpack.c.l.b16 %v2895
        %v3201 = vunpack.c.h.b16 %v2895
        %v3202 = vunpack.c.l.b16 %v2896
        %v3203 = vunpack.c.h.b16 %v2896
        %v3204 = vunpack.c.l.b16 %v2897
        %v3205 = vunpack.c.h.b16 %v2897
        %v3206 = vunpack.c.l.b16 %v2898
        %v3207 = vunpack.c.h.b16 %v2898
        %v3208 = vunpack.c.l.b16 %v2899
        %v3209 = vunpack.c.h.b16 %v2899
        %v3210 = vunpack.c.l.b16 %v2900
        %v3211 = vunpack.c.h.b16 %v2900
        %v3212 = vunpack.c.l.b16 %v2901
        %v3213 = vunpack.c.h.b16 %v2901
        %v3214 = vpack.c.b16 %v3026, %v3022
        %v3215 = vpack.c.b16 %v3027, %v3023
        %v3216 = vpack.c.b16 %v3028, %v3024
        %v3217 = vpack.c.b16 %v3029, %v3025
        %v3218 = vpack.c.b16 %v3034, %v3030
        %v3219 = vpack.c.b16 %v3035, %v3031
        %v3220 = vpack.c.b16 %v3036, %v3032
        %v3221 = vpack.c.b16 %v3037, %v3033
        %v3222 = vpack.c.b16 %v3042, %v3038
        %v3223 = vpack.c.b16 %v3043, %v3039
        %v3224 = vpack.c.b16 %v3044, %v3040
        %v3225 = vpack.c.b16 %v3045, %v3041
        %v3226 = vpack.c.b16 %v3050, %v3046
        %v3227 = vpack.c.b16 %v3051, %v3047
        %v3228 = vpack.c.b16 %v3052, %v3048
        %v3229 = vpack.c.b16 %v3053, %v3049
        %v3230 = vpack.c.b16 %v3058, %v3054
        %v3231 = vpack.c.b16 %v3059, %v3055
        %v3232 = vpack.c.b16 %v3060, %v3056
        %v3233 = vpack.c.b16 %v3061, %v3057
        %v3234 = vpack.c.b16 %v3066, %v3062
        %v3235 = vpack.c.b16 %v3067, %v3063
        %v3236 = vpack.c.b16 %v3068, %v3064
        %v3237 = vpack.c.b16 %v3069, %v3065
        %v3238 = vpack.c.b16 %v3074, %v3070
        %v3239 = vpack.c.b16 %v3075, %v3071
        %v3240 = vpack.c.b16 %v3076, %v3072
        %v3241 = vpack.c.b16 %v3077, %v3073
        %v3242 = vpack.c.b16 %v3082, %v3078
        %v3243 = vpack.c.b16 %v3083, %v3079
        %v3244 = vpack.c.b16 %v3084, %v3080
        %v3245 = vpack.c.b16 %v3085, %v3081
        %v3246 = vpack.c.b16 %v3090, %v3086
        %v3247 = vpack.c.b16 %v3091, %v3087
        %v3248 = vpack.c.b16 %v3092, %v3088
        %v3249 = vpack.c.b16 %v3093, %v3089
        %v3250 = vpack.c.b16 %v3098, %v3094
        %v3251 = vpack.c.b16 %v3099, %v3095
        %v3252 = vpack.c.b16 %v3100, %v3096
        %v3253 = vpack.c.b16 %v3101, %v3097
        %v3254 = vpack.c.b16 %v3106, %v3102
        %v3255 = vpack.c.b16 %v3107, %v3103
        %v3256 = vpack.c.b16 %v3108, %v3104
        %v3257 = vpack.c.b16 %v3109, %v3105
        %v3258 = vpack.c.b16 %v3114, %v3110
        %v3259 = vpack.c.b16 %v3115, %v3111
        %v3260 = vpack.c.b16 %v3116, %v3112
        %v3261 = vpack.c.b16 %v3117, %v3113
        %v3262 = vpack.c.b16 %v3122, %v3118
        %v3263 = vpack.c.b16 %v3123, %v3119
        %v3264 = vpack.c.b16 %v3124, %v3120
        %v3265 = vpack.c.b16 %v3125, %v3121
        %v3266 = vpack.c.b16 %v3130, %v3126
        %v3267 = vpack.c.b16 %v3131, %v3127
        %v3268 = vpack.c.b16 %v3132, %v3128
        %v3269 = vpack.c.b16 %v3133, %v3129
        %v3270 = vpack.c.b16 %v3138, %v3134
        %v3271 = vpack.c.b16 %v3139, %v3135
        %v3272 = vpack.c.b16 %v3140, %v3136
        %v3273 = vpack.c.b16 %v3141, %v3137
        %v3274 = vpack.c.b16 %v3146, %v3142
        %v3275 = vpack.c.b16 %v3147, %v3143
        %v3276 = vpack.c.b16 %v3148, %v3144
        %v3277 = vpack.c.b16 %v3149, %v3145
        %v3278 = vpack.c.b16 %v3154, %v3150
        %v3279 = vpack.c.b16 %v3155, %v3151
        %v3280 = vpack.c.b16 %v3156, %v3152
        %v3281 = vpack.c.b16 %v3157, %v3153
        %v3282 = vpack.c.b16 %v3162, %v3158
        %v3283 = vpack.c.b16 %v3163, %v3159
        %v3284 = vpack.c.b16 %v3164, %v3160
        %v3285 = vpack.c.b16 %v3165, %v3161
        %v3286 = vpack.c.b16 %v3170, %v3166
        %v3287 = vpack.c.b16 %v3171, %v3167
        %v3288 = vpack.c.b16 %v3172, %v3168
        %v3289 = vpack.c.b16 %v3173, %v3169
        %v3290 = vpack.c.b16 %v3178, %v3174
        %v3291 = vpack.c.b16 %v3179, %v3175
        %v3292 = vpack.c.b16 %v3180, %v3176
        %v3293 = vpack.c.b16 %v3181, %v3177
        %v3294 = vpack.c.b16 %v3186, %v3182
        %v3295 = vpack.c.b16 %v3187, %v3183
        %v3296 = vpack.c.b16 %v3188, %v3184
        %v3297 = vpack.c.b16 %v3189, %v3185
        %v3298 = vpack.c.b16 %v3194, %v3190
        %v3299 = vpack.c.b16 %v3195, %v3191
        %v3300 = vpack.c.b16 %v3196, %v3192
        %v3301 = vpack.c.b16 %v3197, %v3193
        %v3302 = vpack.c.b16 %v3202, %v3198
        %v3303 = vpack.c.b16 %v3203, %v3199
        %v3304 = vpack.c.b16 %v3204, %v3200
        %v3305 = vpack.c.b16 %v3205, %v3201
        %v3306 = vpack.c.b16 %v3210, %v3206
        %v3307 = vpack.c.b16 %v3211, %v3207
        %v3308 = vpack.c.b16 %v3212, %v3208
        %v3309 = vpack.c.b16 %v3213, %v3209
        %3406 = vmatprep.subr.bf16.mxu0 %v3243
        %3407 = vmatpush1.bf16.msra.mxu0 %v3242
        %3408 = vmatprep.subr.bf16.mxu0 %v3239
        %3409 = vmatpush1.bf16.msra.mxu0 %v3238
        %3410 = vmatprep.subr.bf16.mxu0 %v3235
        %3411 = vmatpush1.bf16.msra.mxu0 %v3234
        %3412 = vmatprep.subr.bf16.mxu0 %v3231
        %3413 = vmatpush1.bf16.msra.mxu0 %v3230
        %3414 = vmatprep.subr.bf16.mxu0 %v3227
        %3415 = vmatpush1.bf16.msra.mxu0 %v3226
        %3416 = vmatprep.subr.bf16.mxu0 %v3223
        %3417 = vmatpush1.bf16.msra.mxu0 %v3222
        %3418 = vmatprep.subr.bf16.mxu0 %v3219
        %3419 = vmatpush1.bf16.msra.mxu0 %v3218
        %3420 = vmatprep.subr.bf16.mxu0 %v3215
        %3421 = vmatpush1.bf16.msra.mxu0 %v3214
        %3422 = vmatprep.subr.bf16.mxu0 %v3275
        %3423 = vmatpush2.bf16.msra.mxu0 %v3274
        %3424 = vmatprep.subr.bf16.mxu0 %v3271
        %3425 = vmatpush2.bf16.msra.mxu0 %v3270
        %3426 = vmatprep.subr.bf16.mxu0 %v3267
        %3427 = vmatpush2.bf16.msra.mxu0 %v3266
        %3428 = vmatprep.subr.bf16.mxu0 %v3263
        %3429 = vmatpush2.bf16.msra.mxu0 %v3262
        %3430 = vmatprep.subr.bf16.mxu0 %v3259
        %3431 = vmatpush2.bf16.msra.mxu0 %v3258
        %3432 = vmatprep.subr.bf16.mxu0 %v3255
        %3433 = vmatpush2.bf16.msra.mxu0 %v3254
        %3434 = vmatprep.subr.bf16.mxu0 %v3251
        %3435 = vmatpush2.bf16.msra.mxu0 %v3250
        %3436 = vmatprep.subr.bf16.mxu0 %v3247
        %3437 = vmatpush2.bf16.msra.mxu0 %v3246
        %3438 = vmatprep.mubr.bf16.mxu0 %v2915
        %3439 = vmatmul.mubr.bf16.gmra.mxu0 %v2908
        %v3440 = vpop.f32.mrf.mxu0
        %v3441 = vadd.f32 0.0, %v3440
        %v3442 = vpop.f32.mrf.mxu0
        %v3443 = vadd.f32 0.0, %v3442
        %v3444 = vpop.f32.mrf.mxu0
        %v3445 = vpop.f32.mrf.mxu0
        %3446 = vdwg.mxu0
        %3447 = vmatprep.subr.bf16.mxu0 %v3307
        %3448 = vmatpush1.bf16.msra.mxu0 %v3306
        %3449 = vmatprep.subr.bf16.mxu0 %v3303
        %3450 = vmatpush1.bf16.msra.mxu0 %v3302
        %3451 = vmatprep.subr.bf16.mxu0 %v3299
        %3452 = vmatpush1.bf16.msra.mxu0 %v3298
        %3453 = vmatprep.subr.bf16.mxu0 %v3295
        %3454 = vmatpush1.bf16.msra.mxu0 %v3294
        %3455 = vmatprep.subr.bf16.mxu0 %v3291
        %3456 = vmatpush1.bf16.msra.mxu0 %v3290
        %3457 = vmatprep.subr.bf16.mxu0 %v3287
        %3458 = vmatpush1.bf16.msra.mxu0 %v3286
        %3459 = vmatprep.subr.bf16.mxu0 %v3283
        %3460 = vmatpush1.bf16.msra.mxu0 %v3282
        %3461 = vmatprep.subr.bf16.mxu0 %v3279
        %3462 = vmatpush1.bf16.msra.mxu0 %v3278
        %3463 = vmatprep.subr.bf16.mxu0 0
        %3464 = vmatpush2.bf16.msra.mxu0 0
        %3465 = vmatprep.subr.bf16.mxu0 0
        %3466 = vmatpush2.bf16.msra.mxu0 0
        %3467 = vmatprep.subr.bf16.mxu0 0
        %3468 = vmatpush2.bf16.msra.mxu0 0
        %3469 = vmatprep.subr.bf16.mxu0 0
        %3470 = vmatpush2.bf16.msra.mxu0 0
        %3471 = vmatprep.subr.bf16.mxu0 0
        %3472 = vmatpush2.bf16.msra.mxu0 0
        %3473 = vmatprep.subr.bf16.mxu0 0
        %3474 = vmatpush2.bf16.msra.mxu0 0
        %3475 = vmatprep.subr.bf16.mxu0 0
        %3476 = vmatpush2.bf16.msra.mxu0 0
        %3477 = vmatprep.subr.bf16.mxu0 0
        %3478 = vmatpush2.bf16.msra.mxu0 0
        %3479 = vmatprep.mubr.bf16.mxu0 0
        %3480 = vmatmul.mubr.bf16.gmra.mxu0 %v2922
        %v3481 = vpop.f32.mrf.mxu0
        %v3482 = vadd.f32 %v3441, %v3481
        %v3483 = vpop.f32.mrf.mxu0
        %v3484 = vadd.f32 %v3443, %v3483
        %v3485 = vpop.f32.mrf.mxu0
        %v3486 = vpop.f32.mrf.mxu0
        %3487 = vdwg.mxu0
        %3488 = vmatprep.subr.bf16.mxu0 %v3245
        %3489 = vmatpush1.bf16.msra.mxu0 %v3244
        %3490 = vmatprep.subr.bf16.mxu0 %v3241
        %3491 = vmatpush1.bf16.msra.mxu0 %v3240
        %3492 = vmatprep.subr.bf16.mxu0 %v3237
        %3493 = vmatpush1.bf16.msra.mxu0 %v3236
        %3494 = vmatprep.subr.bf16.mxu0 %v3233
        %3495 = vmatpush1.bf16.msra.mxu0 %v3232
        %3496 = vmatprep.subr.bf16.mxu0 %v3229
        %3497 = vmatpush1.bf16.msra.mxu0 %v3228
        %3498 = vmatprep.subr.bf16.mxu0 %v3225
        %3499 = vmatpush1.bf16.msra.mxu0 %v3224
        %3500 = vmatprep.subr.bf16.mxu0 %v3221
        %3501 = vmatpush1.bf16.msra.mxu0 %v3220
        %3502 = vmatprep.subr.bf16.mxu0 %v3217
        %3503 = vmatpush1.bf16.msra.mxu0 %v3216
        %3504 = vmatprep.subr.bf16.mxu0 %v3277
        %3505 = vmatpush2.bf16.msra.mxu0 %v3276
        %3506 = vmatprep.subr.bf16.mxu0 %v3273
        %3507 = vmatpush2.bf16.msra.mxu0 %v3272
        %3508 = vmatprep.subr.bf16.mxu0 %v3269
        %3509 = vmatpush2.bf16.msra.mxu0 %v3268
        %3510 = vmatprep.subr.bf16.mxu0 %v3265
        %3511 = vmatpush2.bf16.msra.mxu0 %v3264
        %3512 = vmatprep.subr.bf16.mxu0 %v3261
        %3513 = vmatpush2.bf16.msra.mxu0 %v3260
        %3514 = vmatprep.subr.bf16.mxu0 %v3257
        %3515 = vmatpush2.bf16.msra.mxu0 %v3256
        %3516 = vmatprep.subr.bf16.mxu0 %v3253
        %3517 = vmatpush2.bf16.msra.mxu0 %v3252
        %3518 = vmatprep.subr.bf16.mxu0 %v3249
        %3519 = vmatpush2.bf16.msra.mxu0 %v3248
        %3520 = vmatprep.mubr.bf16.mxu0 %v2915
        %3521 = vmatmul.mubr.bf16.gmra.mxu0 %v2908
        %v3522 = vpop.f32.mrf.mxu0
        %v3523 = vadd.f32 0.0, %v3522
        %v3524 = vpop.f32.mrf.mxu0
        %v3525 = vadd.f32 0.0, %v3524
        %v3526 = vpop.f32.mrf.mxu0
        %v3527 = vpop.f32.mrf.mxu0
        %3528 = vdwg.mxu0
        %3529 = vmatprep.subr.bf16.mxu0 %v3309
        %3530 = vmatpush1.bf16.msra.mxu0 %v3308
        %3531 = vmatprep.subr.bf16.mxu0 %v3305
        %3532 = vmatpush1.bf16.msra.mxu0 %v3304
        %3533 = vmatprep.subr.bf16.mxu0 %v3301
        %3534 = vmatpush1.bf16.msra.mxu0 %v3300
        %3535 = vmatprep.subr.bf16.mxu0 %v3297
        %3536 = vmatpush1.bf16.msra.mxu0 %v3296
        %3537 = vmatprep.subr.bf16.mxu0 %v3293
        %3538 = vmatpush1.bf16.msra.mxu0 %v3292
        %3539 = vmatprep.subr.bf16.mxu0 %v3289
        %3540 = vmatpush1.bf16.msra.mxu0 %v3288
        %3541 = vmatprep.subr.bf16.mxu0 %v3285
        %3542 = vmatpush1.bf16.msra.mxu0 %v3284
        %3543 = vmatprep.subr.bf16.mxu0 %v3281
        %3544 = vmatpush1.bf16.msra.mxu0 %v3280
        %3545 = vmatprep.subr.bf16.mxu0 0
        %3546 = vmatpush2.bf16.msra.mxu0 0
        %3547 = vmatprep.subr.bf16.mxu0 0
        %3548 = vmatpush2.bf16.msra.mxu0 0
        %3549 = vmatprep.subr.bf16.mxu0 0
        %3550 = vmatpush2.bf16.msra.mxu0 0
        %3551 = vmatprep.subr.bf16.mxu0 0
        %3552 = vmatpush2.bf16.msra.mxu0 0
        %3553 = vmatprep.subr.bf16.mxu0 0
        %3554 = vmatpush2.bf16.msra.mxu0 0
        %3555 = vmatprep.subr.bf16.mxu0 0
        %3556 = vmatpush2.bf16.msra.mxu0 0
        %3557 = vmatprep.subr.bf16.mxu0 0
        %3558 = vmatpush2.bf16.msra.mxu0 0
        %3559 = vmatprep.subr.bf16.mxu0 0
        %3560 = vmatpush2.bf16.msra.mxu0 0
        %3561 = vmatprep.mubr.bf16.mxu0 0
        %3562 = vmatmul.mubr.bf16.gmra.mxu0 %v2922
        %v3563 = vpop.f32.mrf.mxu0
        %v3564 = vadd.f32 %v3523, %v3563
        %v3565 = vpop.f32.mrf.mxu0
        %v3566 = vadd.f32 %v3525, %v3565
        %v3567 = vpop.f32.mrf.mxu0
        %v3568 = vpop.f32.mrf.mxu0
        %3569 = vdwg.mxu0
        %v3666 = vunpack.c.l.b16 %v2709
        %v3667 = vunpack.c.h.b16 %v2709
        %v3668 = vunpack.c.l.b16 %v2710
        %v3669 = vunpack.c.h.b16 %v2710
        %v3670 = vunpack.c.l.b16 %v2711
        %v3671 = vunpack.c.h.b16 %v2711
        %v3672 = vunpack.c.l.b16 %v2712
        %v3673 = vunpack.c.h.b16 %v2712
        %v3674 = vunpack.c.l.b16 %v2713
        %v3675 = vunpack.c.h.b16 %v2713
        %v3676 = vunpack.c.l.b16 %v2714
        %v3677 = vunpack.c.h.b16 %v2714
        %v3678 = vunpack.c.l.b16 %v2715
        %v3679 = vunpack.c.h.b16 %v2715
        %v3680 = vunpack.c.l.b16 %v2716
        %v3681 = vunpack.c.h.b16 %v2716
        %v3682 = vunpack.c.l.b16 %v2717
        %v3683 = vunpack.c.h.b16 %v2717
        %v3684 = vunpack.c.l.b16 %v2718
        %v3685 = vunpack.c.h.b16 %v2718
        %v3686 = vunpack.c.l.b16 %v2719
        %v3687 = vunpack.c.h.b16 %v2719
        %v3688 = vunpack.c.l.b16 %v2720
        %v3689 = vunpack.c.h.b16 %v2720
        %v3690 = vunpack.c.l.b16 %v2721
        %v3691 = vunpack.c.h.b16 %v2721
        %v3692 = vunpack.c.l.b16 %v2722
        %v3693 = vunpack.c.h.b16 %v2722
        %v3694 = vunpack.c.l.b16 %v2723
        %v3695 = vunpack.c.h.b16 %v2723
        %v3696 = vunpack.c.l.b16 %v2724
        %v3697 = vunpack.c.h.b16 %v2724
        %v3698 = vunpack.c.l.b16 %v2725
        %v3699 = vunpack.c.h.b16 %v2725
        %v3700 = vunpack.c.l.b16 %v2726
        %v3701 = vunpack.c.h.b16 %v2726
        %v3702 = vunpack.c.l.b16 %v2727
        %v3703 = vunpack.c.h.b16 %v2727
        %v3704 = vunpack.c.l.b16 %v2728
        %v3705 = vunpack.c.h.b16 %v2728
        %v3706 = vunpack.c.l.b16 %v2729
        %v3707 = vunpack.c.h.b16 %v2729
        %v3708 = vunpack.c.l.b16 %v2730
        %v3709 = vunpack.c.h.b16 %v2730
        %v3710 = vunpack.c.l.b16 %v2731
        %v3711 = vunpack.c.h.b16 %v2731
        %v3712 = vunpack.c.l.b16 %v2732
        %v3713 = vunpack.c.h.b16 %v2732
        %v3714 = vunpack.c.l.b16 %v2733
        %v3715 = vunpack.c.h.b16 %v2733
        %v3716 = vunpack.c.l.b16 %v2734
        %v3717 = vunpack.c.h.b16 %v2734
        %v3718 = vunpack.c.l.b16 %v2735
        %v3719 = vunpack.c.h.b16 %v2735
        %v3720 = vunpack.c.l.b16 %v2736
        %v3721 = vunpack.c.h.b16 %v2736
        %v3722 = vunpack.c.l.b16 %v2737
        %v3723 = vunpack.c.h.b16 %v2737
        %v3724 = vunpack.c.l.b16 %v2738
        %v3725 = vunpack.c.h.b16 %v2738
        %v3726 = vunpack.c.l.b16 %v2739
        %v3727 = vunpack.c.h.b16 %v2739
        %v3728 = vunpack.c.l.b16 %v2740
        %v3729 = vunpack.c.h.b16 %v2740
        %v3730 = vunpack.c.l.b16 %v2741
        %v3731 = vunpack.c.h.b16 %v2741
        %v3732 = vunpack.c.l.b16 %v2742
        %v3733 = vunpack.c.h.b16 %v2742
        %v3734 = vunpack.c.l.b16 %v2743
        %v3735 = vunpack.c.h.b16 %v2743
        %v3736 = vunpack.c.l.b16 %v2744
        %v3737 = vunpack.c.h.b16 %v2744
        %v3738 = vunpack.c.l.b16 %v2745
        %v3739 = vunpack.c.h.b16 %v2745
        %v3740 = vunpack.c.l.b16 %v2746
        %v3741 = vunpack.c.h.b16 %v2746
        %v3742 = vunpack.c.l.b16 %v2747
        %v3743 = vunpack.c.h.b16 %v2747
        %v3744 = vunpack.c.l.b16 %v2748
        %v3745 = vunpack.c.h.b16 %v2748
        %v3746 = vunpack.c.l.b16 %v2749
        %v3747 = vunpack.c.h.b16 %v2749
        %v3748 = vunpack.c.l.b16 %v2750
        %v3749 = vunpack.c.h.b16 %v2750
        %v3750 = vunpack.c.l.b16 %v2751
        %v3751 = vunpack.c.h.b16 %v2751
        %v3752 = vunpack.c.l.b16 %v2752
        %v3753 = vunpack.c.h.b16 %v2752
        %v3754 = vunpack.c.l.b16 %v2753
        %v3755 = vunpack.c.h.b16 %v2753
        %v3756 = vunpack.c.l.b16 %v2754
        %v3757 = vunpack.c.h.b16 %v2754
        %v3758 = vunpack.c.l.b16 %v2755
        %v3759 = vunpack.c.h.b16 %v2755
        %v3760 = vunpack.c.l.b16 %v2756
        %v3761 = vunpack.c.h.b16 %v2756
        %v3762 = vunpack.c.l.b16 %v2757
        %v3763 = vunpack.c.h.b16 %v2757
        %v3764 = vunpack.c.l.b16 %v2758
        %v3765 = vunpack.c.h.b16 %v2758
        %v3766 = vunpack.c.l.b16 %v2759
        %v3767 = vunpack.c.h.b16 %v2759
        %v3768 = vunpack.c.l.b16 %v2760
        %v3769 = vunpack.c.h.b16 %v2760
        %v3770 = vunpack.c.l.b16 %v2761
        %v3771 = vunpack.c.h.b16 %v2761
        %v3772 = vunpack.c.l.b16 %v2762
        %v3773 = vunpack.c.h.b16 %v2762
        %v3774 = vunpack.c.l.b16 %v2763
        %v3775 = vunpack.c.h.b16 %v2763
        %v3776 = vunpack.c.l.b16 %v2764
        %v3777 = vunpack.c.h.b16 %v2764
        %v3778 = vunpack.c.l.b16 %v2765
        %v3779 = vunpack.c.h.b16 %v2765
        %v3780 = vunpack.c.l.b16 %v2766
        %v3781 = vunpack.c.h.b16 %v2766
        %v3782 = vunpack.c.l.b16 %v2767
        %v3783 = vunpack.c.h.b16 %v2767
        %v3784 = vunpack.c.l.b16 %v2768
        %v3785 = vunpack.c.h.b16 %v2768
        %v3786 = vunpack.c.l.b16 %v2769
        %v3787 = vunpack.c.h.b16 %v2769
        %v3788 = vunpack.c.l.b16 %v2770
        %v3789 = vunpack.c.h.b16 %v2770
        %v3790 = vunpack.c.l.b16 %v2771
        %v3791 = vunpack.c.h.b16 %v2771
        %v3792 = vunpack.c.l.b16 %v2772
        %v3793 = vunpack.c.h.b16 %v2772
        %v3794 = vunpack.c.l.b16 %v2773
        %v3795 = vunpack.c.h.b16 %v2773
        %v3796 = vunpack.c.l.b16 %v2774
        %v3797 = vunpack.c.h.b16 %v2774
        %v3798 = vunpack.c.l.b16 %v2775
        %v3799 = vunpack.c.h.b16 %v2775
        %v3800 = vunpack.c.l.b16 %v2776
        %v3801 = vunpack.c.h.b16 %v2776
        %v3802 = vunpack.c.l.b16 %v2777
        %v3803 = vunpack.c.h.b16 %v2777
        %v3804 = vunpack.c.l.b16 %v2778
        %v3805 = vunpack.c.h.b16 %v2778
        %v3806 = vunpack.c.l.b16 %v2779
        %v3807 = vunpack.c.h.b16 %v2779
        %v3808 = vunpack.c.l.b16 %v2780
        %v3809 = vunpack.c.h.b16 %v2780
        %v3810 = vunpack.c.l.b16 %v2781
        %v3811 = vunpack.c.h.b16 %v2781
        %v3812 = vunpack.c.l.b16 %v2782
        %v3813 = vunpack.c.h.b16 %v2782
        %v3814 = vunpack.c.l.b16 %v2783
        %v3815 = vunpack.c.h.b16 %v2783
        %v3816 = vunpack.c.l.b16 %v2784
        %v3817 = vunpack.c.h.b16 %v2784
        %v3818 = vunpack.c.l.b16 %v2785
        %v3819 = vunpack.c.h.b16 %v2785
        %v3820 = vunpack.c.l.b16 %v2786
        %v3821 = vunpack.c.h.b16 %v2786
        %v3822 = vunpack.c.l.b16 %v2787
        %v3823 = vunpack.c.h.b16 %v2787
        %v3824 = vunpack.c.l.b16 %v2788
        %v3825 = vunpack.c.h.b16 %v2788
        %v3826 = vunpack.c.l.b16 %v2789
        %v3827 = vunpack.c.h.b16 %v2789
        %v3828 = vunpack.c.l.b16 %v2790
        %v3829 = vunpack.c.h.b16 %v2790
        %v3830 = vunpack.c.l.b16 %v2791
        %v3831 = vunpack.c.h.b16 %v2791
        %v3832 = vunpack.c.l.b16 %v2792
        %v3833 = vunpack.c.h.b16 %v2792
        %v3834 = vunpack.c.l.b16 %v2793
        %v3835 = vunpack.c.h.b16 %v2793
        %v3836 = vunpack.c.l.b16 %v2794
        %v3837 = vunpack.c.h.b16 %v2794
        %v3838 = vunpack.c.l.b16 %v2795
        %v3839 = vunpack.c.h.b16 %v2795
        %v3840 = vunpack.c.l.b16 %v2796
        %v3841 = vunpack.c.h.b16 %v2796
        %v3842 = vunpack.c.l.b16 %v2797
        %v3843 = vunpack.c.h.b16 %v2797
        %v3844 = vunpack.c.l.b16 %v2798
        %v3845 = vunpack.c.h.b16 %v2798
        %v3846 = vunpack.c.l.b16 %v2799
        %v3847 = vunpack.c.h.b16 %v2799
        %v3848 = vunpack.c.l.b16 %v2800
        %v3849 = vunpack.c.h.b16 %v2800
        %v3850 = vunpack.c.l.b16 %v2801
        %v3851 = vunpack.c.h.b16 %v2801
        %v3852 = vunpack.c.l.b16 %v2802
        %v3853 = vunpack.c.h.b16 %v2802
        %v3854 = vunpack.c.l.b16 %v2803
        %v3855 = vunpack.c.h.b16 %v2803
        %v3856 = vunpack.c.l.b16 %v2804
        %v3857 = vunpack.c.h.b16 %v2804
        %v3858 = vpack.c.b16 %v3670, %v3666
        %v3859 = vpack.c.b16 %v3671, %v3667
        %v3860 = vpack.c.b16 %v3672, %v3668
        %v3861 = vpack.c.b16 %v3673, %v3669
        %v3862 = vpack.c.b16 %v3678, %v3674
        %v3863 = vpack.c.b16 %v3679, %v3675
        %v3864 = vpack.c.b16 %v3680, %v3676
        %v3865 = vpack.c.b16 %v3681, %v3677
        %v3866 = vpack.c.b16 %v3686, %v3682
        %v3867 = vpack.c.b16 %v3687, %v3683
        %v3868 = vpack.c.b16 %v3688, %v3684
        %v3869 = vpack.c.b16 %v3689, %v3685
        %v3870 = vpack.c.b16 %v3694, %v3690
        %v3871 = vpack.c.b16 %v3695, %v3691
        %v3872 = vpack.c.b16 %v3696, %v3692
        %v3873 = vpack.c.b16 %v3697, %v3693
        %v3874 = vpack.c.b16 %v3702, %v3698
        %v3875 = vpack.c.b16 %v3703, %v3699
        %v3876 = vpack.c.b16 %v3704, %v3700
        %v3877 = vpack.c.b16 %v3705, %v3701
        %v3878 = vpack.c.b16 %v3710, %v3706
        %v3879 = vpack.c.b16 %v3711, %v3707
        %v3880 = vpack.c.b16 %v3712, %v3708
        %v3881 = vpack.c.b16 %v3713, %v3709
        %v3882 = vpack.c.b16 %v3718, %v3714
        %v3883 = vpack.c.b16 %v3719, %v3715
        %v3884 = vpack.c.b16 %v3720, %v3716
        %v3885 = vpack.c.b16 %v3721, %v3717
        %v3886 = vpack.c.b16 %v3726, %v3722
        %v3887 = vpack.c.b16 %v3727, %v3723
        %v3888 = vpack.c.b16 %v3728, %v3724
        %v3889 = vpack.c.b16 %v3729, %v3725
        %v3890 = vpack.c.b16 %v3734, %v3730
        %v3891 = vpack.c.b16 %v3735, %v3731
        %v3892 = vpack.c.b16 %v3736, %v3732
        %v3893 = vpack.c.b16 %v3737, %v3733
        %v3894 = vpack.c.b16 %v3742, %v3738
        %v3895 = vpack.c.b16 %v3743, %v3739
        %v3896 = vpack.c.b16 %v3744, %v3740
        %v3897 = vpack.c.b16 %v3745, %v3741
        %v3898 = vpack.c.b16 %v3750, %v3746
        %v3899 = vpack.c.b16 %v3751, %v3747
        %v3900 = vpack.c.b16 %v3752, %v3748
        %v3901 = vpack.c.b16 %v3753, %v3749
        %v3902 = vpack.c.b16 %v3758, %v3754
        %v3903 = vpack.c.b16 %v3759, %v3755
        %v3904 = vpack.c.b16 %v3760, %v3756
        %v3905 = vpack.c.b16 %v3761, %v3757
        %v3906 = vpack.c.b16 %v3766, %v3762
        %v3907 = vpack.c.b16 %v3767, %v3763
        %v3908 = vpack.c.b16 %v3768, %v3764
        %v3909 = vpack.c.b16 %v3769, %v3765
        %v3910 = vpack.c.b16 %v3774, %v3770
        %v3911 = vpack.c.b16 %v3775, %v3771
        %v3912 = vpack.c.b16 %v3776, %v3772
        %v3913 = vpack.c.b16 %v3777, %v3773
        %v3914 = vpack.c.b16 %v3782, %v3778
        %v3915 = vpack.c.b16 %v3783, %v3779
        %v3916 = vpack.c.b16 %v3784, %v3780
        %v3917 = vpack.c.b16 %v3785, %v3781
        %v3918 = vpack.c.b16 %v3790, %v3786
        %v3919 = vpack.c.b16 %v3791, %v3787
        %v3920 = vpack.c.b16 %v3792, %v3788
        %v3921 = vpack.c.b16 %v3793, %v3789
        %v3922 = vpack.c.b16 %v3798, %v3794
        %v3923 = vpack.c.b16 %v3799, %v3795
        %v3924 = vpack.c.b16 %v3800, %v3796
        %v3925 = vpack.c.b16 %v3801, %v3797
        %v3926 = vpack.c.b16 %v3806, %v3802
        %v3927 = vpack.c.b16 %v3807, %v3803
        %v3928 = vpack.c.b16 %v3808, %v3804
        %v3929 = vpack.c.b16 %v3809, %v3805
        %v3930 = vpack.c.b16 %v3814, %v3810
        %v3931 = vpack.c.b16 %v3815, %v3811
        %v3932 = vpack.c.b16 %v3816, %v3812
        %v3933 = vpack.c.b16 %v3817, %v3813
        %v3934 = vpack.c.b16 %v3822, %v3818
        %v3935 = vpack.c.b16 %v3823, %v3819
        %v3936 = vpack.c.b16 %v3824, %v3820
        %v3937 = vpack.c.b16 %v3825, %v3821
        %v3938 = vpack.c.b16 %v3830, %v3826
        %v3939 = vpack.c.b16 %v3831, %v3827
        %v3940 = vpack.c.b16 %v3832, %v3828
        %v3941 = vpack.c.b16 %v3833, %v3829
        %v3942 = vpack.c.b16 %v3838, %v3834
        %v3943 = vpack.c.b16 %v3839, %v3835
        %v3944 = vpack.c.b16 %v3840, %v3836
        %v3945 = vpack.c.b16 %v3841, %v3837
        %v3946 = vpack.c.b16 %v3846, %v3842
        %v3947 = vpack.c.b16 %v3847, %v3843
        %v3948 = vpack.c.b16 %v3848, %v3844
        %v3949 = vpack.c.b16 %v3849, %v3845
        %v3950 = vpack.c.b16 %v3854, %v3850
        %v3951 = vpack.c.b16 %v3855, %v3851
        %v3952 = vpack.c.b16 %v3856, %v3852
        %v3953 = vpack.c.b16 %v3857, %v3853
        %4050 = vmatprep.subr.bf16.mxu0 %v3887
        %4051 = vmatpush1.bf16.msra.mxu0 %v3886
        %4052 = vmatprep.subr.bf16.mxu0 %v3883
        %4053 = vmatpush1.bf16.msra.mxu0 %v3882
        %4054 = vmatprep.subr.bf16.mxu0 %v3879
        %4055 = vmatpush1.bf16.msra.mxu0 %v3878
        %4056 = vmatprep.subr.bf16.mxu0 %v3875
        %4057 = vmatpush1.bf16.msra.mxu0 %v3874
        %4058 = vmatprep.subr.bf16.mxu0 %v3871
        %4059 = vmatpush1.bf16.msra.mxu0 %v3870
        %4060 = vmatprep.subr.bf16.mxu0 %v3867
        %4061 = vmatpush1.bf16.msra.mxu0 %v3866
        %4062 = vmatprep.subr.bf16.mxu0 %v3863
        %4063 = vmatpush1.bf16.msra.mxu0 %v3862
        %4064 = vmatprep.subr.bf16.mxu0 %v3859
        %4065 = vmatpush1.bf16.msra.mxu0 %v3858
        %4066 = vmatprep.subr.bf16.mxu0 %v3919
        %4067 = vmatpush2.bf16.msra.mxu0 %v3918
        %4068 = vmatprep.subr.bf16.mxu0 %v3915
        %4069 = vmatpush2.bf16.msra.mxu0 %v3914
        %4070 = vmatprep.subr.bf16.mxu0 %v3911
        %4071 = vmatpush2.bf16.msra.mxu0 %v3910
        %4072 = vmatprep.subr.bf16.mxu0 %v3907
        %4073 = vmatpush2.bf16.msra.mxu0 %v3906
        %4074 = vmatprep.subr.bf16.mxu0 %v3903
        %4075 = vmatpush2.bf16.msra.mxu0 %v3902
        %4076 = vmatprep.subr.bf16.mxu0 %v3899
        %4077 = vmatpush2.bf16.msra.mxu0 %v3898
        %4078 = vmatprep.subr.bf16.mxu0 %v3895
        %4079 = vmatpush2.bf16.msra.mxu0 %v3894
        %4080 = vmatprep.subr.bf16.mxu0 %v3891
        %4081 = vmatpush2.bf16.msra.mxu0 %v3890
        %4082 = vmatprep.mubr.bf16.mxu0 %v2706
        %4083 = vmatmul.mubr.bf16.gmra.mxu0 %v2705
        %v4084 = vpop.f32.mrf.mxu0
        %v4085 = vadd.f32 %v3482, %v4084
        %v4086 = vpop.f32.mrf.mxu0
        %v4087 = vadd.f32 %v3484, %v4086
        %v4088 = vpop.f32.mrf.mxu0
        %v4089 = vpop.f32.mrf.mxu0
        %4090 = vdwg.mxu0
        %4091 = vmatprep.subr.bf16.mxu0 %v3951
        %4092 = vmatpush1.bf16.msra.mxu0 %v3950
        %4093 = vmatprep.subr.bf16.mxu0 %v3947
        %4094 = vmatpush1.bf16.msra.mxu0 %v3946
        %4095 = vmatprep.subr.bf16.mxu0 %v3943
        %4096 = vmatpush1.bf16.msra.mxu0 %v3942
        %4097 = vmatprep.subr.bf16.mxu0 %v3939
        %4098 = vmatpush1.bf16.msra.mxu0 %v3938
        %4099 = vmatprep.subr.bf16.mxu0 %v3935
        %4100 = vmatpush1.bf16.msra.mxu0 %v3934
        %4101 = vmatprep.subr.bf16.mxu0 %v3931
        %4102 = vmatpush1.bf16.msra.mxu0 %v3930
        %4103 = vmatprep.subr.bf16.mxu0 %v3927
        %4104 = vmatpush1.bf16.msra.mxu0 %v3926
        %4105 = vmatprep.subr.bf16.mxu0 %v3923
        %4106 = vmatpush1.bf16.msra.mxu0 %v3922
        %4107 = vmatprep.subr.bf16.mxu0 0
        %4108 = vmatpush2.bf16.msra.mxu0 0
        %4109 = vmatprep.subr.bf16.mxu0 0
        %4110 = vmatpush2.bf16.msra.mxu0 0
        %4111 = vmatprep.subr.bf16.mxu0 0
        %4112 = vmatpush2.bf16.msra.mxu0 0
        %4113 = vmatprep.subr.bf16.mxu0 0
        %4114 = vmatpush2.bf16.msra.mxu0 0
        %4115 = vmatprep.subr.bf16.mxu0 0
        %4116 = vmatpush2.bf16.msra.mxu0 0
        %4117 = vmatprep.subr.bf16.mxu0 0
        %4118 = vmatpush2.bf16.msra.mxu0 0
        %4119 = vmatprep.subr.bf16.mxu0 0
        %4120 = vmatpush2.bf16.msra.mxu0 0
        %4121 = vmatprep.subr.bf16.mxu0 0
        %4122 = vmatpush2.bf16.msra.mxu0 0
        %4123 = vmatprep.mubr.bf16.mxu0 0
        %4124 = vmatmul.mubr.bf16.gmra.mxu0 %v2707
        %v4125 = vpop.f32.mrf.mxu0
        %v4126 = vadd.f32 %v4085, %v4125
        %v4127 = vpop.f32.mrf.mxu0
        %v4128 = vadd.f32 %v4087, %v4127
        %v4129 = vpop.f32.mrf.mxu0
        %v4130 = vpop.f32.mrf.mxu0
        %4131 = vdwg.mxu0
        %4132 = vmatprep.subr.bf16.mxu0 %v3889
        %4133 = vmatpush1.bf16.msra.mxu0 %v3888
        %4134 = vmatprep.subr.bf16.mxu0 %v3885
        %4135 = vmatpush1.bf16.msra.mxu0 %v3884
        %4136 = vmatprep.subr.bf16.mxu0 %v3881
        %4137 = vmatpush1.bf16.msra.mxu0 %v3880
        %4138 = vmatprep.subr.bf16.mxu0 %v3877
        %4139 = vmatpush1.bf16.msra.mxu0 %v3876
        %4140 = vmatprep.subr.bf16.mxu0 %v3873
        %4141 = vmatpush1.bf16.msra.mxu0 %v3872
        %4142 = vmatprep.subr.bf16.mxu0 %v3869
        %4143 = vmatpush1.bf16.msra.mxu0 %v3868
        %4144 = vmatprep.subr.bf16.mxu0 %v3865
        %4145 = vmatpush1.bf16.msra.mxu0 %v3864
        %4146 = vmatprep.subr.bf16.mxu0 %v3861
        %4147 = vmatpush1.bf16.msra.mxu0 %v3860
        %4148 = vmatprep.subr.bf16.mxu0 %v3921
        %4149 = vmatpush2.bf16.msra.mxu0 %v3920
        %4150 = vmatprep.subr.bf16.mxu0 %v3917
        %4151 = vmatpush2.bf16.msra.mxu0 %v3916
        %4152 = vmatprep.subr.bf16.mxu0 %v3913
        %4153 = vmatpush2.bf16.msra.mxu0 %v3912
        %4154 = vmatprep.subr.bf16.mxu0 %v3909
        %4155 = vmatpush2.bf16.msra.mxu0 %v3908
        %4156 = vmatprep.subr.bf16.mxu0 %v3905
        %4157 = vmatpush2.bf16.msra.mxu0 %v3904
        %4158 = vmatprep.subr.bf16.mxu0 %v3901
        %4159 = vmatpush2.bf16.msra.mxu0 %v3900
        %4160 = vmatprep.subr.bf16.mxu0 %v3897
        %4161 = vmatpush2.bf16.msra.mxu0 %v3896
        %4162 = vmatprep.subr.bf16.mxu0 %v3893
        %4163 = vmatpush2.bf16.msra.mxu0 %v3892
        %4164 = vmatprep.mubr.bf16.mxu0 %v2706
        %4165 = vmatmul.mubr.bf16.gmra.mxu0 %v2705
        %v4166 = vpop.f32.mrf.mxu0
        %v4167 = vadd.f32 %v3564, %v4166
        %v4168 = vpop.f32.mrf.mxu0
        %v4169 = vadd.f32 %v3566, %v4168
        %v4170 = vpop.f32.mrf.mxu0
        %v4171 = vpop.f32.mrf.mxu0
        %4172 = vdwg.mxu0
        %4173 = vmatprep.subr.bf16.mxu0 %v3953
        %4174 = vmatpush1.bf16.msra.mxu0 %v3952
        %4175 = vmatprep.subr.bf16.mxu0 %v3949
        %4176 = vmatpush1.bf16.msra.mxu0 %v3948
        %4177 = vmatprep.subr.bf16.mxu0 %v3945
        %4178 = vmatpush1.bf16.msra.mxu0 %v3944
        %4179 = vmatprep.subr.bf16.mxu0 %v3941
        %4180 = vmatpush1.bf16.msra.mxu0 %v3940
        %4181 = vmatprep.subr.bf16.mxu0 %v3937
        %4182 = vmatpush1.bf16.msra.mxu0 %v3936
        %4183 = vmatprep.subr.bf16.mxu0 %v3933
        %4184 = vmatpush1.bf16.msra.mxu0 %v3932
        %4185 = vmatprep.subr.bf16.mxu0 %v3929
        %4186 = vmatpush1.bf16.msra.mxu0 %v3928
        %4187 = vmatprep.subr.bf16.mxu0 %v3925
        %4188 = vmatpush1.bf16.msra.mxu0 %v3924
        %4189 = vmatprep.subr.bf16.mxu0 0
        %4190 = vmatpush2.bf16.msra.mxu0 0
        %4191 = vmatprep.subr.bf16.mxu0 0
        %4192 = vmatpush2.bf16.msra.mxu0 0
        %4193 = vmatprep.subr.bf16.mxu0 0
        %4194 = vmatpush2.bf16.msra.mxu0 0
        %4195 = vmatprep.subr.bf16.mxu0 0
        %4196 = vmatpush2.bf16.msra.mxu0 0
        %4197 = vmatprep.subr.bf16.mxu0 0
        %4198 = vmatpush2.bf16.msra.mxu0 0
        %4199 = vmatprep.subr.bf16.mxu0 0
        %4200 = vmatpush2.bf16.msra.mxu0 0
        %4201 = vmatprep.subr.bf16.mxu0 0
        %4202 = vmatpush2.bf16.msra.mxu0 0
        %4203 = vmatprep.subr.bf16.mxu0 0
        %4204 = vmatpush2.bf16.msra.mxu0 0
        %4205 = vmatprep.mubr.bf16.mxu0 0
        %4206 = vmatmul.mubr.bf16.gmra.mxu0 %v2707
        %v4207 = vpop.f32.mrf.mxu0
        %v4208 = vadd.f32 %v4167, %v4207
        %v4209 = vpop.f32.mrf.mxu0
        %v4210 = vadd.f32 %v4169, %v4209
        %v4211 = vpop.f32.mrf.mxu0
        %v4212 = vpop.f32.mrf.mxu0
        %4213 = vdwg.mxu0
        %s4214 = scalar_lea.vmem [#allocation7], 1536
        %v4215 = vld [vmem:[%s4214] sm:$0xff]
        %v4216 = vld [vmem:[%s4214 + $0x8] sm:$0xff]
        %v4217 = vld [vmem:[%s4214 + $0x10] sm:$0xff]
        %v4218 = vld [vmem:[%s4214 + $0x18] sm:$0xff]
        %v4219 = vld [vmem:[%s4214 + $0x20] sm:$0xff]
        %v4220 = vld [vmem:[%s4214 + $0x28] sm:$0xff]
        %v4221 = vld [vmem:[%s4214 + $0x30] sm:$0xff]
        %v4222 = vld [vmem:[%s4214 + $0x38] sm:$0xff]
        %v4223 = vld [vmem:[%s4214 + $0x40] sm:$0xff]
        %v4224 = vld [vmem:[%s4214 + $0x48] sm:$0xff]
        %v4225 = vld [vmem:[%s4214 + $0x50] sm:$0xff]
        %v4226 = vld [vmem:[%s4214 + $0x58] sm:$0xff]
        %v4227 = vld [vmem:[%s4214 + $0x60] sm:$0xff]
        %v4228 = vld [vmem:[%s4214 + $0x68] sm:$0xff]
        %v4229 = vld [vmem:[%s4214 + $0x70] sm:$0xff]
        %v4230 = vld [vmem:[%s4214 + $0x78] sm:$0xff]
        %v4231 = vld [vmem:[%s4214 + $0x80] sm:$0xff]
        %v4232 = vld [vmem:[%s4214 + $0x88] sm:$0xff]
        %v4233 = vld [vmem:[%s4214 + $0x90] sm:$0xff]
        %v4234 = vld [vmem:[%s4214 + $0x98] sm:$0xff]
        %v4235 = vld [vmem:[%s4214 + $0xa0] sm:$0xff]
        %v4236 = vld [vmem:[%s4214 + $0xa8] sm:$0xff]
        %v4237 = vld [vmem:[%s4214 + $0xb0] sm:$0xff]
        %v4238 = vld [vmem:[%s4214 + $0xb8] sm:$0xff]
        %v4239 = vld [vmem:[%s4214 + $0xc0] sm:$0xff]
        %v4240 = vld [vmem:[%s4214 + $0xc8] sm:$0xff]
        %v4241 = vld [vmem:[%s4214 + $0xd0] sm:$0xff]
        %v4242 = vld [vmem:[%s4214 + $0xd8] sm:$0xff]
        %v4243 = vld [vmem:[%s4214 + $0xe0] sm:$0xff]
        %v4244 = vld [vmem:[%s4214 + $0xe8] sm:$0xff]
        %v4245 = vld [vmem:[%s4214 + $0xf0] sm:$0xff]
        %v4246 = vld [vmem:[%s4214 + $0xf8] sm:$0xff]
        %v4247 = vld [vmem:[%s4214 + $0x100] sm:$0xff]
        %v4248 = vld [vmem:[%s4214 + $0x108] sm:$0xff]
        %v4249 = vld [vmem:[%s4214 + $0x110] sm:$0xff]
        %v4250 = vld [vmem:[%s4214 + $0x118] sm:$0xff]
        %v4251 = vld [vmem:[%s4214 + $0x120] sm:$0xff]
        %v4252 = vld [vmem:[%s4214 + $0x128] sm:$0xff]
        %v4253 = vld [vmem:[%s4214 + $0x130] sm:$0xff]
        %v4254 = vld [vmem:[%s4214 + $0x138] sm:$0xff]
        %v4255 = vld [vmem:[%s4214 + $0x140] sm:$0xff]
        %v4256 = vld [vmem:[%s4214 + $0x148] sm:$0xff]
        %v4257 = vld [vmem:[%s4214 + $0x150] sm:$0xff]
        %v4258 = vld [vmem:[%s4214 + $0x158] sm:$0xff]
        %v4259 = vld [vmem:[%s4214 + $0x160] sm:$0xff]
        %v4260 = vld [vmem:[%s4214 + $0x168] sm:$0xff]
        %v4261 = vld [vmem:[%s4214 + $0x170] sm:$0xff]
        %v4262 = vld [vmem:[%s4214 + $0x178] sm:$0xff]
        %v4263 = vld [vmem:[%s4214 + $0x180] sm:$0xff]
        %v4264 = vld [vmem:[%s4214 + $0x188] sm:$0xff]
        %v4265 = vld [vmem:[%s4214 + $0x190] sm:$0xff]
        %v4266 = vld [vmem:[%s4214 + $0x198] sm:$0xff]
        %v4267 = vld [vmem:[%s4214 + $0x1a0] sm:$0xff]
        %v4268 = vld [vmem:[%s4214 + $0x1a8] sm:$0xff]
        %v4269 = vld [vmem:[%s4214 + $0x1b0] sm:$0xff]
        %v4270 = vld [vmem:[%s4214 + $0x1b8] sm:$0xff]
        %v4271 = vld [vmem:[%s4214 + $0x1c0] sm:$0xff]
        %v4272 = vld [vmem:[%s4214 + $0x1c8] sm:$0xff]
        %v4273 = vld [vmem:[%s4214 + $0x1d0] sm:$0xff]
        %v4274 = vld [vmem:[%s4214 + $0x1d8] sm:$0xff]
        %v4275 = vld [vmem:[%s4214 + $0x1e0] sm:$0xff]
        %v4276 = vld [vmem:[%s4214 + $0x1e8] sm:$0xff]
        %v4277 = vld [vmem:[%s4214 + $0x1f0] sm:$0xff]
        %v4278 = vld [vmem:[%s4214 + $0x1f8] sm:$0xff]
        %v4279 = vld [vmem:[%s4214 + $0x200] sm:$0xff]
        %v4280 = vld [vmem:[%s4214 + $0x208] sm:$0xff]
        %v4281 = vld [vmem:[%s4214 + $0x210] sm:$0xff]
        %v4282 = vld [vmem:[%s4214 + $0x218] sm:$0xff]
        %v4283 = vld [vmem:[%s4214 + $0x220] sm:$0xff]
        %v4284 = vld [vmem:[%s4214 + $0x228] sm:$0xff]
        %v4285 = vld [vmem:[%s4214 + $0x230] sm:$0xff]
        %v4286 = vld [vmem:[%s4214 + $0x238] sm:$0xff]
        %v4287 = vld [vmem:[%s4214 + $0x240] sm:$0xff]
        %v4288 = vld [vmem:[%s4214 + $0x248] sm:$0xff]
        %v4289 = vld [vmem:[%s4214 + $0x250] sm:$0xff]
        %v4290 = vld [vmem:[%s4214 + $0x258] sm:$0xff]
        %v4291 = vld [vmem:[%s4214 + $0x260] sm:$0xff]
        %v4292 = vld [vmem:[%s4214 + $0x268] sm:$0xff]
        %v4293 = vld [vmem:[%s4214 + $0x270] sm:$0xff]
        %v4294 = vld [vmem:[%s4214 + $0x278] sm:$0xff]
        %v4295 = vld [vmem:[%s4214 + $0x280] sm:$0xff]
        %v4296 = vld [vmem:[%s4214 + $0x288] sm:$0xff]
        %v4297 = vld [vmem:[%s4214 + $0x290] sm:$0xff]
        %v4298 = vld [vmem:[%s4214 + $0x298] sm:$0xff]
        %v4299 = vld [vmem:[%s4214 + $0x2a0] sm:$0xff]
        %v4300 = vld [vmem:[%s4214 + $0x2a8] sm:$0xff]
        %v4301 = vld [vmem:[%s4214 + $0x2b0] sm:$0xff]
        %v4302 = vld [vmem:[%s4214 + $0x2b8] sm:$0xff]
        %v4303 = vld [vmem:[%s4214 + $0x2c0] sm:$0xff]
        %v4304 = vld [vmem:[%s4214 + $0x2c8] sm:$0xff]
        %v4305 = vld [vmem:[%s4214 + $0x2d0] sm:$0xff]
        %v4306 = vld [vmem:[%s4214 + $0x2d8] sm:$0xff]
        %v4307 = vld [vmem:[%s4214 + $0x2e0] sm:$0xff]
        %v4308 = vld [vmem:[%s4214 + $0x2e8] sm:$0xff]
        %v4309 = vld [vmem:[%s4214 + $0x2f0] sm:$0xff]
        %v4310 = vld [vmem:[%s4214 + $0x2f8] sm:$0xff]
        %v4314 = vrot.slane %v2705, 1
        %v4315 = vrot.slane %v2706, 1
        %v4316 = vrot.slane %v2707, 1
        %v4416 = vunpack.c.l.b16 %v4215
        %v4417 = vunpack.c.h.b16 %v4215
        %v4418 = vunpack.c.l.b16 %v4216
        %v4419 = vunpack.c.h.b16 %v4216
        %v4420 = vunpack.c.l.b16 %v4217
        %v4421 = vunpack.c.h.b16 %v4217
        %v4422 = vunpack.c.l.b16 %v4218
        %v4423 = vunpack.c.h.b16 %v4218
        %v4424 = vunpack.c.l.b16 %v4219
        %v4425 = vunpack.c.h.b16 %v4219
        %v4426 = vunpack.c.l.b16 %v4220
        %v4427 = vunpack.c.h.b16 %v4220
        %v4428 = vunpack.c.l.b16 %v4221
        %v4429 = vunpack.c.h.b16 %v4221
        %v4430 = vunpack.c.l.b16 %v4222
        %v4431 = vunpack.c.h.b16 %v4222
        %v4432 = vunpack.c.l.b16 %v4223
        %v4433 = vunpack.c.h.b16 %v4223
        %v4434 = vunpack.c.l.b16 %v4224
        %v4435 = vunpack.c.h.b16 %v4224
        %v4436 = vunpack.c.l.b16 %v4225
        %v4437 = vunpack.c.h.b16 %v4225
        %v4438 = vunpack.c.l.b16 %v4226
        %v4439 = vunpack.c.h.b16 %v4226
        %v4440 = vunpack.c.l.b16 %v4227
        %v4441 = vunpack.c.h.b16 %v4227
        %v4442 = vunpack.c.l.b16 %v4228
        %v4443 = vunpack.c.h.b16 %v4228
        %v4444 = vunpack.c.l.b16 %v4229
        %v4445 = vunpack.c.h.b16 %v4229
        %v4446 = vunpack.c.l.b16 %v4230
        %v4447 = vunpack.c.h.b16 %v4230
        %v4448 = vunpack.c.l.b16 %v4231
        %v4449 = vunpack.c.h.b16 %v4231
        %v4450 = vunpack.c.l.b16 %v4232
        %v4451 = vunpack.c.h.b16 %v4232
        %v4452 = vunpack.c.l.b16 %v4233
        %v4453 = vunpack.c.h.b16 %v4233
        %v4454 = vunpack.c.l.b16 %v4234
        %v4455 = vunpack.c.h.b16 %v4234
        %v4456 = vunpack.c.l.b16 %v4235
        %v4457 = vunpack.c.h.b16 %v4235
        %v4458 = vunpack.c.l.b16 %v4236
        %v4459 = vunpack.c.h.b16 %v4236
        %v4460 = vunpack.c.l.b16 %v4237
        %v4461 = vunpack.c.h.b16 %v4237
        %v4462 = vunpack.c.l.b16 %v4238
        %v4463 = vunpack.c.h.b16 %v4238
        %v4464 = vunpack.c.l.b16 %v4239
        %v4465 = vunpack.c.h.b16 %v4239
        %v4466 = vunpack.c.l.b16 %v4240
        %v4467 = vunpack.c.h.b16 %v4240
        %v4468 = vunpack.c.l.b16 %v4241
        %v4469 = vunpack.c.h.b16 %v4241
        %v4470 = vunpack.c.l.b16 %v4242
        %v4471 = vunpack.c.h.b16 %v4242
        %v4472 = vunpack.c.l.b16 %v4243
        %v4473 = vunpack.c.h.b16 %v4243
        %v4474 = vunpack.c.l.b16 %v4244
        %v4475 = vunpack.c.h.b16 %v4244
        %v4476 = vunpack.c.l.b16 %v4245
        %v4477 = vunpack.c.h.b16 %v4245
        %v4478 = vunpack.c.l.b16 %v4246
        %v4479 = vunpack.c.h.b16 %v4246
        %v4480 = vunpack.c.l.b16 %v4247
        %v4481 = vunpack.c.h.b16 %v4247
        %v4482 = vunpack.c.l.b16 %v4248
        %v4483 = vunpack.c.h.b16 %v4248
        %v4484 = vunpack.c.l.b16 %v4249
        %v4485 = vunpack.c.h.b16 %v4249
        %v4486 = vunpack.c.l.b16 %v4250
        %v4487 = vunpack.c.h.b16 %v4250
        %v4488 = vunpack.c.l.b16 %v4251
        %v4489 = vunpack.c.h.b16 %v4251
        %v4490 = vunpack.c.l.b16 %v4252
        %v4491 = vunpack.c.h.b16 %v4252
        %v4492 = vunpack.c.l.b16 %v4253
        %v4493 = vunpack.c.h.b16 %v4253
        %v4494 = vunpack.c.l.b16 %v4254
        %v4495 = vunpack.c.h.b16 %v4254
        %v4496 = vunpack.c.l.b16 %v4255
        %v4497 = vunpack.c.h.b16 %v4255
        %v4498 = vunpack.c.l.b16 %v4256
        %v4499 = vunpack.c.h.b16 %v4256
        %v4500 = vunpack.c.l.b16 %v4257
        %v4501 = vunpack.c.h.b16 %v4257
        %v4502 = vunpack.c.l.b16 %v4258
        %v4503 = vunpack.c.h.b16 %v4258
        %v4504 = vunpack.c.l.b16 %v4259
        %v4505 = vunpack.c.h.b16 %v4259
        %v4506 = vunpack.c.l.b16 %v4260
        %v4507 = vunpack.c.h.b16 %v4260
        %v4508 = vunpack.c.l.b16 %v4261
        %v4509 = vunpack.c.h.b16 %v4261
        %v4510 = vunpack.c.l.b16 %v4262
        %v4511 = vunpack.c.h.b16 %v4262
        %v4512 = vunpack.c.l.b16 %v4263
        %v4513 = vunpack.c.h.b16 %v4263
        %v4514 = vunpack.c.l.b16 %v4264
        %v4515 = vunpack.c.h.b16 %v4264
        %v4516 = vunpack.c.l.b16 %v4265
        %v4517 = vunpack.c.h.b16 %v4265
        %v4518 = vunpack.c.l.b16 %v4266
        %v4519 = vunpack.c.h.b16 %v4266
        %v4520 = vunpack.c.l.b16 %v4267
        %v4521 = vunpack.c.h.b16 %v4267
        %v4522 = vunpack.c.l.b16 %v4268
        %v4523 = vunpack.c.h.b16 %v4268
        %v4524 = vunpack.c.l.b16 %v4269
        %v4525 = vunpack.c.h.b16 %v4269
        %v4526 = vunpack.c.l.b16 %v4270
        %v4527 = vunpack.c.h.b16 %v4270
        %v4528 = vunpack.c.l.b16 %v4271
        %v4529 = vunpack.c.h.b16 %v4271
        %v4530 = vunpack.c.l.b16 %v4272
        %v4531 = vunpack.c.h.b16 %v4272
        %v4532 = vunpack.c.l.b16 %v4273
        %v4533 = vunpack.c.h.b16 %v4273
        %v4534 = vunpack.c.l.b16 %v4274
        %v4535 = vunpack.c.h.b16 %v4274
        %v4536 = vunpack.c.l.b16 %v4275
        %v4537 = vunpack.c.h.b16 %v4275
        %v4538 = vunpack.c.l.b16 %v4276
        %v4539 = vunpack.c.h.b16 %v4276
        %v4540 = vunpack.c.l.b16 %v4277
        %v4541 = vunpack.c.h.b16 %v4277
        %v4542 = vunpack.c.l.b16 %v4278
        %v4543 = vunpack.c.h.b16 %v4278
        %v4544 = vunpack.c.l.b16 %v4279
        %v4545 = vunpack.c.h.b16 %v4279
        %v4546 = vunpack.c.l.b16 %v4280
        %v4547 = vunpack.c.h.b16 %v4280
        %v4548 = vunpack.c.l.b16 %v4281
        %v4549 = vunpack.c.h.b16 %v4281
        %v4550 = vunpack.c.l.b16 %v4282
        %v4551 = vunpack.c.h.b16 %v4282
        %v4552 = vunpack.c.l.b16 %v4283
        %v4553 = vunpack.c.h.b16 %v4283
        %v4554 = vunpack.c.l.b16 %v4284
        %v4555 = vunpack.c.h.b16 %v4284
        %v4556 = vunpack.c.l.b16 %v4285
        %v4557 = vunpack.c.h.b16 %v4285
        %v4558 = vunpack.c.l.b16 %v4286
        %v4559 = vunpack.c.h.b16 %v4286
        %v4560 = vunpack.c.l.b16 %v4287
        %v4561 = vunpack.c.h.b16 %v4287
        %v4562 = vunpack.c.l.b16 %v4288
        %v4563 = vunpack.c.h.b16 %v4288
        %v4564 = vunpack.c.l.b16 %v4289
        %v4565 = vunpack.c.h.b16 %v4289
        %v4566 = vunpack.c.l.b16 %v4290
        %v4567 = vunpack.c.h.b16 %v4290
        %v4568 = vunpack.c.l.b16 %v4291
        %v4569 = vunpack.c.h.b16 %v4291
        %v4570 = vunpack.c.l.b16 %v4292
        %v4571 = vunpack.c.h.b16 %v4292
        %v4572 = vunpack.c.l.b16 %v4293
        %v4573 = vunpack.c.h.b16 %v4293
        %v4574 = vunpack.c.l.b16 %v4294
        %v4575 = vunpack.c.h.b16 %v4294
        %v4576 = vunpack.c.l.b16 %v4295
        %v4577 = vunpack.c.h.b16 %v4295
        %v4578 = vunpack.c.l.b16 %v4296
        %v4579 = vunpack.c.h.b16 %v4296
        %v4580 = vunpack.c.l.b16 %v4297
        %v4581 = vunpack.c.h.b16 %v4297
        %v4582 = vunpack.c.l.b16 %v4298
        %v4583 = vunpack.c.h.b16 %v4298
        %v4584 = vunpack.c.l.b16 %v4299
        %v4585 = vunpack.c.h.b16 %v4299
        %v4586 = vunpack.c.l.b16 %v4300
        %v4587 = vunpack.c.h.b16 %v4300
        %v4588 = vunpack.c.l.b16 %v4301
        %v4589 = vunpack.c.h.b16 %v4301
        %v4590 = vunpack.c.l.b16 %v4302
        %v4591 = vunpack.c.h.b16 %v4302
        %v4592 = vunpack.c.l.b16 %v4303
        %v4593 = vunpack.c.h.b16 %v4303
        %v4594 = vunpack.c.l.b16 %v4304
        %v4595 = vunpack.c.h.b16 %v4304
        %v4596 = vunpack.c.l.b16 %v4305
        %v4597 = vunpack.c.h.b16 %v4305
        %v4598 = vunpack.c.l.b16 %v4306
        %v4599 = vunpack.c.h.b16 %v4306
        %v4600 = vunpack.c.l.b16 %v4307
        %v4601 = vunpack.c.h.b16 %v4307
        %v4602 = vunpack.c.l.b16 %v4308
        %v4603 = vunpack.c.h.b16 %v4308
        %v4604 = vunpack.c.l.b16 %v4309
        %v4605 = vunpack.c.h.b16 %v4309
        %v4606 = vunpack.c.l.b16 %v4310
        %v4607 = vunpack.c.h.b16 %v4310
        %v4608 = vpack.c.b16 %v4420, %v4416
        %v4609 = vpack.c.b16 %v4421, %v4417
        %v4610 = vpack.c.b16 %v4422, %v4418
        %v4611 = vpack.c.b16 %v4423, %v4419
        %v4612 = vpack.c.b16 %v4428, %v4424
        %v4613 = vpack.c.b16 %v4429, %v4425
        %v4614 = vpack.c.b16 %v4430, %v4426
        %v4615 = vpack.c.b16 %v4431, %v4427
        %v4616 = vpack.c.b16 %v4436, %v4432
        %v4617 = vpack.c.b16 %v4437, %v4433
        %v4618 = vpack.c.b16 %v4438, %v4434
        %v4619 = vpack.c.b16 %v4439, %v4435
        %v4620 = vpack.c.b16 %v4444, %v4440
        %v4621 = vpack.c.b16 %v4445, %v4441
        %v4622 = vpack.c.b16 %v4446, %v4442
        %v4623 = vpack.c.b16 %v4447, %v4443
        %v4624 = vpack.c.b16 %v4452, %v4448
        %v4625 = vpack.c.b16 %v4453, %v4449
        %v4626 = vpack.c.b16 %v4454, %v4450
        %v4627 = vpack.c.b16 %v4455, %v4451
        %v4628 = vpack.c.b16 %v4460, %v4456
        %v4629 = vpack.c.b16 %v4461, %v4457
        %v4630 = vpack.c.b16 %v4462, %v4458
        %v4631 = vpack.c.b16 %v4463, %v4459
        %v4632 = vpack.c.b16 %v4468, %v4464
        %v4633 = vpack.c.b16 %v4469, %v4465
        %v4634 = vpack.c.b16 %v4470, %v4466
        %v4635 = vpack.c.b16 %v4471, %v4467
        %v4636 = vpack.c.b16 %v4476, %v4472
        %v4637 = vpack.c.b16 %v4477, %v4473
        %v4638 = vpack.c.b16 %v4478, %v4474
        %v4639 = vpack.c.b16 %v4479, %v4475
        %v4640 = vpack.c.b16 %v4484, %v4480
        %v4641 = vpack.c.b16 %v4485, %v4481
        %v4642 = vpack.c.b16 %v4486, %v4482
        %v4643 = vpack.c.b16 %v4487, %v4483
        %v4644 = vpack.c.b16 %v4492, %v4488
        %v4645 = vpack.c.b16 %v4493, %v4489
        %v4646 = vpack.c.b16 %v4494, %v4490
        %v4647 = vpack.c.b16 %v4495, %v4491
        %v4648 = vpack.c.b16 %v4500, %v4496
        %v4649 = vpack.c.b16 %v4501, %v4497
        %v4650 = vpack.c.b16 %v4502, %v4498
        %v4651 = vpack.c.b16 %v4503, %v4499
        %v4652 = vpack.c.b16 %v4508, %v4504
        %v4653 = vpack.c.b16 %v4509, %v4505
        %v4654 = vpack.c.b16 %v4510, %v4506
        %v4655 = vpack.c.b16 %v4511, %v4507
        %v4656 = vpack.c.b16 %v4516, %v4512
        %v4657 = vpack.c.b16 %v4517, %v4513
        %v4658 = vpack.c.b16 %v4518, %v4514
        %v4659 = vpack.c.b16 %v4519, %v4515
        %v4660 = vpack.c.b16 %v4524, %v4520
        %v4661 = vpack.c.b16 %v4525, %v4521
        %v4662 = vpack.c.b16 %v4526, %v4522
        %v4663 = vpack.c.b16 %v4527, %v4523
        %v4664 = vpack.c.b16 %v4532, %v4528
        %v4665 = vpack.c.b16 %v4533, %v4529
        %v4666 = vpack.c.b16 %v4534, %v4530
        %v4667 = vpack.c.b16 %v4535, %v4531
        %v4668 = vpack.c.b16 %v4540, %v4536
        %v4669 = vpack.c.b16 %v4541, %v4537
        %v4670 = vpack.c.b16 %v4542, %v4538
        %v4671 = vpack.c.b16 %v4543, %v4539
        %v4672 = vpack.c.b16 %v4548, %v4544
        %v4673 = vpack.c.b16 %v4549, %v4545
        %v4674 = vpack.c.b16 %v4550, %v4546
        %v4675 = vpack.c.b16 %v4551, %v4547
        %v4676 = vpack.c.b16 %v4556, %v4552
        %v4677 = vpack.c.b16 %v4557, %v4553
        %v4678 = vpack.c.b16 %v4558, %v4554
        %v4679 = vpack.c.b16 %v4559, %v4555
        %v4680 = vpack.c.b16 %v4564, %v4560
        %v4681 = vpack.c.b16 %v4565, %v4561
        %v4682 = vpack.c.b16 %v4566, %v4562
        %v4683 = vpack.c.b16 %v4567, %v4563
        %v4684 = vpack.c.b16 %v4572, %v4568
        %v4685 = vpack.c.b16 %v4573, %v4569
        %v4686 = vpack.c.b16 %v4574, %v4570
        %v4687 = vpack.c.b16 %v4575, %v4571
        %v4688 = vpack.c.b16 %v4580, %v4576
        %v4689 = vpack.c.b16 %v4581, %v4577
        %v4690 = vpack.c.b16 %v4582, %v4578
        %v4691 = vpack.c.b16 %v4583, %v4579
        %v4692 = vpack.c.b16 %v4588, %v4584
        %v4693 = vpack.c.b16 %v4589, %v4585
        %v4694 = vpack.c.b16 %v4590, %v4586
        %v4695 = vpack.c.b16 %v4591, %v4587
        %v4696 = vpack.c.b16 %v4596, %v4592
        %v4697 = vpack.c.b16 %v4597, %v4593
        %v4698 = vpack.c.b16 %v4598, %v4594
        %v4699 = vpack.c.b16 %v4599, %v4595
        %v4700 = vpack.c.b16 %v4604, %v4600
        %v4701 = vpack.c.b16 %v4605, %v4601
        %v4702 = vpack.c.b16 %v4606, %v4602
        %v4703 = vpack.c.b16 %v4607, %v4603
        %4800 = vmatprep.subr.bf16.mxu0 %v4637
        %4801 = vmatpush1.bf16.msra.mxu0 %v4636
        %4802 = vmatprep.subr.bf16.mxu0 %v4633
        %4803 = vmatpush1.bf16.msra.mxu0 %v4632
        %4804 = vmatprep.subr.bf16.mxu0 %v4629
        %4805 = vmatpush1.bf16.msra.mxu0 %v4628
        %4806 = vmatprep.subr.bf16.mxu0 %v4625
        %4807 = vmatpush1.bf16.msra.mxu0 %v4624
        %4808 = vmatprep.subr.bf16.mxu0 %v4621
        %4809 = vmatpush1.bf16.msra.mxu0 %v4620
        %4810 = vmatprep.subr.bf16.mxu0 %v4617
        %4811 = vmatpush1.bf16.msra.mxu0 %v4616
        %4812 = vmatprep.subr.bf16.mxu0 %v4613
        %4813 = vmatpush1.bf16.msra.mxu0 %v4612
        %4814 = vmatprep.subr.bf16.mxu0 %v4609
        %4815 = vmatpush1.bf16.msra.mxu0 %v4608
        %4816 = vmatprep.subr.bf16.mxu0 %v4669
        %4817 = vmatpush2.bf16.msra.mxu0 %v4668
        %4818 = vmatprep.subr.bf16.mxu0 %v4665
        %4819 = vmatpush2.bf16.msra.mxu0 %v4664
        %4820 = vmatprep.subr.bf16.mxu0 %v4661
        %4821 = vmatpush2.bf16.msra.mxu0 %v4660
        %4822 = vmatprep.subr.bf16.mxu0 %v4657
        %4823 = vmatpush2.bf16.msra.mxu0 %v4656
        %4824 = vmatprep.subr.bf16.mxu0 %v4653
        %4825 = vmatpush2.bf16.msra.mxu0 %v4652
        %4826 = vmatprep.subr.bf16.mxu0 %v4649
        %4827 = vmatpush2.bf16.msra.mxu0 %v4648
        %4828 = vmatprep.subr.bf16.mxu0 %v4645
        %4829 = vmatpush2.bf16.msra.mxu0 %v4644
        %4830 = vmatprep.subr.bf16.mxu0 %v4641
        %4831 = vmatpush2.bf16.msra.mxu0 %v4640
        %4832 = vmatprep.mubr.bf16.mxu0 %v4315
        %4833 = vmatmul.mubr.bf16.gmra.mxu0 %v4314
        %v4834 = vpop.f32.mrf.mxu0
        %v4835 = vadd.f32 0.0, %v4834
        %v4836 = vpop.f32.mrf.mxu0
        %v4837 = vadd.f32 0.0, %v4836
        %v4838 = vpop.f32.mrf.mxu0
        %v4839 = vpop.f32.mrf.mxu0
        %4840 = vdwg.mxu0
        %4841 = vmatprep.subr.bf16.mxu0 %v4701
        %4842 = vmatpush1.bf16.msra.mxu0 %v4700
        %4843 = vmatprep.subr.bf16.mxu0 %v4697
        %4844 = vmatpush1.bf16.msra.mxu0 %v4696
        %4845 = vmatprep.subr.bf16.mxu0 %v4693
        %4846 = vmatpush1.bf16.msra.mxu0 %v4692
        %4847 = vmatprep.subr.bf16.mxu0 %v4689
        %4848 = vmatpush1.bf16.msra.mxu0 %v4688
        %4849 = vmatprep.subr.bf16.mxu0 %v4685
        %4850 = vmatpush1.bf16.msra.mxu0 %v4684
        %4851 = vmatprep.subr.bf16.mxu0 %v4681
        %4852 = vmatpush1.bf16.msra.mxu0 %v4680
        %4853 = vmatprep.subr.bf16.mxu0 %v4677
        %4854 = vmatpush1.bf16.msra.mxu0 %v4676
        %4855 = vmatprep.subr.bf16.mxu0 %v4673
        %4856 = vmatpush1.bf16.msra.mxu0 %v4672
        %4857 = vmatprep.subr.bf16.mxu0 0
        %4858 = vmatpush2.bf16.msra.mxu0 0
        %4859 = vmatprep.subr.bf16.mxu0 0
        %4860 = vmatpush2.bf16.msra.mxu0 0
        %4861 = vmatprep.subr.bf16.mxu0 0
        %4862 = vmatpush2.bf16.msra.mxu0 0
        %4863 = vmatprep.subr.bf16.mxu0 0
        %4864 = vmatpush2.bf16.msra.mxu0 0
        %4865 = vmatprep.subr.bf16.mxu0 0
        %4866 = vmatpush2.bf16.msra.mxu0 0
        %4867 = vmatprep.subr.bf16.mxu0 0
        %4868 = vmatpush2.bf16.msra.mxu0 0
        %4869 = vmatprep.subr.bf16.mxu0 0
        %4870 = vmatpush2.bf16.msra.mxu0 0
        %4871 = vmatprep.subr.bf16.mxu0 0
        %4872 = vmatpush2.bf16.msra.mxu0 0
        %4873 = vmatprep.mubr.bf16.mxu0 0
        %4874 = vmatmul.mubr.bf16.gmra.mxu0 %v4316
        %v4875 = vpop.f32.mrf.mxu0
        %v4876 = vadd.f32 %v4835, %v4875
        %v4877 = vpop.f32.mrf.mxu0
        %v4878 = vadd.f32 %v4837, %v4877
        %v4879 = vpop.f32.mrf.mxu0
        %v4880 = vpop.f32.mrf.mxu0
        %4881 = vdwg.mxu0
        %4882 = vmatprep.subr.bf16.mxu0 %v4639
        %4883 = vmatpush1.bf16.msra.mxu0 %v4638
        %4884 = vmatprep.subr.bf16.mxu0 %v4635
        %4885 = vmatpush1.bf16.msra.mxu0 %v4634
        %4886 = vmatprep.subr.bf16.mxu0 %v4631
        %4887 = vmatpush1.bf16.msra.mxu0 %v4630
        %4888 = vmatprep.subr.bf16.mxu0 %v4627
        %4889 = vmatpush1.bf16.msra.mxu0 %v4626
        %4890 = vmatprep.subr.bf16.mxu0 %v4623
        %4891 = vmatpush1.bf16.msra.mxu0 %v4622
        %4892 = vmatprep.subr.bf16.mxu0 %v4619
        %4893 = vmatpush1.bf16.msra.mxu0 %v4618
        %4894 = vmatprep.subr.bf16.mxu0 %v4615
        %4895 = vmatpush1.bf16.msra.mxu0 %v4614
        %4896 = vmatprep.subr.bf16.mxu0 %v4611
        %4897 = vmatpush1.bf16.msra.mxu0 %v4610
        %4898 = vmatprep.subr.bf16.mxu0 %v4671
        %4899 = vmatpush2.bf16.msra.mxu0 %v4670
        %4900 = vmatprep.subr.bf16.mxu0 %v4667
        %4901 = vmatpush2.bf16.msra.mxu0 %v4666
        %4902 = vmatprep.subr.bf16.mxu0 %v4663
        %4903 = vmatpush2.bf16.msra.mxu0 %v4662
        %4904 = vmatprep.subr.bf16.mxu0 %v4659
        %4905 = vmatpush2.bf16.msra.mxu0 %v4658
        %4906 = vmatprep.subr.bf16.mxu0 %v4655
        %4907 = vmatpush2.bf16.msra.mxu0 %v4654
        %4908 = vmatprep.subr.bf16.mxu0 %v4651
        %4909 = vmatpush2.bf16.msra.mxu0 %v4650
        %4910 = vmatprep.subr.bf16.mxu0 %v4647
        %4911 = vmatpush2.bf16.msra.mxu0 %v4646
        %4912 = vmatprep.subr.bf16.mxu0 %v4643
        %4913 = vmatpush2.bf16.msra.mxu0 %v4642
        %4914 = vmatprep.mubr.bf16.mxu0 %v4315
        %4915 = vmatmul.mubr.bf16.gmra.mxu0 %v4314
        %v4916 = vpop.f32.mrf.mxu0
        %v4917 = vadd.f32 0.0, %v4916
        %v4918 = vpop.f32.mrf.mxu0
        %v4919 = vadd.f32 0.0, %v4918
        %v4920 = vpop.f32.mrf.mxu0
        %v4921 = vpop.f32.mrf.mxu0
        %4922 = vdwg.mxu0
        %4923 = vmatprep.subr.bf16.mxu0 %v4703
        %4924 = vmatpush1.bf16.msra.mxu0 %v4702
        %4925 = vmatprep.subr.bf16.mxu0 %v4699
        %4926 = vmatpush1.bf16.msra.mxu0 %v4698
        %4927 = vmatprep.subr.bf16.mxu0 %v4695
        %4928 = vmatpush1.bf16.msra.mxu0 %v4694
        %4929 = vmatprep.subr.bf16.mxu0 %v4691
        %4930 = vmatpush1.bf16.msra.mxu0 %v4690
        %4931 = vmatprep.subr.bf16.mxu0 %v4687
        %4932 = vmatpush1.bf16.msra.mxu0 %v4686
        %4933 = vmatprep.subr.bf16.mxu0 %v4683
        %4934 = vmatpush1.bf16.msra.mxu0 %v4682
        %4935 = vmatprep.subr.bf16.mxu0 %v4679
        %4936 = vmatpush1.bf16.msra.mxu0 %v4678
        %4937 = vmatprep.subr.bf16.mxu0 %v4675
        %4938 = vmatpush1.bf16.msra.mxu0 %v4674
        %4939 = vmatprep.subr.bf16.mxu0 0
        %4940 = vmatpush2.bf16.msra.mxu0 0
        %4941 = vmatprep.subr.bf16.mxu0 0
        %4942 = vmatpush2.bf16.msra.mxu0 0
        %4943 = vmatprep.subr.bf16.mxu0 0
        %4944 = vmatpush2.bf16.msra.mxu0 0
        %4945 = vmatprep.subr.bf16.mxu0 0
        %4946 = vmatpush2.bf16.msra.mxu0 0
        %4947 = vmatprep.subr.bf16.mxu0 0
        %4948 = vmatpush2.bf16.msra.mxu0 0
        %4949 = vmatprep.subr.bf16.mxu0 0
        %4950 = vmatpush2.bf16.msra.mxu0 0
        %4951 = vmatprep.subr.bf16.mxu0 0
        %4952 = vmatpush2.bf16.msra.mxu0 0
        %4953 = vmatprep.subr.bf16.mxu0 0
        %4954 = vmatpush2.bf16.msra.mxu0 0
        %4955 = vmatprep.mubr.bf16.mxu0 0
        %4956 = vmatmul.mubr.bf16.gmra.mxu0 %v4316
        %v4957 = vpop.f32.mrf.mxu0
        %v4958 = vadd.f32 %v4917, %v4957
        %v4959 = vpop.f32.mrf.mxu0
        %v4960 = vadd.f32 %v4919, %v4959
        %v4961 = vpop.f32.mrf.mxu0
        %v4962 = vpop.f32.mrf.mxu0
        %4963 = vdwg.mxu0
        %v4964 = vadd.f32 %v4126, %v4876
        %v4965 = vadd.f32 %v4128, %v4878
        %v4966 = vadd.f32 %v4208, %v4958
        %v4967 = vadd.f32 %v4210, %v4960
        %s4968 = scalar_lea.vmem [#allocation7], 2304
        %v4969 = vld [vmem:[%s4968] sm:$0xff]
        %v4970 = vld [vmem:[%s4968 + $0x8] sm:$0xff]
        %v4971 = vld [vmem:[%s4968 + $0x10] sm:$0xff]
        %v4972 = vld [vmem:[%s4968 + $0x18] sm:$0xff]
        %v4973 = vld [vmem:[%s4968 + $0x20] sm:$0xff]
        %v4974 = vld [vmem:[%s4968 + $0x28] sm:$0xff]
        %v4975 = vld [vmem:[%s4968 + $0x30] sm:$0xff]
        %v4976 = vld [vmem:[%s4968 + $0x38] sm:$0xff]
        %v4977 = vld [vmem:[%s4968 + $0x40] sm:$0xff]
        %v4978 = vld [vmem:[%s4968 + $0x48] sm:$0xff]
        %v4979 = vld [vmem:[%s4968 + $0x50] sm:$0xff]
        %v4980 = vld [vmem:[%s4968 + $0x58] sm:$0xff]
        %v4981 = vld [vmem:[%s4968 + $0x60] sm:$0xff]
        %v4982 = vld [vmem:[%s4968 + $0x68] sm:$0xff]
        %v4983 = vld [vmem:[%s4968 + $0x70] sm:$0xff]
        %v4984 = vld [vmem:[%s4968 + $0x78] sm:$0xff]
        %v4985 = vld [vmem:[%s4968 + $0x80] sm:$0xff]
        %v4986 = vld [vmem:[%s4968 + $0x88] sm:$0xff]
        %v4987 = vld [vmem:[%s4968 + $0x90] sm:$0xff]
        %v4988 = vld [vmem:[%s4968 + $0x98] sm:$0xff]
        %v4989 = vld [vmem:[%s4968 + $0xa0] sm:$0xff]
        %v4990 = vld [vmem:[%s4968 + $0xa8] sm:$0xff]
        %v4991 = vld [vmem:[%s4968 + $0xb0] sm:$0xff]
        %v4992 = vld [vmem:[%s4968 + $0xb8] sm:$0xff]
        %v4993 = vld [vmem:[%s4968 + $0xc0] sm:$0xff]
        %v4994 = vld [vmem:[%s4968 + $0xc8] sm:$0xff]
        %v4995 = vld [vmem:[%s4968 + $0xd0] sm:$0xff]
        %v4996 = vld [vmem:[%s4968 + $0xd8] sm:$0xff]
        %v4997 = vld [vmem:[%s4968 + $0xe0] sm:$0xff]
        %v4998 = vld [vmem:[%s4968 + $0xe8] sm:$0xff]
        %v4999 = vld [vmem:[%s4968 + $0xf0] sm:$0xff]
        %v5000 = vld [vmem:[%s4968 + $0xf8] sm:$0xff]
        %v5001 = vld [vmem:[%s4968 + $0x100] sm:$0xff]
        %v5002 = vld [vmem:[%s4968 + $0x108] sm:$0xff]
        %v5003 = vld [vmem:[%s4968 + $0x110] sm:$0xff]
        %v5004 = vld [vmem:[%s4968 + $0x118] sm:$0xff]
        %v5005 = vld [vmem:[%s4968 + $0x120] sm:$0xff]
        %v5006 = vld [vmem:[%s4968 + $0x128] sm:$0xff]
        %v5007 = vld [vmem:[%s4968 + $0x130] sm:$0xff]
        %v5008 = vld [vmem:[%s4968 + $0x138] sm:$0xff]
        %v5009 = vld [vmem:[%s4968 + $0x140] sm:$0xff]
        %v5010 = vld [vmem:[%s4968 + $0x148] sm:$0xff]
        %v5011 = vld [vmem:[%s4968 + $0x150] sm:$0xff]
        %v5012 = vld [vmem:[%s4968 + $0x158] sm:$0xff]
        %v5013 = vld [vmem:[%s4968 + $0x160] sm:$0xff]
        %v5014 = vld [vmem:[%s4968 + $0x168] sm:$0xff]
        %v5015 = vld [vmem:[%s4968 + $0x170] sm:$0xff]
        %v5016 = vld [vmem:[%s4968 + $0x178] sm:$0xff]
        %v5017 = vld [vmem:[%s4968 + $0x180] sm:$0xff]
        %v5018 = vld [vmem:[%s4968 + $0x188] sm:$0xff]
        %v5019 = vld [vmem:[%s4968 + $0x190] sm:$0xff]
        %v5020 = vld [vmem:[%s4968 + $0x198] sm:$0xff]
        %v5021 = vld [vmem:[%s4968 + $0x1a0] sm:$0xff]
        %v5022 = vld [vmem:[%s4968 + $0x1a8] sm:$0xff]
        %v5023 = vld [vmem:[%s4968 + $0x1b0] sm:$0xff]
        %v5024 = vld [vmem:[%s4968 + $0x1b8] sm:$0xff]
        %v5025 = vld [vmem:[%s4968 + $0x1c0] sm:$0xff]
        %v5026 = vld [vmem:[%s4968 + $0x1c8] sm:$0xff]
        %v5027 = vld [vmem:[%s4968 + $0x1d0] sm:$0xff]
        %v5028 = vld [vmem:[%s4968 + $0x1d8] sm:$0xff]
        %v5029 = vld [vmem:[%s4968 + $0x1e0] sm:$0xff]
        %v5030 = vld [vmem:[%s4968 + $0x1e8] sm:$0xff]
        %v5031 = vld [vmem:[%s4968 + $0x1f0] sm:$0xff]
        %v5032 = vld [vmem:[%s4968 + $0x1f8] sm:$0xff]
        %v5033 = vld [vmem:[%s4968 + $0x200] sm:$0xff]
        %v5034 = vld [vmem:[%s4968 + $0x208] sm:$0xff]
        %v5035 = vld [vmem:[%s4968 + $0x210] sm:$0xff]
        %v5036 = vld [vmem:[%s4968 + $0x218] sm:$0xff]
        %v5037 = vld [vmem:[%s4968 + $0x220] sm:$0xff]
        %v5038 = vld [vmem:[%s4968 + $0x228] sm:$0xff]
        %v5039 = vld [vmem:[%s4968 + $0x230] sm:$0xff]
        %v5040 = vld [vmem:[%s4968 + $0x238] sm:$0xff]
        %v5041 = vld [vmem:[%s4968 + $0x240] sm:$0xff]
        %v5042 = vld [vmem:[%s4968 + $0x248] sm:$0xff]
        %v5043 = vld [vmem:[%s4968 + $0x250] sm:$0xff]
        %v5044 = vld [vmem:[%s4968 + $0x258] sm:$0xff]
        %v5045 = vld [vmem:[%s4968 + $0x260] sm:$0xff]
        %v5046 = vld [vmem:[%s4968 + $0x268] sm:$0xff]
        %v5047 = vld [vmem:[%s4968 + $0x270] sm:$0xff]
        %v5048 = vld [vmem:[%s4968 + $0x278] sm:$0xff]
        %v5049 = vld [vmem:[%s4968 + $0x280] sm:$0xff]
        %v5050 = vld [vmem:[%s4968 + $0x288] sm:$0xff]
        %v5051 = vld [vmem:[%s4968 + $0x290] sm:$0xff]
        %v5052 = vld [vmem:[%s4968 + $0x298] sm:$0xff]
        %v5053 = vld [vmem:[%s4968 + $0x2a0] sm:$0xff]
        %v5054 = vld [vmem:[%s4968 + $0x2a8] sm:$0xff]
        %v5055 = vld [vmem:[%s4968 + $0x2b0] sm:$0xff]
        %v5056 = vld [vmem:[%s4968 + $0x2b8] sm:$0xff]
        %v5057 = vld [vmem:[%s4968 + $0x2c0] sm:$0xff]
        %v5058 = vld [vmem:[%s4968 + $0x2c8] sm:$0xff]
        %v5059 = vld [vmem:[%s4968 + $0x2d0] sm:$0xff]
        %v5060 = vld [vmem:[%s4968 + $0x2d8] sm:$0xff]
        %v5061 = vld [vmem:[%s4968 + $0x2e0] sm:$0xff]
        %v5062 = vld [vmem:[%s4968 + $0x2e8] sm:$0xff]
        %v5063 = vld [vmem:[%s4968 + $0x2f0] sm:$0xff]
        %v5064 = vld [vmem:[%s4968 + $0x2f8] sm:$0xff]
        %v5065 = vrot.slane %v2903, 1
        %v5066 = vrot.slane %v2905, 2
        %v5067 = vor.u32 %v5065, %v5066
        %v5068 = vrot.slane %v2910, 1
        %v5069 = vrot.slane %v2912, 2
        %v5070 = vor.u32 %v5068, %v5069
        %v5071 = vrot.slane %v2917, 1
        %v5072 = vrot.slane %v2919, 2
        %v5073 = vor.u32 %v5071, %v5072
        %v5173 = vunpack.c.l.b16 %v4969
        %v5174 = vunpack.c.h.b16 %v4969
        %v5175 = vunpack.c.l.b16 %v4970
        %v5176 = vunpack.c.h.b16 %v4970
        %v5177 = vunpack.c.l.b16 %v4971
        %v5178 = vunpack.c.h.b16 %v4971
        %v5179 = vunpack.c.l.b16 %v4972
        %v5180 = vunpack.c.h.b16 %v4972
        %v5181 = vunpack.c.l.b16 %v4973
        %v5182 = vunpack.c.h.b16 %v4973
        %v5183 = vunpack.c.l.b16 %v4974
        %v5184 = vunpack.c.h.b16 %v4974
        %v5185 = vunpack.c.l.b16 %v4975
        %v5186 = vunpack.c.h.b16 %v4975
        %v5187 = vunpack.c.l.b16 %v4976
        %v5188 = vunpack.c.h.b16 %v4976
        %v5189 = vunpack.c.l.b16 %v4977
        %v5190 = vunpack.c.h.b16 %v4977
        %v5191 = vunpack.c.l.b16 %v4978
        %v5192 = vunpack.c.h.b16 %v4978
        %v5193 = vunpack.c.l.b16 %v4979
        %v5194 = vunpack.c.h.b16 %v4979
        %v5195 = vunpack.c.l.b16 %v4980
        %v5196 = vunpack.c.h.b16 %v4980
        %v5197 = vunpack.c.l.b16 %v4981
        %v5198 = vunpack.c.h.b16 %v4981
        %v5199 = vunpack.c.l.b16 %v4982
        %v5200 = vunpack.c.h.b16 %v4982
        %v5201 = vunpack.c.l.b16 %v4983
        %v5202 = vunpack.c.h.b16 %v4983
        %v5203 = vunpack.c.l.b16 %v4984
        %v5204 = vunpack.c.h.b16 %v4984
        %v5205 = vunpack.c.l.b16 %v4985
        %v5206 = vunpack.c.h.b16 %v4985
        %v5207 = vunpack.c.l.b16 %v4986
        %v5208 = vunpack.c.h.b16 %v4986
        %v5209 = vunpack.c.l.b16 %v4987
        %v5210 = vunpack.c.h.b16 %v4987
        %v5211 = vunpack.c.l.b16 %v4988
        %v5212 = vunpack.c.h.b16 %v4988
        %v5213 = vunpack.c.l.b16 %v4989
        %v5214 = vunpack.c.h.b16 %v4989
        %v5215 = vunpack.c.l.b16 %v4990
        %v5216 = vunpack.c.h.b16 %v4990
        %v5217 = vunpack.c.l.b16 %v4991
        %v5218 = vunpack.c.h.b16 %v4991
        %v5219 = vunpack.c.l.b16 %v4992
        %v5220 = vunpack.c.h.b16 %v4992
        %v5221 = vunpack.c.l.b16 %v4993
        %v5222 = vunpack.c.h.b16 %v4993
        %v5223 = vunpack.c.l.b16 %v4994
        %v5224 = vunpack.c.h.b16 %v4994
        %v5225 = vunpack.c.l.b16 %v4995
        %v5226 = vunpack.c.h.b16 %v4995
        %v5227 = vunpack.c.l.b16 %v4996
        %v5228 = vunpack.c.h.b16 %v4996
        %v5229 = vunpack.c.l.b16 %v4997
        %v5230 = vunpack.c.h.b16 %v4997
        %v5231 = vunpack.c.l.b16 %v4998
        %v5232 = vunpack.c.h.b16 %v4998
        %v5233 = vunpack.c.l.b16 %v4999
        %v5234 = vunpack.c.h.b16 %v4999
        %v5235 = vunpack.c.l.b16 %v5000
        %v5236 = vunpack.c.h.b16 %v5000
        %v5237 = vunpack.c.l.b16 %v5001
        %v5238 = vunpack.c.h.b16 %v5001
        %v5239 = vunpack.c.l.b16 %v5002
        %v5240 = vunpack.c.h.b16 %v5002
        %v5241 = vunpack.c.l.b16 %v5003
        %v5242 = vunpack.c.h.b16 %v5003
        %v5243 = vunpack.c.l.b16 %v5004
        %v5244 = vunpack.c.h.b16 %v5004
        %v5245 = vunpack.c.l.b16 %v5005
        %v5246 = vunpack.c.h.b16 %v5005
        %v5247 = vunpack.c.l.b16 %v5006
        %v5248 = vunpack.c.h.b16 %v5006
        %v5249 = vunpack.c.l.b16 %v5007
        %v5250 = vunpack.c.h.b16 %v5007
        %v5251 = vunpack.c.l.b16 %v5008
        %v5252 = vunpack.c.h.b16 %v5008
        %v5253 = vunpack.c.l.b16 %v5009
        %v5254 = vunpack.c.h.b16 %v5009
        %v5255 = vunpack.c.l.b16 %v5010
        %v5256 = vunpack.c.h.b16 %v5010
        %v5257 = vunpack.c.l.b16 %v5011
        %v5258 = vunpack.c.h.b16 %v5011
        %v5259 = vunpack.c.l.b16 %v5012
        %v5260 = vunpack.c.h.b16 %v5012
        %v5261 = vunpack.c.l.b16 %v5013
        %v5262 = vunpack.c.h.b16 %v5013
        %v5263 = vunpack.c.l.b16 %v5014
        %v5264 = vunpack.c.h.b16 %v5014
        %v5265 = vunpack.c.l.b16 %v5015
        %v5266 = vunpack.c.h.b16 %v5015
        %v5267 = vunpack.c.l.b16 %v5016
        %v5268 = vunpack.c.h.b16 %v5016
        %v5269 = vunpack.c.l.b16 %v5017
        %v5270 = vunpack.c.h.b16 %v5017
        %v5271 = vunpack.c.l.b16 %v5018
        %v5272 = vunpack.c.h.b16 %v5018
        %v5273 = vunpack.c.l.b16 %v5019
        %v5274 = vunpack.c.h.b16 %v5019
        %v5275 = vunpack.c.l.b16 %v5020
        %v5276 = vunpack.c.h.b16 %v5020
        %v5277 = vunpack.c.l.b16 %v5021
        %v5278 = vunpack.c.h.b16 %v5021
        %v5279 = vunpack.c.l.b16 %v5022
        %v5280 = vunpack.c.h.b16 %v5022
        %v5281 = vunpack.c.l.b16 %v5023
        %v5282 = vunpack.c.h.b16 %v5023
        %v5283 = vunpack.c.l.b16 %v5024
        %v5284 = vunpack.c.h.b16 %v5024
        %v5285 = vunpack.c.l.b16 %v5025
        %v5286 = vunpack.c.h.b16 %v5025
        %v5287 = vunpack.c.l.b16 %v5026
        %v5288 = vunpack.c.h.b16 %v5026
        %v5289 = vunpack.c.l.b16 %v5027
        %v5290 = vunpack.c.h.b16 %v5027
        %v5291 = vunpack.c.l.b16 %v5028
        %v5292 = vunpack.c.h.b16 %v5028
        %v5293 = vunpack.c.l.b16 %v5029
        %v5294 = vunpack.c.h.b16 %v5029
        %v5295 = vunpack.c.l.b16 %v5030
        %v5296 = vunpack.c.h.b16 %v5030
        %v5297 = vunpack.c.l.b16 %v5031
        %v5298 = vunpack.c.h.b16 %v5031
        %v5299 = vunpack.c.l.b16 %v5032
        %v5300 = vunpack.c.h.b16 %v5032
        %v5301 = vunpack.c.l.b16 %v5033
        %v5302 = vunpack.c.h.b16 %v5033
        %v5303 = vunpack.c.l.b16 %v5034
        %v5304 = vunpack.c.h.b16 %v5034
        %v5305 = vunpack.c.l.b16 %v5035
        %v5306 = vunpack.c.h.b16 %v5035
        %v5307 = vunpack.c.l.b16 %v5036
        %v5308 = vunpack.c.h.b16 %v5036
        %v5309 = vunpack.c.l.b16 %v5037
        %v5310 = vunpack.c.h.b16 %v5037
        %v5311 = vunpack.c.l.b16 %v5038
        %v5312 = vunpack.c.h.b16 %v5038
        %v5313 = vunpack.c.l.b16 %v5039
        %v5314 = vunpack.c.h.b16 %v5039
        %v5315 = vunpack.c.l.b16 %v5040
        %v5316 = vunpack.c.h.b16 %v5040
        %v5317 = vunpack.c.l.b16 %v5041
        %v5318 = vunpack.c.h.b16 %v5041
        %v5319 = vunpack.c.l.b16 %v5042
        %v5320 = vunpack.c.h.b16 %v5042
        %v5321 = vunpack.c.l.b16 %v5043
        %v5322 = vunpack.c.h.b16 %v5043
        %v5323 = vunpack.c.l.b16 %v5044
        %v5324 = vunpack.c.h.b16 %v5044
        %v5325 = vunpack.c.l.b16 %v5045
        %v5326 = vunpack.c.h.b16 %v5045
        %v5327 = vunpack.c.l.b16 %v5046
        %v5328 = vunpack.c.h.b16 %v5046
        %v5329 = vunpack.c.l.b16 %v5047
        %v5330 = vunpack.c.h.b16 %v5047
        %v5331 = vunpack.c.l.b16 %v5048
        %v5332 = vunpack.c.h.b16 %v5048
        %v5333 = vunpack.c.l.b16 %v5049
        %v5334 = vunpack.c.h.b16 %v5049
        %v5335 = vunpack.c.l.b16 %v5050
        %v5336 = vunpack.c.h.b16 %v5050
        %v5337 = vunpack.c.l.b16 %v5051
        %v5338 = vunpack.c.h.b16 %v5051
        %v5339 = vunpack.c.l.b16 %v5052
        %v5340 = vunpack.c.h.b16 %v5052
        %v5341 = vunpack.c.l.b16 %v5053
        %v5342 = vunpack.c.h.b16 %v5053
        %v5343 = vunpack.c.l.b16 %v5054
        %v5344 = vunpack.c.h.b16 %v5054
        %v5345 = vunpack.c.l.b16 %v5055
        %v5346 = vunpack.c.h.b16 %v5055
        %v5347 = vunpack.c.l.b16 %v5056
        %v5348 = vunpack.c.h.b16 %v5056
        %v5349 = vunpack.c.l.b16 %v5057
        %v5350 = vunpack.c.h.b16 %v5057
        %v5351 = vunpack.c.l.b16 %v5058
        %v5352 = vunpack.c.h.b16 %v5058
        %v5353 = vunpack.c.l.b16 %v5059
        %v5354 = vunpack.c.h.b16 %v5059
        %v5355 = vunpack.c.l.b16 %v5060
        %v5356 = vunpack.c.h.b16 %v5060
        %v5357 = vunpack.c.l.b16 %v5061
        %v5358 = vunpack.c.h.b16 %v5061
        %v5359 = vunpack.c.l.b16 %v5062
        %v5360 = vunpack.c.h.b16 %v5062
        %v5361 = vunpack.c.l.b16 %v5063
        %v5362 = vunpack.c.h.b16 %v5063
        %v5363 = vunpack.c.l.b16 %v5064
        %v5364 = vunpack.c.h.b16 %v5064
        %v5365 = vpack.c.b16 %v5177, %v5173
        %v5366 = vpack.c.b16 %v5178, %v5174
        %v5367 = vpack.c.b16 %v5179, %v5175
        %v5368 = vpack.c.b16 %v5180, %v5176
        %v5369 = vpack.c.b16 %v5185, %v5181
        %v5370 = vpack.c.b16 %v5186, %v5182
        %v5371 = vpack.c.b16 %v5187, %v5183
        %v5372 = vpack.c.b16 %v5188, %v5184
        %v5373 = vpack.c.b16 %v5193, %v5189
        %v5374 = vpack.c.b16 %v5194, %v5190
        %v5375 = vpack.c.b16 %v5195, %v5191
        %v5376 = vpack.c.b16 %v5196, %v5192
        %v5377 = vpack.c.b16 %v5201, %v5197
        %v5378 = vpack.c.b16 %v5202, %v5198
        %v5379 = vpack.c.b16 %v5203, %v5199
        %v5380 = vpack.c.b16 %v5204, %v5200
        %v5381 = vpack.c.b16 %v5209, %v5205
        %v5382 = vpack.c.b16 %v5210, %v5206
        %v5383 = vpack.c.b16 %v5211, %v5207
        %v5384 = vpack.c.b16 %v5212, %v5208
        %v5385 = vpack.c.b16 %v5217, %v5213
        %v5386 = vpack.c.b16 %v5218, %v5214
        %v5387 = vpack.c.b16 %v5219, %v5215
        %v5388 = vpack.c.b16 %v5220, %v5216
        %v5389 = vpack.c.b16 %v5225, %v5221
        %v5390 = vpack.c.b16 %v5226, %v5222
        %v5391 = vpack.c.b16 %v5227, %v5223
        %v5392 = vpack.c.b16 %v5228, %v5224
        %v5393 = vpack.c.b16 %v5233, %v5229
        %v5394 = vpack.c.b16 %v5234, %v5230
        %v5395 = vpack.c.b16 %v5235, %v5231
        %v5396 = vpack.c.b16 %v5236, %v5232
        %v5397 = vpack.c.b16 %v5241, %v5237
        %v5398 = vpack.c.b16 %v5242, %v5238
        %v5399 = vpack.c.b16 %v5243, %v5239
        %v5400 = vpack.c.b16 %v5244, %v5240
        %v5401 = vpack.c.b16 %v5249, %v5245
        %v5402 = vpack.c.b16 %v5250, %v5246
        %v5403 = vpack.c.b16 %v5251, %v5247
        %v5404 = vpack.c.b16 %v5252, %v5248
        %v5405 = vpack.c.b16 %v5257, %v5253
        %v5406 = vpack.c.b16 %v5258, %v5254
        %v5407 = vpack.c.b16 %v5259, %v5255
        %v5408 = vpack.c.b16 %v5260, %v5256
        %v5409 = vpack.c.b16 %v5265, %v5261
        %v5410 = vpack.c.b16 %v5266, %v5262
        %v5411 = vpack.c.b16 %v5267, %v5263
        %v5412 = vpack.c.b16 %v5268, %v5264
        %v5413 = vpack.c.b16 %v5273, %v5269
        %v5414 = vpack.c.b16 %v5274, %v5270
        %v5415 = vpack.c.b16 %v5275, %v5271
        %v5416 = vpack.c.b16 %v5276, %v5272
        %v5417 = vpack.c.b16 %v5281, %v5277
        %v5418 = vpack.c.b16 %v5282, %v5278
        %v5419 = vpack.c.b16 %v5283, %v5279
        %v5420 = vpack.c.b16 %v5284, %v5280
        %v5421 = vpack.c.b16 %v5289, %v5285
        %v5422 = vpack.c.b16 %v5290, %v5286
        %v5423 = vpack.c.b16 %v5291, %v5287
        %v5424 = vpack.c.b16 %v5292, %v5288
        %v5425 = vpack.c.b16 %v5297, %v5293
        %v5426 = vpack.c.b16 %v5298, %v5294
        %v5427 = vpack.c.b16 %v5299, %v5295
        %v5428 = vpack.c.b16 %v5300, %v5296
        %v5429 = vpack.c.b16 %v5305, %v5301
        %v5430 = vpack.c.b16 %v5306, %v5302
        %v5431 = vpack.c.b16 %v5307, %v5303
        %v5432 = vpack.c.b16 %v5308, %v5304
        %v5433 = vpack.c.b16 %v5313, %v5309
        %v5434 = vpack.c.b16 %v5314, %v5310
        %v5435 = vpack.c.b16 %v5315, %v5311
        %v5436 = vpack.c.b16 %v5316, %v5312
        %v5437 = vpack.c.b16 %v5321, %v5317
        %v5438 = vpack.c.b16 %v5322, %v5318
        %v5439 = vpack.c.b16 %v5323, %v5319
        %v5440 = vpack.c.b16 %v5324, %v5320
        %v5441 = vpack.c.b16 %v5329, %v5325
        %v5442 = vpack.c.b16 %v5330, %v5326
        %v5443 = vpack.c.b16 %v5331, %v5327
        %v5444 = vpack.c.b16 %v5332, %v5328
        %v5445 = vpack.c.b16 %v5337, %v5333
        %v5446 = vpack.c.b16 %v5338, %v5334
        %v5447 = vpack.c.b16 %v5339, %v5335
        %v5448 = vpack.c.b16 %v5340, %v5336
        %v5449 = vpack.c.b16 %v5345, %v5341
        %v5450 = vpack.c.b16 %v5346, %v5342
        %v5451 = vpack.c.b16 %v5347, %v5343
        %v5452 = vpack.c.b16 %v5348, %v5344
        %v5453 = vpack.c.b16 %v5353, %v5349
        %v5454 = vpack.c.b16 %v5354, %v5350
        %v5455 = vpack.c.b16 %v5355, %v5351
        %v5456 = vpack.c.b16 %v5356, %v5352
        %v5457 = vpack.c.b16 %v5361, %v5357
        %v5458 = vpack.c.b16 %v5362, %v5358
        %v5459 = vpack.c.b16 %v5363, %v5359
        %v5460 = vpack.c.b16 %v5364, %v5360
        %5557 = vmatprep.subr.bf16.mxu0 %v5394
        %5558 = vmatpush1.bf16.msra.mxu0 %v5393
        %5559 = vmatprep.subr.bf16.mxu0 %v5390
        %5560 = vmatpush1.bf16.msra.mxu0 %v5389
        %5561 = vmatprep.subr.bf16.mxu0 %v5386
        %5562 = vmatpush1.bf16.msra.mxu0 %v5385
        %5563 = vmatprep.subr.bf16.mxu0 %v5382
        %5564 = vmatpush1.bf16.msra.mxu0 %v5381
        %5565 = vmatprep.subr.bf16.mxu0 %v5378
        %5566 = vmatpush1.bf16.msra.mxu0 %v5377
        %5567 = vmatprep.subr.bf16.mxu0 %v5374
        %5568 = vmatpush1.bf16.msra.mxu0 %v5373
        %5569 = vmatprep.subr.bf16.mxu0 %v5370
        %5570 = vmatpush1.bf16.msra.mxu0 %v5369
        %5571 = vmatprep.subr.bf16.mxu0 %v5366
        %5572 = vmatpush1.bf16.msra.mxu0 %v5365
        %5573 = vmatprep.subr.bf16.mxu0 %v5426
        %5574 = vmatpush2.bf16.msra.mxu0 %v5425
        %5575 = vmatprep.subr.bf16.mxu0 %v5422
        %5576 = vmatpush2.bf16.msra.mxu0 %v5421
        %5577 = vmatprep.subr.bf16.mxu0 %v5418
        %5578 = vmatpush2.bf16.msra.mxu0 %v5417
        %5579 = vmatprep.subr.bf16.mxu0 %v5414
        %5580 = vmatpush2.bf16.msra.mxu0 %v5413
        %5581 = vmatprep.subr.bf16.mxu0 %v5410
        %5582 = vmatpush2.bf16.msra.mxu0 %v5409
        %5583 = vmatprep.subr.bf16.mxu0 %v5406
        %5584 = vmatpush2.bf16.msra.mxu0 %v5405
        %5585 = vmatprep.subr.bf16.mxu0 %v5402
        %5586 = vmatpush2.bf16.msra.mxu0 %v5401
        %5587 = vmatprep.subr.bf16.mxu0 %v5398
        %5588 = vmatpush2.bf16.msra.mxu0 %v5397
        %5589 = vmatprep.mubr.bf16.mxu0 %v5070
        %5590 = vmatmul.mubr.bf16.gmra.mxu0 %v5067
        %v5591 = vpop.f32.mrf.mxu0
        %v5592 = vadd.f32 0.0, %v5591
        %v5593 = vpop.f32.mrf.mxu0
        %v5594 = vadd.f32 0.0, %v5593
        %v5595 = vpop.f32.mrf.mxu0
        %v5596 = vpop.f32.mrf.mxu0
        %5597 = vdwg.mxu0
        %5598 = vmatprep.subr.bf16.mxu0 %v5458
        %5599 = vmatpush1.bf16.msra.mxu0 %v5457
        %5600 = vmatprep.subr.bf16.mxu0 %v5454
        %5601 = vmatpush1.bf16.msra.mxu0 %v5453
        %5602 = vmatprep.subr.bf16.mxu0 %v5450
        %5603 = vmatpush1.bf16.msra.mxu0 %v5449
        %5604 = vmatprep.subr.bf16.mxu0 %v5446
        %5605 = vmatpush1.bf16.msra.mxu0 %v5445
        %5606 = vmatprep.subr.bf16.mxu0 %v5442
        %5607 = vmatpush1.bf16.msra.mxu0 %v5441
        %5608 = vmatprep.subr.bf16.mxu0 %v5438
        %5609 = vmatpush1.bf16.msra.mxu0 %v5437
        %5610 = vmatprep.subr.bf16.mxu0 %v5434
        %5611 = vmatpush1.bf16.msra.mxu0 %v5433
        %5612 = vmatprep.subr.bf16.mxu0 %v5430
        %5613 = vmatpush1.bf16.msra.mxu0 %v5429
        %5614 = vmatprep.subr.bf16.mxu0 0
        %5615 = vmatpush2.bf16.msra.mxu0 0
        %5616 = vmatprep.subr.bf16.mxu0 0
        %5617 = vmatpush2.bf16.msra.mxu0 0
        %5618 = vmatprep.subr.bf16.mxu0 0
        %5619 = vmatpush2.bf16.msra.mxu0 0
        %5620 = vmatprep.subr.bf16.mxu0 0
        %5621 = vmatpush2.bf16.msra.mxu0 0
        %5622 = vmatprep.subr.bf16.mxu0 0
        %5623 = vmatpush2.bf16.msra.mxu0 0
        %5624 = vmatprep.subr.bf16.mxu0 0
        %5625 = vmatpush2.bf16.msra.mxu0 0
        %5626 = vmatprep.subr.bf16.mxu0 0
        %5627 = vmatpush2.bf16.msra.mxu0 0
        %5628 = vmatprep.subr.bf16.mxu0 0
        %5629 = vmatpush2.bf16.msra.mxu0 0
        %5630 = vmatprep.mubr.bf16.mxu0 0
        %5631 = vmatmul.mubr.bf16.gmra.mxu0 %v5073
        %v5632 = vpop.f32.mrf.mxu0
        %v5633 = vadd.f32 %v5592, %v5632
        %v5634 = vpop.f32.mrf.mxu0
        %v5635 = vadd.f32 %v5594, %v5634
        %v5636 = vpop.f32.mrf.mxu0
        %v5637 = vpop.f32.mrf.mxu0
        %5638 = vdwg.mxu0
        %5639 = vmatprep.subr.bf16.mxu0 %v5396
        %5640 = vmatpush1.bf16.msra.mxu0 %v5395
        %5641 = vmatprep.subr.bf16.mxu0 %v5392
        %5642 = vmatpush1.bf16.msra.mxu0 %v5391
        %5643 = vmatprep.subr.bf16.mxu0 %v5388
        %5644 = vmatpush1.bf16.msra.mxu0 %v5387
        %5645 = vmatprep.subr.bf16.mxu0 %v5384
        %5646 = vmatpush1.bf16.msra.mxu0 %v5383
        %5647 = vmatprep.subr.bf16.mxu0 %v5380
        %5648 = vmatpush1.bf16.msra.mxu0 %v5379
        %5649 = vmatprep.subr.bf16.mxu0 %v5376
        %5650 = vmatpush1.bf16.msra.mxu0 %v5375
        %5651 = vmatprep.subr.bf16.mxu0 %v5372
        %5652 = vmatpush1.bf16.msra.mxu0 %v5371
        %5653 = vmatprep.subr.bf16.mxu0 %v5368
        %5654 = vmatpush1.bf16.msra.mxu0 %v5367
        %5655 = vmatprep.subr.bf16.mxu0 %v5428
        %5656 = vmatpush2.bf16.msra.mxu0 %v5427
        %5657 = vmatprep.subr.bf16.mxu0 %v5424
        %5658 = vmatpush2.bf16.msra.mxu0 %v5423
        %5659 = vmatprep.subr.bf16.mxu0 %v5420
        %5660 = vmatpush2.bf16.msra.mxu0 %v5419
        %5661 = vmatprep.subr.bf16.mxu0 %v5416
        %5662 = vmatpush2.bf16.msra.mxu0 %v5415
        %5663 = vmatprep.subr.bf16.mxu0 %v5412
        %5664 = vmatpush2.bf16.msra.mxu0 %v5411
        %5665 = vmatprep.subr.bf16.mxu0 %v5408
        %5666 = vmatpush2.bf16.msra.mxu0 %v5407
        %5667 = vmatprep.subr.bf16.mxu0 %v5404
        %5668 = vmatpush2.bf16.msra.mxu0 %v5403
        %5669 = vmatprep.subr.bf16.mxu0 %v5400
        %5670 = vmatpush2.bf16.msra.mxu0 %v5399
        %5671 = vmatprep.mubr.bf16.mxu0 %v5070
        %5672 = vmatmul.mubr.bf16.gmra.mxu0 %v5067
        %v5673 = vpop.f32.mrf.mxu0
        %v5674 = vadd.f32 0.0, %v5673
        %v5675 = vpop.f32.mrf.mxu0
        %v5676 = vadd.f32 0.0, %v5675
        %v5677 = vpop.f32.mrf.mxu0
        %v5678 = vpop.f32.mrf.mxu0
        %5679 = vdwg.mxu0
        %5680 = vmatprep.subr.bf16.mxu0 %v5460
        %5681 = vmatpush1.bf16.msra.mxu0 %v5459
        %5682 = vmatprep.subr.bf16.mxu0 %v5456
        %5683 = vmatpush1.bf16.msra.mxu0 %v5455
        %5684 = vmatprep.subr.bf16.mxu0 %v5452
        %5685 = vmatpush1.bf16.msra.mxu0 %v5451
        %5686 = vmatprep.subr.bf16.mxu0 %v5448
        %5687 = vmatpush1.bf16.msra.mxu0 %v5447
        %5688 = vmatprep.subr.bf16.mxu0 %v5444
        %5689 = vmatpush1.bf16.msra.mxu0 %v5443
        %5690 = vmatprep.subr.bf16.mxu0 %v5440
        %5691 = vmatpush1.bf16.msra.mxu0 %v5439
        %5692 = vmatprep.subr.bf16.mxu0 %v5436
        %5693 = vmatpush1.bf16.msra.mxu0 %v5435
        %5694 = vmatprep.subr.bf16.mxu0 %v5432
        %5695 = vmatpush1.bf16.msra.mxu0 %v5431
        %5696 = vmatprep.subr.bf16.mxu0 0
        %5697 = vmatpush2.bf16.msra.mxu0 0
        %5698 = vmatprep.subr.bf16.mxu0 0
        %5699 = vmatpush2.bf16.msra.mxu0 0
        %5700 = vmatprep.subr.bf16.mxu0 0
        %5701 = vmatpush2.bf16.msra.mxu0 0
        %5702 = vmatprep.subr.bf16.mxu0 0
        %5703 = vmatpush2.bf16.msra.mxu0 0
        %5704 = vmatprep.subr.bf16.mxu0 0
        %5705 = vmatpush2.bf16.msra.mxu0 0
        %5706 = vmatprep.subr.bf16.mxu0 0
        %5707 = vmatpush2.bf16.msra.mxu0 0
        %5708 = vmatprep.subr.bf16.mxu0 0
        %5709 = vmatpush2.bf16.msra.mxu0 0
        %5710 = vmatprep.subr.bf16.mxu0 0
        %5711 = vmatpush2.bf16.msra.mxu0 0
        %5712 = vmatprep.mubr.bf16.mxu0 0
        %5713 = vmatmul.mubr.bf16.gmra.mxu0 %v5073
        %v5714 = vpop.f32.mrf.mxu0
        %v5715 = vadd.f32 %v5674, %v5714
        %v5716 = vpop.f32.mrf.mxu0
        %v5717 = vadd.f32 %v5676, %v5716
        %v5718 = vpop.f32.mrf.mxu0
        %v5719 = vpop.f32.mrf.mxu0
        %5720 = vdwg.mxu0
        %v5721 = vadd.f32 %v4964, %v5633
        %v5722 = vadd.f32 %v4965, %v5635
        %v5723 = vadd.f32 %v4966, %v5715
        %v5724 = vadd.f32 %v4967, %v5717
        %s5725 = scalar_lea.vmem [#allocation7], 3072
        %v5726 = vld [vmem:[%s5725] sm:$0xff]
        %v5727 = vld [vmem:[%s5725 + $0x8] sm:$0xff]
        %v5728 = vld [vmem:[%s5725 + $0x10] sm:$0xff]
        %v5729 = vld [vmem:[%s5725 + $0x18] sm:$0xff]
        %v5730 = vld [vmem:[%s5725 + $0x20] sm:$0xff]
        %v5731 = vld [vmem:[%s5725 + $0x28] sm:$0xff]
        %v5732 = vld [vmem:[%s5725 + $0x30] sm:$0xff]
        %v5733 = vld [vmem:[%s5725 + $0x38] sm:$0xff]
        %v5734 = vld [vmem:[%s5725 + $0x40] sm:$0xff]
        %v5735 = vld [vmem:[%s5725 + $0x48] sm:$0xff]
        %v5736 = vld [vmem:[%s5725 + $0x50] sm:$0xff]
        %v5737 = vld [vmem:[%s5725 + $0x58] sm:$0xff]
        %v5738 = vld [vmem:[%s5725 + $0x60] sm:$0xff]
        %v5739 = vld [vmem:[%s5725 + $0x68] sm:$0xff]
        %v5740 = vld [vmem:[%s5725 + $0x70] sm:$0xff]
        %v5741 = vld [vmem:[%s5725 + $0x78] sm:$0xff]
        %v5742 = vld [vmem:[%s5725 + $0x80] sm:$0xff]
        %v5743 = vld [vmem:[%s5725 + $0x88] sm:$0xff]
        %v5744 = vld [vmem:[%s5725 + $0x90] sm:$0xff]
        %v5745 = vld [vmem:[%s5725 + $0x98] sm:$0xff]
        %v5746 = vld [vmem:[%s5725 + $0xa0] sm:$0xff]
        %v5747 = vld [vmem:[%s5725 + $0xa8] sm:$0xff]
        %v5748 = vld [vmem:[%s5725 + $0xb0] sm:$0xff]
        %v5749 = vld [vmem:[%s5725 + $0xb8] sm:$0xff]
        %v5750 = vld [vmem:[%s5725 + $0xc0] sm:$0xff]
        %v5751 = vld [vmem:[%s5725 + $0xc8] sm:$0xff]
        %v5752 = vld [vmem:[%s5725 + $0xd0] sm:$0xff]
        %v5753 = vld [vmem:[%s5725 + $0xd8] sm:$0xff]
        %v5754 = vld [vmem:[%s5725 + $0xe0] sm:$0xff]
        %v5755 = vld [vmem:[%s5725 + $0xe8] sm:$0xff]
        %v5756 = vld [vmem:[%s5725 + $0xf0] sm:$0xff]
        %v5757 = vld [vmem:[%s5725 + $0xf8] sm:$0xff]
        %v5758 = vld [vmem:[%s5725 + $0x100] sm:$0xff]
        %v5759 = vld [vmem:[%s5725 + $0x108] sm:$0xff]
        %v5760 = vld [vmem:[%s5725 + $0x110] sm:$0xff]
        %v5761 = vld [vmem:[%s5725 + $0x118] sm:$0xff]
        %v5762 = vld [vmem:[%s5725 + $0x120] sm:$0xff]
        %v5763 = vld [vmem:[%s5725 + $0x128] sm:$0xff]
        %v5764 = vld [vmem:[%s5725 + $0x130] sm:$0xff]
        %v5765 = vld [vmem:[%s5725 + $0x138] sm:$0xff]
        %v5766 = vld [vmem:[%s5725 + $0x140] sm:$0xff]
        %v5767 = vld [vmem:[%s5725 + $0x148] sm:$0xff]
        %v5768 = vld [vmem:[%s5725 + $0x150] sm:$0xff]
        %v5769 = vld [vmem:[%s5725 + $0x158] sm:$0xff]
        %v5770 = vld [vmem:[%s5725 + $0x160] sm:$0xff]
        %v5771 = vld [vmem:[%s5725 + $0x168] sm:$0xff]
        %v5772 = vld [vmem:[%s5725 + $0x170] sm:$0xff]
        %v5773 = vld [vmem:[%s5725 + $0x178] sm:$0xff]
        %v5774 = vld [vmem:[%s5725 + $0x180] sm:$0xff]
        %v5775 = vld [vmem:[%s5725 + $0x188] sm:$0xff]
        %v5776 = vld [vmem:[%s5725 + $0x190] sm:$0xff]
        %v5777 = vld [vmem:[%s5725 + $0x198] sm:$0xff]
        %v5778 = vld [vmem:[%s5725 + $0x1a0] sm:$0xff]
        %v5779 = vld [vmem:[%s5725 + $0x1a8] sm:$0xff]
        %v5780 = vld [vmem:[%s5725 + $0x1b0] sm:$0xff]
        %v5781 = vld [vmem:[%s5725 + $0x1b8] sm:$0xff]
        %v5782 = vld [vmem:[%s5725 + $0x1c0] sm:$0xff]
        %v5783 = vld [vmem:[%s5725 + $0x1c8] sm:$0xff]
        %v5784 = vld [vmem:[%s5725 + $0x1d0] sm:$0xff]
        %v5785 = vld [vmem:[%s5725 + $0x1d8] sm:$0xff]
        %v5786 = vld [vmem:[%s5725 + $0x1e0] sm:$0xff]
        %v5787 = vld [vmem:[%s5725 + $0x1e8] sm:$0xff]
        %v5788 = vld [vmem:[%s5725 + $0x1f0] sm:$0xff]
        %v5789 = vld [vmem:[%s5725 + $0x1f8] sm:$0xff]
        %v5790 = vld [vmem:[%s5725 + $0x200] sm:$0xff]
        %v5791 = vld [vmem:[%s5725 + $0x208] sm:$0xff]
        %v5792 = vld [vmem:[%s5725 + $0x210] sm:$0xff]
        %v5793 = vld [vmem:[%s5725 + $0x218] sm:$0xff]
        %v5794 = vld [vmem:[%s5725 + $0x220] sm:$0xff]
        %v5795 = vld [vmem:[%s5725 + $0x228] sm:$0xff]
        %v5796 = vld [vmem:[%s5725 + $0x230] sm:$0xff]
        %v5797 = vld [vmem:[%s5725 + $0x238] sm:$0xff]
        %v5798 = vld [vmem:[%s5725 + $0x240] sm:$0xff]
        %v5799 = vld [vmem:[%s5725 + $0x248] sm:$0xff]
        %v5800 = vld [vmem:[%s5725 + $0x250] sm:$0xff]
        %v5801 = vld [vmem:[%s5725 + $0x258] sm:$0xff]
        %v5802 = vld [vmem:[%s5725 + $0x260] sm:$0xff]
        %v5803 = vld [vmem:[%s5725 + $0x268] sm:$0xff]
        %v5804 = vld [vmem:[%s5725 + $0x270] sm:$0xff]
        %v5805 = vld [vmem:[%s5725 + $0x278] sm:$0xff]
        %v5806 = vld [vmem:[%s5725 + $0x280] sm:$0xff]
        %v5807 = vld [vmem:[%s5725 + $0x288] sm:$0xff]
        %v5808 = vld [vmem:[%s5725 + $0x290] sm:$0xff]
        %v5809 = vld [vmem:[%s5725 + $0x298] sm:$0xff]
        %v5810 = vld [vmem:[%s5725 + $0x2a0] sm:$0xff]
        %v5811 = vld [vmem:[%s5725 + $0x2a8] sm:$0xff]
        %v5812 = vld [vmem:[%s5725 + $0x2b0] sm:$0xff]
        %v5813 = vld [vmem:[%s5725 + $0x2b8] sm:$0xff]
        %v5814 = vld [vmem:[%s5725 + $0x2c0] sm:$0xff]
        %v5815 = vld [vmem:[%s5725 + $0x2c8] sm:$0xff]
        %v5816 = vld [vmem:[%s5725 + $0x2d0] sm:$0xff]
        %v5817 = vld [vmem:[%s5725 + $0x2d8] sm:$0xff]
        %v5818 = vld [vmem:[%s5725 + $0x2e0] sm:$0xff]
        %v5819 = vld [vmem:[%s5725 + $0x2e8] sm:$0xff]
        %v5820 = vld [vmem:[%s5725 + $0x2f0] sm:$0xff]
        %v5821 = vld [vmem:[%s5725 + $0x2f8] sm:$0xff]
        %v5822 = vrot.slane %v2705, 2
        %v5823 = vrot.slane %v2706, 2
        %v5824 = vrot.slane %v2707, 2
        %v5924 = vunpack.c.l.b16 %v5726
        %v5925 = vunpack.c.h.b16 %v5726
        %v5926 = vunpack.c.l.b16 %v5727
        %v5927 = vunpack.c.h.b16 %v5727
        %v5928 = vunpack.c.l.b16 %v5728
        %v5929 = vunpack.c.h.b16 %v5728
        %v5930 = vunpack.c.l.b16 %v5729
        %v5931 = vunpack.c.h.b16 %v5729
        %v5932 = vunpack.c.l.b16 %v5730
        %v5933 = vunpack.c.h.b16 %v5730
        %v5934 = vunpack.c.l.b16 %v5731
        %v5935 = vunpack.c.h.b16 %v5731
        %v5936 = vunpack.c.l.b16 %v5732
        %v5937 = vunpack.c.h.b16 %v5732
        %v5938 = vunpack.c.l.b16 %v5733
        %v5939 = vunpack.c.h.b16 %v5733
        %v5940 = vunpack.c.l.b16 %v5734
        %v5941 = vunpack.c.h.b16 %v5734
        %v5942 = vunpack.c.l.b16 %v5735
        %v5943 = vunpack.c.h.b16 %v5735
        %v5944 = vunpack.c.l.b16 %v5736
        %v5945 = vunpack.c.h.b16 %v5736
        %v5946 = vunpack.c.l.b16 %v5737
        %v5947 = vunpack.c.h.b16 %v5737
        %v5948 = vunpack.c.l.b16 %v5738
        %v5949 = vunpack.c.h.b16 %v5738
        %v5950 = vunpack.c.l.b16 %v5739
        %v5951 = vunpack.c.h.b16 %v5739
        %v5952 = vunpack.c.l.b16 %v5740
        %v5953 = vunpack.c.h.b16 %v5740
        %v5954 = vunpack.c.l.b16 %v5741
        %v5955 = vunpack.c.h.b16 %v5741
        %v5956 = vunpack.c.l.b16 %v5742
        %v5957 = vunpack.c.h.b16 %v5742
        %v5958 = vunpack.c.l.b16 %v5743
        %v5959 = vunpack.c.h.b16 %v5743
        %v5960 = vunpack.c.l.b16 %v5744
        %v5961 = vunpack.c.h.b16 %v5744
        %v5962 = vunpack.c.l.b16 %v5745
        %v5963 = vunpack.c.h.b16 %v5745
        %v5964 = vunpack.c.l.b16 %v5746
        %v5965 = vunpack.c.h.b16 %v5746
        %v5966 = vunpack.c.l.b16 %v5747
        %v5967 = vunpack.c.h.b16 %v5747
        %v5968 = vunpack.c.l.b16 %v5748
        %v5969 = vunpack.c.h.b16 %v5748
        %v5970 = vunpack.c.l.b16 %v5749
        %v5971 = vunpack.c.h.b16 %v5749
        %v5972 = vunpack.c.l.b16 %v5750
        %v5973 = vunpack.c.h.b16 %v5750
        %v5974 = vunpack.c.l.b16 %v5751
        %v5975 = vunpack.c.h.b16 %v5751
        %v5976 = vunpack.c.l.b16 %v5752
        %v5977 = vunpack.c.h.b16 %v5752
        %v5978 = vunpack.c.l.b16 %v5753
        %v5979 = vunpack.c.h.b16 %v5753
        %v5980 = vunpack.c.l.b16 %v5754
        %v5981 = vunpack.c.h.b16 %v5754
        %v5982 = vunpack.c.l.b16 %v5755
        %v5983 = vunpack.c.h.b16 %v5755
        %v5984 = vunpack.c.l.b16 %v5756
        %v5985 = vunpack.c.h.b16 %v5756
        %v5986 = vunpack.c.l.b16 %v5757
        %v5987 = vunpack.c.h.b16 %v5757
        %v5988 = vunpack.c.l.b16 %v5758
        %v5989 = vunpack.c.h.b16 %v5758
        %v5990 = vunpack.c.l.b16 %v5759
        %v5991 = vunpack.c.h.b16 %v5759
        %v5992 = vunpack.c.l.b16 %v5760
        %v5993 = vunpack.c.h.b16 %v5760
        %v5994 = vunpack.c.l.b16 %v5761
        %v5995 = vunpack.c.h.b16 %v5761
        %v5996 = vunpack.c.l.b16 %v5762
        %v5997 = vunpack.c.h.b16 %v5762
        %v5998 = vunpack.c.l.b16 %v5763
        %v5999 = vunpack.c.h.b16 %v5763
        %v6000 = vunpack.c.l.b16 %v5764
        %v6001 = vunpack.c.h.b16 %v5764
        %v6002 = vunpack.c.l.b16 %v5765
        %v6003 = vunpack.c.h.b16 %v5765
        %v6004 = vunpack.c.l.b16 %v5766
        %v6005 = vunpack.c.h.b16 %v5766
        %v6006 = vunpack.c.l.b16 %v5767
        %v6007 = vunpack.c.h.b16 %v5767
        %v6008 = vunpack.c.l.b16 %v5768
        %v6009 = vunpack.c.h.b16 %v5768
        %v6010 = vunpack.c.l.b16 %v5769
        %v6011 = vunpack.c.h.b16 %v5769
        %v6012 = vunpack.c.l.b16 %v5770
        %v6013 = vunpack.c.h.b16 %v5770
        %v6014 = vunpack.c.l.b16 %v5771
        %v6015 = vunpack.c.h.b16 %v5771
        %v6016 = vunpack.c.l.b16 %v5772
        %v6017 = vunpack.c.h.b16 %v5772
        %v6018 = vunpack.c.l.b16 %v5773
        %v6019 = vunpack.c.h.b16 %v5773
        %v6020 = vunpack.c.l.b16 %v5774
        %v6021 = vunpack.c.h.b16 %v5774
        %v6022 = vunpack.c.l.b16 %v5775
        %v6023 = vunpack.c.h.b16 %v5775
        %v6024 = vunpack.c.l.b16 %v5776
        %v6025 = vunpack.c.h.b16 %v5776
        %v6026 = vunpack.c.l.b16 %v5777
        %v6027 = vunpack.c.h.b16 %v5777
        %v6028 = vunpack.c.l.b16 %v5778
        %v6029 = vunpack.c.h.b16 %v5778
        %v6030 = vunpack.c.l.b16 %v5779
        %v6031 = vunpack.c.h.b16 %v5779
        %v6032 = vunpack.c.l.b16 %v5780
        %v6033 = vunpack.c.h.b16 %v5780
        %v6034 = vunpack.c.l.b16 %v5781
        %v6035 = vunpack.c.h.b16 %v5781
        %v6036 = vunpack.c.l.b16 %v5782
        %v6037 = vunpack.c.h.b16 %v5782
        %v6038 = vunpack.c.l.b16 %v5783
        %v6039 = vunpack.c.h.b16 %v5783
        %v6040 = vunpack.c.l.b16 %v5784
        %v6041 = vunpack.c.h.b16 %v5784
        %v6042 = vunpack.c.l.b16 %v5785
        %v6043 = vunpack.c.h.b16 %v5785
        %v6044 = vunpack.c.l.b16 %v5786
        %v6045 = vunpack.c.h.b16 %v5786
        %v6046 = vunpack.c.l.b16 %v5787
        %v6047 = vunpack.c.h.b16 %v5787
        %v6048 = vunpack.c.l.b16 %v5788
        %v6049 = vunpack.c.h.b16 %v5788
        %v6050 = vunpack.c.l.b16 %v5789
        %v6051 = vunpack.c.h.b16 %v5789
        %v6052 = vunpack.c.l.b16 %v5790
        %v6053 = vunpack.c.h.b16 %v5790
        %v6054 = vunpack.c.l.b16 %v5791
        %v6055 = vunpack.c.h.b16 %v5791
        %v6056 = vunpack.c.l.b16 %v5792
        %v6057 = vunpack.c.h.b16 %v5792
        %v6058 = vunpack.c.l.b16 %v5793
        %v6059 = vunpack.c.h.b16 %v5793
        %v6060 = vunpack.c.l.b16 %v5794
        %v6061 = vunpack.c.h.b16 %v5794
        %v6062 = vunpack.c.l.b16 %v5795
        %v6063 = vunpack.c.h.b16 %v5795
        %v6064 = vunpack.c.l.b16 %v5796
        %v6065 = vunpack.c.h.b16 %v5796
        %v6066 = vunpack.c.l.b16 %v5797
        %v6067 = vunpack.c.h.b16 %v5797
        %v6068 = vunpack.c.l.b16 %v5798
        %v6069 = vunpack.c.h.b16 %v5798
        %v6070 = vunpack.c.l.b16 %v5799
        %v6071 = vunpack.c.h.b16 %v5799
        %v6072 = vunpack.c.l.b16 %v5800
        %v6073 = vunpack.c.h.b16 %v5800
        %v6074 = vunpack.c.l.b16 %v5801
        %v6075 = vunpack.c.h.b16 %v5801
        %v6076 = vunpack.c.l.b16 %v5802
        %v6077 = vunpack.c.h.b16 %v5802
        %v6078 = vunpack.c.l.b16 %v5803
        %v6079 = vunpack.c.h.b16 %v5803
        %v6080 = vunpack.c.l.b16 %v5804
        %v6081 = vunpack.c.h.b16 %v5804
        %v6082 = vunpack.c.l.b16 %v5805
        %v6083 = vunpack.c.h.b16 %v5805
        %v6084 = vunpack.c.l.b16 %v5806
        %v6085 = vunpack.c.h.b16 %v5806
        %v6086 = vunpack.c.l.b16 %v5807
        %v6087 = vunpack.c.h.b16 %v5807
        %v6088 = vunpack.c.l.b16 %v5808
        %v6089 = vunpack.c.h.b16 %v5808
        %v6090 = vunpack.c.l.b16 %v5809
        %v6091 = vunpack.c.h.b16 %v5809
        %v6092 = vunpack.c.l.b16 %v5810
        %v6093 = vunpack.c.h.b16 %v5810
        %v6094 = vunpack.c.l.b16 %v5811
        %v6095 = vunpack.c.h.b16 %v5811
        %v6096 = vunpack.c.l.b16 %v5812
        %v6097 = vunpack.c.h.b16 %v5812
        %v6098 = vunpack.c.l.b16 %v5813
        %v6099 = vunpack.c.h.b16 %v5813
        %v6100 = vunpack.c.l.b16 %v5814
        %v6101 = vunpack.c.h.b16 %v5814
        %v6102 = vunpack.c.l.b16 %v5815
        %v6103 = vunpack.c.h.b16 %v5815
        %v6104 = vunpack.c.l.b16 %v5816
        %v6105 = vunpack.c.h.b16 %v5816
        %v6106 = vunpack.c.l.b16 %v5817
        %v6107 = vunpack.c.h.b16 %v5817
        %v6108 = vunpack.c.l.b16 %v5818
        %v6109 = vunpack.c.h.b16 %v5818
        %v6110 = vunpack.c.l.b16 %v5819
        %v6111 = vunpack.c.h.b16 %v5819
        %v6112 = vunpack.c.l.b16 %v5820
        %v6113 = vunpack.c.h.b16 %v5820
        %v6114 = vunpack.c.l.b16 %v5821
        %v6115 = vunpack.c.h.b16 %v5821
        %v6116 = vpack.c.b16 %v5928, %v5924
        %v6117 = vpack.c.b16 %v5929, %v5925
        %v6118 = vpack.c.b16 %v5930, %v5926
        %v6119 = vpack.c.b16 %v5931, %v5927
        %v6120 = vpack.c.b16 %v5936, %v5932
        %v6121 = vpack.c.b16 %v5937, %v5933
        %v6122 = vpack.c.b16 %v5938, %v5934
        %v6123 = vpack.c.b16 %v5939, %v5935
        %v6124 = vpack.c.b16 %v5944, %v5940
        %v6125 = vpack.c.b16 %v5945, %v5941
        %v6126 = vpack.c.b16 %v5946, %v5942
        %v6127 = vpack.c.b16 %v5947, %v5943
        %v6128 = vpack.c.b16 %v5952, %v5948
        %v6129 = vpack.c.b16 %v5953, %v5949
        %v6130 = vpack.c.b16 %v5954, %v5950
        %v6131 = vpack.c.b16 %v5955, %v5951
        %v6132 = vpack.c.b16 %v5960, %v5956
        %v6133 = vpack.c.b16 %v5961, %v5957
        %v6134 = vpack.c.b16 %v5962, %v5958
        %v6135 = vpack.c.b16 %v5963, %v5959
        %v6136 = vpack.c.b16 %v5968, %v5964
        %v6137 = vpack.c.b16 %v5969, %v5965
        %v6138 = vpack.c.b16 %v5970, %v5966
        %v6139 = vpack.c.b16 %v5971, %v5967
        %v6140 = vpack.c.b16 %v5976, %v5972
        %v6141 = vpack.c.b16 %v5977, %v5973
        %v6142 = vpack.c.b16 %v5978, %v5974
        %v6143 = vpack.c.b16 %v5979, %v5975
        %v6144 = vpack.c.b16 %v5984, %v5980
        %v6145 = vpack.c.b16 %v5985, %v5981
        %v6146 = vpack.c.b16 %v5986, %v5982
        %v6147 = vpack.c.b16 %v5987, %v5983
        %v6148 = vpack.c.b16 %v5992, %v5988
        %v6149 = vpack.c.b16 %v5993, %v5989
        %v6150 = vpack.c.b16 %v5994, %v5990
        %v6151 = vpack.c.b16 %v5995, %v5991
        %v6152 = vpack.c.b16 %v6000, %v5996
        %v6153 = vpack.c.b16 %v6001, %v5997
        %v6154 = vpack.c.b16 %v6002, %v5998
        %v6155 = vpack.c.b16 %v6003, %v5999
        %v6156 = vpack.c.b16 %v6008, %v6004
        %v6157 = vpack.c.b16 %v6009, %v6005
        %v6158 = vpack.c.b16 %v6010, %v6006
        %v6159 = vpack.c.b16 %v6011, %v6007
        %v6160 = vpack.c.b16 %v6016, %v6012
        %v6161 = vpack.c.b16 %v6017, %v6013
        %v6162 = vpack.c.b16 %v6018, %v6014
        %v6163 = vpack.c.b16 %v6019, %v6015
        %v6164 = vpack.c.b16 %v6024, %v6020
        %v6165 = vpack.c.b16 %v6025, %v6021
        %v6166 = vpack.c.b16 %v6026, %v6022
        %v6167 = vpack.c.b16 %v6027, %v6023
        %v6168 = vpack.c.b16 %v6032, %v6028
        %v6169 = vpack.c.b16 %v6033, %v6029
        %v6170 = vpack.c.b16 %v6034, %v6030
        %v6171 = vpack.c.b16 %v6035, %v6031
        %v6172 = vpack.c.b16 %v6040, %v6036
        %v6173 = vpack.c.b16 %v6041, %v6037
        %v6174 = vpack.c.b16 %v6042, %v6038
        %v6175 = vpack.c.b16 %v6043, %v6039
        %v6176 = vpack.c.b16 %v6048, %v6044
        %v6177 = vpack.c.b16 %v6049, %v6045
        %v6178 = vpack.c.b16 %v6050, %v6046
        %v6179 = vpack.c.b16 %v6051, %v6047
        %v6180 = vpack.c.b16 %v6056, %v6052
        %v6181 = vpack.c.b16 %v6057, %v6053
        %v6182 = vpack.c.b16 %v6058, %v6054
        %v6183 = vpack.c.b16 %v6059, %v6055
        %v6184 = vpack.c.b16 %v6064, %v6060
        %v6185 = vpack.c.b16 %v6065, %v6061
        %v6186 = vpack.c.b16 %v6066, %v6062
        %v6187 = vpack.c.b16 %v6067, %v6063
        %v6188 = vpack.c.b16 %v6072, %v6068
        %v6189 = vpack.c.b16 %v6073, %v6069
        %v6190 = vpack.c.b16 %v6074, %v6070
        %v6191 = vpack.c.b16 %v6075, %v6071
        %v6192 = vpack.c.b16 %v6080, %v6076
        %v6193 = vpack.c.b16 %v6081, %v6077
        %v6194 = vpack.c.b16 %v6082, %v6078
        %v6195 = vpack.c.b16 %v6083, %v6079
        %v6196 = vpack.c.b16 %v6088, %v6084
        %v6197 = vpack.c.b16 %v6089, %v6085
        %v6198 = vpack.c.b16 %v6090, %v6086
        %v6199 = vpack.c.b16 %v6091, %v6087
        %v6200 = vpack.c.b16 %v6096, %v6092
        %v6201 = vpack.c.b16 %v6097, %v6093
        %v6202 = vpack.c.b16 %v6098, %v6094
        %v6203 = vpack.c.b16 %v6099, %v6095
        %v6204 = vpack.c.b16 %v6104, %v6100
        %v6205 = vpack.c.b16 %v6105, %v6101
        %v6206 = vpack.c.b16 %v6106, %v6102
        %v6207 = vpack.c.b16 %v6107, %v6103
        %v6208 = vpack.c.b16 %v6112, %v6108
        %v6209 = vpack.c.b16 %v6113, %v6109
        %v6210 = vpack.c.b16 %v6114, %v6110
        %v6211 = vpack.c.b16 %v6115, %v6111
        %6308 = vmatprep.subr.bf16.mxu0 %v6145
        %6309 = vmatpush1.bf16.msra.mxu0 %v6144
        %6310 = vmatprep.subr.bf16.mxu0 %v6141
        %6311 = vmatpush1.bf16.msra.mxu0 %v6140
        %6312 = vmatprep.subr.bf16.mxu0 %v6137
        %6313 = vmatpush1.bf16.msra.mxu0 %v6136
        %6314 = vmatprep.subr.bf16.mxu0 %v6133
        %6315 = vmatpush1.bf16.msra.mxu0 %v6132
        %6316 = vmatprep.subr.bf16.mxu0 %v6129
        %6317 = vmatpush1.bf16.msra.mxu0 %v6128
        %6318 = vmatprep.subr.bf16.mxu0 %v6125
        %6319 = vmatpush1.bf16.msra.mxu0 %v6124
        %6320 = vmatprep.subr.bf16.mxu0 %v6121
        %6321 = vmatpush1.bf16.msra.mxu0 %v6120
        %6322 = vmatprep.subr.bf16.mxu0 %v6117
        %6323 = vmatpush1.bf16.msra.mxu0 %v6116
        %6324 = vmatprep.subr.bf16.mxu0 %v6177
        %6325 = vmatpush2.bf16.msra.mxu0 %v6176
        %6326 = vmatprep.subr.bf16.mxu0 %v6173
        %6327 = vmatpush2.bf16.msra.mxu0 %v6172
        %6328 = vmatprep.subr.bf16.mxu0 %v6169
        %6329 = vmatpush2.bf16.msra.mxu0 %v6168
        %6330 = vmatprep.subr.bf16.mxu0 %v6165
        %6331 = vmatpush2.bf16.msra.mxu0 %v6164
        %6332 = vmatprep.subr.bf16.mxu0 %v6161
        %6333 = vmatpush2.bf16.msra.mxu0 %v6160
        %6334 = vmatprep.subr.bf16.mxu0 %v6157
        %6335 = vmatpush2.bf16.msra.mxu0 %v6156
        %6336 = vmatprep.subr.bf16.mxu0 %v6153
        %6337 = vmatpush2.bf16.msra.mxu0 %v6152
        %6338 = vmatprep.subr.bf16.mxu0 %v6149
        %6339 = vmatpush2.bf16.msra.mxu0 %v6148
        %6340 = vmatprep.mubr.bf16.mxu0 %v5823
        %6341 = vmatmul.mubr.bf16.gmra.mxu0 %v5822
        %v6342 = vpop.f32.mrf.mxu0
        %v6343 = vadd.f32 0.0, %v6342
        %v6344 = vpop.f32.mrf.mxu0
        %v6345 = vadd.f32 0.0, %v6344
        %v6346 = vpop.f32.mrf.mxu0
        %v6347 = vpop.f32.mrf.mxu0
        %6348 = vdwg.mxu0
        %6349 = vmatprep.subr.bf16.mxu0 %v6209
        %6350 = vmatpush1.bf16.msra.mxu0 %v6208
        %6351 = vmatprep.subr.bf16.mxu0 %v6205
        %6352 = vmatpush1.bf16.msra.mxu0 %v6204
        %6353 = vmatprep.subr.bf16.mxu0 %v6201
        %6354 = vmatpush1.bf16.msra.mxu0 %v6200
        %6355 = vmatprep.subr.bf16.mxu0 %v6197
        %6356 = vmatpush1.bf16.msra.mxu0 %v6196
        %6357 = vmatprep.subr.bf16.mxu0 %v6193
        %6358 = vmatpush1.bf16.msra.mxu0 %v6192
        %6359 = vmatprep.subr.bf16.mxu0 %v6189
        %6360 = vmatpush1.bf16.msra.mxu0 %v6188
        %6361 = vmatprep.subr.bf16.mxu0 %v6185
        %6362 = vmatpush1.bf16.msra.mxu0 %v6184
        %6363 = vmatprep.subr.bf16.mxu0 %v6181
        %6364 = vmatpush1.bf16.msra.mxu0 %v6180
        %6365 = vmatprep.subr.bf16.mxu0 0
        %6366 = vmatpush2.bf16.msra.mxu0 0
        %6367 = vmatprep.subr.bf16.mxu0 0
        %6368 = vmatpush2.bf16.msra.mxu0 0
        %6369 = vmatprep.subr.bf16.mxu0 0
        %6370 = vmatpush2.bf16.msra.mxu0 0
        %6371 = vmatprep.subr.bf16.mxu0 0
        %6372 = vmatpush2.bf16.msra.mxu0 0
        %6373 = vmatprep.subr.bf16.mxu0 0
        %6374 = vmatpush2.bf16.msra.mxu0 0
        %6375 = vmatprep.subr.bf16.mxu0 0
        %6376 = vmatpush2.bf16.msra.mxu0 0
        %6377 = vmatprep.subr.bf16.mxu0 0
        %6378 = vmatpush2.bf16.msra.mxu0 0
        %6379 = vmatprep.subr.bf16.mxu0 0
        %6380 = vmatpush2.bf16.msra.mxu0 0
        %6381 = vmatprep.mubr.bf16.mxu0 0
        %6382 = vmatmul.mubr.bf16.gmra.mxu0 %v5824
        %v6383 = vpop.f32.mrf.mxu0
        %v6384 = vadd.f32 %v6343, %v6383
        %v6385 = vpop.f32.mrf.mxu0
        %v6386 = vadd.f32 %v6345, %v6385
        %v6387 = vpop.f32.mrf.mxu0
        %v6388 = vpop.f32.mrf.mxu0
        %6389 = vdwg.mxu0
        %6390 = vmatprep.subr.bf16.mxu0 %v6147
        %6391 = vmatpush1.bf16.msra.mxu0 %v6146
        %6392 = vmatprep.subr.bf16.mxu0 %v6143
        %6393 = vmatpush1.bf16.msra.mxu0 %v6142
        %6394 = vmatprep.subr.bf16.mxu0 %v6139
        %6395 = vmatpush1.bf16.msra.mxu0 %v6138
        %6396 = vmatprep.subr.bf16.mxu0 %v6135
        %6397 = vmatpush1.bf16.msra.mxu0 %v6134
        %6398 = vmatprep.subr.bf16.mxu0 %v6131
        %6399 = vmatpush1.bf16.msra.mxu0 %v6130
        %6400 = vmatprep.subr.bf16.mxu0 %v6127
        %6401 = vmatpush1.bf16.msra.mxu0 %v6126
        %6402 = vmatprep.subr.bf16.mxu0 %v6123
        %6403 = vmatpush1.bf16.msra.mxu0 %v6122
        %6404 = vmatprep.subr.bf16.mxu0 %v6119
        %6405 = vmatpush1.bf16.msra.mxu0 %v6118
        %6406 = vmatprep.subr.bf16.mxu0 %v6179
        %6407 = vmatpush2.bf16.msra.mxu0 %v6178
        %6408 = vmatprep.subr.bf16.mxu0 %v6175
        %6409 = vmatpush2.bf16.msra.mxu0 %v6174
        %6410 = vmatprep.subr.bf16.mxu0 %v6171
        %6411 = vmatpush2.bf16.msra.mxu0 %v6170
        %6412 = vmatprep.subr.bf16.mxu0 %v6167
        %6413 = vmatpush2.bf16.msra.mxu0 %v6166
        %6414 = vmatprep.subr.bf16.mxu0 %v6163
        %6415 = vmatpush2.bf16.msra.mxu0 %v6162
        %6416 = vmatprep.subr.bf16.mxu0 %v6159
        %6417 = vmatpush2.bf16.msra.mxu0 %v6158
        %6418 = vmatprep.subr.bf16.mxu0 %v6155
        %6419 = vmatpush2.bf16.msra.mxu0 %v6154
        %6420 = vmatprep.subr.bf16.mxu0 %v6151
        %6421 = vmatpush2.bf16.msra.mxu0 %v6150
        %6422 = vmatprep.mubr.bf16.mxu0 %v5823
        %6423 = vmatmul.mubr.bf16.gmra.mxu0 %v5822
        %v6424 = vpop.f32.mrf.mxu0
        %v6425 = vadd.f32 0.0, %v6424
        %v6426 = vpop.f32.mrf.mxu0
        %v6427 = vadd.f32 0.0, %v6426
        %v6428 = vpop.f32.mrf.mxu0
        %v6429 = vpop.f32.mrf.mxu0
        %6430 = vdwg.mxu0
        %6431 = vmatprep.subr.bf16.mxu0 %v6211
        %6432 = vmatpush1.bf16.msra.mxu0 %v6210
        %6433 = vmatprep.subr.bf16.mxu0 %v6207
        %6434 = vmatpush1.bf16.msra.mxu0 %v6206
        %6435 = vmatprep.subr.bf16.mxu0 %v6203
        %6436 = vmatpush1.bf16.msra.mxu0 %v6202
        %6437 = vmatprep.subr.bf16.mxu0 %v6199
        %6438 = vmatpush1.bf16.msra.mxu0 %v6198
        %6439 = vmatprep.subr.bf16.mxu0 %v6195
        %6440 = vmatpush1.bf16.msra.mxu0 %v6194
        %6441 = vmatprep.subr.bf16.mxu0 %v6191
        %6442 = vmatpush1.bf16.msra.mxu0 %v6190
        %6443 = vmatprep.subr.bf16.mxu0 %v6187
        %6444 = vmatpush1.bf16.msra.mxu0 %v6186
        %6445 = vmatprep.subr.bf16.mxu0 %v6183
        %6446 = vmatpush1.bf16.msra.mxu0 %v6182
        %6447 = vmatprep.subr.bf16.mxu0 0
        %6448 = vmatpush2.bf16.msra.mxu0 0
        %6449 = vmatprep.subr.bf16.mxu0 0
        %6450 = vmatpush2.bf16.msra.mxu0 0
        %6451 = vmatprep.subr.bf16.mxu0 0
        %6452 = vmatpush2.bf16.msra.mxu0 0
        %6453 = vmatprep.subr.bf16.mxu0 0
        %6454 = vmatpush2.bf16.msra.mxu0 0
        %6455 = vmatprep.subr.bf16.mxu0 0
        %6456 = vmatpush2.bf16.msra.mxu0 0
        %6457 = vmatprep.subr.bf16.mxu0 0
        %6458 = vmatpush2.bf16.msra.mxu0 0
        %6459 = vmatprep.subr.bf16.mxu0 0
        %6460 = vmatpush2.bf16.msra.mxu0 0
        %6461 = vmatprep.subr.bf16.mxu0 0
        %6462 = vmatpush2.bf16.msra.mxu0 0
        %6463 = vmatprep.mubr.bf16.mxu0 0
        %6464 = vmatmul.mubr.bf16.gmra.mxu0 %v5824
        %v6465 = vpop.f32.mrf.mxu0
        %v6466 = vadd.f32 %v6425, %v6465
        %v6467 = vpop.f32.mrf.mxu0
        %v6468 = vadd.f32 %v6427, %v6467
        %v6469 = vpop.f32.mrf.mxu0
        %v6470 = vpop.f32.mrf.mxu0
        %6471 = vdwg.mxu0
        %v6472 = vadd.f32 %v5721, %v6384
        %v6473 = vadd.f32 %v5722, %v6386
        %v6474 = vadd.f32 %v5723, %v6466
        %v6475 = vadd.f32 %v5724, %v6468
        %v6477 = vlaneseq
        %v6478 = vshrl.u32 %v6477, 7
        %v6479 = vsub.s32 0, %v6478
        %v6480 = vrot.slane %v2708, %v6479
        %v6481 = vlaneseq
        %v6482 = vshrl.u32 %v6481, 7
        %v6483 = vsub.s32 1, %v6482
        %v6484 = vrot.slane %v2708, %v6483
        %v6485 = vlaneseq
        %v6486 = vshrl.u32 %v6485, 7
        %v6487 = vsub.s32 2, %v6486
        %v6488 = vrot.slane %v2708, %v6487
        %v6489 = vlaneseq
        %v6490 = vshrl.u32 %v6489, 7
        %v6491 = vsub.s32 3, %v6490
        %v6492 = vrot.slane %v2708, %v6491
        %v6497 = vadd.f32 %v6472, %v6480
        %v6498 = vadd.f32 %v6473, %v6484
        %v6499 = vadd.f32 %v6474, %v6488
        %v6500 = vadd.f32 %v6475, %v6492
        %v6501 = vmax.f32 %v6497, 0.0
        %v6502 = vmax.f32 %v6498, 0.0
        %v6503 = vmax.f32 %v6499, 0.0
        %v6504 = vmax.f32 %v6500, 0.0
        %v6505 = vmax.f32 %v6501, %v6503
        %v6506 = vmax.f32 %v6502, %v6504
        %v6507 = vpack.c.bf16 %v6505, %v6505
        %v6508 = vpack.c.bf16 %v6506, %v6506
        %v6511 = vunpack.c.l.b16 %v6507
        %v6512 = vunpack.c.l.b16 %v6508
        %v6513 = vpack.c.b16 %v6512, %v6511
        %v6514 = vunpack.i.l.s16 %v6513
        %v6515 = vunpack.i.h.s16 %v6513
        %v6516 = vpack.c.b16 %v6515, %v6514
        %v6518 = vrot.slane %v6516, 4
        %v6520 = vmax.bf16 %v6516, %v6518
        %v6523 = vunpack.c.l.s4 1983009808
        %v6524 = vunpack.c.0.s8 %v6523
        %v6525 = vlaneseq
        %v6526 = vshrl.u32 %v6525, 7
        %v6527 = vsub.s32 %v6524, %v6526
        %v6528 = vrot.slane %v6520, %v6527
        %v6529 = vunpack.i.l.s16 %v6528
        %v6530 = vunpack.i.h.s16 %v6528
        %v6531 = vpack.c.b16 %v6530, %v6529
        %v6532 = vunpack.i.l.s16 %v6531
        %v6533 = vunpack.i.h.s16 %v6531
        %v6534 = vpack.c.b16 %v6533, %v6532
        %v6535 = vld [vmem:[#allocation10] sm:$0xff]
        %v6536 = vld [vmem:[#allocation10 + $0x8] sm:$0xff]
        %v6537 = vld [vmem:[#allocation10 + $0x10] sm:$0xff]
        %v6538 = vld [vmem:[#allocation10 + $0x18] sm:$0xff]
        %v6539 = vld [vmem:[#allocation10 + $0x20] sm:$0xff]
        %v6540 = vld [vmem:[#allocation10 + $0x28] sm:$0xff]
        %v6541 = vld [vmem:[#allocation10 + $0x30] sm:$0xff]
        %v6542 = vld [vmem:[#allocation10 + $0x38] sm:$0xff]
        %v6543 = vld [vmem:[#allocation10 + $0x40] sm:$0xff]
        %v6544 = vld [vmem:[#allocation10 + $0x48] sm:$0xff]
        %v6545 = vld [vmem:[#allocation10 + $0x50] sm:$0xff]
        %v6546 = vld [vmem:[#allocation10 + $0x58] sm:$0xff]
        %v6547 = vld [vmem:[#allocation10 + $0x60] sm:$0xff]
        %v6548 = vld [vmem:[#allocation10 + $0x68] sm:$0xff]
        %v6549 = vld [vmem:[#allocation10 + $0x70] sm:$0xff]
        %v6550 = vld [vmem:[#allocation10 + $0x78] sm:$0xff]
        %v6551 = vld [vmem:[#allocation10 + $0x80] sm:$0xff]
        %v6552 = vld [vmem:[#allocation10 + $0x88] sm:$0xff]
        %v6553 = vld [vmem:[#allocation10 + $0x90] sm:$0xff]
        %v6554 = vld [vmem:[#allocation10 + $0x98] sm:$0xff]
        %v6555 = vld [vmem:[#allocation10 + $0xa0] sm:$0xff]
        %v6556 = vld [vmem:[#allocation10 + $0xa8] sm:$0xff]
        %v6557 = vld [vmem:[#allocation10 + $0xb0] sm:$0xff]
        %v6558 = vld [vmem:[#allocation10 + $0xb8] sm:$0xff]
        %v6559 = vld [vmem:[#allocation10 + $0xc0] sm:$0xff]
        %v6560 = vld [vmem:[#allocation10 + $0xc8] sm:$0xff]
        %v6561 = vld [vmem:[#allocation10 + $0xd0] sm:$0xff]
        %v6562 = vld [vmem:[#allocation10 + $0xd8] sm:$0xff]
        %v6563 = vld [vmem:[#allocation10 + $0xe0] sm:$0xff]
        %v6564 = vld [vmem:[#allocation10 + $0xe8] sm:$0xff]
        %v6565 = vld [vmem:[#allocation10 + $0xf0] sm:$0xff]
        %v6566 = vld [vmem:[#allocation10 + $0xf8] sm:$0xff]
        %v6567 = vld [vmem:[#allocation10 + $0x100] sm:$0xff]
        %v6568 = vld [vmem:[#allocation10 + $0x108] sm:$0xff]
        %v6569 = vld [vmem:[#allocation10 + $0x110] sm:$0xff]
        %v6570 = vld [vmem:[#allocation10 + $0x118] sm:$0xff]
        %v6571 = vld [vmem:[#allocation10 + $0x120] sm:$0xff]
        %v6572 = vld [vmem:[#allocation10 + $0x128] sm:$0xff]
        %v6573 = vld [vmem:[#allocation10 + $0x130] sm:$0xff]
        %v6574 = vld [vmem:[#allocation10 + $0x138] sm:$0xff]
        %v6575 = vld [vmem:[#allocation10 + $0x140] sm:$0xff]
        %v6576 = vld [vmem:[#allocation10 + $0x148] sm:$0xff]
        %v6577 = vld [vmem:[#allocation10 + $0x150] sm:$0xff]
        %v6578 = vld [vmem:[#allocation10 + $0x158] sm:$0xff]
        %v6579 = vld [vmem:[#allocation10 + $0x160] sm:$0xff]
        %v6580 = vld [vmem:[#allocation10 + $0x168] sm:$0xff]
        %v6581 = vld [vmem:[#allocation10 + $0x170] sm:$0xff]
        %v6582 = vld [vmem:[#allocation10 + $0x178] sm:$0xff]
        %v6583 = vld [vmem:[#allocation10 + $0x180] sm:$0xff]
        %v6584 = vld [vmem:[#allocation10 + $0x188] sm:$0xff]
        %v6585 = vld [vmem:[#allocation10 + $0x190] sm:$0xff]
        %v6586 = vld [vmem:[#allocation10 + $0x198] sm:$0xff]
        %v6587 = vld [vmem:[#allocation10 + $0x1a0] sm:$0xff]
        %v6588 = vld [vmem:[#allocation10 + $0x1a8] sm:$0xff]
        %v6589 = vld [vmem:[#allocation10 + $0x1b0] sm:$0xff]
        %v6590 = vld [vmem:[#allocation10 + $0x1b8] sm:$0xff]
        %v6591 = vld [vmem:[#allocation10 + $0x1c0] sm:$0xff]
        %v6592 = vld [vmem:[#allocation10 + $0x1c8] sm:$0xff]
        %v6593 = vld [vmem:[#allocation10 + $0x1d0] sm:$0xff]
        %v6594 = vld [vmem:[#allocation10 + $0x1d8] sm:$0xff]
        %v6595 = vld [vmem:[#allocation10 + $0x1e0] sm:$0xff]
        %v6596 = vld [vmem:[#allocation10 + $0x1e8] sm:$0xff]
        %v6597 = vld [vmem:[#allocation10 + $0x1f0] sm:$0xff]
        %v6598 = vld [vmem:[#allocation10 + $0x1f8] sm:$0xff]
        %v6599 = vld [vmem:[#allocation10 + $0x200] sm:$0xff]
        %v6600 = vld [vmem:[#allocation10 + $0x208] sm:$0xff]
        %v6601 = vld [vmem:[#allocation10 + $0x210] sm:$0xff]
        %v6602 = vld [vmem:[#allocation10 + $0x218] sm:$0xff]
        %v6603 = vld [vmem:[#allocation10 + $0x220] sm:$0xff]
        %v6604 = vld [vmem:[#allocation10 + $0x228] sm:$0xff]
        %v6605 = vld [vmem:[#allocation10 + $0x230] sm:$0xff]
        %v6606 = vld [vmem:[#allocation10 + $0x238] sm:$0xff]
        %v6607 = vld [vmem:[#allocation10 + $0x240] sm:$0xff]
        %v6608 = vld [vmem:[#allocation10 + $0x248] sm:$0xff]
        %v6609 = vld [vmem:[#allocation10 + $0x250] sm:$0xff]
        %v6610 = vld [vmem:[#allocation10 + $0x258] sm:$0xff]
        %v6611 = vld [vmem:[#allocation10 + $0x260] sm:$0xff]
        %v6612 = vld [vmem:[#allocation10 + $0x268] sm:$0xff]
        %v6613 = vld [vmem:[#allocation10 + $0x270] sm:$0xff]
        %v6614 = vld [vmem:[#allocation10 + $0x278] sm:$0xff]
        %v6615 = vld [vmem:[#allocation10 + $0x280] sm:$0xff]
        %v6616 = vld [vmem:[#allocation10 + $0x288] sm:$0xff]
        %v6617 = vld [vmem:[#allocation10 + $0x290] sm:$0xff]
        %v6618 = vld [vmem:[#allocation10 + $0x298] sm:$0xff]
        %v6619 = vld [vmem:[#allocation10 + $0x2a0] sm:$0xff]
        %v6620 = vld [vmem:[#allocation10 + $0x2a8] sm:$0xff]
        %v6621 = vld [vmem:[#allocation10 + $0x2b0] sm:$0xff]
        %v6622 = vld [vmem:[#allocation10 + $0x2b8] sm:$0xff]
        %v6623 = vld [vmem:[#allocation10 + $0x2c0] sm:$0xff]
        %v6624 = vld [vmem:[#allocation10 + $0x2c8] sm:$0xff]
        %v6625 = vld [vmem:[#allocation10 + $0x2d0] sm:$0xff]
        %v6626 = vld [vmem:[#allocation10 + $0x2d8] sm:$0xff]
        %v6627 = vld [vmem:[#allocation10 + $0x2e0] sm:$0xff]
        %v6628 = vld [vmem:[#allocation10 + $0x2e8] sm:$0xff]
        %v6629 = vld [vmem:[#allocation10 + $0x2f0] sm:$0xff]
        %v6630 = vld [vmem:[#allocation10 + $0x2f8] sm:$0xff]
        %v6631 = vld [vmem:[#allocation10 + $0x300] sm:$0xff]
        %v6632 = vld [vmem:[#allocation10 + $0x308] sm:$0xff]
        %v6633 = vld [vmem:[#allocation10 + $0x310] sm:$0xff]
        %v6634 = vld [vmem:[#allocation10 + $0x318] sm:$0xff]
        %v6635 = vld [vmem:[#allocation10 + $0x320] sm:$0xff]
        %v6636 = vld [vmem:[#allocation10 + $0x328] sm:$0xff]
        %v6637 = vld [vmem:[#allocation10 + $0x330] sm:$0xff]
        %v6638 = vld [vmem:[#allocation10 + $0x338] sm:$0xff]
        %v6639 = vld [vmem:[#allocation10 + $0x340] sm:$0xff]
        %v6640 = vld [vmem:[#allocation10 + $0x348] sm:$0xff]
        %v6641 = vld [vmem:[#allocation10 + $0x350] sm:$0xff]
        %v6642 = vld [vmem:[#allocation10 + $0x358] sm:$0xff]
        %v6643 = vld [vmem:[#allocation10 + $0x360] sm:$0xff]
        %v6644 = vld [vmem:[#allocation10 + $0x368] sm:$0xff]
        %v6645 = vld [vmem:[#allocation10 + $0x370] sm:$0xff]
        %v6646 = vld [vmem:[#allocation10 + $0x378] sm:$0xff]
        %v6647 = vld [vmem:[#allocation10 + $0x380] sm:$0xff]
        %v6648 = vld [vmem:[#allocation10 + $0x388] sm:$0xff]
        %v6649 = vld [vmem:[#allocation10 + $0x390] sm:$0xff]
        %v6650 = vld [vmem:[#allocation10 + $0x398] sm:$0xff]
        %v6651 = vld [vmem:[#allocation10 + $0x3a0] sm:$0xff]
        %v6652 = vld [vmem:[#allocation10 + $0x3a8] sm:$0xff]
        %v6653 = vld [vmem:[#allocation10 + $0x3b0] sm:$0xff]
        %v6654 = vld [vmem:[#allocation10 + $0x3b8] sm:$0xff]
        %v6655 = vld [vmem:[#allocation10 + $0x3c0] sm:$0xff]
        %v6656 = vld [vmem:[#allocation10 + $0x3c8] sm:$0xff]
        %v6657 = vld [vmem:[#allocation10 + $0x3d0] sm:$0xff]
        %v6658 = vld [vmem:[#allocation10 + $0x3d8] sm:$0xff]
        %v6659 = vld [vmem:[#allocation10 + $0x3e0] sm:$0xff]
        %v6660 = vld [vmem:[#allocation10 + $0x3e8] sm:$0xff]
        %v6661 = vld [vmem:[#allocation10 + $0x3f0] sm:$0xff]
        %v6662 = vld [vmem:[#allocation10 + $0x3f8] sm:$0xff]
        %v6663 = vld [vmem:[#allocation10 + $0x400] sm:$0xff]
        %v6664 = vld [vmem:[#allocation10 + $0x408] sm:$0xff]
        %v6665 = vld [vmem:[#allocation10 + $0x410] sm:$0xff]
        %v6666 = vld [vmem:[#allocation10 + $0x418] sm:$0xff]
        %v6667 = vld [vmem:[#allocation10 + $0x420] sm:$0xff]
        %v6668 = vld [vmem:[#allocation10 + $0x428] sm:$0xff]
        %v6669 = vld [vmem:[#allocation10 + $0x430] sm:$0xff]
        %v6670 = vld [vmem:[#allocation10 + $0x438] sm:$0xff]
        %v6671 = vld [vmem:[#allocation10 + $0x440] sm:$0xff]
        %v6672 = vld [vmem:[#allocation10 + $0x448] sm:$0xff]
        %v6673 = vld [vmem:[#allocation10 + $0x450] sm:$0xff]
        %v6674 = vld [vmem:[#allocation10 + $0x458] sm:$0xff]
        %v6675 = vld [vmem:[#allocation10 + $0x460] sm:$0xff]
        %v6676 = vld [vmem:[#allocation10 + $0x468] sm:$0xff]
        %v6677 = vld [vmem:[#allocation10 + $0x470] sm:$0xff]
        %v6678 = vld [vmem:[#allocation10 + $0x478] sm:$0xff]
        %v6679 = vld [vmem:[#allocation10 + $0x480] sm:$0xff]
        %v6680 = vld [vmem:[#allocation10 + $0x488] sm:$0xff]
        %v6681 = vld [vmem:[#allocation10 + $0x490] sm:$0xff]
        %v6682 = vld [vmem:[#allocation10 + $0x498] sm:$0xff]
        %v6683 = vld [vmem:[#allocation10 + $0x4a0] sm:$0xff]
        %v6684 = vld [vmem:[#allocation10 + $0x4a8] sm:$0xff]
        %v6685 = vld [vmem:[#allocation10 + $0x4b0] sm:$0xff]
        %v6686 = vld [vmem:[#allocation10 + $0x4b8] sm:$0xff]
        %v6687 = vld [vmem:[#allocation10 + $0x4c0] sm:$0xff]
        %v6688 = vld [vmem:[#allocation10 + $0x4c8] sm:$0xff]
        %v6689 = vld [vmem:[#allocation10 + $0x4d0] sm:$0xff]
        %v6690 = vld [vmem:[#allocation10 + $0x4d8] sm:$0xff]
        %v6691 = vld [vmem:[#allocation10 + $0x4e0] sm:$0xff]
        %v6692 = vld [vmem:[#allocation10 + $0x4e8] sm:$0xff]
        %v6693 = vld [vmem:[#allocation10 + $0x4f0] sm:$0xff]
        %v6694 = vld [vmem:[#allocation10 + $0x4f8] sm:$0xff]
        %v6695 = vld [vmem:[#allocation10 + $0x500] sm:$0xff]
        %v6696 = vld [vmem:[#allocation10 + $0x508] sm:$0xff]
        %v6697 = vld [vmem:[#allocation10 + $0x510] sm:$0xff]
        %v6698 = vld [vmem:[#allocation10 + $0x518] sm:$0xff]
        %v6699 = vld [vmem:[#allocation10 + $0x520] sm:$0xff]
        %v6700 = vld [vmem:[#allocation10 + $0x528] sm:$0xff]
        %v6701 = vld [vmem:[#allocation10 + $0x530] sm:$0xff]
        %v6702 = vld [vmem:[#allocation10 + $0x538] sm:$0xff]
        %v6703 = vld [vmem:[#allocation10 + $0x540] sm:$0xff]
        %v6704 = vld [vmem:[#allocation10 + $0x548] sm:$0xff]
        %v6705 = vld [vmem:[#allocation10 + $0x550] sm:$0xff]
        %v6706 = vld [vmem:[#allocation10 + $0x558] sm:$0xff]
        %v6707 = vld [vmem:[#allocation10 + $0x560] sm:$0xff]
        %v6708 = vld [vmem:[#allocation10 + $0x568] sm:$0xff]
        %v6709 = vld [vmem:[#allocation10 + $0x570] sm:$0xff]
        %v6710 = vld [vmem:[#allocation10 + $0x578] sm:$0xff]
        %v6711 = vld [vmem:[#allocation10 + $0x580] sm:$0xff]
        %v6712 = vld [vmem:[#allocation10 + $0x588] sm:$0xff]
        %v6713 = vld [vmem:[#allocation10 + $0x590] sm:$0xff]
        %v6714 = vld [vmem:[#allocation10 + $0x598] sm:$0xff]
        %v6715 = vld [vmem:[#allocation10 + $0x5a0] sm:$0xff]
        %v6716 = vld [vmem:[#allocation10 + $0x5a8] sm:$0xff]
        %v6717 = vld [vmem:[#allocation10 + $0x5b0] sm:$0xff]
        %v6718 = vld [vmem:[#allocation10 + $0x5b8] sm:$0xff]
        %v6719 = vld [vmem:[#allocation10 + $0x5c0] sm:$0xff]
        %v6720 = vld [vmem:[#allocation10 + $0x5c8] sm:$0xff]
        %v6721 = vld [vmem:[#allocation10 + $0x5d0] sm:$0xff]
        %v6722 = vld [vmem:[#allocation10 + $0x5d8] sm:$0xff]
        %v6723 = vld [vmem:[#allocation10 + $0x5e0] sm:$0xff]
        %v6724 = vld [vmem:[#allocation10 + $0x5e8] sm:$0xff]
        %v6725 = vld [vmem:[#allocation10 + $0x5f0] sm:$0xff]
        %v6726 = vld [vmem:[#allocation10 + $0x5f8] sm:$0xff]
        %v6727 = vld [vmem:[#allocation10 + $0x600] sm:$0xff]
        %v6728 = vld [vmem:[#allocation10 + $0x608] sm:$0xff]
        %v6729 = vld [vmem:[#allocation10 + $0x610] sm:$0xff]
        %v6730 = vld [vmem:[#allocation10 + $0x618] sm:$0xff]
        %v6731 = vld [vmem:[#allocation10 + $0x620] sm:$0xff]
        %v6732 = vld [vmem:[#allocation10 + $0x628] sm:$0xff]
        %v6733 = vld [vmem:[#allocation10 + $0x630] sm:$0xff]
        %v6734 = vld [vmem:[#allocation10 + $0x638] sm:$0xff]
        %v6735 = vld [vmem:[#allocation10 + $0x640] sm:$0xff]
        %v6736 = vld [vmem:[#allocation10 + $0x648] sm:$0xff]
        %v6737 = vld [vmem:[#allocation10 + $0x650] sm:$0xff]
        %v6738 = vld [vmem:[#allocation10 + $0x658] sm:$0xff]
        %v6739 = vld [vmem:[#allocation10 + $0x660] sm:$0xff]
        %v6740 = vld [vmem:[#allocation10 + $0x668] sm:$0xff]
        %v6741 = vld [vmem:[#allocation10 + $0x670] sm:$0xff]
        %v6742 = vld [vmem:[#allocation10 + $0x678] sm:$0xff]
        %v6743 = vld [vmem:[#allocation10 + $0x680] sm:$0xff]
        %v6744 = vld [vmem:[#allocation10 + $0x688] sm:$0xff]
        %v6745 = vld [vmem:[#allocation10 + $0x690] sm:$0xff]
        %v6746 = vld [vmem:[#allocation10 + $0x698] sm:$0xff]
        %v6747 = vld [vmem:[#allocation10 + $0x6a0] sm:$0xff]
        %v6748 = vld [vmem:[#allocation10 + $0x6a8] sm:$0xff]
        %v6749 = vld [vmem:[#allocation10 + $0x6b0] sm:$0xff]
        %v6750 = vld [vmem:[#allocation10 + $0x6b8] sm:$0xff]
        %v6751 = vld [vmem:[#allocation10 + $0x6c0] sm:$0xff]
        %v6752 = vld [vmem:[#allocation10 + $0x6c8] sm:$0xff]
        %v6753 = vld [vmem:[#allocation10 + $0x6d0] sm:$0xff]
        %v6754 = vld [vmem:[#allocation10 + $0x6d8] sm:$0xff]
        %v6755 = vld [vmem:[#allocation10 + $0x6e0] sm:$0xff]
        %v6756 = vld [vmem:[#allocation10 + $0x6e8] sm:$0xff]
        %v6757 = vld [vmem:[#allocation10 + $0x6f0] sm:$0xff]
        %v6758 = vld [vmem:[#allocation10 + $0x6f8] sm:$0xff]
        %v6759 = vld [vmem:[#allocation10 + $0x700] sm:$0xff]
        %v6760 = vld [vmem:[#allocation10 + $0x708] sm:$0xff]
        %v6761 = vld [vmem:[#allocation10 + $0x710] sm:$0xff]
        %v6762 = vld [vmem:[#allocation10 + $0x718] sm:$0xff]
        %v6763 = vld [vmem:[#allocation10 + $0x720] sm:$0xff]
        %v6764 = vld [vmem:[#allocation10 + $0x728] sm:$0xff]
        %v6765 = vld [vmem:[#allocation10 + $0x730] sm:$0xff]
        %v6766 = vld [vmem:[#allocation10 + $0x738] sm:$0xff]
        %v6767 = vld [vmem:[#allocation10 + $0x740] sm:$0xff]
        %v6768 = vld [vmem:[#allocation10 + $0x748] sm:$0xff]
        %v6769 = vld [vmem:[#allocation10 + $0x750] sm:$0xff]
        %v6770 = vld [vmem:[#allocation10 + $0x758] sm:$0xff]
        %v6771 = vld [vmem:[#allocation10 + $0x760] sm:$0xff]
        %v6772 = vld [vmem:[#allocation10 + $0x768] sm:$0xff]
        %v6773 = vld [vmem:[#allocation10 + $0x770] sm:$0xff]
        %v6774 = vld [vmem:[#allocation10 + $0x778] sm:$0xff]
        %v6775 = vld [vmem:[#allocation10 + $0x780] sm:$0xff]
        %v6776 = vld [vmem:[#allocation10 + $0x788] sm:$0xff]
        %v6777 = vld [vmem:[#allocation10 + $0x790] sm:$0xff]
        %v6778 = vld [vmem:[#allocation10 + $0x798] sm:$0xff]
        %v6779 = vld [vmem:[#allocation10 + $0x7a0] sm:$0xff]
        %v6780 = vld [vmem:[#allocation10 + $0x7a8] sm:$0xff]
        %v6781 = vld [vmem:[#allocation10 + $0x7b0] sm:$0xff]
        %v6782 = vld [vmem:[#allocation10 + $0x7b8] sm:$0xff]
        %v6783 = vld [vmem:[#allocation10 + $0x7c0] sm:$0xff]
        %v6784 = vld [vmem:[#allocation10 + $0x7c8] sm:$0xff]
        %v6785 = vld [vmem:[#allocation10 + $0x7d0] sm:$0xff]
        %v6786 = vld [vmem:[#allocation10 + $0x7d8] sm:$0xff]
        %v6787 = vld [vmem:[#allocation10 + $0x7e0] sm:$0xff]
        %v6788 = vld [vmem:[#allocation10 + $0x7e8] sm:$0xff]
        %v6789 = vld [vmem:[#allocation10 + $0x7f0] sm:$0xff]
        %v6790 = vld [vmem:[#allocation10 + $0x7f8] sm:$0xff]
        %v6791 = vld [vmem:[#allocation11] sm:$0xf]
        %v6792 = vcombine.high %v6534, %v6534
        %v6794 = vunpack.c.l.s4 1966171168
        %v6795 = vunpack.c.0.s8 %v6794
        %v6796 = vlaneseq
        %v6797 = vshrl.u32 %v6796, 7
        %v6798 = vsub.s32 %v6795, %v6797
        %v6799 = vrot.slane %v6534, %v6798
        %v6801 = vunpack.c.l.s4 1966171168
        %v6802 = vunpack.c.0.s8 %v6801
        %v6803 = vlaneseq
        %v6804 = vshrl.u32 %v6803, 7
        %v6805 = vsub.s32 %v6802, %v6804
        %v6806 = vrot.slane %v6792, %v6805
        %v6807 = vcombine.high %v6799, %v6799
        %v6808 = vcombine.high %v6806, %v6806
        %v6810 = vunpack.c.l.s4 1966171168
        %v6811 = vunpack.c.0.s8 %v6810
        %v6812 = vlaneseq
        %v6813 = vshrl.u32 %v6812, 7
        %v6814 = vsub.s32 %v6811, %v6813
        %v6815 = vrot.slane %v6799, %v6814
        %v6817 = vunpack.c.l.s4 1966171168
        %v6818 = vunpack.c.0.s8 %v6817
        %v6819 = vlaneseq
        %v6820 = vshrl.u32 %v6819, 7
        %v6821 = vsub.s32 %v6818, %v6820
        %v6822 = vrot.slane %v6806, %v6821
        %v6824 = vunpack.c.l.s4 1966171168
        %v6825 = vunpack.c.0.s8 %v6824
        %v6826 = vlaneseq
        %v6827 = vshrl.u32 %v6826, 7
        %v6828 = vsub.s32 %v6825, %v6827
        %v6829 = vrot.slane %v6807, %v6828
        %v6831 = vunpack.c.l.s4 1966171168
        %v6832 = vunpack.c.0.s8 %v6831
        %v6833 = vlaneseq
        %v6834 = vshrl.u32 %v6833, 7
        %v6835 = vsub.s32 %v6832, %v6834
        %v6836 = vrot.slane %v6808, %v6835
        %v6837 = vcombine.high %v6815, %v6815
        %v6838 = vcombine.high %v6822, %v6822
        %v6839 = vcombine.high %v6829, %v6829
        %v6840 = vcombine.high %v6836, %v6836
        %v7105 = vunpack.c.l.b16 %v6535
        %v7106 = vunpack.c.h.b16 %v6535
        %v7107 = vunpack.c.l.b16 %v6536
        %v7108 = vunpack.c.h.b16 %v6536
        %v7109 = vunpack.c.l.b16 %v6537
        %v7110 = vunpack.c.h.b16 %v6537
        %v7111 = vunpack.c.l.b16 %v6538
        %v7112 = vunpack.c.h.b16 %v6538
        %v7113 = vunpack.c.l.b16 %v6539
        %v7114 = vunpack.c.h.b16 %v6539
        %v7115 = vunpack.c.l.b16 %v6540
        %v7116 = vunpack.c.h.b16 %v6540
        %v7117 = vunpack.c.l.b16 %v6541
        %v7118 = vunpack.c.h.b16 %v6541
        %v7119 = vunpack.c.l.b16 %v6542
        %v7120 = vunpack.c.h.b16 %v6542
        %v7121 = vunpack.c.l.b16 %v6543
        %v7122 = vunpack.c.h.b16 %v6543
        %v7123 = vunpack.c.l.b16 %v6544
        %v7124 = vunpack.c.h.b16 %v6544
        %v7125 = vunpack.c.l.b16 %v6545
        %v7126 = vunpack.c.h.b16 %v6545
        %v7127 = vunpack.c.l.b16 %v6546
        %v7128 = vunpack.c.h.b16 %v6546
        %v7129 = vunpack.c.l.b16 %v6547
        %v7130 = vunpack.c.h.b16 %v6547
        %v7131 = vunpack.c.l.b16 %v6548
        %v7132 = vunpack.c.h.b16 %v6548
        %v7133 = vunpack.c.l.b16 %v6549
        %v7134 = vunpack.c.h.b16 %v6549
        %v7135 = vunpack.c.l.b16 %v6550
        %v7136 = vunpack.c.h.b16 %v6550
        %v7137 = vunpack.c.l.b16 %v6551
        %v7138 = vunpack.c.h.b16 %v6551
        %v7139 = vunpack.c.l.b16 %v6552
        %v7140 = vunpack.c.h.b16 %v6552
        %v7141 = vunpack.c.l.b16 %v6553
        %v7142 = vunpack.c.h.b16 %v6553
        %v7143 = vunpack.c.l.b16 %v6554
        %v7144 = vunpack.c.h.b16 %v6554
        %v7145 = vunpack.c.l.b16 %v6555
        %v7146 = vunpack.c.h.b16 %v6555
        %v7147 = vunpack.c.l.b16 %v6556
        %v7148 = vunpack.c.h.b16 %v6556
        %v7149 = vunpack.c.l.b16 %v6557
        %v7150 = vunpack.c.h.b16 %v6557
        %v7151 = vunpack.c.l.b16 %v6558
        %v7152 = vunpack.c.h.b16 %v6558
        %v7153 = vunpack.c.l.b16 %v6559
        %v7154 = vunpack.c.h.b16 %v6559
        %v7155 = vunpack.c.l.b16 %v6560
        %v7156 = vunpack.c.h.b16 %v6560
        %v7157 = vunpack.c.l.b16 %v6561
        %v7158 = vunpack.c.h.b16 %v6561
        %v7159 = vunpack.c.l.b16 %v6562
        %v7160 = vunpack.c.h.b16 %v6562
        %v7161 = vunpack.c.l.b16 %v6563
        %v7162 = vunpack.c.h.b16 %v6563
        %v7163 = vunpack.c.l.b16 %v6564
        %v7164 = vunpack.c.h.b16 %v6564
        %v7165 = vunpack.c.l.b16 %v6565
        %v7166 = vunpack.c.h.b16 %v6565
        %v7167 = vunpack.c.l.b16 %v6566
        %v7168 = vunpack.c.h.b16 %v6566
        %v7169 = vunpack.c.l.b16 %v6567
        %v7170 = vunpack.c.h.b16 %v6567
        %v7171 = vunpack.c.l.b16 %v6568
        %v7172 = vunpack.c.h.b16 %v6568
        %v7173 = vunpack.c.l.b16 %v6569
        %v7174 = vunpack.c.h.b16 %v6569
        %v7175 = vunpack.c.l.b16 %v6570
        %v7176 = vunpack.c.h.b16 %v6570
        %v7177 = vunpack.c.l.b16 %v6571
        %v7178 = vunpack.c.h.b16 %v6571
        %v7179 = vunpack.c.l.b16 %v6572
        %v7180 = vunpack.c.h.b16 %v6572
        %v7181 = vunpack.c.l.b16 %v6573
        %v7182 = vunpack.c.h.b16 %v6573
        %v7183 = vunpack.c.l.b16 %v6574
        %v7184 = vunpack.c.h.b16 %v6574
        %v7185 = vunpack.c.l.b16 %v6575
        %v7186 = vunpack.c.h.b16 %v6575
        %v7187 = vunpack.c.l.b16 %v6576
        %v7188 = vunpack.c.h.b16 %v6576
        %v7189 = vunpack.c.l.b16 %v6577
        %v7190 = vunpack.c.h.b16 %v6577
        %v7191 = vunpack.c.l.b16 %v6578
        %v7192 = vunpack.c.h.b16 %v6578
        %v7193 = vunpack.c.l.b16 %v6579
        %v7194 = vunpack.c.h.b16 %v6579
        %v7195 = vunpack.c.l.b16 %v6580
        %v7196 = vunpack.c.h.b16 %v6580
        %v7197 = vunpack.c.l.b16 %v6581
        %v7198 = vunpack.c.h.b16 %v6581
        %v7199 = vunpack.c.l.b16 %v6582
        %v7200 = vunpack.c.h.b16 %v6582
        %v7201 = vunpack.c.l.b16 %v6583
        %v7202 = vunpack.c.h.b16 %v6583
        %v7203 = vunpack.c.l.b16 %v6584
        %v7204 = vunpack.c.h.b16 %v6584
        %v7205 = vunpack.c.l.b16 %v6585
        %v7206 = vunpack.c.h.b16 %v6585
        %v7207 = vunpack.c.l.b16 %v6586
        %v7208 = vunpack.c.h.b16 %v6586
        %v7209 = vunpack.c.l.b16 %v6587
        %v7210 = vunpack.c.h.b16 %v6587
        %v7211 = vunpack.c.l.b16 %v6588
        %v7212 = vunpack.c.h.b16 %v6588
        %v7213 = vunpack.c.l.b16 %v6589
        %v7214 = vunpack.c.h.b16 %v6589
        %v7215 = vunpack.c.l.b16 %v6590
        %v7216 = vunpack.c.h.b16 %v6590
        %v7217 = vunpack.c.l.b16 %v6591
        %v7218 = vunpack.c.h.b16 %v6591
        %v7219 = vunpack.c.l.b16 %v6592
        %v7220 = vunpack.c.h.b16 %v6592
        %v7221 = vunpack.c.l.b16 %v6593
        %v7222 = vunpack.c.h.b16 %v6593
        %v7223 = vunpack.c.l.b16 %v6594
        %v7224 = vunpack.c.h.b16 %v6594
        %v7225 = vunpack.c.l.b16 %v6595
        %v7226 = vunpack.c.h.b16 %v6595
        %v7227 = vunpack.c.l.b16 %v6596
        %v7228 = vunpack.c.h.b16 %v6596
        %v7229 = vunpack.c.l.b16 %v6597
        %v7230 = vunpack.c.h.b16 %v6597
        %v7231 = vunpack.c.l.b16 %v6598
        %v7232 = vunpack.c.h.b16 %v6598
        %v7233 = vunpack.c.l.b16 %v6599
        %v7234 = vunpack.c.h.b16 %v6599
        %v7235 = vunpack.c.l.b16 %v6600
        %v7236 = vunpack.c.h.b16 %v6600
        %v7237 = vunpack.c.l.b16 %v6601
        %v7238 = vunpack.c.h.b16 %v6601
        %v7239 = vunpack.c.l.b16 %v6602
        %v7240 = vunpack.c.h.b16 %v6602
        %v7241 = vunpack.c.l.b16 %v6603
        %v7242 = vunpack.c.h.b16 %v6603
        %v7243 = vunpack.c.l.b16 %v6604
        %v7244 = vunpack.c.h.b16 %v6604
        %v7245 = vunpack.c.l.b16 %v6605
        %v7246 = vunpack.c.h.b16 %v6605
        %v7247 = vunpack.c.l.b16 %v6606
        %v7248 = vunpack.c.h.b16 %v6606
        %v7249 = vunpack.c.l.b16 %v6607
        %v7250 = vunpack.c.h.b16 %v6607
        %v7251 = vunpack.c.l.b16 %v6608
        %v7252 = vunpack.c.h.b16 %v6608
        %v7253 = vunpack.c.l.b16 %v6609
        %v7254 = vunpack.c.h.b16 %v6609
        %v7255 = vunpack.c.l.b16 %v6610
        %v7256 = vunpack.c.h.b16 %v6610
        %v7257 = vunpack.c.l.b16 %v6611
        %v7258 = vunpack.c.h.b16 %v6611
        %v7259 = vunpack.c.l.b16 %v6612
        %v7260 = vunpack.c.h.b16 %v6612
        %v7261 = vunpack.c.l.b16 %v6613
        %v7262 = vunpack.c.h.b16 %v6613
        %v7263 = vunpack.c.l.b16 %v6614
        %v7264 = vunpack.c.h.b16 %v6614
        %v7265 = vunpack.c.l.b16 %v6615
        %v7266 = vunpack.c.h.b16 %v6615
        %v7267 = vunpack.c.l.b16 %v6616
        %v7268 = vunpack.c.h.b16 %v6616
        %v7269 = vunpack.c.l.b16 %v6617
        %v7270 = vunpack.c.h.b16 %v6617
        %v7271 = vunpack.c.l.b16 %v6618
        %v7272 = vunpack.c.h.b16 %v6618
        %v7273 = vunpack.c.l.b16 %v6619
        %v7274 = vunpack.c.h.b16 %v6619
        %v7275 = vunpack.c.l.b16 %v6620
        %v7276 = vunpack.c.h.b16 %v6620
        %v7277 = vunpack.c.l.b16 %v6621
        %v7278 = vunpack.c.h.b16 %v6621
        %v7279 = vunpack.c.l.b16 %v6622
        %v7280 = vunpack.c.h.b16 %v6622
        %v7281 = vunpack.c.l.b16 %v6623
        %v7282 = vunpack.c.h.b16 %v6623
        %v7283 = vunpack.c.l.b16 %v6624
        %v7284 = vunpack.c.h.b16 %v6624
        %v7285 = vunpack.c.l.b16 %v6625
        %v7286 = vunpack.c.h.b16 %v6625
        %v7287 = vunpack.c.l.b16 %v6626
        %v7288 = vunpack.c.h.b16 %v6626
        %v7289 = vunpack.c.l.b16 %v6627
        %v7290 = vunpack.c.h.b16 %v6627
        %v7291 = vunpack.c.l.b16 %v6628
        %v7292 = vunpack.c.h.b16 %v6628
        %v7293 = vunpack.c.l.b16 %v6629
        %v7294 = vunpack.c.h.b16 %v6629
        %v7295 = vunpack.c.l.b16 %v6630
        %v7296 = vunpack.c.h.b16 %v6630
        %v7297 = vunpack.c.l.b16 %v6631
        %v7298 = vunpack.c.h.b16 %v6631
        %v7299 = vunpack.c.l.b16 %v6632
        %v7300 = vunpack.c.h.b16 %v6632
        %v7301 = vunpack.c.l.b16 %v6633
        %v7302 = vunpack.c.h.b16 %v6633
        %v7303 = vunpack.c.l.b16 %v6634
        %v7304 = vunpack.c.h.b16 %v6634
        %v7305 = vunpack.c.l.b16 %v6635
        %v7306 = vunpack.c.h.b16 %v6635
        %v7307 = vunpack.c.l.b16 %v6636
        %v7308 = vunpack.c.h.b16 %v6636
        %v7309 = vunpack.c.l.b16 %v6637
        %v7310 = vunpack.c.h.b16 %v6637
        %v7311 = vunpack.c.l.b16 %v6638
        %v7312 = vunpack.c.h.b16 %v6638
        %v7313 = vunpack.c.l.b16 %v6639
        %v7314 = vunpack.c.h.b16 %v6639
        %v7315 = vunpack.c.l.b16 %v6640
        %v7316 = vunpack.c.h.b16 %v6640
        %v7317 = vunpack.c.l.b16 %v6641
        %v7318 = vunpack.c.h.b16 %v6641
        %v7319 = vunpack.c.l.b16 %v6642
        %v7320 = vunpack.c.h.b16 %v6642
        %v7321 = vunpack.c.l.b16 %v6643
        %v7322 = vunpack.c.h.b16 %v6643
        %v7323 = vunpack.c.l.b16 %v6644
        %v7324 = vunpack.c.h.b16 %v6644
        %v7325 = vunpack.c.l.b16 %v6645
        %v7326 = vunpack.c.h.b16 %v6645
        %v7327 = vunpack.c.l.b16 %v6646
        %v7328 = vunpack.c.h.b16 %v6646
        %v7329 = vunpack.c.l.b16 %v6647
        %v7330 = vunpack.c.h.b16 %v6647
        %v7331 = vunpack.c.l.b16 %v6648
        %v7332 = vunpack.c.h.b16 %v6648
        %v7333 = vunpack.c.l.b16 %v6649
        %v7334 = vunpack.c.h.b16 %v6649
        %v7335 = vunpack.c.l.b16 %v6650
        %v7336 = vunpack.c.h.b16 %v6650
        %v7337 = vunpack.c.l.b16 %v6651
        %v7338 = vunpack.c.h.b16 %v6651
        %v7339 = vunpack.c.l.b16 %v6652
        %v7340 = vunpack.c.h.b16 %v6652
        %v7341 = vunpack.c.l.b16 %v6653
        %v7342 = vunpack.c.h.b16 %v6653
        %v7343 = vunpack.c.l.b16 %v6654
        %v7344 = vunpack.c.h.b16 %v6654
        %v7345 = vunpack.c.l.b16 %v6655
        %v7346 = vunpack.c.h.b16 %v6655
        %v7347 = vunpack.c.l.b16 %v6656
        %v7348 = vunpack.c.h.b16 %v6656
        %v7349 = vunpack.c.l.b16 %v6657
        %v7350 = vunpack.c.h.b16 %v6657
        %v7351 = vunpack.c.l.b16 %v6658
        %v7352 = vunpack.c.h.b16 %v6658
        %v7353 = vunpack.c.l.b16 %v6659
        %v7354 = vunpack.c.h.b16 %v6659
        %v7355 = vunpack.c.l.b16 %v6660
        %v7356 = vunpack.c.h.b16 %v6660
        %v7357 = vunpack.c.l.b16 %v6661
        %v7358 = vunpack.c.h.b16 %v6661
        %v7359 = vunpack.c.l.b16 %v6662
        %v7360 = vunpack.c.h.b16 %v6662
        %v7361 = vunpack.c.l.b16 %v6663
        %v7362 = vunpack.c.h.b16 %v6663
        %v7363 = vunpack.c.l.b16 %v6664
        %v7364 = vunpack.c.h.b16 %v6664
        %v7365 = vunpack.c.l.b16 %v6665
        %v7366 = vunpack.c.h.b16 %v6665
        %v7367 = vunpack.c.l.b16 %v6666
        %v7368 = vunpack.c.h.b16 %v6666
        %v7369 = vunpack.c.l.b16 %v6667
        %v7370 = vunpack.c.h.b16 %v6667
        %v7371 = vunpack.c.l.b16 %v6668
        %v7372 = vunpack.c.h.b16 %v6668
        %v7373 = vunpack.c.l.b16 %v6669
        %v7374 = vunpack.c.h.b16 %v6669
        %v7375 = vunpack.c.l.b16 %v6670
        %v7376 = vunpack.c.h.b16 %v6670
        %v7377 = vunpack.c.l.b16 %v6671
        %v7378 = vunpack.c.h.b16 %v6671
        %v7379 = vunpack.c.l.b16 %v6672
        %v7380 = vunpack.c.h.b16 %v6672
        %v7381 = vunpack.c.l.b16 %v6673
        %v7382 = vunpack.c.h.b16 %v6673
        %v7383 = vunpack.c.l.b16 %v6674
        %v7384 = vunpack.c.h.b16 %v6674
        %v7385 = vunpack.c.l.b16 %v6675
        %v7386 = vunpack.c.h.b16 %v6675
        %v7387 = vunpack.c.l.b16 %v6676
        %v7388 = vunpack.c.h.b16 %v6676
        %v7389 = vunpack.c.l.b16 %v6677
        %v7390 = vunpack.c.h.b16 %v6677
        %v7391 = vunpack.c.l.b16 %v6678
        %v7392 = vunpack.c.h.b16 %v6678
        %v7393 = vunpack.c.l.b16 %v6679
        %v7394 = vunpack.c.h.b16 %v6679
        %v7395 = vunpack.c.l.b16 %v6680
        %v7396 = vunpack.c.h.b16 %v6680
        %v7397 = vunpack.c.l.b16 %v6681
        %v7398 = vunpack.c.h.b16 %v6681
        %v7399 = vunpack.c.l.b16 %v6682
        %v7400 = vunpack.c.h.b16 %v6682
        %v7401 = vunpack.c.l.b16 %v6683
        %v7402 = vunpack.c.h.b16 %v6683
        %v7403 = vunpack.c.l.b16 %v6684
        %v7404 = vunpack.c.h.b16 %v6684
        %v7405 = vunpack.c.l.b16 %v6685
        %v7406 = vunpack.c.h.b16 %v6685
        %v7407 = vunpack.c.l.b16 %v6686
        %v7408 = vunpack.c.h.b16 %v6686
        %v7409 = vunpack.c.l.b16 %v6687
        %v7410 = vunpack.c.h.b16 %v6687
        %v7411 = vunpack.c.l.b16 %v6688
        %v7412 = vunpack.c.h.b16 %v6688
        %v7413 = vunpack.c.l.b16 %v6689
        %v7414 = vunpack.c.h.b16 %v6689
        %v7415 = vunpack.c.l.b16 %v6690
        %v7416 = vunpack.c.h.b16 %v6690
        %v7417 = vunpack.c.l.b16 %v6691
        %v7418 = vunpack.c.h.b16 %v6691
        %v7419 = vunpack.c.l.b16 %v6692
        %v7420 = vunpack.c.h.b16 %v6692
        %v7421 = vunpack.c.l.b16 %v6693
        %v7422 = vunpack.c.h.b16 %v6693
        %v7423 = vunpack.c.l.b16 %v6694
        %v7424 = vunpack.c.h.b16 %v6694
        %v7425 = vunpack.c.l.b16 %v6695
        %v7426 = vunpack.c.h.b16 %v6695
        %v7427 = vunpack.c.l.b16 %v6696
        %v7428 = vunpack.c.h.b16 %v6696
        %v7429 = vunpack.c.l.b16 %v6697
        %v7430 = vunpack.c.h.b16 %v6697
        %v7431 = vunpack.c.l.b16 %v6698
        %v7432 = vunpack.c.h.b16 %v6698
        %v7433 = vunpack.c.l.b16 %v6699
        %v7434 = vunpack.c.h.b16 %v6699
        %v7435 = vunpack.c.l.b16 %v6700
        %v7436 = vunpack.c.h.b16 %v6700
        %v7437 = vunpack.c.l.b16 %v6701
        %v7438 = vunpack.c.h.b16 %v6701
        %v7439 = vunpack.c.l.b16 %v6702
        %v7440 = vunpack.c.h.b16 %v6702
        %v7441 = vunpack.c.l.b16 %v6703
        %v7442 = vunpack.c.h.b16 %v6703
        %v7443 = vunpack.c.l.b16 %v6704
        %v7444 = vunpack.c.h.b16 %v6704
        %v7445 = vunpack.c.l.b16 %v6705
        %v7446 = vunpack.c.h.b16 %v6705
        %v7447 = vunpack.c.l.b16 %v6706
        %v7448 = vunpack.c.h.b16 %v6706
        %v7449 = vunpack.c.l.b16 %v6707
        %v7450 = vunpack.c.h.b16 %v6707
        %v7451 = vunpack.c.l.b16 %v6708
        %v7452 = vunpack.c.h.b16 %v6708
        %v7453 = vunpack.c.l.b16 %v6709
        %v7454 = vunpack.c.h.b16 %v6709
        %v7455 = vunpack.c.l.b16 %v6710
        %v7456 = vunpack.c.h.b16 %v6710
        %v7457 = vunpack.c.l.b16 %v6711
        %v7458 = vunpack.c.h.b16 %v6711
        %v7459 = vunpack.c.l.b16 %v6712
        %v7460 = vunpack.c.h.b16 %v6712
        %v7461 = vunpack.c.l.b16 %v6713
        %v7462 = vunpack.c.h.b16 %v6713
        %v7463 = vunpack.c.l.b16 %v6714
        %v7464 = vunpack.c.h.b16 %v6714
        %v7465 = vunpack.c.l.b16 %v6715
        %v7466 = vunpack.c.h.b16 %v6715
        %v7467 = vunpack.c.l.b16 %v6716
        %v7468 = vunpack.c.h.b16 %v6716
        %v7469 = vunpack.c.l.b16 %v6717
        %v7470 = vunpack.c.h.b16 %v6717
        %v7471 = vunpack.c.l.b16 %v6718
        %v7472 = vunpack.c.h.b16 %v6718
        %v7473 = vunpack.c.l.b16 %v6719
        %v7474 = vunpack.c.h.b16 %v6719
        %v7475 = vunpack.c.l.b16 %v6720
        %v7476 = vunpack.c.h.b16 %v6720
        %v7477 = vunpack.c.l.b16 %v6721
        %v7478 = vunpack.c.h.b16 %v6721
        %v7479 = vunpack.c.l.b16 %v6722
        %v7480 = vunpack.c.h.b16 %v6722
        %v7481 = vunpack.c.l.b16 %v6723
        %v7482 = vunpack.c.h.b16 %v6723
        %v7483 = vunpack.c.l.b16 %v6724
        %v7484 = vunpack.c.h.b16 %v6724
        %v7485 = vunpack.c.l.b16 %v6725
        %v7486 = vunpack.c.h.b16 %v6725
        %v7487 = vunpack.c.l.b16 %v6726
        %v7488 = vunpack.c.h.b16 %v6726
        %v7489 = vunpack.c.l.b16 %v6727
        %v7490 = vunpack.c.h.b16 %v6727
        %v7491 = vunpack.c.l.b16 %v6728
        %v7492 = vunpack.c.h.b16 %v6728
        %v7493 = vunpack.c.l.b16 %v6729
        %v7494 = vunpack.c.h.b16 %v6729
        %v7495 = vunpack.c.l.b16 %v6730
        %v7496 = vunpack.c.h.b16 %v6730
        %v7497 = vunpack.c.l.b16 %v6731
        %v7498 = vunpack.c.h.b16 %v6731
        %v7499 = vunpack.c.l.b16 %v6732
        %v7500 = vunpack.c.h.b16 %v6732
        %v7501 = vunpack.c.l.b16 %v6733
        %v7502 = vunpack.c.h.b16 %v6733
        %v7503 = vunpack.c.l.b16 %v6734
        %v7504 = vunpack.c.h.b16 %v6734
        %v7505 = vunpack.c.l.b16 %v6735
        %v7506 = vunpack.c.h.b16 %v6735
        %v7507 = vunpack.c.l.b16 %v6736
        %v7508 = vunpack.c.h.b16 %v6736
        %v7509 = vunpack.c.l.b16 %v6737
        %v7510 = vunpack.c.h.b16 %v6737
        %v7511 = vunpack.c.l.b16 %v6738
        %v7512 = vunpack.c.h.b16 %v6738
        %v7513 = vunpack.c.l.b16 %v6739
        %v7514 = vunpack.c.h.b16 %v6739
        %v7515 = vunpack.c.l.b16 %v6740
        %v7516 = vunpack.c.h.b16 %v6740
        %v7517 = vunpack.c.l.b16 %v6741
        %v7518 = vunpack.c.h.b16 %v6741
        %v7519 = vunpack.c.l.b16 %v6742
        %v7520 = vunpack.c.h.b16 %v6742
        %v7521 = vunpack.c.l.b16 %v6743
        %v7522 = vunpack.c.h.b16 %v6743
        %v7523 = vunpack.c.l.b16 %v6744
        %v7524 = vunpack.c.h.b16 %v6744
        %v7525 = vunpack.c.l.b16 %v6745
        %v7526 = vunpack.c.h.b16 %v6745
        %v7527 = vunpack.c.l.b16 %v6746
        %v7528 = vunpack.c.h.b16 %v6746
        %v7529 = vunpack.c.l.b16 %v6747
        %v7530 = vunpack.c.h.b16 %v6747
        %v7531 = vunpack.c.l.b16 %v6748
        %v7532 = vunpack.c.h.b16 %v6748
        %v7533 = vunpack.c.l.b16 %v6749
        %v7534 = vunpack.c.h.b16 %v6749
        %v7535 = vunpack.c.l.b16 %v6750
        %v7536 = vunpack.c.h.b16 %v6750
        %v7537 = vunpack.c.l.b16 %v6751
        %v7538 = vunpack.c.h.b16 %v6751
        %v7539 = vunpack.c.l.b16 %v6752
        %v7540 = vunpack.c.h.b16 %v6752
        %v7541 = vunpack.c.l.b16 %v6753
        %v7542 = vunpack.c.h.b16 %v6753
        %v7543 = vunpack.c.l.b16 %v6754
        %v7544 = vunpack.c.h.b16 %v6754
        %v7545 = vunpack.c.l.b16 %v6755
        %v7546 = vunpack.c.h.b16 %v6755
        %v7547 = vunpack.c.l.b16 %v6756
        %v7548 = vunpack.c.h.b16 %v6756
        %v7549 = vunpack.c.l.b16 %v6757
        %v7550 = vunpack.c.h.b16 %v6757
        %v7551 = vunpack.c.l.b16 %v6758
        %v7552 = vunpack.c.h.b16 %v6758
        %v7553 = vunpack.c.l.b16 %v6759
        %v7554 = vunpack.c.h.b16 %v6759
        %v7555 = vunpack.c.l.b16 %v6760
        %v7556 = vunpack.c.h.b16 %v6760
        %v7557 = vunpack.c.l.b16 %v6761
        %v7558 = vunpack.c.h.b16 %v6761
        %v7559 = vunpack.c.l.b16 %v6762
        %v7560 = vunpack.c.h.b16 %v6762
        %v7561 = vunpack.c.l.b16 %v6763
        %v7562 = vunpack.c.h.b16 %v6763
        %v7563 = vunpack.c.l.b16 %v6764
        %v7564 = vunpack.c.h.b16 %v6764
        %v7565 = vunpack.c.l.b16 %v6765
        %v7566 = vunpack.c.h.b16 %v6765
        %v7567 = vunpack.c.l.b16 %v6766
        %v7568 = vunpack.c.h.b16 %v6766
        %v7569 = vunpack.c.l.b16 %v6767
        %v7570 = vunpack.c.h.b16 %v6767
        %v7571 = vunpack.c.l.b16 %v6768
        %v7572 = vunpack.c.h.b16 %v6768
        %v7573 = vunpack.c.l.b16 %v6769
        %v7574 = vunpack.c.h.b16 %v6769
        %v7575 = vunpack.c.l.b16 %v6770
        %v7576 = vunpack.c.h.b16 %v6770
        %v7577 = vunpack.c.l.b16 %v6771
        %v7578 = vunpack.c.h.b16 %v6771
        %v7579 = vunpack.c.l.b16 %v6772
        %v7580 = vunpack.c.h.b16 %v6772
        %v7581 = vunpack.c.l.b16 %v6773
        %v7582 = vunpack.c.h.b16 %v6773
        %v7583 = vunpack.c.l.b16 %v6774
        %v7584 = vunpack.c.h.b16 %v6774
        %v7585 = vunpack.c.l.b16 %v6775
        %v7586 = vunpack.c.h.b16 %v6775
        %v7587 = vunpack.c.l.b16 %v6776
        %v7588 = vunpack.c.h.b16 %v6776
        %v7589 = vunpack.c.l.b16 %v6777
        %v7590 = vunpack.c.h.b16 %v6777
        %v7591 = vunpack.c.l.b16 %v6778
        %v7592 = vunpack.c.h.b16 %v6778
        %v7593 = vunpack.c.l.b16 %v6779
        %v7594 = vunpack.c.h.b16 %v6779
        %v7595 = vunpack.c.l.b16 %v6780
        %v7596 = vunpack.c.h.b16 %v6780
        %v7597 = vunpack.c.l.b16 %v6781
        %v7598 = vunpack.c.h.b16 %v6781
        %v7599 = vunpack.c.l.b16 %v6782
        %v7600 = vunpack.c.h.b16 %v6782
        %v7601 = vunpack.c.l.b16 %v6783
        %v7602 = vunpack.c.h.b16 %v6783
        %v7603 = vunpack.c.l.b16 %v6784
        %v7604 = vunpack.c.h.b16 %v6784
        %v7605 = vunpack.c.l.b16 %v6785
        %v7606 = vunpack.c.h.b16 %v6785
        %v7607 = vunpack.c.l.b16 %v6786
        %v7608 = vunpack.c.h.b16 %v6786
        %v7609 = vunpack.c.l.b16 %v6787
        %v7610 = vunpack.c.h.b16 %v6787
        %v7611 = vunpack.c.l.b16 %v6788
        %v7612 = vunpack.c.h.b16 %v6788
        %v7613 = vunpack.c.l.b16 %v6789
        %v7614 = vunpack.c.h.b16 %v6789
        %v7615 = vunpack.c.l.b16 %v6790
        %v7616 = vunpack.c.h.b16 %v6790
        %v7617 = vpack.c.b16 %v7109, %v7105
        %v7618 = vpack.c.b16 %v7110, %v7106
        %v7619 = vpack.c.b16 %v7111, %v7107
        %v7620 = vpack.c.b16 %v7112, %v7108
        %v7621 = vpack.c.b16 %v7117, %v7113
        %v7622 = vpack.c.b16 %v7118, %v7114
        %v7623 = vpack.c.b16 %v7119, %v7115
        %v7624 = vpack.c.b16 %v7120, %v7116
        %v7625 = vpack.c.b16 %v7125, %v7121
        %v7626 = vpack.c.b16 %v7126, %v7122
        %v7627 = vpack.c.b16 %v7127, %v7123
        %v7628 = vpack.c.b16 %v7128, %v7124
        %v7629 = vpack.c.b16 %v7133, %v7129
        %v7630 = vpack.c.b16 %v7134, %v7130
        %v7631 = vpack.c.b16 %v7135, %v7131
        %v7632 = vpack.c.b16 %v7136, %v7132
        %v7633 = vpack.c.b16 %v7141, %v7137
        %v7634 = vpack.c.b16 %v7142, %v7138
        %v7635 = vpack.c.b16 %v7143, %v7139
        %v7636 = vpack.c.b16 %v7144, %v7140
        %v7637 = vpack.c.b16 %v7149, %v7145
        %v7638 = vpack.c.b16 %v7150, %v7146
        %v7639 = vpack.c.b16 %v7151, %v7147
        %v7640 = vpack.c.b16 %v7152, %v7148
        %v7641 = vpack.c.b16 %v7157, %v7153
        %v7642 = vpack.c.b16 %v7158, %v7154
        %v7643 = vpack.c.b16 %v7159, %v7155
        %v7644 = vpack.c.b16 %v7160, %v7156
        %v7645 = vpack.c.b16 %v7165, %v7161
        %v7646 = vpack.c.b16 %v7166, %v7162
        %v7647 = vpack.c.b16 %v7167, %v7163
        %v7648 = vpack.c.b16 %v7168, %v7164
        %v7649 = vpack.c.b16 %v7173, %v7169
        %v7650 = vpack.c.b16 %v7174, %v7170
        %v7651 = vpack.c.b16 %v7175, %v7171
        %v7652 = vpack.c.b16 %v7176, %v7172
        %v7653 = vpack.c.b16 %v7181, %v7177
        %v7654 = vpack.c.b16 %v7182, %v7178
        %v7655 = vpack.c.b16 %v7183, %v7179
        %v7656 = vpack.c.b16 %v7184, %v7180
        %v7657 = vpack.c.b16 %v7189, %v7185
        %v7658 = vpack.c.b16 %v7190, %v7186
        %v7659 = vpack.c.b16 %v7191, %v7187
        %v7660 = vpack.c.b16 %v7192, %v7188
        %v7661 = vpack.c.b16 %v7197, %v7193
        %v7662 = vpack.c.b16 %v7198, %v7194
        %v7663 = vpack.c.b16 %v7199, %v7195
        %v7664 = vpack.c.b16 %v7200, %v7196
        %v7665 = vpack.c.b16 %v7205, %v7201
        %v7666 = vpack.c.b16 %v7206, %v7202
        %v7667 = vpack.c.b16 %v7207, %v7203
        %v7668 = vpack.c.b16 %v7208, %v7204
        %v7669 = vpack.c.b16 %v7213, %v7209
        %v7670 = vpack.c.b16 %v7214, %v7210
        %v7671 = vpack.c.b16 %v7215, %v7211
        %v7672 = vpack.c.b16 %v7216, %v7212
        %v7673 = vpack.c.b16 %v7221, %v7217
        %v7674 = vpack.c.b16 %v7222, %v7218
        %v7675 = vpack.c.b16 %v7223, %v7219
        %v7676 = vpack.c.b16 %v7224, %v7220
        %v7677 = vpack.c.b16 %v7229, %v7225
        %v7678 = vpack.c.b16 %v7230, %v7226
        %v7679 = vpack.c.b16 %v7231, %v7227
        %v7680 = vpack.c.b16 %v7232, %v7228
        %v7681 = vpack.c.b16 %v7237, %v7233
        %v7682 = vpack.c.b16 %v7238, %v7234
        %v7683 = vpack.c.b16 %v7239, %v7235
        %v7684 = vpack.c.b16 %v7240, %v7236
        %v7685 = vpack.c.b16 %v7245, %v7241
        %v7686 = vpack.c.b16 %v7246, %v7242
        %v7687 = vpack.c.b16 %v7247, %v7243
        %v7688 = vpack.c.b16 %v7248, %v7244
        %v7689 = vpack.c.b16 %v7253, %v7249
        %v7690 = vpack.c.b16 %v7254, %v7250
        %v7691 = vpack.c.b16 %v7255, %v7251
        %v7692 = vpack.c.b16 %v7256, %v7252
        %v7693 = vpack.c.b16 %v7261, %v7257
        %v7694 = vpack.c.b16 %v7262, %v7258
        %v7695 = vpack.c.b16 %v7263, %v7259
        %v7696 = vpack.c.b16 %v7264, %v7260
        %v7697 = vpack.c.b16 %v7269, %v7265
        %v7698 = vpack.c.b16 %v7270, %v7266
        %v7699 = vpack.c.b16 %v7271, %v7267
        %v7700 = vpack.c.b16 %v7272, %v7268
        %v7701 = vpack.c.b16 %v7277, %v7273
        %v7702 = vpack.c.b16 %v7278, %v7274
        %v7703 = vpack.c.b16 %v7279, %v7275
        %v7704 = vpack.c.b16 %v7280, %v7276
        %v7705 = vpack.c.b16 %v7285, %v7281
        %v7706 = vpack.c.b16 %v7286, %v7282
        %v7707 = vpack.c.b16 %v7287, %v7283
        %v7708 = vpack.c.b16 %v7288, %v7284
        %v7709 = vpack.c.b16 %v7293, %v7289
        %v7710 = vpack.c.b16 %v7294, %v7290
        %v7711 = vpack.c.b16 %v7295, %v7291
        %v7712 = vpack.c.b16 %v7296, %v7292
        %v7713 = vpack.c.b16 %v7301, %v7297
        %v7714 = vpack.c.b16 %v7302, %v7298
        %v7715 = vpack.c.b16 %v7303, %v7299
        %v7716 = vpack.c.b16 %v7304, %v7300
        %v7717 = vpack.c.b16 %v7309, %v7305
        %v7718 = vpack.c.b16 %v7310, %v7306
        %v7719 = vpack.c.b16 %v7311, %v7307
        %v7720 = vpack.c.b16 %v7312, %v7308
        %v7721 = vpack.c.b16 %v7317, %v7313
        %v7722 = vpack.c.b16 %v7318, %v7314
        %v7723 = vpack.c.b16 %v7319, %v7315
        %v7724 = vpack.c.b16 %v7320, %v7316
        %v7725 = vpack.c.b16 %v7325, %v7321
        %v7726 = vpack.c.b16 %v7326, %v7322
        %v7727 = vpack.c.b16 %v7327, %v7323
        %v7728 = vpack.c.b16 %v7328, %v7324
        %v7729 = vpack.c.b16 %v7333, %v7329
        %v7730 = vpack.c.b16 %v7334, %v7330
        %v7731 = vpack.c.b16 %v7335, %v7331
        %v7732 = vpack.c.b16 %v7336, %v7332
        %v7733 = vpack.c.b16 %v7341, %v7337
        %v7734 = vpack.c.b16 %v7342, %v7338
        %v7735 = vpack.c.b16 %v7343, %v7339
        %v7736 = vpack.c.b16 %v7344, %v7340
        %v7737 = vpack.c.b16 %v7349, %v7345
        %v7738 = vpack.c.b16 %v7350, %v7346
        %v7739 = vpack.c.b16 %v7351, %v7347
        %v7740 = vpack.c.b16 %v7352, %v7348
        %v7741 = vpack.c.b16 %v7357, %v7353
        %v7742 = vpack.c.b16 %v7358, %v7354
        %v7743 = vpack.c.b16 %v7359, %v7355
        %v7744 = vpack.c.b16 %v7360, %v7356
        %v7745 = vpack.c.b16 %v7365, %v7361
        %v7746 = vpack.c.b16 %v7366, %v7362
        %v7747 = vpack.c.b16 %v7367, %v7363
        %v7748 = vpack.c.b16 %v7368, %v7364
        %v7749 = vpack.c.b16 %v7373, %v7369
        %v7750 = vpack.c.b16 %v7374, %v7370
        %v7751 = vpack.c.b16 %v7375, %v7371
        %v7752 = vpack.c.b16 %v7376, %v7372
        %v7753 = vpack.c.b16 %v7381, %v7377
        %v7754 = vpack.c.b16 %v7382, %v7378
        %v7755 = vpack.c.b16 %v7383, %v7379
        %v7756 = vpack.c.b16 %v7384, %v7380
        %v7757 = vpack.c.b16 %v7389, %v7385
        %v7758 = vpack.c.b16 %v7390, %v7386
        %v7759 = vpack.c.b16 %v7391, %v7387
        %v7760 = vpack.c.b16 %v7392, %v7388
        %v7761 = vpack.c.b16 %v7397, %v7393
        %v7762 = vpack.c.b16 %v7398, %v7394
        %v7763 = vpack.c.b16 %v7399, %v7395
        %v7764 = vpack.c.b16 %v7400, %v7396
        %v7765 = vpack.c.b16 %v7405, %v7401
        %v7766 = vpack.c.b16 %v7406, %v7402
        %v7767 = vpack.c.b16 %v7407, %v7403
        %v7768 = vpack.c.b16 %v7408, %v7404
        %v7769 = vpack.c.b16 %v7413, %v7409
        %v7770 = vpack.c.b16 %v7414, %v7410
        %v7771 = vpack.c.b16 %v7415, %v7411
        %v7772 = vpack.c.b16 %v7416, %v7412
        %v7773 = vpack.c.b16 %v7421, %v7417
        %v7774 = vpack.c.b16 %v7422, %v7418
        %v7775 = vpack.c.b16 %v7423, %v7419
        %v7776 = vpack.c.b16 %v7424, %v7420
        %v7777 = vpack.c.b16 %v7429, %v7425
        %v7778 = vpack.c.b16 %v7430, %v7426
        %v7779 = vpack.c.b16 %v7431, %v7427
        %v7780 = vpack.c.b16 %v7432, %v7428
        %v7781 = vpack.c.b16 %v7437, %v7433
        %v7782 = vpack.c.b16 %v7438, %v7434
        %v7783 = vpack.c.b16 %v7439, %v7435
        %v7784 = vpack.c.b16 %v7440, %v7436
        %v7785 = vpack.c.b16 %v7445, %v7441
        %v7786 = vpack.c.b16 %v7446, %v7442
        %v7787 = vpack.c.b16 %v7447, %v7443
        %v7788 = vpack.c.b16 %v7448, %v7444
        %v7789 = vpack.c.b16 %v7453, %v7449
        %v7790 = vpack.c.b16 %v7454, %v7450
        %v7791 = vpack.c.b16 %v7455, %v7451
        %v7792 = vpack.c.b16 %v7456, %v7452
        %v7793 = vpack.c.b16 %v7461, %v7457
        %v7794 = vpack.c.b16 %v7462, %v7458
        %v7795 = vpack.c.b16 %v7463, %v7459
        %v7796 = vpack.c.b16 %v7464, %v7460
        %v7797 = vpack.c.b16 %v7469, %v7465
        %v7798 = vpack.c.b16 %v7470, %v7466
        %v7799 = vpack.c.b16 %v7471, %v7467
        %v7800 = vpack.c.b16 %v7472, %v7468
        %v7801 = vpack.c.b16 %v7477, %v7473
        %v7802 = vpack.c.b16 %v7478, %v7474
        %v7803 = vpack.c.b16 %v7479, %v7475
        %v7804 = vpack.c.b16 %v7480, %v7476
        %v7805 = vpack.c.b16 %v7485, %v7481
        %v7806 = vpack.c.b16 %v7486, %v7482
        %v7807 = vpack.c.b16 %v7487, %v7483
        %v7808 = vpack.c.b16 %v7488, %v7484
        %v7809 = vpack.c.b16 %v7493, %v7489
        %v7810 = vpack.c.b16 %v7494, %v7490
        %v7811 = vpack.c.b16 %v7495, %v7491
        %v7812 = vpack.c.b16 %v7496, %v7492
        %v7813 = vpack.c.b16 %v7501, %v7497
        %v7814 = vpack.c.b16 %v7502, %v7498
        %v7815 = vpack.c.b16 %v7503, %v7499
        %v7816 = vpack.c.b16 %v7504, %v7500
        %v7817 = vpack.c.b16 %v7509, %v7505
        %v7818 = vpack.c.b16 %v7510, %v7506
        %v7819 = vpack.c.b16 %v7511, %v7507
        %v7820 = vpack.c.b16 %v7512, %v7508
        %v7821 = vpack.c.b16 %v7517, %v7513
        %v7822 = vpack.c.b16 %v7518, %v7514
        %v7823 = vpack.c.b16 %v7519, %v7515
        %v7824 = vpack.c.b16 %v7520, %v7516
        %v7825 = vpack.c.b16 %v7525, %v7521
        %v7826 = vpack.c.b16 %v7526, %v7522
        %v7827 = vpack.c.b16 %v7527, %v7523
        %v7828 = vpack.c.b16 %v7528, %v7524
        %v7829 = vpack.c.b16 %v7533, %v7529
        %v7830 = vpack.c.b16 %v7534, %v7530
        %v7831 = vpack.c.b16 %v7535, %v7531
        %v7832 = vpack.c.b16 %v7536, %v7532
        %v7833 = vpack.c.b16 %v7541, %v7537
        %v7834 = vpack.c.b16 %v7542, %v7538
        %v7835 = vpack.c.b16 %v7543, %v7539
        %v7836 = vpack.c.b16 %v7544, %v7540
        %v7837 = vpack.c.b16 %v7549, %v7545
        %v7838 = vpack.c.b16 %v7550, %v7546
        %v7839 = vpack.c.b16 %v7551, %v7547
        %v7840 = vpack.c.b16 %v7552, %v7548
        %v7841 = vpack.c.b16 %v7557, %v7553
        %v7842 = vpack.c.b16 %v7558, %v7554
        %v7843 = vpack.c.b16 %v7559, %v7555
        %v7844 = vpack.c.b16 %v7560, %v7556
        %v7845 = vpack.c.b16 %v7565, %v7561
        %v7846 = vpack.c.b16 %v7566, %v7562
        %v7847 = vpack.c.b16 %v7567, %v7563
        %v7848 = vpack.c.b16 %v7568, %v7564
        %v7849 = vpack.c.b16 %v7573, %v7569
        %v7850 = vpack.c.b16 %v7574, %v7570
        %v7851 = vpack.c.b16 %v7575, %v7571
        %v7852 = vpack.c.b16 %v7576, %v7572
        %v7853 = vpack.c.b16 %v7581, %v7577
        %v7854 = vpack.c.b16 %v7582, %v7578
        %v7855 = vpack.c.b16 %v7583, %v7579
        %v7856 = vpack.c.b16 %v7584, %v7580
        %v7857 = vpack.c.b16 %v7589, %v7585
        %v7858 = vpack.c.b16 %v7590, %v7586
        %v7859 = vpack.c.b16 %v7591, %v7587
        %v7860 = vpack.c.b16 %v7592, %v7588
        %v7861 = vpack.c.b16 %v7597, %v7593
        %v7862 = vpack.c.b16 %v7598, %v7594
        %v7863 = vpack.c.b16 %v7599, %v7595
        %v7864 = vpack.c.b16 %v7600, %v7596
        %v7865 = vpack.c.b16 %v7605, %v7601
        %v7866 = vpack.c.b16 %v7606, %v7602
        %v7867 = vpack.c.b16 %v7607, %v7603
        %v7868 = vpack.c.b16 %v7608, %v7604
        %v7869 = vpack.c.b16 %v7613, %v7609
        %v7870 = vpack.c.b16 %v7614, %v7610
        %v7871 = vpack.c.b16 %v7615, %v7611
        %v7872 = vpack.c.b16 %v7616, %v7612
        %v8130 = vlaneseq
        %v8131 = vshrl.u32 %v8130, 7
        %v8132 = vsub.s32 0, %v8131
        %v8133 = vrot.slane %v6791, %v8132
        %v8134 = vlaneseq
        %v8135 = vshrl.u32 %v8134, 7
        %v8136 = vsub.s32 1, %v8135
        %v8137 = vrot.slane %v6791, %v8136
        %v8138 = vlaneseq
        %v8139 = vshrl.u32 %v8138, 7
        %v8140 = vsub.s32 2, %v8139
        %v8141 = vrot.slane %v6791, %v8140
        %v8142 = vlaneseq
        %v8143 = vshrl.u32 %v8142, 7
        %v8144 = vsub.s32 3, %v8143
        %v8145 = vrot.slane %v6791, %v8144
        %8150 = vmatprep.subr.bf16.mxu0 %v7646
        %8151 = vmatpush1.bf16.msra.mxu0 %v7645
        %8152 = vmatprep.subr.bf16.mxu0 %v7642
        %8153 = vmatpush1.bf16.msra.mxu0 %v7641
        %8154 = vmatprep.subr.bf16.mxu0 %v7638
        %8155 = vmatpush1.bf16.msra.mxu0 %v7637
        %8156 = vmatprep.subr.bf16.mxu0 %v7634
        %8157 = vmatpush1.bf16.msra.mxu0 %v7633
        %8158 = vmatprep.subr.bf16.mxu0 %v7630
        %8159 = vmatpush1.bf16.msra.mxu0 %v7629
        %8160 = vmatprep.subr.bf16.mxu0 %v7626
        %8161 = vmatpush1.bf16.msra.mxu0 %v7625
        %8162 = vmatprep.subr.bf16.mxu0 %v7622
        %8163 = vmatpush1.bf16.msra.mxu0 %v7621
        %8164 = vmatprep.subr.bf16.mxu0 %v7618
        %8165 = vmatpush1.bf16.msra.mxu0 %v7617
        %8166 = vmatprep.subr.bf16.mxu0 %v7678
        %8167 = vmatpush2.bf16.msra.mxu0 %v7677
        %8168 = vmatprep.subr.bf16.mxu0 %v7674
        %8169 = vmatpush2.bf16.msra.mxu0 %v7673
        %8170 = vmatprep.subr.bf16.mxu0 %v7670
        %8171 = vmatpush2.bf16.msra.mxu0 %v7669
        %8172 = vmatprep.subr.bf16.mxu0 %v7666
        %8173 = vmatpush2.bf16.msra.mxu0 %v7665
        %8174 = vmatprep.subr.bf16.mxu0 %v7662
        %8175 = vmatpush2.bf16.msra.mxu0 %v7661
        %8176 = vmatprep.subr.bf16.mxu0 %v7658
        %8177 = vmatpush2.bf16.msra.mxu0 %v7657
        %8178 = vmatprep.subr.bf16.mxu0 %v7654
        %8179 = vmatpush2.bf16.msra.mxu0 %v7653
        %8180 = vmatprep.subr.bf16.mxu0 %v7650
        %8181 = vmatpush2.bf16.msra.mxu0 %v7649
        %8182 = vmatprep.mubr.bf16.mxu0 %v6829
        %8183 = vmatmul.mubr.bf16.gmra.mxu0 %v6815
        %v8184 = vpop.f32.mrf.mxu0
        %v8185 = vadd.f32 %v8133, %v8184
        %v8186 = vpop.f32.mrf.mxu0
        %v8187 = vadd.f32 %v8137, %v8186
        %v8188 = vpop.f32.mrf.mxu0
        %v8189 = vpop.f32.mrf.mxu0
        %8190 = vdwg.mxu0
        %8191 = vmatprep.subr.bf16.mxu0 %v7710
        %8192 = vmatpush1.bf16.msra.mxu0 %v7709
        %8193 = vmatprep.subr.bf16.mxu0 %v7706
        %8194 = vmatpush1.bf16.msra.mxu0 %v7705
        %8195 = vmatprep.subr.bf16.mxu0 %v7702
        %8196 = vmatpush1.bf16.msra.mxu0 %v7701
        %8197 = vmatprep.subr.bf16.mxu0 %v7698
        %8198 = vmatpush1.bf16.msra.mxu0 %v7697
        %8199 = vmatprep.subr.bf16.mxu0 %v7694
        %8200 = vmatpush1.bf16.msra.mxu0 %v7693
        %8201 = vmatprep.subr.bf16.mxu0 %v7690
        %8202 = vmatpush1.bf16.msra.mxu0 %v7689
        %8203 = vmatprep.subr.bf16.mxu0 %v7686
        %8204 = vmatpush1.bf16.msra.mxu0 %v7685
        %8205 = vmatprep.subr.bf16.mxu0 %v7682
        %8206 = vmatpush1.bf16.msra.mxu0 %v7681
        %8207 = vmatprep.subr.bf16.mxu0 %v7742
        %8208 = vmatpush2.bf16.msra.mxu0 %v7741
        %8209 = vmatprep.subr.bf16.mxu0 %v7738
        %8210 = vmatpush2.bf16.msra.mxu0 %v7737
        %8211 = vmatprep.subr.bf16.mxu0 %v7734
        %8212 = vmatpush2.bf16.msra.mxu0 %v7733
        %8213 = vmatprep.subr.bf16.mxu0 %v7730
        %8214 = vmatpush2.bf16.msra.mxu0 %v7729
        %8215 = vmatprep.subr.bf16.mxu0 %v7726
        %8216 = vmatpush2.bf16.msra.mxu0 %v7725
        %8217 = vmatprep.subr.bf16.mxu0 %v7722
        %8218 = vmatpush2.bf16.msra.mxu0 %v7721
        %8219 = vmatprep.subr.bf16.mxu0 %v7718
        %8220 = vmatpush2.bf16.msra.mxu0 %v7717
        %8221 = vmatprep.subr.bf16.mxu0 %v7714
        %8222 = vmatpush2.bf16.msra.mxu0 %v7713
        %8223 = vmatprep.mubr.bf16.mxu0 %v6839
        %8224 = vmatmul.mubr.bf16.gmra.mxu0 %v6837
        %v8225 = vpop.f32.mrf.mxu0
        %v8226 = vadd.f32 %v8185, %v8225
        %v8227 = vpop.f32.mrf.mxu0
        %v8228 = vadd.f32 %v8187, %v8227
        %v8229 = vpop.f32.mrf.mxu0
        %v8230 = vpop.f32.mrf.mxu0
        %8231 = vdwg.mxu0
        %8232 = vmatprep.subr.bf16.mxu0 %v7774
        %8233 = vmatpush1.bf16.msra.mxu0 %v7773
        %8234 = vmatprep.subr.bf16.mxu0 %v7770
        %8235 = vmatpush1.bf16.msra.mxu0 %v7769
        %8236 = vmatprep.subr.bf16.mxu0 %v7766
        %8237 = vmatpush1.bf16.msra.mxu0 %v7765
        %8238 = vmatprep.subr.bf16.mxu0 %v7762
        %8239 = vmatpush1.bf16.msra.mxu0 %v7761
        %8240 = vmatprep.subr.bf16.mxu0 %v7758
        %8241 = vmatpush1.bf16.msra.mxu0 %v7757
        %8242 = vmatprep.subr.bf16.mxu0 %v7754
        %8243 = vmatpush1.bf16.msra.mxu0 %v7753
        %8244 = vmatprep.subr.bf16.mxu0 %v7750
        %8245 = vmatpush1.bf16.msra.mxu0 %v7749
        %8246 = vmatprep.subr.bf16.mxu0 %v7746
        %8247 = vmatpush1.bf16.msra.mxu0 %v7745
        %8248 = vmatprep.subr.bf16.mxu0 %v7806
        %8249 = vmatpush2.bf16.msra.mxu0 %v7805
        %8250 = vmatprep.subr.bf16.mxu0 %v7802
        %8251 = vmatpush2.bf16.msra.mxu0 %v7801
        %8252 = vmatprep.subr.bf16.mxu0 %v7798
        %8253 = vmatpush2.bf16.msra.mxu0 %v7797
        %8254 = vmatprep.subr.bf16.mxu0 %v7794
        %8255 = vmatpush2.bf16.msra.mxu0 %v7793
        %8256 = vmatprep.subr.bf16.mxu0 %v7790
        %8257 = vmatpush2.bf16.msra.mxu0 %v7789
        %8258 = vmatprep.subr.bf16.mxu0 %v7786
        %8259 = vmatpush2.bf16.msra.mxu0 %v7785
        %8260 = vmatprep.subr.bf16.mxu0 %v7782
        %8261 = vmatpush2.bf16.msra.mxu0 %v7781
        %8262 = vmatprep.subr.bf16.mxu0 %v7778
        %8263 = vmatpush2.bf16.msra.mxu0 %v7777
        %8264 = vmatprep.mubr.bf16.mxu0 %v6836
        %8265 = vmatmul.mubr.bf16.gmra.mxu0 %v6822
        %v8266 = vpop.f32.mrf.mxu0
        %v8267 = vadd.f32 %v8226, %v8266
        %v8268 = vpop.f32.mrf.mxu0
        %v8269 = vadd.f32 %v8228, %v8268
        %v8270 = vpop.f32.mrf.mxu0
        %v8271 = vpop.f32.mrf.mxu0
        %8272 = vdwg.mxu0
        %8273 = vmatprep.subr.bf16.mxu0 %v7838
        %8274 = vmatpush1.bf16.msra.mxu0 %v7837
        %8275 = vmatprep.subr.bf16.mxu0 %v7834
        %8276 = vmatpush1.bf16.msra.mxu0 %v7833
        %8277 = vmatprep.subr.bf16.mxu0 %v7830
        %8278 = vmatpush1.bf16.msra.mxu0 %v7829
        %8279 = vmatprep.subr.bf16.mxu0 %v7826
        %8280 = vmatpush1.bf16.msra.mxu0 %v7825
        %8281 = vmatprep.subr.bf16.mxu0 %v7822
        %8282 = vmatpush1.bf16.msra.mxu0 %v7821
        %8283 = vmatprep.subr.bf16.mxu0 %v7818
        %8284 = vmatpush1.bf16.msra.mxu0 %v7817
        %8285 = vmatprep.subr.bf16.mxu0 %v7814
        %8286 = vmatpush1.bf16.msra.mxu0 %v7813
        %8287 = vmatprep.subr.bf16.mxu0 %v7810
        %8288 = vmatpush1.bf16.msra.mxu0 %v7809
        %8289 = vmatprep.subr.bf16.mxu0 %v7870
        %8290 = vmatpush2.bf16.msra.mxu0 %v7869
        %8291 = vmatprep.subr.bf16.mxu0 %v7866
        %8292 = vmatpush2.bf16.msra.mxu0 %v7865
        %8293 = vmatprep.subr.bf16.mxu0 %v7862
        %8294 = vmatpush2.bf16.msra.mxu0 %v7861
        %8295 = vmatprep.subr.bf16.mxu0 %v7858
        %8296 = vmatpush2.bf16.msra.mxu0 %v7857
        %8297 = vmatprep.subr.bf16.mxu0 %v7854
        %8298 = vmatpush2.bf16.msra.mxu0 %v7853
        %8299 = vmatprep.subr.bf16.mxu0 %v7850
        %8300 = vmatpush2.bf16.msra.mxu0 %v7849
        %8301 = vmatprep.subr.bf16.mxu0 %v7846
        %8302 = vmatpush2.bf16.msra.mxu0 %v7845
        %8303 = vmatprep.subr.bf16.mxu0 %v7842
        %8304 = vmatpush2.bf16.msra.mxu0 %v7841
        %8305 = vmatprep.mubr.bf16.mxu0 %v6840
        %8306 = vmatmul.mubr.bf16.gmra.mxu0 %v6838
        %v8307 = vpop.f32.mrf.mxu0
        %v8308 = vadd.f32 %v8267, %v8307
        %v8309 = vpop.f32.mrf.mxu0
        %v8310 = vadd.f32 %v8269, %v8309
        %v8311 = vpop.f32.mrf.mxu0
        %v8312 = vpop.f32.mrf.mxu0
        %8313 = vdwg.mxu0
        %8314 = vmatprep.subr.bf16.mxu0 %v7648
        %8315 = vmatpush1.bf16.msra.mxu0 %v7647
        %8316 = vmatprep.subr.bf16.mxu0 %v7644
        %8317 = vmatpush1.bf16.msra.mxu0 %v7643
        %8318 = vmatprep.subr.bf16.mxu0 %v7640
        %8319 = vmatpush1.bf16.msra.mxu0 %v7639
        %8320 = vmatprep.subr.bf16.mxu0 %v7636
        %8321 = vmatpush1.bf16.msra.mxu0 %v7635
        %8322 = vmatprep.subr.bf16.mxu0 %v7632
        %8323 = vmatpush1.bf16.msra.mxu0 %v7631
        %8324 = vmatprep.subr.bf16.mxu0 %v7628
        %8325 = vmatpush1.bf16.msra.mxu0 %v7627
        %8326 = vmatprep.subr.bf16.mxu0 %v7624
        %8327 = vmatpush1.bf16.msra.mxu0 %v7623
        %8328 = vmatprep.subr.bf16.mxu0 %v7620
        %8329 = vmatpush1.bf16.msra.mxu0 %v7619
        %8330 = vmatprep.subr.bf16.mxu0 %v7680
        %8331 = vmatpush2.bf16.msra.mxu0 %v7679
        %8332 = vmatprep.subr.bf16.mxu0 %v7676
        %8333 = vmatpush2.bf16.msra.mxu0 %v7675
        %8334 = vmatprep.subr.bf16.mxu0 %v7672
        %8335 = vmatpush2.bf16.msra.mxu0 %v7671
        %8336 = vmatprep.subr.bf16.mxu0 %v7668
        %8337 = vmatpush2.bf16.msra.mxu0 %v7667
        %8338 = vmatprep.subr.bf16.mxu0 %v7664
        %8339 = vmatpush2.bf16.msra.mxu0 %v7663
        %8340 = vmatprep.subr.bf16.mxu0 %v7660
        %8341 = vmatpush2.bf16.msra.mxu0 %v7659
        %8342 = vmatprep.subr.bf16.mxu0 %v7656
        %8343 = vmatpush2.bf16.msra.mxu0 %v7655
        %8344 = vmatprep.subr.bf16.mxu0 %v7652
        %8345 = vmatpush2.bf16.msra.mxu0 %v7651
        %8346 = vmatprep.mubr.bf16.mxu0 %v6829
        %8347 = vmatmul.mubr.bf16.gmra.mxu0 %v6815
        %v8348 = vpop.f32.mrf.mxu0
        %v8349 = vadd.f32 %v8141, %v8348
        %v8350 = vpop.f32.mrf.mxu0
        %v8351 = vadd.f32 %v8145, %v8350
        %v8352 = vpop.f32.mrf.mxu0
        %v8353 = vpop.f32.mrf.mxu0
        %8354 = vdwg.mxu0
        %8355 = vmatprep.subr.bf16.mxu0 %v7712
        %8356 = vmatpush1.bf16.msra.mxu0 %v7711
        %8357 = vmatprep.subr.bf16.mxu0 %v7708
        %8358 = vmatpush1.bf16.msra.mxu0 %v7707
        %8359 = vmatprep.subr.bf16.mxu0 %v7704
        %8360 = vmatpush1.bf16.msra.mxu0 %v7703
        %8361 = vmatprep.subr.bf16.mxu0 %v7700
        %8362 = vmatpush1.bf16.msra.mxu0 %v7699
        %8363 = vmatprep.subr.bf16.mxu0 %v7696
        %8364 = vmatpush1.bf16.msra.mxu0 %v7695
        %8365 = vmatprep.subr.bf16.mxu0 %v7692
        %8366 = vmatpush1.bf16.msra.mxu0 %v7691
        %8367 = vmatprep.subr.bf16.mxu0 %v7688
        %8368 = vmatpush1.bf16.msra.mxu0 %v7687
        %8369 = vmatprep.subr.bf16.mxu0 %v7684
        %8370 = vmatpush1.bf16.msra.mxu0 %v7683
        %8371 = vmatprep.subr.bf16.mxu0 %v7744
        %8372 = vmatpush2.bf16.msra.mxu0 %v7743
        %8373 = vmatprep.subr.bf16.mxu0 %v7740
        %8374 = vmatpush2.bf16.msra.mxu0 %v7739
        %8375 = vmatprep.subr.bf16.mxu0 %v7736
        %8376 = vmatpush2.bf16.msra.mxu0 %v7735
        %8377 = vmatprep.subr.bf16.mxu0 %v7732
        %8378 = vmatpush2.bf16.msra.mxu0 %v7731
        %8379 = vmatprep.subr.bf16.mxu0 %v7728
        %8380 = vmatpush2.bf16.msra.mxu0 %v7727
        %8381 = vmatprep.subr.bf16.mxu0 %v7724
        %8382 = vmatpush2.bf16.msra.mxu0 %v7723
        %8383 = vmatprep.subr.bf16.mxu0 %v7720
        %8384 = vmatpush2.bf16.msra.mxu0 %v7719
        %8385 = vmatprep.subr.bf16.mxu0 %v7716
        %8386 = vmatpush2.bf16.msra.mxu0 %v7715
        %8387 = vmatprep.mubr.bf16.mxu0 %v6839
        %8388 = vmatmul.mubr.bf16.gmra.mxu0 %v6837
        %v8389 = vpop.f32.mrf.mxu0
        %v8390 = vadd.f32 %v8349, %v8389
        %v8391 = vpop.f32.mrf.mxu0
        %v8392 = vadd.f32 %v8351, %v8391
        %v8393 = vpop.f32.mrf.mxu0
        %v8394 = vpop.f32.mrf.mxu0
        %8395 = vdwg.mxu0
        %8396 = vmatprep.subr.bf16.mxu0 %v7776
        %8397 = vmatpush1.bf16.msra.mxu0 %v7775
        %8398 = vmatprep.subr.bf16.mxu0 %v7772
        %8399 = vmatpush1.bf16.msra.mxu0 %v7771
        %8400 = vmatprep.subr.bf16.mxu0 %v7768
        %8401 = vmatpush1.bf16.msra.mxu0 %v7767
        %8402 = vmatprep.subr.bf16.mxu0 %v7764
        %8403 = vmatpush1.bf16.msra.mxu0 %v7763
        %8404 = vmatprep.subr.bf16.mxu0 %v7760
        %8405 = vmatpush1.bf16.msra.mxu0 %v7759
        %8406 = vmatprep.subr.bf16.mxu0 %v7756
        %8407 = vmatpush1.bf16.msra.mxu0 %v7755
        %8408 = vmatprep.subr.bf16.mxu0 %v7752
        %8409 = vmatpush1.bf16.msra.mxu0 %v7751
        %8410 = vmatprep.subr.bf16.mxu0 %v7748
        %8411 = vmatpush1.bf16.msra.mxu0 %v7747
        %8412 = vmatprep.subr.bf16.mxu0 %v7808
        %8413 = vmatpush2.bf16.msra.mxu0 %v7807
        %8414 = vmatprep.subr.bf16.mxu0 %v7804
        %8415 = vmatpush2.bf16.msra.mxu0 %v7803
        %8416 = vmatprep.subr.bf16.mxu0 %v7800
        %8417 = vmatpush2.bf16.msra.mxu0 %v7799
        %8418 = vmatprep.subr.bf16.mxu0 %v7796
        %8419 = vmatpush2.bf16.msra.mxu0 %v7795
        %8420 = vmatprep.subr.bf16.mxu0 %v7792
        %8421 = vmatpush2.bf16.msra.mxu0 %v7791
        %8422 = vmatprep.subr.bf16.mxu0 %v7788
        %8423 = vmatpush2.bf16.msra.mxu0 %v7787
        %8424 = vmatprep.subr.bf16.mxu0 %v7784
        %8425 = vmatpush2.bf16.msra.mxu0 %v7783
        %8426 = vmatprep.subr.bf16.mxu0 %v7780
        %8427 = vmatpush2.bf16.msra.mxu0 %v7779
        %8428 = vmatprep.mubr.bf16.mxu0 %v6836
        %8429 = vmatmul.mubr.bf16.gmra.mxu0 %v6822
        %v8430 = vpop.f32.mrf.mxu0
        %v8431 = vadd.f32 %v8390, %v8430
        %v8432 = vpop.f32.mrf.mxu0
        %v8433 = vadd.f32 %v8392, %v8432
        %v8434 = vpop.f32.mrf.mxu0
        %v8435 = vpop.f32.mrf.mxu0
        %8436 = vdwg.mxu0
        %8437 = vmatprep.subr.bf16.mxu0 %v7840
        %8438 = vmatpush1.bf16.msra.mxu0 %v7839
        %8439 = vmatprep.subr.bf16.mxu0 %v7836
        %8440 = vmatpush1.bf16.msra.mxu0 %v7835
        %8441 = vmatprep.subr.bf16.mxu0 %v7832
        %8442 = vmatpush1.bf16.msra.mxu0 %v7831
        %8443 = vmatprep.subr.bf16.mxu0 %v7828
        %8444 = vmatpush1.bf16.msra.mxu0 %v7827
        %8445 = vmatprep.subr.bf16.mxu0 %v7824
        %8446 = vmatpush1.bf16.msra.mxu0 %v7823
        %8447 = vmatprep.subr.bf16.mxu0 %v7820
        %8448 = vmatpush1.bf16.msra.mxu0 %v7819
        %8449 = vmatprep.subr.bf16.mxu0 %v7816
        %8450 = vmatpush1.bf16.msra.mxu0 %v7815
        %8451 = vmatprep.subr.bf16.mxu0 %v7812
        %8452 = vmatpush1.bf16.msra.mxu0 %v7811
        %8453 = vmatprep.subr.bf16.mxu0 %v7872
        %8454 = vmatpush2.bf16.msra.mxu0 %v7871
        %8455 = vmatprep.subr.bf16.mxu0 %v7868
        %8456 = vmatpush2.bf16.msra.mxu0 %v7867
        %8457 = vmatprep.subr.bf16.mxu0 %v7864
        %8458 = vmatpush2.bf16.msra.mxu0 %v7863
        %8459 = vmatprep.subr.bf16.mxu0 %v7860
        %8460 = vmatpush2.bf16.msra.mxu0 %v7859
        %8461 = vmatprep.subr.bf16.mxu0 %v7856
        %8462 = vmatpush2.bf16.msra.mxu0 %v7855
        %8463 = vmatprep.subr.bf16.mxu0 %v7852
        %8464 = vmatpush2.bf16.msra.mxu0 %v7851
        %8465 = vmatprep.subr.bf16.mxu0 %v7848
        %8466 = vmatpush2.bf16.msra.mxu0 %v7847
        %8467 = vmatprep.subr.bf16.mxu0 %v7844
        %8468 = vmatpush2.bf16.msra.mxu0 %v7843
        %8469 = vmatprep.mubr.bf16.mxu0 %v6840
        %8470 = vmatmul.mubr.bf16.gmra.mxu0 %v6838
        %v8471 = vpop.f32.mrf.mxu0
        %v8472 = vadd.f32 %v8431, %v8471
        %v8473 = vpop.f32.mrf.mxu0
        %v8474 = vadd.f32 %v8433, %v8473
        %v8475 = vpop.f32.mrf.mxu0
        %v8476 = vpop.f32.mrf.mxu0
        %8477 = vdwg.mxu0
        %v8478 = vmax.f32 %v8308, 0.0
        %v8479 = vmax.f32 %v8310, 0.0
        %v8480 = vmax.f32 %v8472, 0.0
        %v8481 = vmax.f32 %v8474, 0.0
        %v8482 = vpack.c.bf16 %v8478, %v8478
        %v8483 = vpack.c.bf16 %v8479, %v8479
        %v8484 = vpack.c.bf16 %v8480, %v8480
        %v8485 = vpack.c.bf16 %v8481, %v8481
        %v8486 = vld [vmem:[#allocation13] sm:$0xf]
        %v8487 = vld [vmem:[#allocation13 + $0x4] sm:$0xf]
        %v8488 = vld [vmem:[#allocation13 + $0x8] sm:$0xf]
        %v8489 = vld [vmem:[#allocation13 + $0xc] sm:$0xf]
        %v8490 = vld [vmem:[#allocation13 + $0x10] sm:$0xf]
        %v8491 = vld [vmem:[#allocation13 + $0x14] sm:$0xf]
        %v8492 = vld [vmem:[#allocation13 + $0x18] sm:$0xf]
        %v8493 = vld [vmem:[#allocation13 + $0x1c] sm:$0xf]
        %v8494 = vld [vmem:[#allocation13 + $0x20] sm:$0xf]
        %v8495 = vld [vmem:[#allocation13 + $0x24] sm:$0xf]
        %v8496 = vld [vmem:[#allocation13 + $0x28] sm:$0xf]
        %v8497 = vld [vmem:[#allocation13 + $0x2c] sm:$0xf]
        %v8498 = vld [vmem:[#allocation13 + $0x30] sm:$0xf]
        %v8499 = vld [vmem:[#allocation13 + $0x34] sm:$0xf]
        %v8500 = vld [vmem:[#allocation13 + $0x38] sm:$0xf]
        %v8501 = vld [vmem:[#allocation13 + $0x3c] sm:$0xf]
        %v8502 = vld [vmem:[#allocation13 + $0x40] sm:$0xf]
        %v8503 = vld [vmem:[#allocation13 + $0x44] sm:$0xf]
        %v8504 = vld [vmem:[#allocation13 + $0x48] sm:$0xf]
        %v8505 = vld [vmem:[#allocation13 + $0x4c] sm:$0xf]
        %v8506 = vld [vmem:[#allocation13 + $0x50] sm:$0xf]
        %v8507 = vld [vmem:[#allocation13 + $0x54] sm:$0xf]
        %v8508 = vld [vmem:[#allocation13 + $0x58] sm:$0xf]
        %v8509 = vld [vmem:[#allocation13 + $0x5c] sm:$0xf]
        %v8510 = vld [vmem:[#allocation13 + $0x60] sm:$0xf]
        %v8511 = vld [vmem:[#allocation13 + $0x64] sm:$0xf]
        %v8512 = vld [vmem:[#allocation13 + $0x68] sm:$0xf]
        %v8513 = vld [vmem:[#allocation13 + $0x6c] sm:$0xf]
        %v8514 = vld [vmem:[#allocation13 + $0x70] sm:$0xf]
        %v8515 = vld [vmem:[#allocation13 + $0x74] sm:$0xf]
        %v8516 = vld [vmem:[#allocation13 + $0x78] sm:$0xf]
        %v8517 = vld [vmem:[#allocation13 + $0x7c] sm:$0xf]
        %v8518 = vld [vmem:[#allocation13 + $0x80] sm:$0xf]
        %v8519 = vld [vmem:[#allocation13 + $0x84] sm:$0xf]
        %v8520 = vld [vmem:[#allocation13 + $0x88] sm:$0xf]
        %v8521 = vld [vmem:[#allocation13 + $0x8c] sm:$0xf]
        %v8522 = vld [vmem:[#allocation13 + $0x90] sm:$0xf]
        %v8523 = vld [vmem:[#allocation13 + $0x94] sm:$0xf]
        %v8524 = vld [vmem:[#allocation13 + $0x98] sm:$0xf]
        %v8525 = vld [vmem:[#allocation13 + $0x9c] sm:$0xf]
        %v8526 = vld [vmem:[#allocation13 + $0xa0] sm:$0xf]
        %v8527 = vld [vmem:[#allocation13 + $0xa4] sm:$0xf]
        %v8528 = vld [vmem:[#allocation13 + $0xa8] sm:$0xf]
        %v8529 = vld [vmem:[#allocation13 + $0xac] sm:$0xf]
        %v8530 = vld [vmem:[#allocation13 + $0xb0] sm:$0xf]
        %v8531 = vld [vmem:[#allocation13 + $0xb4] sm:$0xf]
        %v8532 = vld [vmem:[#allocation13 + $0xb8] sm:$0xf]
        %v8533 = vld [vmem:[#allocation13 + $0xbc] sm:$0xf]
        %v8534 = vld [vmem:[#allocation13 + $0xc0] sm:$0xf]
        %v8535 = vld [vmem:[#allocation13 + $0xc4] sm:$0xf]
        %v8536 = vld [vmem:[#allocation13 + $0xc8] sm:$0xf]
        %v8537 = vld [vmem:[#allocation13 + $0xcc] sm:$0xf]
        %v8538 = vld [vmem:[#allocation13 + $0xd0] sm:$0xf]
        %v8539 = vld [vmem:[#allocation13 + $0xd4] sm:$0xf]
        %v8540 = vld [vmem:[#allocation13 + $0xd8] sm:$0xf]
        %v8541 = vld [vmem:[#allocation13 + $0xdc] sm:$0xf]
        %v8542 = vld [vmem:[#allocation13 + $0xe0] sm:$0xf]
        %v8543 = vld [vmem:[#allocation13 + $0xe4] sm:$0xf]
        %v8544 = vld [vmem:[#allocation13 + $0xe8] sm:$0xf]
        %v8545 = vld [vmem:[#allocation13 + $0xec] sm:$0xf]
        %v8546 = vld [vmem:[#allocation13 + $0xf0] sm:$0xf]
        %v8547 = vld [vmem:[#allocation13 + $0xf4] sm:$0xf]
        %v8548 = vld [vmem:[#allocation13 + $0xf8] sm:$0xf]
        %v8549 = vld [vmem:[#allocation13 + $0xfc] sm:$0xf]
        %v8550 = vld [vmem:[#allocation14] sm:$0x1]
        %v8615 = vunpack.c.l.b16 %v8486
        %v8616 = vunpack.c.l.b16 %v8487
        %v8617 = vunpack.c.l.b16 %v8488
        %v8618 = vunpack.c.l.b16 %v8489
        %v8619 = vunpack.c.l.b16 %v8490
        %v8620 = vunpack.c.l.b16 %v8491
        %v8621 = vunpack.c.l.b16 %v8492
        %v8622 = vunpack.c.l.b16 %v8493
        %v8623 = vunpack.c.l.b16 %v8494
        %v8624 = vunpack.c.l.b16 %v8495
        %v8625 = vunpack.c.l.b16 %v8496
        %v8626 = vunpack.c.l.b16 %v8497
        %v8627 = vunpack.c.l.b16 %v8498
        %v8628 = vunpack.c.l.b16 %v8499
        %v8629 = vunpack.c.l.b16 %v8500
        %v8630 = vunpack.c.l.b16 %v8501
        %v8631 = vunpack.c.l.b16 %v8502
        %v8632 = vunpack.c.l.b16 %v8503
        %v8633 = vunpack.c.l.b16 %v8504
        %v8634 = vunpack.c.l.b16 %v8505
        %v8635 = vunpack.c.l.b16 %v8506
        %v8636 = vunpack.c.l.b16 %v8507
        %v8637 = vunpack.c.l.b16 %v8508
        %v8638 = vunpack.c.l.b16 %v8509
        %v8639 = vunpack.c.l.b16 %v8510
        %v8640 = vunpack.c.l.b16 %v8511
        %v8641 = vunpack.c.l.b16 %v8512
        %v8642 = vunpack.c.l.b16 %v8513
        %v8643 = vunpack.c.l.b16 %v8514
        %v8644 = vunpack.c.l.b16 %v8515
        %v8645 = vunpack.c.l.b16 %v8516
        %v8646 = vunpack.c.l.b16 %v8517
        %v8647 = vunpack.c.l.b16 %v8518
        %v8648 = vunpack.c.l.b16 %v8519
        %v8649 = vunpack.c.l.b16 %v8520
        %v8650 = vunpack.c.l.b16 %v8521
        %v8651 = vunpack.c.l.b16 %v8522
        %v8652 = vunpack.c.l.b16 %v8523
        %v8653 = vunpack.c.l.b16 %v8524
        %v8654 = vunpack.c.l.b16 %v8525
        %v8655 = vunpack.c.l.b16 %v8526
        %v8656 = vunpack.c.l.b16 %v8527
        %v8657 = vunpack.c.l.b16 %v8528
        %v8658 = vunpack.c.l.b16 %v8529
        %v8659 = vunpack.c.l.b16 %v8530
        %v8660 = vunpack.c.l.b16 %v8531
        %v8661 = vunpack.c.l.b16 %v8532
        %v8662 = vunpack.c.l.b16 %v8533
        %v8663 = vunpack.c.l.b16 %v8534
        %v8664 = vunpack.c.l.b16 %v8535
        %v8665 = vunpack.c.l.b16 %v8536
        %v8666 = vunpack.c.l.b16 %v8537
        %v8667 = vunpack.c.l.b16 %v8538
        %v8668 = vunpack.c.l.b16 %v8539
        %v8669 = vunpack.c.l.b16 %v8540
        %v8670 = vunpack.c.l.b16 %v8541
        %v8671 = vunpack.c.l.b16 %v8542
        %v8672 = vunpack.c.l.b16 %v8543
        %v8673 = vunpack.c.l.b16 %v8544
        %v8674 = vunpack.c.l.b16 %v8545
        %v8675 = vunpack.c.l.b16 %v8546
        %v8676 = vunpack.c.l.b16 %v8547
        %v8677 = vunpack.c.l.b16 %v8548
        %v8678 = vunpack.c.l.b16 %v8549
        %v8679 = vpack.c.b16 %v8616, %v8615
        %v8680 = vpack.c.b16 %v8618, %v8617
        %v8681 = vpack.c.b16 %v8620, %v8619
        %v8682 = vpack.c.b16 %v8622, %v8621
        %v8683 = vpack.c.b16 %v8624, %v8623
        %v8684 = vpack.c.b16 %v8626, %v8625
        %v8685 = vpack.c.b16 %v8628, %v8627
        %v8686 = vpack.c.b16 %v8630, %v8629
        %v8687 = vpack.c.b16 %v8632, %v8631
        %v8688 = vpack.c.b16 %v8634, %v8633
        %v8689 = vpack.c.b16 %v8636, %v8635
        %v8690 = vpack.c.b16 %v8638, %v8637
        %v8691 = vpack.c.b16 %v8640, %v8639
        %v8692 = vpack.c.b16 %v8642, %v8641
        %v8693 = vpack.c.b16 %v8644, %v8643
        %v8694 = vpack.c.b16 %v8646, %v8645
        %v8695 = vpack.c.b16 %v8648, %v8647
        %v8696 = vpack.c.b16 %v8650, %v8649
        %v8697 = vpack.c.b16 %v8652, %v8651
        %v8698 = vpack.c.b16 %v8654, %v8653
        %v8699 = vpack.c.b16 %v8656, %v8655
        %v8700 = vpack.c.b16 %v8658, %v8657
        %v8701 = vpack.c.b16 %v8660, %v8659
        %v8702 = vpack.c.b16 %v8662, %v8661
        %v8703 = vpack.c.b16 %v8664, %v8663
        %v8704 = vpack.c.b16 %v8666, %v8665
        %v8705 = vpack.c.b16 %v8668, %v8667
        %v8706 = vpack.c.b16 %v8670, %v8669
        %v8707 = vpack.c.b16 %v8672, %v8671
        %v8708 = vpack.c.b16 %v8674, %v8673
        %v8709 = vpack.c.b16 %v8676, %v8675
        %v8710 = vpack.c.b16 %v8678, %v8677
        %8743 = vmatprep.subr.bf16.mxu0 0
        %8744 = vmatpush1.bf16.msra.mxu0 %v8686
        %8745 = vmatprep.subr.bf16.mxu0 0
        %8746 = vmatpush1.bf16.msra.mxu0 %v8685
        %8747 = vmatprep.subr.bf16.mxu0 0
        %8748 = vmatpush1.bf16.msra.mxu0 %v8684
        %8749 = vmatprep.subr.bf16.mxu0 0
        %8750 = vmatpush1.bf16.msra.mxu0 %v8683
        %8751 = vmatprep.subr.bf16.mxu0 0
        %8752 = vmatpush1.bf16.msra.mxu0 %v8682
        %8753 = vmatprep.subr.bf16.mxu0 0
        %8754 = vmatpush1.bf16.msra.mxu0 %v8681
        %8755 = vmatprep.subr.bf16.mxu0 0
        %8756 = vmatpush1.bf16.msra.mxu0 %v8680
        %8757 = vmatprep.subr.bf16.mxu0 0
        %8758 = vmatpush1.bf16.msra.mxu0 %v8679
        %8759 = vmatprep.subr.bf16.mxu0 0
        %8760 = vmatpush2.bf16.msra.mxu0 %v8694
        %8761 = vmatprep.subr.bf16.mxu0 0
        %8762 = vmatpush2.bf16.msra.mxu0 %v8693
        %8763 = vmatprep.subr.bf16.mxu0 0
        %8764 = vmatpush2.bf16.msra.mxu0 %v8692
        %8765 = vmatprep.subr.bf16.mxu0 0
        %8766 = vmatpush2.bf16.msra.mxu0 %v8691
        %8767 = vmatprep.subr.bf16.mxu0 0
        %8768 = vmatpush2.bf16.msra.mxu0 %v8690
        %8769 = vmatprep.subr.bf16.mxu0 0
        %8770 = vmatpush2.bf16.msra.mxu0 %v8689
        %8771 = vmatprep.subr.bf16.mxu0 0
        %8772 = vmatpush2.bf16.msra.mxu0 %v8688
        %8773 = vmatprep.subr.bf16.mxu0 0
        %8774 = vmatpush2.bf16.msra.mxu0 %v8687
        %8775 = vmatprep.mubr.bf16.mxu0 %v8483
        %8776 = vmatmul.mubr.bf16.gmra.mxu0 %v8482
        %v8777 = vpop.f32.mrf.mxu0
        %v8778 = vadd.f32 %v8550, %v8777
        %v8779 = vpop.f32.mrf.mxu0
        %v8780 = vpop.f32.mrf.mxu0
        %v8781 = vpop.f32.mrf.mxu0
        %8782 = vdwg.mxu0
        %8783 = vmatprep.subr.bf16.mxu0 0
        %8784 = vmatpush1.bf16.msra.mxu0 %v8702
        %8785 = vmatprep.subr.bf16.mxu0 0
        %8786 = vmatpush1.bf16.msra.mxu0 %v8701
        %8787 = vmatprep.subr.bf16.mxu0 0
        %8788 = vmatpush1.bf16.msra.mxu0 %v8700
        %8789 = vmatprep.subr.bf16.mxu0 0
        %8790 = vmatpush1.bf16.msra.mxu0 %v8699
        %8791 = vmatprep.subr.bf16.mxu0 0
        %8792 = vmatpush1.bf16.msra.mxu0 %v8698
        %8793 = vmatprep.subr.bf16.mxu0 0
        %8794 = vmatpush1.bf16.msra.mxu0 %v8697
        %8795 = vmatprep.subr.bf16.mxu0 0
        %8796 = vmatpush1.bf16.msra.mxu0 %v8696
        %8797 = vmatprep.subr.bf16.mxu0 0
        %8798 = vmatpush1.bf16.msra.mxu0 %v8695
        %8799 = vmatprep.subr.bf16.mxu0 0
        %8800 = vmatpush2.bf16.msra.mxu0 %v8710
        %8801 = vmatprep.subr.bf16.mxu0 0
        %8802 = vmatpush2.bf16.msra.mxu0 %v8709
        %8803 = vmatprep.subr.bf16.mxu0 0
        %8804 = vmatpush2.bf16.msra.mxu0 %v8708
        %8805 = vmatprep.subr.bf16.mxu0 0
        %8806 = vmatpush2.bf16.msra.mxu0 %v8707
        %8807 = vmatprep.subr.bf16.mxu0 0
        %8808 = vmatpush2.bf16.msra.mxu0 %v8706
        %8809 = vmatprep.subr.bf16.mxu0 0
        %8810 = vmatpush2.bf16.msra.mxu0 %v8705
        %8811 = vmatprep.subr.bf16.mxu0 0
        %8812 = vmatpush2.bf16.msra.mxu0 %v8704
        %8813 = vmatprep.subr.bf16.mxu0 0
        %8814 = vmatpush2.bf16.msra.mxu0 %v8703
        %8815 = vmatprep.mubr.bf16.mxu0 %v8485
        %8816 = vmatmul.mubr.bf16.gmra.mxu0 %v8484
        %v8817 = vpop.f32.mrf.mxu0
        %v8818 = vadd.f32 %v8778, %v8817
        %v8819 = vpop.f32.mrf.mxu0
        %v8820 = vpop.f32.mrf.mxu0
        %v8821 = vpop.f32.mrf.mxu0
        %8822 = vdwg.mxu0
        %8823 = vst [vmem:[%s433] sm:$0x1] %v8818
        %s8824 = sand.u32 %s230, 1
        %s8825 = scalar_lea.sflag [#allocation4], %s8824
        %s8826 = sand.u32 %s230, 1
        %s8827 = scalar_lea.vmem [#allocation16], %s8826
        // Predicated region
        $region89: #{tpu_custom_call.1} parent=55 // pred_check
          %p8828 = pneg %p240
        $region90: #{tpu_custom_call.1} parent=55 // pred_check_branch
          %8830 = sbr.rel (%p8828) target = $region92
        $region91: #{tpu_custom_call.1} parent=55 // pred_region
          %s8832 = ssub.s32 16, 16
          %8833 = vsyncadd %s8825, %s8832
          %s8834 = smul.addr %s28, 16
          %s8835 = scalar_lea.hbm %s9, %s8834
          %s8837 = sshll.u32 %s8827, 4
          %s8838 = int_to_ptr.vmem [resolvable:$true] %s8837
          %8840 = dma.vmem_to_hbm [thread:$0]  %s8838, 16, %s8835, %s8825
        $region92: #{tpu_custom_call.1} parent=55 // pred_fallthru
          _
      $region56: #{tpu_custom_call.1} parent=5 // pred_fallthru
        _
      %p8841 = scmp.le.s32.totalorder 2, %s23
      // Predicated region
      $region93: #{tpu_custom_call.1} parent=5 // pred_check
        %p8842 = pneg %p8841
      $region94: #{tpu_custom_call.1} parent=5 // pred_check_branch
        %8844 = sbr.rel (%p8842) target = $region96
      $region95: #{tpu_custom_call.1} parent=5 // pred_region
        %s8845 = ssub.s32 %s23, 2
        // Predicated region
        $region97: #{tpu_custom_call.1} parent=95 // pred_check
          %p8846 = pneg %p246
        $region98: #{tpu_custom_call.1} parent=95 // pred_check_branch
          %8848 = sbr.rel (%p8846) target = $region100
        $region99: #{tpu_custom_call.1} parent=95 // pred_region
          %s8849 = sand.u32 %s231, 1
          %s8850 = scalar_lea.sflag [#allocation4], %s8849
          %s8851 = sand.u32 %s231, 1
          %s8852 = scalar_lea.vmem [#allocation16], %s8851
          %8853 = dma.done %s8850, 16
        $region100: #{tpu_custom_call.1} parent=95 // pred_fallthru
          _
      $region96: #{tpu_custom_call.1} parent=5 // pred_fallthru
        _
    $region6: #{tpu_custom_call.1} parent=1 // loop_footer
      %s27 = sadd.s32 1, %s23
    $region7: #{tpu_custom_call.1} parent=1 // loop_footer_branch
      %22 = sbr.rel target = $region3
    $region8: #{tpu_custom_call.1} parent=1 // loop_exit
      _
    %8854 = vsyncpa [#allocation3], 1
    %s8855 = scalar_lea.sflag [#allocation3], 1
    %8856 = vsyncpa %s8855, 1
    %8857 = vsyncpa [#allocation6], 1
    %8858 = vsyncpa [#allocation9], 1
    %8859 = vsyncpa [#allocation12], 1
    %8860 = vsyncpa [#allocation15], 1
    %8861 = vsyncpa [#allocation4], 1
    %s8862 = scalar_lea.sflag [#allocation4], 1
    %8863 = vsyncpa %s8862, 1

</llo_original>
